<compile_context>
chip_gen: v5e
topology: v5e:2x2
jax: 0.10.0
libtpu: 0.0.40
codegen_flags: <defaults>
</compile_context>

<pallas_src>
import functools

import numpy as np
import jax
import jax.numpy as jnp
from jax import lax
from jax.experimental import pallas as pl
from jax.experimental.pallas import tpu as pltpu


def _gelu_exact(x):
    # torch nn.GELU() / F.gelu default (approximate='none'): 0.5*x*(1+erf(x/sqrt(2)))
    return 0.5 * x * (1.0 + lax.erf(x * 0.7071067811865476))


def down_kernel(
    x_ref,    # (4, N, Cin)       4 max-pool window slots, N = B_blk*HW (batch-flat)
    t_ref,    # (B_blk, emb_dim)
    mi_ref,   # (9, N, Cin)  f32  conv pad masks pre-broadcast to Cin lanes
    mo_ref,   # (9, N, Cout) f32  conv pad masks pre-broadcast to Cout lanes
    w1a_ref, g1a_ref, b1a_ref,    # DoubleConv1 conv1 (bf16) + GroupNorm (f32)
    w1b_ref, g1b_ref, b1b_ref,    # DoubleConv1 conv2 + GroupNorm
    w2a_ref, g2a_ref, b2a_ref,    # DoubleConv2 conv1 + GroupNorm
    w2b_ref, g2b_ref, b2b_ref,    # DoubleConv2 conv2 + GroupNorm
    we_ref, be_ref,               # emb Linear: W^T (emb_dim, Cout) bf16, bias f32
    out_ref,                      # (N, Cout)
    scr_ref,                      # (N, 9*Cout) bf16 scratch for the widest im2col
    *, H, W, B_blk,
):
    HW = H * W
    N = B_blk * HW
    Cout = out_ref.shape[-1]

    # ---- 2x2 max-pool: reduction over the 4 pre-gathered window slots ----
    p = jnp.maximum(
        jnp.maximum(x_ref[0].astype(jnp.float32), x_ref[1].astype(jnp.float32)),
        jnp.maximum(x_ref[2].astype(jnp.float32), x_ref[3].astype(jnp.float32)),
    )                                                     # (N, Cin)

    # Tap shifts of a padding=1 3x3 conv on the batch-flat row axis.  Rolls that
    # cross sample boundaries are exactly the taps the masks zero out.
    shifts = tuple((kh - 1) * W + (kw - 1) for kh in range(3) for kw in range(3))

    def conv3x3(a, w_ref, m_ref):
        # a: (N, C) f32; m_ref: (9, N, C) 0/1 masks; w_ref: (9*C, Co) bf16 with
        # rows ordered (kh, kw, c_in).  im2col concat kept in vregs (C is small).
        patches = []
        for k, shift in enumerate(shifts):
            if shift == 0:                                # centre tap: always valid
                patch = a
            else:
                patch = jnp.roll(a, -shift, axis=0) * m_ref[k]
            patches.append(patch.astype(jnp.bfloat16))
        im2col = jnp.concatenate(patches, axis=-1)        # (N, 9*C) bf16
        return jnp.dot(im2col, w_ref[...], preferred_element_type=jnp.float32)

    def conv3x3_staged(a, w_ref, m_ref):
        # Widest conv (C == Cout): stage the im2col through VMEM scratch so the
        # 9 patches + concat are never live in vregs simultaneously.
        c = a.shape[-1]
        for k, shift in enumerate(shifts):
            if shift == 0:
                patch = a
            else:
                patch = jnp.roll(a, -shift, axis=0) * m_ref[k]
            scr_ref[:, k * c:(k + 1) * c] = patch.astype(jnp.bfloat16)
        return jnp.dot(scr_ref[...], w_ref[...], preferred_element_type=jnp.float32)

    def groupnorm1(y, g_ref, b_ref, eps=1e-5):
        # GroupNorm(num_groups=1, C): biased per-sample stats over (HW, C).
        c = y.shape[-1]
        y3 = y.reshape(B_blk, HW, c)                      # leading-dim split: free
        n = float(HW * c)
        mu = jnp.sum(jnp.sum(y3, axis=-1, keepdims=True), axis=1, keepdims=True) / n
        d = y3 - mu
        var = jnp.sum(jnp.sum(d * d, axis=-1, keepdims=True), axis=1, keepdims=True) / n
        yn = (d * lax.rsqrt(var + eps)).reshape(N, c)
        return yn * g_ref[...] + b_ref[...]

    # ---- DoubleConv 1 (residual, Cin -> Cin) ----
    h = _gelu_exact(groupnorm1(conv3x3(p, w1a_ref, mi_ref), g1a_ref, b1a_ref))
    h = groupnorm1(conv3x3(h, w1b_ref, mi_ref), g1b_ref, b1b_ref)
    x1 = _gelu_exact(p + h)

    # ---- DoubleConv 2 (Cin -> Cout, no residual) ----
    h = _gelu_exact(groupnorm1(conv3x3(x1, w2a_ref, mi_ref), g2a_ref, b2a_ref))
    h = groupnorm1(conv3x3_staged(h, w2b_ref, mo_ref), g2b_ref, b2b_ref)  # (N, Cout)

    # ---- time embedding: Linear(SiLU(t)), batched over the B_blk samples ----
    t = t_ref[...].astype(jnp.float32)                    # (B_blk, emb_dim)
    e = jnp.exp(-jnp.abs(t))                              # stable sigmoid
    sig = jnp.where(t >= 0, 1.0, e) / (1.0 + e)
    silu = (t * sig).astype(jnp.bfloat16)
    emb = jnp.dot(silu, we_ref[...], preferred_element_type=jnp.float32) + be_ref[...]

    y = h.reshape(B_blk, HW, Cout) + emb[:, None, :]
    out_ref[...] = y.reshape(N, Cout).astype(out_ref.dtype)


def _conv_pad_masks(H, W, b_blk, widths):
    """Per-tap validity masks of a padding=1 3x3 conv, tiled to b_blk*HW rows and
    pre-broadcast (in the wrapper, once) to the given channel widths."""
    hh, ww = np.meshgrid(np.arange(H), np.arange(W), indexing="ij")
    hh = hh.reshape(-1)
    ww = ww.reshape(-1)
    ms = []
    for kh in range(3):
        for kw in range(3):
            dh, dw = kh - 1, kw - 1
            m = (hh + dh >= 0) & (hh + dh < H) & (ww + dw >= 0) & (ww + dw < W)
            ms.append(m.astype(np.float32))
    base = np.tile(np.stack(ms, axis=0), (1, b_blk))          # (9, b_blk*HW)
    return [jnp.asarray(np.repeat(base[:, :, None], c, axis=2)) for c in widths]


def down(x, t, params, *, block_batch=None):
    """x: (B, Cin, Hs, Ws) NCHW, t: (B, emb_dim). Returns (B, Cout, Hs//2, Ws//2)."""
    B, Cin, Hs, Ws = x.shape
    H, W = Hs // 2, Ws // 2
    HW = H * W
    emb_dim = t.shape[-1]
    Cout = params[12].shape[-1]                 # emb Linear W^T: (emb_dim, Cout)

    # Batch block: aim for M = block_batch*HW ~ 256 matmul rows per grid step
    # (full v6e/v7x MXU height) while dividing B exactly.
    if block_batch is None:
        block_batch = max(1, min(B, max(1, 256 // HW)))
        while B % block_batch:
            block_batch -= 1
    nb = B // block_batch
    N = block_batch * HW

    # Pre-gather the four 2x2 max-pool window slots (pure layout plumbing):
    # NCHW -> (nb, 4, block_batch*HW, Cin), token-major within each batch block.
    # TODO(synk): at large H,W fold this gather into the kernel (strided loads) to
    # avoid the extra HBM round-trip of x; negligible at these feature-map sizes.
    xr = x.reshape(nb, block_batch, Cin, H, 2, W, 2)
    x_win = jnp.transpose(xr, (0, 4, 6, 1, 3, 5, 2)).reshape(nb, 4, N, Cin)
    t3 = t.reshape(nb, block_batch, emb_dim)

    masks_in, masks_out = _conv_pad_masks(H, W, block_batch, (Cin, Cout))

    # bf16 MXU operands (f32 accumulation in-kernel); GroupNorm affine + emb bias f32.
    conv_w_idx = (0, 3, 6, 9, 12)
    params_cast = [p.astype(jnp.bfloat16) if i in conv_w_idx else p
                   for i, p in enumerate(params)]

    def full_spec(a):
        nd = a.ndim

        def idx(i):
            return (0,) * nd

        return pl.BlockSpec(a.shape, idx)

    in_specs = [
        pl.BlockSpec((None, 4, N, Cin), lambda i: (i, 0, 0, 0)),          # x block
        pl.BlockSpec((None, block_batch, emb_dim), lambda i: (i, 0, 0)),  # t block
        full_spec(masks_in),
        full_spec(masks_out),
    ] + [full_spec(p) for p in params_cast]

    out = pl.pallas_call(
        functools.partial(down_kernel, H=H, W=W, B_blk=block_batch),
        out_shape=jax.ShapeDtypeStruct((nb, N, Cout), x.dtype),
        grid=(nb,),
        in_specs=in_specs,
        out_specs=pl.BlockSpec((None, N, Cout), lambda i: (i, 0, 0)),
        scratch_shapes=[pltpu.VMEM((N, 9 * Cout), jnp.bfloat16)],
        compiler_params=pltpu.CompilerParams(dimension_semantics=("parallel",)),
    )(x_win, t3, masks_in, masks_out, *params_cast)

    return jnp.transpose(out.reshape(B, H, W, Cout), (0, 3, 1, 2))


def init_params(key, cin, cout, emb_dim):
    """Deterministic synthetic parameters matching Down(cin, cout, emb_dim).

    Conv weights stored pre-flattened: PyTorch (Cout, Cin, 3, 3)
    -> permute (2, 3, 1, 0) -> reshape (9*Cin, Cout).  GroupNorm affine is (1, C).
    The emb Linear weight is pre-transposed to (emb_dim, Cout); its bias is (1, Cout).
    """
    ks = jax.random.split(key, 6)
    std = 0.05

    def w(k, shape):
        return (std * jax.random.normal(k, shape)).astype(jnp.float32)

    def gn(c):
        return [jnp.ones((1, c), jnp.float32), jnp.zeros((1, c), jnp.float32)]

    return (
        [w(ks[0], (9 * cin, cin))] + gn(cin)        # DoubleConv1 conv1, GN
        + [w(ks[1], (9 * cin, cin))] + gn(cin)      # DoubleConv1 conv2, GN
        + [w(ks[2], (9 * cin, cout))] + gn(cout)    # DoubleConv2 conv1, GN
        + [w(ks[3], (9 * cout, cout))] + gn(cout)   # DoubleConv2 conv2, GN
        + [w(ks[4], (emb_dim, cout)), w(ks[5], (1, cout))]   # emb Linear W^T, b
    )


if __name__ == "__main__":
    B, Cin, Cout, size, emb_dim = 2, 32, 64, 16, 256

    key = jax.random.PRNGKey(0)
    kx, kt, kp = jax.random.split(key, 3)
    x = jax.random.normal(kx, (B, Cin, size, size), dtype=jnp.float32)
    t = jax.random.normal(kt, (B, emb_dim), dtype=jnp.float32)
    params = init_params(kp, Cin, Cout, emb_dim)

    out = jax.block_until_ready(down(x, t, params))
    assert out.shape == (B, Cout, size // 2, size // 2)
    print("KERNEL_OK")
</pallas_src>

<mosaic_0001>
module attributes {stable_mosaic.version = 11 : i64} {
  func.func @down_kernel(%arg0: i32, %arg1: memref<1x4x128x32xf32, #tpu.memory_space<vmem>>, %arg2: memref<1x2x256xf32, #tpu.memory_space<vmem>>, %arg3: memref<9x128x32xf32, #tpu.memory_space<vmem>>, %arg4: memref<9x128x64xf32, #tpu.memory_space<vmem>>, %arg5: memref<288x32xbf16, #tpu.memory_space<vmem>>, %arg6: memref<1x32xf32, #tpu.memory_space<vmem>>, %arg7: memref<1x32xf32, #tpu.memory_space<vmem>>, %arg8: memref<288x32xbf16, #tpu.memory_space<vmem>>, %arg9: memref<1x32xf32, #tpu.memory_space<vmem>>, %arg10: memref<1x32xf32, #tpu.memory_space<vmem>>, %arg11: memref<288x64xbf16, #tpu.memory_space<vmem>>, %arg12: memref<1x64xf32, #tpu.memory_space<vmem>>, %arg13: memref<1x64xf32, #tpu.memory_space<vmem>>, %arg14: memref<576x64xbf16, #tpu.memory_space<vmem>>, %arg15: memref<1x64xf32, #tpu.memory_space<vmem>>, %arg16: memref<1x64xf32, #tpu.memory_space<vmem>>, %arg17: memref<256x64xbf16, #tpu.memory_space<vmem>>, %arg18: memref<1x64xf32, #tpu.memory_space<vmem>>, %arg19: memref<1x128x64xf32, #tpu.memory_space<vmem>>, %arg20: memref<128x576xbf16, #tpu.memory_space<vmem>>) attributes {dimension_semantics = [#tpu.dimension_semantics<parallel>], iteration_bounds = array<i64: 1>, scalar_prefetch = 0 : i64, scratch_operands = 1 : i64, tpu.core_type = #tpu.core_type<tc>, window_params = [{transform_indices = @transform_0, window_bounds = array<i64: 1, 4, 128, 32>}, {transform_indices = @transform_1, window_bounds = array<i64: 1, 2, 256>}, {pipeline_mode = #tpu.pipeline_mode<synchronous>, transform_indices = @transform_2, window_bounds = array<i64: 9, 128, 32>}, {pipeline_mode = #tpu.pipeline_mode<synchronous>, transform_indices = @transform_3, window_bounds = array<i64: 9, 128, 64>}, {pipeline_mode = #tpu.pipeline_mode<synchronous>, transform_indices = @transform_4, window_bounds = array<i64: 288, 32>}, {pipeline_mode = #tpu.pipeline_mode<synchronous>, transform_indices = @transform_5, window_bounds = array<i64: 1, 32>}, {pipeline_mode = #tpu.pipeline_mode<synchronous>, transform_indices = @transform_6, window_bounds = array<i64: 1, 32>}, {pipeline_mode = #tpu.pipeline_mode<synchronous>, transform_indices = @transform_7, window_bounds = array<i64: 288, 32>}, {pipeline_mode = #tpu.pipeline_mode<synchronous>, transform_indices = @transform_8, window_bounds = array<i64: 1, 32>}, {pipeline_mode = #tpu.pipeline_mode<synchronous>, transform_indices = @transform_9, window_bounds = array<i64: 1, 32>}, {pipeline_mode = #tpu.pipeline_mode<synchronous>, transform_indices = @transform_10, window_bounds = array<i64: 288, 64>}, {pipeline_mode = #tpu.pipeline_mode<synchronous>, transform_indices = @transform_11, window_bounds = array<i64: 1, 64>}, {pipeline_mode = #tpu.pipeline_mode<synchronous>, transform_indices = @transform_12, window_bounds = array<i64: 1, 64>}, {pipeline_mode = #tpu.pipeline_mode<synchronous>, transform_indices = @transform_13, window_bounds = array<i64: 576, 64>}, {pipeline_mode = #tpu.pipeline_mode<synchronous>, transform_indices = @transform_14, window_bounds = array<i64: 1, 64>}, {pipeline_mode = #tpu.pipeline_mode<synchronous>, transform_indices = @transform_15, window_bounds = array<i64: 1, 64>}, {pipeline_mode = #tpu.pipeline_mode<synchronous>, transform_indices = @transform_16, window_bounds = array<i64: 256, 64>}, {pipeline_mode = #tpu.pipeline_mode<synchronous>, transform_indices = @transform_17, window_bounds = array<i64: 1, 64>}, {transform_indices = @transform_18, window_bounds = array<i64: 1, 128, 64>}]} {
    %c0 = arith.constant 0 : index
    %c0_0 = arith.constant 0 : index
    %c0_1 = arith.constant 0 : index
    %c0_2 = arith.constant 0 : index
    %0 = vector.load %arg1[%c0, %c0_0, %c0_1, %c0_2] : memref<1x4x128x32xf32, #tpu.memory_space<vmem>>, vector<1x1x128x32xf32>
    %1 = vector.shape_cast %0 : vector<1x1x128x32xf32> to vector<128x32xf32>
    %c0_3 = arith.constant 0 : index
    %c1 = arith.constant 1 : index
    %c0_4 = arith.constant 0 : index
    %c0_5 = arith.constant 0 : index
    %2 = vector.load %arg1[%c0_3, %c1, %c0_4, %c0_5] : memref<1x4x128x32xf32, #tpu.memory_space<vmem>>, vector<1x1x128x32xf32>
    %3 = vector.shape_cast %2 : vector<1x1x128x32xf32> to vector<128x32xf32>
    %4 = arith.maximumf %1, %3 : vector<128x32xf32>
    %c0_6 = arith.constant 0 : index
    %c2 = arith.constant 2 : index
    %c0_7 = arith.constant 0 : index
    %c0_8 = arith.constant 0 : index
    %5 = vector.load %arg1[%c0_6, %c2, %c0_7, %c0_8] : memref<1x4x128x32xf32, #tpu.memory_space<vmem>>, vector<1x1x128x32xf32>
    %6 = vector.shape_cast %5 : vector<1x1x128x32xf32> to vector<128x32xf32>
    %c0_9 = arith.constant 0 : index
    %c3 = arith.constant 3 : index
    %c0_10 = arith.constant 0 : index
    %c0_11 = arith.constant 0 : index
    %7 = vector.load %arg1[%c0_9, %c3, %c0_10, %c0_11] : memref<1x4x128x32xf32, #tpu.memory_space<vmem>>, vector<1x1x128x32xf32>
    %8 = vector.shape_cast %7 : vector<1x1x128x32xf32> to vector<128x32xf32>
    %9 = arith.maximumf %6, %8 : vector<128x32xf32>
    %10 = arith.maximumf %4, %9 : vector<128x32xf32>
    %11 = vector.extract_strided_slice %10 {offsets = [119, 0], sizes = [9, 32], strides = [1, 1]} : vector<128x32xf32> to vector<9x32xf32>
    %12 = vector.extract_strided_slice %10 {offsets = [0, 0], sizes = [119, 32], strides = [1, 1]} : vector<128x32xf32> to vector<119x32xf32>
    %13 = tpu.concatenate %11, %12 in 0 : vector<9x32xf32>, vector<119x32xf32> -> vector<128x32xf32>
    %c0_12 = arith.constant 0 : index
    %c0_13 = arith.constant 0 : index
    %c0_14 = arith.constant 0 : index
    %14 = vector.load %arg3[%c0_12, %c0_13, %c0_14] : memref<9x128x32xf32, #tpu.memory_space<vmem>>, vector<1x128x32xf32>
    %15 = vector.shape_cast %14 : vector<1x128x32xf32> to vector<128x32xf32>
    %16 = arith.mulf %13, %15 : vector<128x32xf32>
    %17 = arith.truncf %16 : vector<128x32xf32> to vector<128x32xbf16>
    %18 = vector.extract_strided_slice %10 {offsets = [120, 0], sizes = [8, 32], strides = [1, 1]} : vector<128x32xf32> to vector<8x32xf32>
    %19 = vector.extract_strided_slice %10 {offsets = [0, 0], sizes = [120, 32], strides = [1, 1]} : vector<128x32xf32> to vector<120x32xf32>
    %20 = tpu.concatenate %18, %19 in 0 : vector<8x32xf32>, vector<120x32xf32> -> vector<128x32xf32>
    %c1_15 = arith.constant 1 : index
    %c0_16 = arith.constant 0 : index
    %c0_17 = arith.constant 0 : index
    %21 = vector.load %arg3[%c1_15, %c0_16, %c0_17] : memref<9x128x32xf32, #tpu.memory_space<vmem>>, vector<1x128x32xf32>
    %22 = vector.shape_cast %21 : vector<1x128x32xf32> to vector<128x32xf32>
    %23 = arith.mulf %20, %22 : vector<128x32xf32>
    %24 = arith.truncf %23 : vector<128x32xf32> to vector<128x32xbf16>
    %25 = vector.extract_strided_slice %10 {offsets = [121, 0], sizes = [7, 32], strides = [1, 1]} : vector<128x32xf32> to vector<7x32xf32>
    %26 = vector.extract_strided_slice %10 {offsets = [0, 0], sizes = [121, 32], strides = [1, 1]} : vector<128x32xf32> to vector<121x32xf32>
    %27 = tpu.concatenate %25, %26 in 0 : vector<7x32xf32>, vector<121x32xf32> -> vector<128x32xf32>
    %c2_18 = arith.constant 2 : index
    %c0_19 = arith.constant 0 : index
    %c0_20 = arith.constant 0 : index
    %28 = vector.load %arg3[%c2_18, %c0_19, %c0_20] : memref<9x128x32xf32, #tpu.memory_space<vmem>>, vector<1x128x32xf32>
    %29 = vector.shape_cast %28 : vector<1x128x32xf32> to vector<128x32xf32>
    %30 = arith.mulf %27, %29 : vector<128x32xf32>
    %31 = arith.truncf %30 : vector<128x32xf32> to vector<128x32xbf16>
    %32 = vector.extract_strided_slice %10 {offsets = [127, 0], sizes = [1, 32], strides = [1, 1]} : vector<128x32xf32> to vector<1x32xf32>
    %33 = vector.extract_strided_slice %10 {offsets = [0, 0], sizes = [127, 32], strides = [1, 1]} : vector<128x32xf32> to vector<127x32xf32>
    %34 = tpu.concatenate %32, %33 in 0 : vector<1x32xf32>, vector<127x32xf32> -> vector<128x32xf32>
    %c3_21 = arith.constant 3 : index
    %c0_22 = arith.constant 0 : index
    %c0_23 = arith.constant 0 : index
    %35 = vector.load %arg3[%c3_21, %c0_22, %c0_23] : memref<9x128x32xf32, #tpu.memory_space<vmem>>, vector<1x128x32xf32>
    %36 = vector.shape_cast %35 : vector<1x128x32xf32> to vector<128x32xf32>
    %37 = arith.mulf %34, %36 : vector<128x32xf32>
    %38 = arith.truncf %37 : vector<128x32xf32> to vector<128x32xbf16>
    %39 = arith.truncf %10 : vector<128x32xf32> to vector<128x32xbf16>
    %40 = vector.extract_strided_slice %10 {offsets = [1, 0], sizes = [127, 32], strides = [1, 1]} : vector<128x32xf32> to vector<127x32xf32>
    %41 = vector.extract_strided_slice %10 {offsets = [0, 0], sizes = [1, 32], strides = [1, 1]} : vector<128x32xf32> to vector<1x32xf32>
    %42 = tpu.concatenate %40, %41 in 0 : vector<127x32xf32>, vector<1x32xf32> -> vector<128x32xf32>
    %c5 = arith.constant 5 : index
    %c0_24 = arith.constant 0 : index
    %c0_25 = arith.constant 0 : index
    %43 = vector.load %arg3[%c5, %c0_24, %c0_25] : memref<9x128x32xf32, #tpu.memory_space<vmem>>, vector<1x128x32xf32>
    %44 = vector.shape_cast %43 : vector<1x128x32xf32> to vector<128x32xf32>
    %45 = arith.mulf %42, %44 : vector<128x32xf32>
    %46 = arith.truncf %45 : vector<128x32xf32> to vector<128x32xbf16>
    %47 = vector.extract_strided_slice %10 {offsets = [7, 0], sizes = [121, 32], strides = [1, 1]} : vector<128x32xf32> to vector<121x32xf32>
    %48 = vector.extract_strided_slice %10 {offsets = [0, 0], sizes = [7, 32], strides = [1, 1]} : vector<128x32xf32> to vector<7x32xf32>
    %49 = tpu.concatenate %47, %48 in 0 : vector<121x32xf32>, vector<7x32xf32> -> vector<128x32xf32>
    %c6 = arith.constant 6 : index
    %c0_26 = arith.constant 0 : index
    %c0_27 = arith.constant 0 : index
    %50 = vector.load %arg3[%c6, %c0_26, %c0_27] : memref<9x128x32xf32, #tpu.memory_space<vmem>>, vector<1x128x32xf32>
    %51 = vector.shape_cast %50 : vector<1x128x32xf32> to vector<128x32xf32>
    %52 = arith.mulf %49, %51 : vector<128x32xf32>
    %53 = arith.truncf %52 : vector<128x32xf32> to vector<128x32xbf16>
    %54 = vector.extract_strided_slice %10 {offsets = [8, 0], sizes = [120, 32], strides = [1, 1]} : vector<128x32xf32> to vector<120x32xf32>
    %55 = vector.extract_strided_slice %10 {offsets = [0, 0], sizes = [8, 32], strides = [1, 1]} : vector<128x32xf32> to vector<8x32xf32>
    %56 = tpu.concatenate %54, %55 in 0 : vector<120x32xf32>, vector<8x32xf32> -> vector<128x32xf32>
    %c7 = arith.constant 7 : index
    %c0_28 = arith.constant 0 : index
    %c0_29 = arith.constant 0 : index
    %57 = vector.load %arg3[%c7, %c0_28, %c0_29] : memref<9x128x32xf32, #tpu.memory_space<vmem>>, vector<1x128x32xf32>
    %58 = vector.shape_cast %57 : vector<1x128x32xf32> to vector<128x32xf32>
    %59 = arith.mulf %56, %58 : vector<128x32xf32>
    %60 = arith.truncf %59 : vector<128x32xf32> to vector<128x32xbf16>
    %61 = vector.extract_strided_slice %10 {offsets = [9, 0], sizes = [119, 32], strides = [1, 1]} : vector<128x32xf32> to vector<119x32xf32>
    %62 = vector.extract_strided_slice %10 {offsets = [0, 0], sizes = [9, 32], strides = [1, 1]} : vector<128x32xf32> to vector<9x32xf32>
    %63 = tpu.concatenate %61, %62 in 0 : vector<119x32xf32>, vector<9x32xf32> -> vector<128x32xf32>
    %c8 = arith.constant 8 : index
    %c0_30 = arith.constant 0 : index
    %c0_31 = arith.constant 0 : index
    %64 = vector.load %arg3[%c8, %c0_30, %c0_31] : memref<9x128x32xf32, #tpu.memory_space<vmem>>, vector<1x128x32xf32>
    %65 = vector.shape_cast %64 : vector<1x128x32xf32> to vector<128x32xf32>
    %66 = arith.mulf %63, %65 : vector<128x32xf32>
    %67 = arith.truncf %66 : vector<128x32xf32> to vector<128x32xbf16>
    %68 = tpu.concatenate %17, %24, %31, %38, %39, %46, %53, %60, %67 in 1 : vector<128x32xbf16>, vector<128x32xbf16>, vector<128x32xbf16>, vector<128x32xbf16>, vector<128x32xbf16>, vector<128x32xbf16>, vector<128x32xbf16>, vector<128x32xbf16>, vector<128x32xbf16> -> vector<128x288xbf16>
    %c0_32 = arith.constant 0 : index
    %c0_33 = arith.constant 0 : index
    %69 = vector.load %arg5[%c0_32, %c0_33] : memref<288x32xbf16, #tpu.memory_space<vmem>>, vector<288x32xbf16>
    %cst = arith.constant dense<0.000000e+00> : vector<128x32xf32>
    %70 = tpu.matmul %68, %69, %cst {dimension_numbers = #tpu.dot_dimension_numbers<[1], [0], [0], [1], [0, 0, 1, 1], [], []>} : vector<128x288xbf16>, vector<288x32xbf16>, vector<128x32xf32> -> vector<128x32xf32>
    %71 = vector.shape_cast %70 : vector<128x32xf32> to vector<2x64x32xf32>
    %cst_34 = arith.constant dense<0.000000e+00> : vector<2x64xf32>
    %72 = vector.multi_reduction <add>, %71, %cst_34 [2] : vector<2x64x32xf32> to vector<2x64xf32>
    %73 = vector.shape_cast %72 : vector<2x64xf32> to vector<2x64x1xf32>
    %cst_35 = arith.constant dense<0.000000e+00> : vector<2x1xf32>
    %74 = vector.multi_reduction <add>, %73, %cst_35 [1] : vector<2x64x1xf32> to vector<2x1xf32>
    %75 = vector.shape_cast %74 : vector<2x1xf32> to vector<2x1x1xf32>
    %cst_36 = arith.constant 2.048000e+03 : f32
    %76 = vector.broadcast %cst_36 : f32 to vector<2x1x1xf32>
    %77 = arith.divf %75, %76 : vector<2x1x1xf32>
    %78 = vector.broadcast %77 : vector<2x1x1xf32> to vector<2x64x32xf32>
    %79 = arith.subf %71, %78 : vector<2x64x32xf32>
    %80 = arith.mulf %79, %79 : vector<2x64x32xf32>
    %cst_37 = arith.constant dense<0.000000e+00> : vector<2x64xf32>
    %81 = vector.multi_reduction <add>, %80, %cst_37 [2] : vector<2x64x32xf32> to vector<2x64xf32>
    %82 = vector.shape_cast %81 : vector<2x64xf32> to vector<2x64x1xf32>
    %cst_38 = arith.constant dense<0.000000e+00> : vector<2x1xf32>
    %83 = vector.multi_reduction <add>, %82, %cst_38 [1] : vector<2x64x1xf32> to vector<2x1xf32>
    %84 = vector.shape_cast %83 : vector<2x1xf32> to vector<2x1x1xf32>
    %cst_39 = arith.constant 2.048000e+03 : f32
    %85 = vector.broadcast %cst_39 : f32 to vector<2x1x1xf32>
    %86 = arith.divf %84, %85 : vector<2x1x1xf32>
    %cst_40 = arith.constant 9.99999974E-6 : f32
    %87 = vector.broadcast %cst_40 : f32 to vector<2x1x1xf32>
    %88 = arith.addf %86, %87 : vector<2x1x1xf32>
    %89 = math.rsqrt %88 : vector<2x1x1xf32>
    %90 = vector.broadcast %89 : vector<2x1x1xf32> to vector<2x64x32xf32>
    %91 = arith.mulf %79, %90 : vector<2x64x32xf32>
    %92 = vector.shape_cast %91 : vector<2x64x32xf32> to vector<128x32xf32>
    %c0_41 = arith.constant 0 : index
    %c0_42 = arith.constant 0 : index
    %93 = vector.load %arg6[%c0_41, %c0_42] : memref<1x32xf32, #tpu.memory_space<vmem>>, vector<1x32xf32>
    %94 = vector.broadcast %93 : vector<1x32xf32> to vector<128x32xf32>
    %95 = arith.mulf %92, %94 : vector<128x32xf32>
    %c0_43 = arith.constant 0 : index
    %c0_44 = arith.constant 0 : index
    %96 = vector.load %arg7[%c0_43, %c0_44] : memref<1x32xf32, #tpu.memory_space<vmem>>, vector<1x32xf32>
    %97 = vector.broadcast %96 : vector<1x32xf32> to vector<128x32xf32>
    %98 = arith.addf %95, %97 : vector<128x32xf32>
    %cst_45 = arith.constant 5.000000e-01 : f32
    %99 = vector.broadcast %cst_45 : f32 to vector<128x32xf32>
    %100 = arith.mulf %99, %98 : vector<128x32xf32>
    %cst_46 = arith.constant 0.707106769 : f32
    %101 = vector.broadcast %cst_46 : f32 to vector<128x32xf32>
    %102 = arith.mulf %98, %101 : vector<128x32xf32>
    %103 = math.erf %102 : vector<128x32xf32>
    %cst_47 = arith.constant 1.000000e+00 : f32
    %104 = vector.broadcast %cst_47 : f32 to vector<128x32xf32>
    %105 = arith.addf %104, %103 : vector<128x32xf32>
    %106 = arith.mulf %100, %105 : vector<128x32xf32>
    %107 = vector.extract_strided_slice %106 {offsets = [119, 0], sizes = [9, 32], strides = [1, 1]} : vector<128x32xf32> to vector<9x32xf32>
    %108 = vector.extract_strided_slice %106 {offsets = [0, 0], sizes = [119, 32], strides = [1, 1]} : vector<128x32xf32> to vector<119x32xf32>
    %109 = tpu.concatenate %107, %108 in 0 : vector<9x32xf32>, vector<119x32xf32> -> vector<128x32xf32>
    %c0_48 = arith.constant 0 : index
    %c0_49 = arith.constant 0 : index
    %c0_50 = arith.constant 0 : index
    %110 = vector.load %arg3[%c0_48, %c0_49, %c0_50] : memref<9x128x32xf32, #tpu.memory_space<vmem>>, vector<1x128x32xf32>
    %111 = vector.shape_cast %110 : vector<1x128x32xf32> to vector<128x32xf32>
    %112 = arith.mulf %109, %111 : vector<128x32xf32>
    %113 = arith.truncf %112 : vector<128x32xf32> to vector<128x32xbf16>
    %114 = vector.extract_strided_slice %106 {offsets = [120, 0], sizes = [8, 32], strides = [1, 1]} : vector<128x32xf32> to vector<8x32xf32>
    %115 = vector.extract_strided_slice %106 {offsets = [0, 0], sizes = [120, 32], strides = [1, 1]} : vector<128x32xf32> to vector<120x32xf32>
    %116 = tpu.concatenate %114, %115 in 0 : vector<8x32xf32>, vector<120x32xf32> -> vector<128x32xf32>
    %c1_51 = arith.constant 1 : index
    %c0_52 = arith.constant 0 : index
    %c0_53 = arith.constant 0 : index
    %117 = vector.load %arg3[%c1_51, %c0_52, %c0_53] : memref<9x128x32xf32, #tpu.memory_space<vmem>>, vector<1x128x32xf32>
    %118 = vector.shape_cast %117 : vector<1x128x32xf32> to vector<128x32xf32>
    %119 = arith.mulf %116, %118 : vector<128x32xf32>
    %120 = arith.truncf %119 : vector<128x32xf32> to vector<128x32xbf16>
    %121 = vector.extract_strided_slice %106 {offsets = [121, 0], sizes = [7, 32], strides = [1, 1]} : vector<128x32xf32> to vector<7x32xf32>
    %122 = vector.extract_strided_slice %106 {offsets = [0, 0], sizes = [121, 32], strides = [1, 1]} : vector<128x32xf32> to vector<121x32xf32>
    %123 = tpu.concatenate %121, %122 in 0 : vector<7x32xf32>, vector<121x32xf32> -> vector<128x32xf32>
    %c2_54 = arith.constant 2 : index
    %c0_55 = arith.constant 0 : index
    %c0_56 = arith.constant 0 : index
    %124 = vector.load %arg3[%c2_54, %c0_55, %c0_56] : memref<9x128x32xf32, #tpu.memory_space<vmem>>, vector<1x128x32xf32>
    %125 = vector.shape_cast %124 : vector<1x128x32xf32> to vector<128x32xf32>
    %126 = arith.mulf %123, %125 : vector<128x32xf32>
    %127 = arith.truncf %126 : vector<128x32xf32> to vector<128x32xbf16>
    %128 = vector.extract_strided_slice %106 {offsets = [127, 0], sizes = [1, 32], strides = [1, 1]} : vector<128x32xf32> to vector<1x32xf32>
    %129 = vector.extract_strided_slice %106 {offsets = [0, 0], sizes = [127, 32], strides = [1, 1]} : vector<128x32xf32> to vector<127x32xf32>
    %130 = tpu.concatenate %128, %129 in 0 : vector<1x32xf32>, vector<127x32xf32> -> vector<128x32xf32>
    %c3_57 = arith.constant 3 : index
    %c0_58 = arith.constant 0 : index
    %c0_59 = arith.constant 0 : index
    %131 = vector.load %arg3[%c3_57, %c0_58, %c0_59] : memref<9x128x32xf32, #tpu.memory_space<vmem>>, vector<1x128x32xf32>
    %132 = vector.shape_cast %131 : vector<1x128x32xf32> to vector<128x32xf32>
    %133 = arith.mulf %130, %132 : vector<128x32xf32>
    %134 = arith.truncf %133 : vector<128x32xf32> to vector<128x32xbf16>
    %135 = arith.truncf %106 : vector<128x32xf32> to vector<128x32xbf16>
    %136 = vector.extract_strided_slice %106 {offsets = [1, 0], sizes = [127, 32], strides = [1, 1]} : vector<128x32xf32> to vector<127x32xf32>
    %137 = vector.extract_strided_slice %106 {offsets = [0, 0], sizes = [1, 32], strides = [1, 1]} : vector<128x32xf32> to vector<1x32xf32>
    %138 = tpu.concatenate %136, %137 in 0 : vector<127x32xf32>, vector<1x32xf32> -> vector<128x32xf32>
    %c5_60 = arith.constant 5 : index
    %c0_61 = arith.constant 0 : index
    %c0_62 = arith.constant 0 : index
    %139 = vector.load %arg3[%c5_60, %c0_61, %c0_62] : memref<9x128x32xf32, #tpu.memory_space<vmem>>, vector<1x128x32xf32>
    %140 = vector.shape_cast %139 : vector<1x128x32xf32> to vector<128x32xf32>
    %141 = arith.mulf %138, %140 : vector<128x32xf32>
    %142 = arith.truncf %141 : vector<128x32xf32> to vector<128x32xbf16>
    %143 = vector.extract_strided_slice %106 {offsets = [7, 0], sizes = [121, 32], strides = [1, 1]} : vector<128x32xf32> to vector<121x32xf32>
    %144 = vector.extract_strided_slice %106 {offsets = [0, 0], sizes = [7, 32], strides = [1, 1]} : vector<128x32xf32> to vector<7x32xf32>
    %145 = tpu.concatenate %143, %144 in 0 : vector<121x32xf32>, vector<7x32xf32> -> vector<128x32xf32>
    %c6_63 = arith.constant 6 : index
    %c0_64 = arith.constant 0 : index
    %c0_65 = arith.constant 0 : index
    %146 = vector.load %arg3[%c6_63, %c0_64, %c0_65] : memref<9x128x32xf32, #tpu.memory_space<vmem>>, vector<1x128x32xf32>
    %147 = vector.shape_cast %146 : vector<1x128x32xf32> to vector<128x32xf32>
    %148 = arith.mulf %145, %147 : vector<128x32xf32>
    %149 = arith.truncf %148 : vector<128x32xf32> to vector<128x32xbf16>
    %150 = vector.extract_strided_slice %106 {offsets = [8, 0], sizes = [120, 32], strides = [1, 1]} : vector<128x32xf32> to vector<120x32xf32>
    %151 = vector.extract_strided_slice %106 {offsets = [0, 0], sizes = [8, 32], strides = [1, 1]} : vector<128x32xf32> to vector<8x32xf32>
    %152 = tpu.concatenate %150, %151 in 0 : vector<120x32xf32>, vector<8x32xf32> -> vector<128x32xf32>
    %c7_66 = arith.constant 7 : index
    %c0_67 = arith.constant 0 : index
    %c0_68 = arith.constant 0 : index
    %153 = vector.load %arg3[%c7_66, %c0_67, %c0_68] : memref<9x128x32xf32, #tpu.memory_space<vmem>>, vector<1x128x32xf32>
    %154 = vector.shape_cast %153 : vector<1x128x32xf32> to vector<128x32xf32>
    %155 = arith.mulf %152, %154 : vector<128x32xf32>
    %156 = arith.truncf %155 : vector<128x32xf32> to vector<128x32xbf16>
    %157 = vector.extract_strided_slice %106 {offsets = [9, 0], sizes = [119, 32], strides = [1, 1]} : vector<128x32xf32> to vector<119x32xf32>
    %158 = vector.extract_strided_slice %106 {offsets = [0, 0], sizes = [9, 32], strides = [1, 1]} : vector<128x32xf32> to vector<9x32xf32>
    %159 = tpu.concatenate %157, %158 in 0 : vector<119x32xf32>, vector<9x32xf32> -> vector<128x32xf32>
    %c8_69 = arith.constant 8 : index
    %c0_70 = arith.constant 0 : index
    %c0_71 = arith.constant 0 : index
    %160 = vector.load %arg3[%c8_69, %c0_70, %c0_71] : memref<9x128x32xf32, #tpu.memory_space<vmem>>, vector<1x128x32xf32>
    %161 = vector.shape_cast %160 : vector<1x128x32xf32> to vector<128x32xf32>
    %162 = arith.mulf %159, %161 : vector<128x32xf32>
    %163 = arith.truncf %162 : vector<128x32xf32> to vector<128x32xbf16>
    %164 = tpu.concatenate %113, %120, %127, %134, %135, %142, %149, %156, %163 in 1 : vector<128x32xbf16>, vector<128x32xbf16>, vector<128x32xbf16>, vector<128x32xbf16>, vector<128x32xbf16>, vector<128x32xbf16>, vector<128x32xbf16>, vector<128x32xbf16>, vector<128x32xbf16> -> vector<128x288xbf16>
    %c0_72 = arith.constant 0 : index
    %c0_73 = arith.constant 0 : index
    %165 = vector.load %arg8[%c0_72, %c0_73] : memref<288x32xbf16, #tpu.memory_space<vmem>>, vector<288x32xbf16>
    %cst_74 = arith.constant dense<0.000000e+00> : vector<128x32xf32>
    %166 = tpu.matmul %164, %165, %cst_74 {dimension_numbers = #tpu.dot_dimension_numbers<[1], [0], [0], [1], [0, 0, 1, 1], [], []>} : vector<128x288xbf16>, vector<288x32xbf16>, vector<128x32xf32> -> vector<128x32xf32>
    %167 = vector.shape_cast %166 : vector<128x32xf32> to vector<2x64x32xf32>
    %cst_75 = arith.constant dense<0.000000e+00> : vector<2x64xf32>
    %168 = vector.multi_reduction <add>, %167, %cst_75 [2] : vector<2x64x32xf32> to vector<2x64xf32>
    %169 = vector.shape_cast %168 : vector<2x64xf32> to vector<2x64x1xf32>
    %cst_76 = arith.constant dense<0.000000e+00> : vector<2x1xf32>
    %170 = vector.multi_reduction <add>, %169, %cst_76 [1] : vector<2x64x1xf32> to vector<2x1xf32>
    %171 = vector.shape_cast %170 : vector<2x1xf32> to vector<2x1x1xf32>
    %cst_77 = arith.constant 2.048000e+03 : f32
    %172 = vector.broadcast %cst_77 : f32 to vector<2x1x1xf32>
    %173 = arith.divf %171, %172 : vector<2x1x1xf32>
    %174 = vector.broadcast %173 : vector<2x1x1xf32> to vector<2x64x32xf32>
    %175 = arith.subf %167, %174 : vector<2x64x32xf32>
    %176 = arith.mulf %175, %175 : vector<2x64x32xf32>
    %cst_78 = arith.constant dense<0.000000e+00> : vector<2x64xf32>
    %177 = vector.multi_reduction <add>, %176, %cst_78 [2] : vector<2x64x32xf32> to vector<2x64xf32>
    %178 = vector.shape_cast %177 : vector<2x64xf32> to vector<2x64x1xf32>
    %cst_79 = arith.constant dense<0.000000e+00> : vector<2x1xf32>
    %179 = vector.multi_reduction <add>, %178, %cst_79 [1] : vector<2x64x1xf32> to vector<2x1xf32>
    %180 = vector.shape_cast %179 : vector<2x1xf32> to vector<2x1x1xf32>
    %cst_80 = arith.constant 2.048000e+03 : f32
    %181 = vector.broadcast %cst_80 : f32 to vector<2x1x1xf32>
    %182 = arith.divf %180, %181 : vector<2x1x1xf32>
    %cst_81 = arith.constant 9.99999974E-6 : f32
    %183 = vector.broadcast %cst_81 : f32 to vector<2x1x1xf32>
    %184 = arith.addf %182, %183 : vector<2x1x1xf32>
    %185 = math.rsqrt %184 : vector<2x1x1xf32>
    %186 = vector.broadcast %185 : vector<2x1x1xf32> to vector<2x64x32xf32>
    %187 = arith.mulf %175, %186 : vector<2x64x32xf32>
    %188 = vector.shape_cast %187 : vector<2x64x32xf32> to vector<128x32xf32>
    %c0_82 = arith.constant 0 : index
    %c0_83 = arith.constant 0 : index
    %189 = vector.load %arg9[%c0_82, %c0_83] : memref<1x32xf32, #tpu.memory_space<vmem>>, vector<1x32xf32>
    %190 = vector.broadcast %189 : vector<1x32xf32> to vector<128x32xf32>
    %191 = arith.mulf %188, %190 : vector<128x32xf32>
    %c0_84 = arith.constant 0 : index
    %c0_85 = arith.constant 0 : index
    %192 = vector.load %arg10[%c0_84, %c0_85] : memref<1x32xf32, #tpu.memory_space<vmem>>, vector<1x32xf32>
    %193 = vector.broadcast %192 : vector<1x32xf32> to vector<128x32xf32>
    %194 = arith.addf %191, %193 : vector<128x32xf32>
    %195 = arith.addf %10, %194 : vector<128x32xf32>
    %cst_86 = arith.constant 5.000000e-01 : f32
    %196 = vector.broadcast %cst_86 : f32 to vector<128x32xf32>
    %197 = arith.mulf %196, %195 : vector<128x32xf32>
    %cst_87 = arith.constant 0.707106769 : f32
    %198 = vector.broadcast %cst_87 : f32 to vector<128x32xf32>
    %199 = arith.mulf %195, %198 : vector<128x32xf32>
    %200 = math.erf %199 : vector<128x32xf32>
    %cst_88 = arith.constant 1.000000e+00 : f32
    %201 = vector.broadcast %cst_88 : f32 to vector<128x32xf32>
    %202 = arith.addf %201, %200 : vector<128x32xf32>
    %203 = arith.mulf %197, %202 : vector<128x32xf32>
    %204 = vector.extract_strided_slice %203 {offsets = [119, 0], sizes = [9, 32], strides = [1, 1]} : vector<128x32xf32> to vector<9x32xf32>
    %205 = vector.extract_strided_slice %203 {offsets = [0, 0], sizes = [119, 32], strides = [1, 1]} : vector<128x32xf32> to vector<119x32xf32>
    %206 = tpu.concatenate %204, %205 in 0 : vector<9x32xf32>, vector<119x32xf32> -> vector<128x32xf32>
    %c0_89 = arith.constant 0 : index
    %c0_90 = arith.constant 0 : index
    %c0_91 = arith.constant 0 : index
    %207 = vector.load %arg3[%c0_89, %c0_90, %c0_91] : memref<9x128x32xf32, #tpu.memory_space<vmem>>, vector<1x128x32xf32>
    %208 = vector.shape_cast %207 : vector<1x128x32xf32> to vector<128x32xf32>
    %209 = arith.mulf %206, %208 : vector<128x32xf32>
    %210 = arith.truncf %209 : vector<128x32xf32> to vector<128x32xbf16>
    %211 = vector.extract_strided_slice %203 {offsets = [120, 0], sizes = [8, 32], strides = [1, 1]} : vector<128x32xf32> to vector<8x32xf32>
    %212 = vector.extract_strided_slice %203 {offsets = [0, 0], sizes = [120, 32], strides = [1, 1]} : vector<128x32xf32> to vector<120x32xf32>
    %213 = tpu.concatenate %211, %212 in 0 : vector<8x32xf32>, vector<120x32xf32> -> vector<128x32xf32>
    %c1_92 = arith.constant 1 : index
    %c0_93 = arith.constant 0 : index
    %c0_94 = arith.constant 0 : index
    %214 = vector.load %arg3[%c1_92, %c0_93, %c0_94] : memref<9x128x32xf32, #tpu.memory_space<vmem>>, vector<1x128x32xf32>
    %215 = vector.shape_cast %214 : vector<1x128x32xf32> to vector<128x32xf32>
    %216 = arith.mulf %213, %215 : vector<128x32xf32>
    %217 = arith.truncf %216 : vector<128x32xf32> to vector<128x32xbf16>
    %218 = vector.extract_strided_slice %203 {offsets = [121, 0], sizes = [7, 32], strides = [1, 1]} : vector<128x32xf32> to vector<7x32xf32>
    %219 = vector.extract_strided_slice %203 {offsets = [0, 0], sizes = [121, 32], strides = [1, 1]} : vector<128x32xf32> to vector<121x32xf32>
    %220 = tpu.concatenate %218, %219 in 0 : vector<7x32xf32>, vector<121x32xf32> -> vector<128x32xf32>
    %c2_95 = arith.constant 2 : index
    %c0_96 = arith.constant 0 : index
    %c0_97 = arith.constant 0 : index
    %221 = vector.load %arg3[%c2_95, %c0_96, %c0_97] : memref<9x128x32xf32, #tpu.memory_space<vmem>>, vector<1x128x32xf32>
    %222 = vector.shape_cast %221 : vector<1x128x32xf32> to vector<128x32xf32>
    %223 = arith.mulf %220, %222 : vector<128x32xf32>
    %224 = arith.truncf %223 : vector<128x32xf32> to vector<128x32xbf16>
    %225 = vector.extract_strided_slice %203 {offsets = [127, 0], sizes = [1, 32], strides = [1, 1]} : vector<128x32xf32> to vector<1x32xf32>
    %226 = vector.extract_strided_slice %203 {offsets = [0, 0], sizes = [127, 32], strides = [1, 1]} : vector<128x32xf32> to vector<127x32xf32>
    %227 = tpu.concatenate %225, %226 in 0 : vector<1x32xf32>, vector<127x32xf32> -> vector<128x32xf32>
    %c3_98 = arith.constant 3 : index
    %c0_99 = arith.constant 0 : index
    %c0_100 = arith.constant 0 : index
    %228 = vector.load %arg3[%c3_98, %c0_99, %c0_100] : memref<9x128x32xf32, #tpu.memory_space<vmem>>, vector<1x128x32xf32>
    %229 = vector.shape_cast %228 : vector<1x128x32xf32> to vector<128x32xf32>
    %230 = arith.mulf %227, %229 : vector<128x32xf32>
    %231 = arith.truncf %230 : vector<128x32xf32> to vector<128x32xbf16>
    %232 = arith.truncf %203 : vector<128x32xf32> to vector<128x32xbf16>
    %233 = vector.extract_strided_slice %203 {offsets = [1, 0], sizes = [127, 32], strides = [1, 1]} : vector<128x32xf32> to vector<127x32xf32>
    %234 = vector.extract_strided_slice %203 {offsets = [0, 0], sizes = [1, 32], strides = [1, 1]} : vector<128x32xf32> to vector<1x32xf32>
    %235 = tpu.concatenate %233, %234 in 0 : vector<127x32xf32>, vector<1x32xf32> -> vector<128x32xf32>
    %c5_101 = arith.constant 5 : index
    %c0_102 = arith.constant 0 : index
    %c0_103 = arith.constant 0 : index
    %236 = vector.load %arg3[%c5_101, %c0_102, %c0_103] : memref<9x128x32xf32, #tpu.memory_space<vmem>>, vector<1x128x32xf32>
    %237 = vector.shape_cast %236 : vector<1x128x32xf32> to vector<128x32xf32>
    %238 = arith.mulf %235, %237 : vector<128x32xf32>
    %239 = arith.truncf %238 : vector<128x32xf32> to vector<128x32xbf16>
    %240 = vector.extract_strided_slice %203 {offsets = [7, 0], sizes = [121, 32], strides = [1, 1]} : vector<128x32xf32> to vector<121x32xf32>
    %241 = vector.extract_strided_slice %203 {offsets = [0, 0], sizes = [7, 32], strides = [1, 1]} : vector<128x32xf32> to vector<7x32xf32>
    %242 = tpu.concatenate %240, %241 in 0 : vector<121x32xf32>, vector<7x32xf32> -> vector<128x32xf32>
    %c6_104 = arith.constant 6 : index
    %c0_105 = arith.constant 0 : index
    %c0_106 = arith.constant 0 : index
    %243 = vector.load %arg3[%c6_104, %c0_105, %c0_106] : memref<9x128x32xf32, #tpu.memory_space<vmem>>, vector<1x128x32xf32>
    %244 = vector.shape_cast %243 : vector<1x128x32xf32> to vector<128x32xf32>
    %245 = arith.mulf %242, %244 : vector<128x32xf32>
    %246 = arith.truncf %245 : vector<128x32xf32> to vector<128x32xbf16>
    %247 = vector.extract_strided_slice %203 {offsets = [8, 0], sizes = [120, 32], strides = [1, 1]} : vector<128x32xf32> to vector<120x32xf32>
    %248 = vector.extract_strided_slice %203 {offsets = [0, 0], sizes = [8, 32], strides = [1, 1]} : vector<128x32xf32> to vector<8x32xf32>
    %249 = tpu.concatenate %247, %248 in 0 : vector<120x32xf32>, vector<8x32xf32> -> vector<128x32xf32>
    %c7_107 = arith.constant 7 : index
    %c0_108 = arith.constant 0 : index
    %c0_109 = arith.constant 0 : index
    %250 = vector.load %arg3[%c7_107, %c0_108, %c0_109] : memref<9x128x32xf32, #tpu.memory_space<vmem>>, vector<1x128x32xf32>
    %251 = vector.shape_cast %250 : vector<1x128x32xf32> to vector<128x32xf32>
    %252 = arith.mulf %249, %251 : vector<128x32xf32>
    %253 = arith.truncf %252 : vector<128x32xf32> to vector<128x32xbf16>
    %254 = vector.extract_strided_slice %203 {offsets = [9, 0], sizes = [119, 32], strides = [1, 1]} : vector<128x32xf32> to vector<119x32xf32>
    %255 = vector.extract_strided_slice %203 {offsets = [0, 0], sizes = [9, 32], strides = [1, 1]} : vector<128x32xf32> to vector<9x32xf32>
    %256 = tpu.concatenate %254, %255 in 0 : vector<119x32xf32>, vector<9x32xf32> -> vector<128x32xf32>
    %c8_110 = arith.constant 8 : index
    %c0_111 = arith.constant 0 : index
    %c0_112 = arith.constant 0 : index
    %257 = vector.load %arg3[%c8_110, %c0_111, %c0_112] : memref<9x128x32xf32, #tpu.memory_space<vmem>>, vector<1x128x32xf32>
    %258 = vector.shape_cast %257 : vector<1x128x32xf32> to vector<128x32xf32>
    %259 = arith.mulf %256, %258 : vector<128x32xf32>
    %260 = arith.truncf %259 : vector<128x32xf32> to vector<128x32xbf16>
    %261 = tpu.concatenate %210, %217, %224, %231, %232, %239, %246, %253, %260 in 1 : vector<128x32xbf16>, vector<128x32xbf16>, vector<128x32xbf16>, vector<128x32xbf16>, vector<128x32xbf16>, vector<128x32xbf16>, vector<128x32xbf16>, vector<128x32xbf16>, vector<128x32xbf16> -> vector<128x288xbf16>
    %c0_113 = arith.constant 0 : index
    %c0_114 = arith.constant 0 : index
    %262 = vector.load %arg11[%c0_113, %c0_114] : memref<288x64xbf16, #tpu.memory_space<vmem>>, vector<288x64xbf16>
    %cst_115 = arith.constant dense<0.000000e+00> : vector<128x64xf32>
    %263 = tpu.matmul %261, %262, %cst_115 {dimension_numbers = #tpu.dot_dimension_numbers<[1], [0], [0], [1], [0, 0, 1, 1], [], []>} : vector<128x288xbf16>, vector<288x64xbf16>, vector<128x64xf32> -> vector<128x64xf32>
    %264 = vector.shape_cast %263 : vector<128x64xf32> to vector<2x64x64xf32>
    %cst_116 = arith.constant dense<0.000000e+00> : vector<2x64xf32>
    %265 = vector.multi_reduction <add>, %264, %cst_116 [2] : vector<2x64x64xf32> to vector<2x64xf32>
    %266 = vector.shape_cast %265 : vector<2x64xf32> to vector<2x64x1xf32>
    %cst_117 = arith.constant dense<0.000000e+00> : vector<2x1xf32>
    %267 = vector.multi_reduction <add>, %266, %cst_117 [1] : vector<2x64x1xf32> to vector<2x1xf32>
    %268 = vector.shape_cast %267 : vector<2x1xf32> to vector<2x1x1xf32>
    %cst_118 = arith.constant 4.096000e+03 : f32
    %269 = vector.broadcast %cst_118 : f32 to vector<2x1x1xf32>
    %270 = arith.divf %268, %269 : vector<2x1x1xf32>
    %271 = vector.broadcast %270 : vector<2x1x1xf32> to vector<2x64x64xf32>
    %272 = arith.subf %264, %271 : vector<2x64x64xf32>
    %273 = arith.mulf %272, %272 : vector<2x64x64xf32>
    %cst_119 = arith.constant dense<0.000000e+00> : vector<2x64xf32>
    %274 = vector.multi_reduction <add>, %273, %cst_119 [2] : vector<2x64x64xf32> to vector<2x64xf32>
    %275 = vector.shape_cast %274 : vector<2x64xf32> to vector<2x64x1xf32>
    %cst_120 = arith.constant dense<0.000000e+00> : vector<2x1xf32>
    %276 = vector.multi_reduction <add>, %275, %cst_120 [1] : vector<2x64x1xf32> to vector<2x1xf32>
    %277 = vector.shape_cast %276 : vector<2x1xf32> to vector<2x1x1xf32>
    %cst_121 = arith.constant 4.096000e+03 : f32
    %278 = vector.broadcast %cst_121 : f32 to vector<2x1x1xf32>
    %279 = arith.divf %277, %278 : vector<2x1x1xf32>
    %cst_122 = arith.constant 9.99999974E-6 : f32
    %280 = vector.broadcast %cst_122 : f32 to vector<2x1x1xf32>
    %281 = arith.addf %279, %280 : vector<2x1x1xf32>
    %282 = math.rsqrt %281 : vector<2x1x1xf32>
    %283 = vector.broadcast %282 : vector<2x1x1xf32> to vector<2x64x64xf32>
    %284 = arith.mulf %272, %283 : vector<2x64x64xf32>
    %285 = vector.shape_cast %284 : vector<2x64x64xf32> to vector<128x64xf32>
    %c0_123 = arith.constant 0 : index
    %c0_124 = arith.constant 0 : index
    %286 = vector.load %arg12[%c0_123, %c0_124] : memref<1x64xf32, #tpu.memory_space<vmem>>, vector<1x64xf32>
    %287 = vector.broadcast %286 : vector<1x64xf32> to vector<128x64xf32>
    %288 = arith.mulf %285, %287 : vector<128x64xf32>
    %c0_125 = arith.constant 0 : index
    %c0_126 = arith.constant 0 : index
    %289 = vector.load %arg13[%c0_125, %c0_126] : memref<1x64xf32, #tpu.memory_space<vmem>>, vector<1x64xf32>
    %290 = vector.broadcast %289 : vector<1x64xf32> to vector<128x64xf32>
    %291 = arith.addf %288, %290 : vector<128x64xf32>
    %cst_127 = arith.constant 5.000000e-01 : f32
    %292 = vector.broadcast %cst_127 : f32 to vector<128x64xf32>
    %293 = arith.mulf %292, %291 : vector<128x64xf32>
    %cst_128 = arith.constant 0.707106769 : f32
    %294 = vector.broadcast %cst_128 : f32 to vector<128x64xf32>
    %295 = arith.mulf %291, %294 : vector<128x64xf32>
    %296 = math.erf %295 : vector<128x64xf32>
    %cst_129 = arith.constant 1.000000e+00 : f32
    %297 = vector.broadcast %cst_129 : f32 to vector<128x64xf32>
    %298 = arith.addf %297, %296 : vector<128x64xf32>
    %299 = arith.mulf %293, %298 : vector<128x64xf32>
    %300 = vector.extract_strided_slice %299 {offsets = [119, 0], sizes = [9, 64], strides = [1, 1]} : vector<128x64xf32> to vector<9x64xf32>
    %301 = vector.extract_strided_slice %299 {offsets = [0, 0], sizes = [119, 64], strides = [1, 1]} : vector<128x64xf32> to vector<119x64xf32>
    %302 = tpu.concatenate %300, %301 in 0 : vector<9x64xf32>, vector<119x64xf32> -> vector<128x64xf32>
    %c0_130 = arith.constant 0 : index
    %c0_131 = arith.constant 0 : index
    %c0_132 = arith.constant 0 : index
    %303 = vector.load %arg4[%c0_130, %c0_131, %c0_132] : memref<9x128x64xf32, #tpu.memory_space<vmem>>, vector<1x128x64xf32>
    %304 = vector.shape_cast %303 : vector<1x128x64xf32> to vector<128x64xf32>
    %305 = arith.mulf %302, %304 : vector<128x64xf32>
    %306 = arith.truncf %305 : vector<128x64xf32> to vector<128x64xbf16>
    %c0_133 = arith.constant 0 : index
    %c0_134 = arith.constant 0 : index
    %307 = vector.load %arg20[%c0_133, %c0_134] : memref<128x576xbf16, #tpu.memory_space<vmem>>, vector<128x64xbf16>
    tpu.vector_store %arg20[%c0_133, %c0_134], %306 {strides = array<i32>} : memref<128x576xbf16, #tpu.memory_space<vmem>>, vector<128x64xbf16>,
    %308 = vector.extract_strided_slice %299 {offsets = [120, 0], sizes = [8, 64], strides = [1, 1]} : vector<128x64xf32> to vector<8x64xf32>
    %309 = vector.extract_strided_slice %299 {offsets = [0, 0], sizes = [120, 64], strides = [1, 1]} : vector<128x64xf32> to vector<120x64xf32>
    %310 = tpu.concatenate %308, %309 in 0 : vector<8x64xf32>, vector<120x64xf32> -> vector<128x64xf32>
    %c1_135 = arith.constant 1 : index
    %c0_136 = arith.constant 0 : index
    %c0_137 = arith.constant 0 : index
    %311 = vector.load %arg4[%c1_135, %c0_136, %c0_137] : memref<9x128x64xf32, #tpu.memory_space<vmem>>, vector<1x128x64xf32>
    %312 = vector.shape_cast %311 : vector<1x128x64xf32> to vector<128x64xf32>
    %313 = arith.mulf %310, %312 : vector<128x64xf32>
    %314 = arith.truncf %313 : vector<128x64xf32> to vector<128x64xbf16>
    %c0_138 = arith.constant 0 : index
    %c64 = arith.constant 64 : index
    %315 = vector.load %arg20[%c0_138, %c64] : memref<128x576xbf16, #tpu.memory_space<vmem>>, vector<128x64xbf16>
    tpu.vector_store %arg20[%c0_138, %c64], %314 {strides = array<i32>} : memref<128x576xbf16, #tpu.memory_space<vmem>>, vector<128x64xbf16>,
    %316 = vector.extract_strided_slice %299 {offsets = [121, 0], sizes = [7, 64], strides = [1, 1]} : vector<128x64xf32> to vector<7x64xf32>
    %317 = vector.extract_strided_slice %299 {offsets = [0, 0], sizes = [121, 64], strides = [1, 1]} : vector<128x64xf32> to vector<121x64xf32>
    %318 = tpu.concatenate %316, %317 in 0 : vector<7x64xf32>, vector<121x64xf32> -> vector<128x64xf32>
    %c2_139 = arith.constant 2 : index
    %c0_140 = arith.constant 0 : index
    %c0_141 = arith.constant 0 : index
    %319 = vector.load %arg4[%c2_139, %c0_140, %c0_141] : memref<9x128x64xf32, #tpu.memory_space<vmem>>, vector<1x128x64xf32>
    %320 = vector.shape_cast %319 : vector<1x128x64xf32> to vector<128x64xf32>
    %321 = arith.mulf %318, %320 : vector<128x64xf32>
    %322 = arith.truncf %321 : vector<128x64xf32> to vector<128x64xbf16>
    %c0_142 = arith.constant 0 : index
    %c128 = arith.constant 128 : index
    %323 = vector.load %arg20[%c0_142, %c128] : memref<128x576xbf16, #tpu.memory_space<vmem>>, vector<128x64xbf16>
    tpu.vector_store %arg20[%c0_142, %c128], %322 {strides = array<i32>} : memref<128x576xbf16, #tpu.memory_space<vmem>>, vector<128x64xbf16>,
    %324 = vector.extract_strided_slice %299 {offsets = [127, 0], sizes = [1, 64], strides = [1, 1]} : vector<128x64xf32> to vector<1x64xf32>
    %325 = vector.extract_strided_slice %299 {offsets = [0, 0], sizes = [127, 64], strides = [1, 1]} : vector<128x64xf32> to vector<127x64xf32>
    %326 = tpu.concatenate %324, %325 in 0 : vector<1x64xf32>, vector<127x64xf32> -> vector<128x64xf32>
    %c3_143 = arith.constant 3 : index
    %c0_144 = arith.constant 0 : index
    %c0_145 = arith.constant 0 : index
    %327 = vector.load %arg4[%c3_143, %c0_144, %c0_145] : memref<9x128x64xf32, #tpu.memory_space<vmem>>, vector<1x128x64xf32>
    %328 = vector.shape_cast %327 : vector<1x128x64xf32> to vector<128x64xf32>
    %329 = arith.mulf %326, %328 : vector<128x64xf32>
    %330 = arith.truncf %329 : vector<128x64xf32> to vector<128x64xbf16>
    %c0_146 = arith.constant 0 : index
    %c192 = arith.constant 192 : index
    %331 = vector.load %arg20[%c0_146, %c192] : memref<128x576xbf16, #tpu.memory_space<vmem>>, vector<128x64xbf16>
    tpu.vector_store %arg20[%c0_146, %c192], %330 {strides = array<i32>} : memref<128x576xbf16, #tpu.memory_space<vmem>>, vector<128x64xbf16>,
    %332 = arith.truncf %299 : vector<128x64xf32> to vector<128x64xbf16>
    %c0_147 = arith.constant 0 : index
    %c256 = arith.constant 256 : index
    %333 = vector.load %arg20[%c0_147, %c256] : memref<128x576xbf16, #tpu.memory_space<vmem>>, vector<128x64xbf16>
    tpu.vector_store %arg20[%c0_147, %c256], %332 {strides = array<i32>} : memref<128x576xbf16, #tpu.memory_space<vmem>>, vector<128x64xbf16>,
    %334 = vector.extract_strided_slice %299 {offsets = [1, 0], sizes = [127, 64], strides = [1, 1]} : vector<128x64xf32> to vector<127x64xf32>
    %335 = vector.extract_strided_slice %299 {offsets = [0, 0], sizes = [1, 64], strides = [1, 1]} : vector<128x64xf32> to vector<1x64xf32>
    %336 = tpu.concatenate %334, %335 in 0 : vector<127x64xf32>, vector<1x64xf32> -> vector<128x64xf32>
    %c5_148 = arith.constant 5 : index
    %c0_149 = arith.constant 0 : index
    %c0_150 = arith.constant 0 : index
    %337 = vector.load %arg4[%c5_148, %c0_149, %c0_150] : memref<9x128x64xf32, #tpu.memory_space<vmem>>, vector<1x128x64xf32>
    %338 = vector.shape_cast %337 : vector<1x128x64xf32> to vector<128x64xf32>
    %339 = arith.mulf %336, %338 : vector<128x64xf32>
    %340 = arith.truncf %339 : vector<128x64xf32> to vector<128x64xbf16>
    %c0_151 = arith.constant 0 : index
    %c320 = arith.constant 320 : index
    %341 = vector.load %arg20[%c0_151, %c320] : memref<128x576xbf16, #tpu.memory_space<vmem>>, vector<128x64xbf16>
    tpu.vector_store %arg20[%c0_151, %c320], %340 {strides = array<i32>} : memref<128x576xbf16, #tpu.memory_space<vmem>>, vector<128x64xbf16>,
    %342 = vector.extract_strided_slice %299 {offsets = [7, 0], sizes = [121, 64], strides = [1, 1]} : vector<128x64xf32> to vector<121x64xf32>
    %343 = vector.extract_strided_slice %299 {offsets = [0, 0], sizes = [7, 64], strides = [1, 1]} : vector<128x64xf32> to vector<7x64xf32>
    %344 = tpu.concatenate %342, %343 in 0 : vector<121x64xf32>, vector<7x64xf32> -> vector<128x64xf32>
    %c6_152 = arith.constant 6 : index
    %c0_153 = arith.constant 0 : index
    %c0_154 = arith.constant 0 : index
    %345 = vector.load %arg4[%c6_152, %c0_153, %c0_154] : memref<9x128x64xf32, #tpu.memory_space<vmem>>, vector<1x128x64xf32>
    %346 = vector.shape_cast %345 : vector<1x128x64xf32> to vector<128x64xf32>
    %347 = arith.mulf %344, %346 : vector<128x64xf32>
    %348 = arith.truncf %347 : vector<128x64xf32> to vector<128x64xbf16>
    %c0_155 = arith.constant 0 : index
    %c384 = arith.constant 384 : index
    %349 = vector.load %arg20[%c0_155, %c384] : memref<128x576xbf16, #tpu.memory_space<vmem>>, vector<128x64xbf16>
    tpu.vector_store %arg20[%c0_155, %c384], %348 {strides = array<i32>} : memref<128x576xbf16, #tpu.memory_space<vmem>>, vector<128x64xbf16>,
    %350 = vector.extract_strided_slice %299 {offsets = [8, 0], sizes = [120, 64], strides = [1, 1]} : vector<128x64xf32> to vector<120x64xf32>
    %351 = vector.extract_strided_slice %299 {offsets = [0, 0], sizes = [8, 64], strides = [1, 1]} : vector<128x64xf32> to vector<8x64xf32>
    %352 = tpu.concatenate %350, %351 in 0 : vector<120x64xf32>, vector<8x64xf32> -> vector<128x64xf32>
    %c7_156 = arith.constant 7 : index
    %c0_157 = arith.constant 0 : index
    %c0_158 = arith.constant 0 : index
    %353 = vector.load %arg4[%c7_156, %c0_157, %c0_158] : memref<9x128x64xf32, #tpu.memory_space<vmem>>, vector<1x128x64xf32>
    %354 = vector.shape_cast %353 : vector<1x128x64xf32> to vector<128x64xf32>
    %355 = arith.mulf %352, %354 : vector<128x64xf32>
    %356 = arith.truncf %355 : vector<128x64xf32> to vector<128x64xbf16>
    %c0_159 = arith.constant 0 : index
    %c448 = arith.constant 448 : index
    %357 = vector.load %arg20[%c0_159, %c448] : memref<128x576xbf16, #tpu.memory_space<vmem>>, vector<128x64xbf16>
    tpu.vector_store %arg20[%c0_159, %c448], %356 {strides = array<i32>} : memref<128x576xbf16, #tpu.memory_space<vmem>>, vector<128x64xbf16>,
    %358 = vector.extract_strided_slice %299 {offsets = [9, 0], sizes = [119, 64], strides = [1, 1]} : vector<128x64xf32> to vector<119x64xf32>
    %359 = vector.extract_strided_slice %299 {offsets = [0, 0], sizes = [9, 64], strides = [1, 1]} : vector<128x64xf32> to vector<9x64xf32>
    %360 = tpu.concatenate %358, %359 in 0 : vector<119x64xf32>, vector<9x64xf32> -> vector<128x64xf32>
    %c8_160 = arith.constant 8 : index
    %c0_161 = arith.constant 0 : index
    %c0_162 = arith.constant 0 : index
    %361 = vector.load %arg4[%c8_160, %c0_161, %c0_162] : memref<9x128x64xf32, #tpu.memory_space<vmem>>, vector<1x128x64xf32>
    %362 = vector.shape_cast %361 : vector<1x128x64xf32> to vector<128x64xf32>
    %363 = arith.mulf %360, %362 : vector<128x64xf32>
    %364 = arith.truncf %363 : vector<128x64xf32> to vector<128x64xbf16>
    %c0_163 = arith.constant 0 : index
    %c512 = arith.constant 512 : index
    %365 = vector.load %arg20[%c0_163, %c512] : memref<128x576xbf16, #tpu.memory_space<vmem>>, vector<128x64xbf16>
    tpu.vector_store %arg20[%c0_163, %c512], %364 {strides = array<i32>} : memref<128x576xbf16, #tpu.memory_space<vmem>>, vector<128x64xbf16>,
    %c0_164 = arith.constant 0 : index
    %c0_165 = arith.constant 0 : index
    %366 = vector.load %arg20[%c0_164, %c0_165] : memref<128x576xbf16, #tpu.memory_space<vmem>>, vector<128x576xbf16>
    %c0_166 = arith.constant 0 : index
    %c0_167 = arith.constant 0 : index
    %367 = vector.load %arg14[%c0_166, %c0_167] : memref<576x64xbf16, #tpu.memory_space<vmem>>, vector<576x64xbf16>
    %cst_168 = arith.constant dense<0.000000e+00> : vector<128x64xf32>
    %368 = tpu.matmul %366, %367, %cst_168 {dimension_numbers = #tpu.dot_dimension_numbers<[1], [0], [0], [1], [0, 0, 1, 1], [], []>} : vector<128x576xbf16>, vector<576x64xbf16>, vector<128x64xf32> -> vector<128x64xf32>
    %369 = vector.shape_cast %368 : vector<128x64xf32> to vector<2x64x64xf32>
    %cst_169 = arith.constant dense<0.000000e+00> : vector<2x64xf32>
    %370 = vector.multi_reduction <add>, %369, %cst_169 [2] : vector<2x64x64xf32> to vector<2x64xf32>
    %371 = vector.shape_cast %370 : vector<2x64xf32> to vector<2x64x1xf32>
    %cst_170 = arith.constant dense<0.000000e+00> : vector<2x1xf32>
    %372 = vector.multi_reduction <add>, %371, %cst_170 [1] : vector<2x64x1xf32> to vector<2x1xf32>
    %373 = vector.shape_cast %372 : vector<2x1xf32> to vector<2x1x1xf32>
    %cst_171 = arith.constant 4.096000e+03 : f32
    %374 = vector.broadcast %cst_171 : f32 to vector<2x1x1xf32>
    %375 = arith.divf %373, %374 : vector<2x1x1xf32>
    %376 = vector.broadcast %375 : vector<2x1x1xf32> to vector<2x64x64xf32>
    %377 = arith.subf %369, %376 : vector<2x64x64xf32>
    %378 = arith.mulf %377, %377 : vector<2x64x64xf32>
    %cst_172 = arith.constant dense<0.000000e+00> : vector<2x64xf32>
    %379 = vector.multi_reduction <add>, %378, %cst_172 [2] : vector<2x64x64xf32> to vector<2x64xf32>
    %380 = vector.shape_cast %379 : vector<2x64xf32> to vector<2x64x1xf32>
    %cst_173 = arith.constant dense<0.000000e+00> : vector<2x1xf32>
    %381 = vector.multi_reduction <add>, %380, %cst_173 [1] : vector<2x64x1xf32> to vector<2x1xf32>
    %382 = vector.shape_cast %381 : vector<2x1xf32> to vector<2x1x1xf32>
    %cst_174 = arith.constant 4.096000e+03 : f32
    %383 = vector.broadcast %cst_174 : f32 to vector<2x1x1xf32>
    %384 = arith.divf %382, %383 : vector<2x1x1xf32>
    %cst_175 = arith.constant 9.99999974E-6 : f32
    %385 = vector.broadcast %cst_175 : f32 to vector<2x1x1xf32>
    %386 = arith.addf %384, %385 : vector<2x1x1xf32>
    %387 = math.rsqrt %386 : vector<2x1x1xf32>
    %388 = vector.broadcast %387 : vector<2x1x1xf32> to vector<2x64x64xf32>
    %389 = arith.mulf %377, %388 : vector<2x64x64xf32>
    %390 = vector.shape_cast %389 : vector<2x64x64xf32> to vector<128x64xf32>
    %c0_176 = arith.constant 0 : index
    %c0_177 = arith.constant 0 : index
    %391 = vector.load %arg15[%c0_176, %c0_177] : memref<1x64xf32, #tpu.memory_space<vmem>>, vector<1x64xf32>
    %392 = vector.broadcast %391 : vector<1x64xf32> to vector<128x64xf32>
    %393 = arith.mulf %390, %392 : vector<128x64xf32>
    %c0_178 = arith.constant 0 : index
    %c0_179 = arith.constant 0 : index
    %394 = vector.load %arg16[%c0_178, %c0_179] : memref<1x64xf32, #tpu.memory_space<vmem>>, vector<1x64xf32>
    %395 = vector.broadcast %394 : vector<1x64xf32> to vector<128x64xf32>
    %396 = arith.addf %393, %395 : vector<128x64xf32>
    %c0_180 = arith.constant 0 : index
    %c0_181 = arith.constant 0 : index
    %c0_182 = arith.constant 0 : index
    %397 = vector.load %arg2[%c0_180, %c0_181, %c0_182] : memref<1x2x256xf32, #tpu.memory_space<vmem>>, vector<1x2x256xf32>
    %398 = vector.shape_cast %397 : vector<1x2x256xf32> to vector<2x256xf32>
    %399 = math.absf %398 : vector<2x256xf32>
    %cst_183 = arith.constant 0.000000e+00 : f32
    %400 = vector.broadcast %cst_183 : f32 to vector<2x256xf32>
    %401 = arith.subf %400, %399 : vector<2x256xf32>
    %402 = math.exp %401 : vector<2x256xf32>
    %cst_184 = arith.constant 0.000000e+00 : f32
    %403 = vector.broadcast %cst_184 : f32 to vector<2x256xf32>
    %404 = arith.cmpf oge, %398, %403 : vector<2x256xf32>
    %cst_185 = arith.constant 1.000000e+00 : f32
    %405 = vector.broadcast %cst_185 : f32 to vector<2x256xf32>
    %406 = arith.select %404, %405, %402 : vector<2x256xi1>, vector<2x256xf32>
    %cst_186 = arith.constant 1.000000e+00 : f32
    %407 = vector.broadcast %cst_186 : f32 to vector<2x256xf32>
    %408 = arith.addf %407, %402 : vector<2x256xf32>
    %409 = arith.divf %406, %408 : vector<2x256xf32>
    %410 = arith.mulf %398, %409 : vector<2x256xf32>
    %411 = arith.truncf %410 : vector<2x256xf32> to vector<2x256xbf16>
    %c0_187 = arith.constant 0 : index
    %c0_188 = arith.constant 0 : index
    %412 = vector.load %arg17[%c0_187, %c0_188] : memref<256x64xbf16, #tpu.memory_space<vmem>>, vector<256x64xbf16>
    %cst_189 = arith.constant dense<0.000000e+00> : vector<2x64xf32>
    %413 = tpu.matmul %411, %412, %cst_189 {dimension_numbers = #tpu.dot_dimension_numbers<[1], [0], [0], [1], [0, 0, 1, 1], [], []>} : vector<2x256xbf16>, vector<256x64xbf16>, vector<2x64xf32> -> vector<2x64xf32>
    %c0_190 = arith.constant 0 : index
    %c0_191 = arith.constant 0 : index
    %414 = vector.load %arg18[%c0_190, %c0_191] : memref<1x64xf32, #tpu.memory_space<vmem>>, vector<1x64xf32>
    %415 = vector.broadcast %414 : vector<1x64xf32> to vector<2x64xf32>
    %416 = arith.addf %413, %415 : vector<2x64xf32>
    %417 = vector.shape_cast %396 : vector<128x64xf32> to vector<2x64x64xf32>
    %418 = vector.shape_cast %416 : vector<2x64xf32> to vector<2x1x64xf32>
    %419 = vector.broadcast %418 : vector<2x1x64xf32> to vector<2x64x64xf32>
    %420 = arith.addf %417, %419 : vector<2x64x64xf32>
    %421 = vector.shape_cast %420 : vector<2x64x64xf32> to vector<128x64xf32>
    %c0_192 = arith.constant 0 : index
    %c0_193 = arith.constant 0 : index
    %c0_194 = arith.constant 0 : index
    %422 = vector.load %arg19[%c0_192, %c0_193, %c0_194] : memref<1x128x64xf32, #tpu.memory_space<vmem>>, vector<1x128x64xf32>
    %423 = vector.shape_cast %422 : vector<1x128x64xf32> to vector<128x64xf32>
    %424 = vector.shape_cast %421 : vector<128x64xf32> to vector<1x128x64xf32>
    tpu.vector_store %arg19[%c0_192, %c0_193, %c0_194], %424 {strides = array<i32>} : memref<1x128x64xf32, #tpu.memory_space<vmem>>, vector<1x128x64xf32>,
    return
  }
  func.func @transform_0(%arg0: i32) -> (i32, i32, i32, i32) {
    %c0_i32 = arith.constant 0 : i32
    %c0_i32_0 = arith.constant 0 : i32
    %c0_i32_1 = arith.constant 0 : i32
    %c0_i32_2 = arith.constant 0 : i32
    return %arg0, %c0_i32, %c0_i32_0, %c0_i32_1 : i32, i32, i32, i32
  }
  func.func @transform_1(%arg0: i32) -> (i32, i32, i32) {
    %c0_i32 = arith.constant 0 : i32
    %c0_i32_0 = arith.constant 0 : i32
    %c0_i32_1 = arith.constant 0 : i32
    return %arg0, %c0_i32, %c0_i32_0 : i32, i32, i32
  }
  func.func @transform_2(%arg0: i32) -> (i32, i32, i32) {
    %c0_i32 = arith.constant 0 : i32
    %c0_i32_0 = arith.constant 0 : i32
    %c0_i32_1 = arith.constant 0 : i32
    %c0_i32_2 = arith.constant 0 : i32
    return %c0_i32, %c0_i32_0, %c0_i32_1 : i32, i32, i32
  }
  func.func @transform_3(%arg0: i32) -> (i32, i32, i32) {
    %c0_i32 = arith.constant 0 : i32
    %c0_i32_0 = arith.constant 0 : i32
    %c0_i32_1 = arith.constant 0 : i32
    %c0_i32_2 = arith.constant 0 : i32
    return %c0_i32, %c0_i32_0, %c0_i32_1 : i32, i32, i32
  }
  func.func @transform_4(%arg0: i32) -> (i32, i32) {
    %c0_i32 = arith.constant 0 : i32
    %c0_i32_0 = arith.constant 0 : i32
    %c0_i32_1 = arith.constant 0 : i32
    return %c0_i32, %c0_i32_0 : i32, i32
  }
  func.func @transform_5(%arg0: i32) -> (i32, i32) {
    %c0_i32 = arith.constant 0 : i32
    %c0_i32_0 = arith.constant 0 : i32
    %c0_i32_1 = arith.constant 0 : i32
    return %c0_i32, %c0_i32_0 : i32, i32
  }
  func.func @transform_6(%arg0: i32) -> (i32, i32) {
    %c0_i32 = arith.constant 0 : i32
    %c0_i32_0 = arith.constant 0 : i32
    %c0_i32_1 = arith.constant 0 : i32
    return %c0_i32, %c0_i32_0 : i32, i32
  }
  func.func @transform_7(%arg0: i32) -> (i32, i32) {
    %c0_i32 = arith.constant 0 : i32
    %c0_i32_0 = arith.constant 0 : i32
    %c0_i32_1 = arith.constant 0 : i32
    return %c0_i32, %c0_i32_0 : i32, i32
  }
  func.func @transform_8(%arg0: i32) -> (i32, i32) {
    %c0_i32 = arith.constant 0 : i32
    %c0_i32_0 = arith.constant 0 : i32
    %c0_i32_1 = arith.constant 0 : i32
    return %c0_i32, %c0_i32_0 : i32, i32
  }
  func.func @transform_9(%arg0: i32) -> (i32, i32) {
    %c0_i32 = arith.constant 0 : i32
    %c0_i32_0 = arith.constant 0 : i32
    %c0_i32_1 = arith.constant 0 : i32
    return %c0_i32, %c0_i32_0 : i32, i32
  }
  func.func @transform_10(%arg0: i32) -> (i32, i32) {
    %c0_i32 = arith.constant 0 : i32
    %c0_i32_0 = arith.constant 0 : i32
    %c0_i32_1 = arith.constant 0 : i32
    return %c0_i32, %c0_i32_0 : i32, i32
  }
  func.func @transform_11(%arg0: i32) -> (i32, i32) {
    %c0_i32 = arith.constant 0 : i32
    %c0_i32_0 = arith.constant 0 : i32
    %c0_i32_1 = arith.constant 0 : i32
    return %c0_i32, %c0_i32_0 : i32, i32
  }
  func.func @transform_12(%arg0: i32) -> (i32, i32) {
    %c0_i32 = arith.constant 0 : i32
    %c0_i32_0 = arith.constant 0 : i32
    %c0_i32_1 = arith.constant 0 : i32
    return %c0_i32, %c0_i32_0 : i32, i32
  }
  func.func @transform_13(%arg0: i32) -> (i32, i32) {
    %c0_i32 = arith.constant 0 : i32
    %c0_i32_0 = arith.constant 0 : i32
    %c0_i32_1 = arith.constant 0 : i32
    return %c0_i32, %c0_i32_0 : i32, i32
  }
  func.func @transform_14(%arg0: i32) -> (i32, i32) {
    %c0_i32 = arith.constant 0 : i32
    %c0_i32_0 = arith.constant 0 : i32
    %c0_i32_1 = arith.constant 0 : i32
    return %c0_i32, %c0_i32_0 : i32, i32
  }
  func.func @transform_15(%arg0: i32) -> (i32, i32) {
    %c0_i32 = arith.constant 0 : i32
    %c0_i32_0 = arith.constant 0 : i32
    %c0_i32_1 = arith.constant 0 : i32
    return %c0_i32, %c0_i32_0 : i32, i32
  }
  func.func @transform_16(%arg0: i32) -> (i32, i32) {
    %c0_i32 = arith.constant 0 : i32
    %c0_i32_0 = arith.constant 0 : i32
    %c0_i32_1 = arith.constant 0 : i32
    return %c0_i32, %c0_i32_0 : i32, i32
  }
  func.func @transform_17(%arg0: i32) -> (i32, i32) {
    %c0_i32 = arith.constant 0 : i32
    %c0_i32_0 = arith.constant 0 : i32
    %c0_i32_1 = arith.constant 0 : i32
    return %c0_i32, %c0_i32_0 : i32, i32
  }
  func.func @transform_18(%arg0: i32) -> (i32, i32, i32) {
    %c0_i32 = arith.constant 0 : i32
    %c0_i32_0 = arith.constant 0 : i32
    %c0_i32_1 = arith.constant 0 : i32
    return %arg0, %c0_i32, %c0_i32_0 : i32, i32, i32
  }
}

</mosaic_0001>

<llo_original>
// kernel: tpu_custom_call.1
$region0: #{tpu_custom_call.1}
  #allocation0 [shape = 'u32[]', space=smem, size = 0x4, offset = 0x4, fixed_abs, tag = 'smem constant byte address 0x4 - core index']
  #allocation1 [shape = 'u32[72,128]{1,0:T(1,128)}', space=vmem, size = 0x9000, scoped, tag = 'internal scratch']
  #allocation2 [shape = 'bf16[128,576]{1,0:T(8,128)(2,1)}', space=vmem, size = 0x28000, scoped, tag = 'scratch operand']
  %s0 = inlined_call_operand.vmem [shape: f32[1,4,128,32], index: 0, kind: input, shape index: {}]
  %s1 = inlined_call_operand.vmem [shape: f32[1,2,256], index: 1, kind: input, shape index: {}]
  %s2 = inlined_call_operand.vmem [shape: f32[9,128,32], index: 2, kind: input, shape index: {}]
  %s3 = inlined_call_operand.vmem [shape: f32[9,128,64], index: 3, kind: input, shape index: {}]
  %s4 = inlined_call_operand.vmem [shape: bf16[288,32], index: 4, kind: input, shape index: {}]
  %s5 = inlined_call_operand.vmem [shape: f32[1,32], index: 5, kind: input, shape index: {}]
  %s6 = inlined_call_operand.vmem [shape: f32[1,32], index: 6, kind: input, shape index: {}]
  %s7 = inlined_call_operand.vmem [shape: bf16[288,32], index: 7, kind: input, shape index: {}]
  %s8 = inlined_call_operand.vmem [shape: f32[1,32], index: 8, kind: input, shape index: {}]
  %s9 = inlined_call_operand.vmem [shape: f32[1,32], index: 9, kind: input, shape index: {}]
  %s10 = inlined_call_operand.vmem [shape: bf16[288,64], index: 10, kind: input, shape index: {}]
  %s11 = inlined_call_operand.vmem [shape: f32[1,64], index: 11, kind: input, shape index: {}]
  %s12 = inlined_call_operand.vmem [shape: f32[1,64], index: 12, kind: input, shape index: {}]
  %s13 = inlined_call_operand.vmem [shape: bf16[576,64], index: 13, kind: input, shape index: {}]
  %s14 = inlined_call_operand.vmem [shape: f32[1,64], index: 14, kind: input, shape index: {}]
  %s15 = inlined_call_operand.vmem [shape: f32[1,64], index: 15, kind: input, shape index: {}]
  %s16 = inlined_call_operand.vmem [shape: bf16[256,64], index: 16, kind: input, shape index: {}]
  %s17 = inlined_call_operand.vmem [shape: f32[1,64], index: 17, kind: input, shape index: {}]
  %s18 = inlined_call_operand.vmem [shape: f32[1,128,64], index: 18, kind: output, shape index: {}]
  %s19 = sld [smem:[#allocation0]]
  $region82: #{tpu_custom_call.1} parent=0
    _
  %s21 = ssub.s32 1, %s19
  %s22 = scalar_select 0, %s21, %s19
  // Predicated region
  $region2: #{tpu_custom_call.1} parent=0 // pred_check
    _
  $region3: #{tpu_custom_call.1} parent=0 // pred_check_branch
    %24 = sbr.rel (0) target = $region5
  $region4: #{tpu_custom_call.1} parent=0 // pred_region
    _
  $region5: #{tpu_custom_call.1} parent=0 // pred_fallthru
    _
  // Predicated region
  $region6: #{tpu_custom_call.1} parent=0 // pred_check
    _
  $region7: #{tpu_custom_call.1} parent=0 // pred_check_branch
    %26 = sbr.rel (0) target = $region9
  $region8: #{tpu_custom_call.1} parent=0 // pred_region
    _
  $region9: #{tpu_custom_call.1} parent=0 // pred_fallthru
    _
  // Predicated region
  $region10: #{tpu_custom_call.1} parent=0 // pred_check
    _
  $region11: #{tpu_custom_call.1} parent=0 // pred_check_branch
    %28 = sbr.rel (0) target = $region13
  $region12: #{tpu_custom_call.1} parent=0 // pred_region
    _
  $region13: #{tpu_custom_call.1} parent=0 // pred_fallthru
    _
  // Predicated region
  $region14: #{tpu_custom_call.1} parent=0 // pred_check
    _
  $region15: #{tpu_custom_call.1} parent=0 // pred_check_branch
    %30 = sbr.rel (0) target = $region17
  $region16: #{tpu_custom_call.1} parent=0 // pred_region
    _
  $region17: #{tpu_custom_call.1} parent=0 // pred_fallthru
    _
  // Predicated region
  $region18: #{tpu_custom_call.1} parent=0 // pred_check
    _
  $region19: #{tpu_custom_call.1} parent=0 // pred_check_branch
    %32 = sbr.rel (0) target = $region21
  $region20: #{tpu_custom_call.1} parent=0 // pred_region
    _
  $region21: #{tpu_custom_call.1} parent=0 // pred_fallthru
    _
  // Predicated region
  $region22: #{tpu_custom_call.1} parent=0 // pred_check
    _
  $region23: #{tpu_custom_call.1} parent=0 // pred_check_branch
    %34 = sbr.rel (0) target = $region25
  $region24: #{tpu_custom_call.1} parent=0 // pred_region
    _
  $region25: #{tpu_custom_call.1} parent=0 // pred_fallthru
    _
  // Predicated region
  $region26: #{tpu_custom_call.1} parent=0 // pred_check
    _
  $region27: #{tpu_custom_call.1} parent=0 // pred_check_branch
    %36 = sbr.rel (0) target = $region29
  $region28: #{tpu_custom_call.1} parent=0 // pred_region
    _
  $region29: #{tpu_custom_call.1} parent=0 // pred_fallthru
    _
  // Predicated region
  $region30: #{tpu_custom_call.1} parent=0 // pred_check
    _
  $region31: #{tpu_custom_call.1} parent=0 // pred_check_branch
    %38 = sbr.rel (0) target = $region33
  $region32: #{tpu_custom_call.1} parent=0 // pred_region
    _
  $region33: #{tpu_custom_call.1} parent=0 // pred_fallthru
    _
  // Predicated region
  $region34: #{tpu_custom_call.1} parent=0 // pred_check
    _
  $region35: #{tpu_custom_call.1} parent=0 // pred_check_branch
    %40 = sbr.rel (0) target = $region37
  $region36: #{tpu_custom_call.1} parent=0 // pred_region
    _
  $region37: #{tpu_custom_call.1} parent=0 // pred_fallthru
    _
  // Predicated region
  $region38: #{tpu_custom_call.1} parent=0 // pred_check
    _
  $region39: #{tpu_custom_call.1} parent=0 // pred_check_branch
    %42 = sbr.rel (0) target = $region41
  $region40: #{tpu_custom_call.1} parent=0 // pred_region
    _
  $region41: #{tpu_custom_call.1} parent=0 // pred_fallthru
    _
  // Predicated region
  $region42: #{tpu_custom_call.1} parent=0 // pred_check
    _
  $region43: #{tpu_custom_call.1} parent=0 // pred_check_branch
    %44 = sbr.rel (0) target = $region45
  $region44: #{tpu_custom_call.1} parent=0 // pred_region
    _
  $region45: #{tpu_custom_call.1} parent=0 // pred_fallthru
    _
  // Predicated region
  $region46: #{tpu_custom_call.1} parent=0 // pred_check
    _
  $region47: #{tpu_custom_call.1} parent=0 // pred_check_branch
    %46 = sbr.rel (0) target = $region49
  $region48: #{tpu_custom_call.1} parent=0 // pred_region
    _
  $region49: #{tpu_custom_call.1} parent=0 // pred_fallthru
    _
  // Predicated region
  $region50: #{tpu_custom_call.1} parent=0 // pred_check
    _
  $region51: #{tpu_custom_call.1} parent=0 // pred_check_branch
    %48 = sbr.rel (0) target = $region53
  $region52: #{tpu_custom_call.1} parent=0 // pred_region
    _
  $region53: #{tpu_custom_call.1} parent=0 // pred_fallthru
    _
  // Predicated region
  $region54: #{tpu_custom_call.1} parent=0 // pred_check
    _
  $region55: #{tpu_custom_call.1} parent=0 // pred_check_branch
    %50 = sbr.rel (0) target = $region57
  $region56: #{tpu_custom_call.1} parent=0 // pred_region
    _
  $region57: #{tpu_custom_call.1} parent=0 // pred_fallthru
    _
  // Predicated region
  $region58: #{tpu_custom_call.1} parent=0 // pred_check
    _
  $region59: #{tpu_custom_call.1} parent=0 // pred_check_branch
    %52 = sbr.rel (0) target = $region61
  $region60: #{tpu_custom_call.1} parent=0 // pred_region
    _
  $region61: #{tpu_custom_call.1} parent=0 // pred_fallthru
    _
  // Predicated region
  $region62: #{tpu_custom_call.1} parent=0 // pred_check
    _
  $region63: #{tpu_custom_call.1} parent=0 // pred_check_branch
    %54 = sbr.rel (0) target = $region65
  $region64: #{tpu_custom_call.1} parent=0 // pred_region
    _
  $region65: #{tpu_custom_call.1} parent=0 // pred_fallthru
    _
  // Predicated region
  $region66: #{tpu_custom_call.1} parent=0 // pred_check
    _
  $region67: #{tpu_custom_call.1} parent=0 // pred_check_branch
    %56 = sbr.rel (0) target = $region69
  $region68: #{tpu_custom_call.1} parent=0 // pred_region
    _
  $region69: #{tpu_custom_call.1} parent=0 // pred_fallthru
    _
  // Predicated region
  $region70: #{tpu_custom_call.1} parent=0 // pred_check
    _
  $region71: #{tpu_custom_call.1} parent=0 // pred_check_branch
    %58 = sbr.rel (0) target = $region73
  $region72: #{tpu_custom_call.1} parent=0 // pred_region
    _
  $region73: #{tpu_custom_call.1} parent=0 // pred_fallthru
    _
  %v60 = vld [vmem:[%s0] sm:$0xff]
  %v61 = vld [vmem:[%s0 + $0x8] sm:$0xff]
  %v62 = vld [vmem:[%s0 + $0x10] sm:$0xff]
  %v63 = vld [vmem:[%s0 + $0x18] sm:$0xff]
  %v64 = vld [vmem:[%s0 + $0x20] sm:$0xff]
  %v65 = vld [vmem:[%s0 + $0x28] sm:$0xff]
  %v66 = vld [vmem:[%s0 + $0x30] sm:$0xff]
  %v67 = vld [vmem:[%s0 + $0x38] sm:$0xff]
  %v68 = vld [vmem:[%s0 + $0x40] sm:$0xff]
  %v69 = vld [vmem:[%s0 + $0x48] sm:$0xff]
  %v70 = vld [vmem:[%s0 + $0x50] sm:$0xff]
  %v71 = vld [vmem:[%s0 + $0x58] sm:$0xff]
  %v72 = vld [vmem:[%s0 + $0x60] sm:$0xff]
  %v73 = vld [vmem:[%s0 + $0x68] sm:$0xff]
  %v74 = vld [vmem:[%s0 + $0x70] sm:$0xff]
  %v75 = vld [vmem:[%s0 + $0x78] sm:$0xff]
  %s76 = scalar_lea.vmem %s0, 128
  %v77 = vld [vmem:[%s76] sm:$0xff]
  %v78 = vld [vmem:[%s76 + $0x8] sm:$0xff]
  %v79 = vld [vmem:[%s76 + $0x10] sm:$0xff]
  %v80 = vld [vmem:[%s76 + $0x18] sm:$0xff]
  %v81 = vld [vmem:[%s76 + $0x20] sm:$0xff]
  %v82 = vld [vmem:[%s76 + $0x28] sm:$0xff]
  %v83 = vld [vmem:[%s76 + $0x30] sm:$0xff]
  %v84 = vld [vmem:[%s76 + $0x38] sm:$0xff]
  %v85 = vld [vmem:[%s76 + $0x40] sm:$0xff]
  %v86 = vld [vmem:[%s76 + $0x48] sm:$0xff]
  %v87 = vld [vmem:[%s76 + $0x50] sm:$0xff]
  %v88 = vld [vmem:[%s76 + $0x58] sm:$0xff]
  %v89 = vld [vmem:[%s76 + $0x60] sm:$0xff]
  %v90 = vld [vmem:[%s76 + $0x68] sm:$0xff]
  %v91 = vld [vmem:[%s76 + $0x70] sm:$0xff]
  %v92 = vld [vmem:[%s76 + $0x78] sm:$0xff]
  %v93 = vmax.f32 %v60, %v77
  %v94 = vmax.f32 %v61, %v78
  %v95 = vmax.f32 %v62, %v79
  %v96 = vmax.f32 %v63, %v80
  %v97 = vmax.f32 %v64, %v81
  %v98 = vmax.f32 %v65, %v82
  %v99 = vmax.f32 %v66, %v83
  %v100 = vmax.f32 %v67, %v84
  %v101 = vmax.f32 %v68, %v85
  %v102 = vmax.f32 %v69, %v86
  %v103 = vmax.f32 %v70, %v87
  %v104 = vmax.f32 %v71, %v88
  %v105 = vmax.f32 %v72, %v89
  %v106 = vmax.f32 %v73, %v90
  %v107 = vmax.f32 %v74, %v91
  %v108 = vmax.f32 %v75, %v92
  %s109 = scalar_lea.vmem %s0, 256
  %v110 = vld [vmem:[%s109] sm:$0xff]
  %v111 = vld [vmem:[%s109 + $0x8] sm:$0xff]
  %v112 = vld [vmem:[%s109 + $0x10] sm:$0xff]
  %v113 = vld [vmem:[%s109 + $0x18] sm:$0xff]
  %v114 = vld [vmem:[%s109 + $0x20] sm:$0xff]
  %v115 = vld [vmem:[%s109 + $0x28] sm:$0xff]
  %v116 = vld [vmem:[%s109 + $0x30] sm:$0xff]
  %v117 = vld [vmem:[%s109 + $0x38] sm:$0xff]
  %v118 = vld [vmem:[%s109 + $0x40] sm:$0xff]
  %v119 = vld [vmem:[%s109 + $0x48] sm:$0xff]
  %v120 = vld [vmem:[%s109 + $0x50] sm:$0xff]
  %v121 = vld [vmem:[%s109 + $0x58] sm:$0xff]
  %v122 = vld [vmem:[%s109 + $0x60] sm:$0xff]
  %v123 = vld [vmem:[%s109 + $0x68] sm:$0xff]
  %v124 = vld [vmem:[%s109 + $0x70] sm:$0xff]
  %v125 = vld [vmem:[%s109 + $0x78] sm:$0xff]
  %s126 = scalar_lea.vmem %s0, 384
  %v127 = vld [vmem:[%s126] sm:$0xff]
  %v128 = vld [vmem:[%s126 + $0x8] sm:$0xff]
  %v129 = vld [vmem:[%s126 + $0x10] sm:$0xff]
  %v130 = vld [vmem:[%s126 + $0x18] sm:$0xff]
  %v131 = vld [vmem:[%s126 + $0x20] sm:$0xff]
  %v132 = vld [vmem:[%s126 + $0x28] sm:$0xff]
  %v133 = vld [vmem:[%s126 + $0x30] sm:$0xff]
  %v134 = vld [vmem:[%s126 + $0x38] sm:$0xff]
  %v135 = vld [vmem:[%s126 + $0x40] sm:$0xff]
  %v136 = vld [vmem:[%s126 + $0x48] sm:$0xff]
  %v137 = vld [vmem:[%s126 + $0x50] sm:$0xff]
  %v138 = vld [vmem:[%s126 + $0x58] sm:$0xff]
  %v139 = vld [vmem:[%s126 + $0x60] sm:$0xff]
  %v140 = vld [vmem:[%s126 + $0x68] sm:$0xff]
  %v141 = vld [vmem:[%s126 + $0x70] sm:$0xff]
  %v142 = vld [vmem:[%s126 + $0x78] sm:$0xff]
  %v143 = vmax.f32 %v110, %v127
  %v144 = vmax.f32 %v111, %v128
  %v145 = vmax.f32 %v112, %v129
  %v146 = vmax.f32 %v113, %v130
  %v147 = vmax.f32 %v114, %v131
  %v148 = vmax.f32 %v115, %v132
  %v149 = vmax.f32 %v116, %v133
  %v150 = vmax.f32 %v117, %v134
  %v151 = vmax.f32 %v118, %v135
  %v152 = vmax.f32 %v119, %v136
  %v153 = vmax.f32 %v120, %v137
  %v154 = vmax.f32 %v121, %v138
  %v155 = vmax.f32 %v122, %v139
  %v156 = vmax.f32 %v123, %v140
  %v157 = vmax.f32 %v124, %v141
  %v158 = vmax.f32 %v125, %v142
  %v159 = vmax.f32 %v93, %v143
  %v160 = vmax.f32 %v94, %v144
  %v161 = vmax.f32 %v95, %v145
  %v162 = vmax.f32 %v96, %v146
  %v163 = vmax.f32 %v97, %v147
  %v164 = vmax.f32 %v98, %v148
  %v165 = vmax.f32 %v99, %v149
  %v166 = vmax.f32 %v100, %v150
  %v167 = vmax.f32 %v101, %v151
  %v168 = vmax.f32 %v102, %v152
  %v169 = vmax.f32 %v103, %v153
  %v170 = vmax.f32 %v104, %v154
  %v171 = vmax.f32 %v105, %v155
  %v172 = vmax.f32 %v106, %v156
  %v173 = vmax.f32 %v107, %v157
  %v174 = vmax.f32 %v108, %v158
  %vm177 = vcmask 1040384
  %v178 = vrot.slane %v173, 7
  %v179 = vrot.slane %v174, 7
  %v180 = vsel %vm177, %v178, %v179
  %v197 = vrot.slane %v159, 7
  %v198 = vrot.slane %v160, 7
  %v199 = vsel %vm177, %v197, %v198
  %v200 = vrot.slane %v161, 7
  %v201 = vsel %vm177, %v198, %v200
  %v202 = vrot.slane %v162, 7
  %v203 = vsel %vm177, %v200, %v202
  %v204 = vrot.slane %v163, 7
  %v205 = vsel %vm177, %v202, %v204
  %v206 = vrot.slane %v164, 7
  %v207 = vsel %vm177, %v204, %v206
  %v208 = vrot.slane %v165, 7
  %v209 = vsel %vm177, %v206, %v208
  %v210 = vrot.slane %v166, 7
  %v211 = vsel %vm177, %v208, %v210
  %v212 = vrot.slane %v167, 7
  %v213 = vsel %vm177, %v210, %v212
  %v214 = vrot.slane %v168, 7
  %v215 = vsel %vm177, %v212, %v214
  %v216 = vrot.slane %v169, 7
  %v217 = vsel %vm177, %v214, %v216
  %v218 = vrot.slane %v170, 7
  %v219 = vsel %vm177, %v216, %v218
  %v220 = vrot.slane %v171, 7
  %v221 = vsel %vm177, %v218, %v220
  %v222 = vrot.slane %v172, 7
  %v223 = vsel %vm177, %v220, %v222
  %v224 = vsel %vm177, %v222, %v178
  %v240 = vsel %vm177, %v179, %v197
  %v241 = vld [vmem:[%s2] sm:$0xff]
  %v242 = vld [vmem:[%s2 + $0x8] sm:$0xff]
  %v243 = vld [vmem:[%s2 + $0x10] sm:$0xff]
  %v244 = vld [vmem:[%s2 + $0x18] sm:$0xff]
  %v245 = vld [vmem:[%s2 + $0x20] sm:$0xff]
  %v246 = vld [vmem:[%s2 + $0x28] sm:$0xff]
  %v247 = vld [vmem:[%s2 + $0x30] sm:$0xff]
  %v248 = vld [vmem:[%s2 + $0x38] sm:$0xff]
  %v249 = vld [vmem:[%s2 + $0x40] sm:$0xff]
  %v250 = vld [vmem:[%s2 + $0x48] sm:$0xff]
  %v251 = vld [vmem:[%s2 + $0x50] sm:$0xff]
  %v252 = vld [vmem:[%s2 + $0x58] sm:$0xff]
  %v253 = vld [vmem:[%s2 + $0x60] sm:$0xff]
  %v254 = vld [vmem:[%s2 + $0x68] sm:$0xff]
  %v255 = vld [vmem:[%s2 + $0x70] sm:$0xff]
  %v256 = vld [vmem:[%s2 + $0x78] sm:$0xff]
  %v257 = vmul.f32 %v180, %v241
  %v258 = vmul.f32 %v240, %v242
  %v259 = vmul.f32 %v199, %v243
  %v260 = vmul.f32 %v201, %v244
  %v261 = vmul.f32 %v203, %v245
  %v262 = vmul.f32 %v205, %v246
  %v263 = vmul.f32 %v207, %v247
  %v264 = vmul.f32 %v209, %v248
  %v265 = vmul.f32 %v211, %v249
  %v266 = vmul.f32 %v213, %v250
  %v267 = vmul.f32 %v215, %v251
  %v268 = vmul.f32 %v217, %v252
  %v269 = vmul.f32 %v219, %v253
  %v270 = vmul.f32 %v221, %v254
  %v271 = vmul.f32 %v223, %v255
  %v272 = vmul.f32 %v224, %v256
  %v273 = vpack.c.bf16 %v257, %v257
  %v274 = vpack.c.bf16 %v258, %v258
  %v275 = vpack.c.bf16 %v259, %v259
  %v276 = vpack.c.bf16 %v260, %v260
  %v277 = vpack.c.bf16 %v261, %v261
  %v278 = vpack.c.bf16 %v262, %v262
  %v279 = vpack.c.bf16 %v263, %v263
  %v280 = vpack.c.bf16 %v264, %v264
  %v281 = vpack.c.bf16 %v265, %v265
  %v282 = vpack.c.bf16 %v266, %v266
  %v283 = vpack.c.bf16 %v267, %v267
  %v284 = vpack.c.bf16 %v268, %v268
  %v285 = vpack.c.bf16 %v269, %v269
  %v286 = vpack.c.bf16 %v270, %v270
  %v287 = vpack.c.bf16 %v271, %v271
  %v288 = vpack.c.bf16 %v272, %v272
  %s289 = scalar_lea.vmem %s2, 128
  %v290 = vld [vmem:[%s289] sm:$0xff]
  %v291 = vld [vmem:[%s289 + $0x8] sm:$0xff]
  %v292 = vld [vmem:[%s289 + $0x10] sm:$0xff]
  %v293 = vld [vmem:[%s289 + $0x18] sm:$0xff]
  %v294 = vld [vmem:[%s289 + $0x20] sm:$0xff]
  %v295 = vld [vmem:[%s289 + $0x28] sm:$0xff]
  %v296 = vld [vmem:[%s289 + $0x30] sm:$0xff]
  %v297 = vld [vmem:[%s289 + $0x38] sm:$0xff]
  %v298 = vld [vmem:[%s289 + $0x40] sm:$0xff]
  %v299 = vld [vmem:[%s289 + $0x48] sm:$0xff]
  %v300 = vld [vmem:[%s289 + $0x50] sm:$0xff]
  %v301 = vld [vmem:[%s289 + $0x58] sm:$0xff]
  %v302 = vld [vmem:[%s289 + $0x60] sm:$0xff]
  %v303 = vld [vmem:[%s289 + $0x68] sm:$0xff]
  %v304 = vld [vmem:[%s289 + $0x70] sm:$0xff]
  %v305 = vld [vmem:[%s289 + $0x78] sm:$0xff]
  %v306 = vmul.f32 %v174, %v290
  %v307 = vmul.f32 %v159, %v291
  %v308 = vmul.f32 %v160, %v292
  %v309 = vmul.f32 %v161, %v293
  %v310 = vmul.f32 %v162, %v294
  %v311 = vmul.f32 %v163, %v295
  %v312 = vmul.f32 %v164, %v296
  %v313 = vmul.f32 %v165, %v297
  %v314 = vmul.f32 %v166, %v298
  %v315 = vmul.f32 %v167, %v299
  %v316 = vmul.f32 %v168, %v300
  %v317 = vmul.f32 %v169, %v301
  %v318 = vmul.f32 %v170, %v302
  %v319 = vmul.f32 %v171, %v303
  %v320 = vmul.f32 %v172, %v304
  %v321 = vmul.f32 %v173, %v305
  %v322 = vpack.c.bf16 %v306, %v306
  %v323 = vpack.c.bf16 %v307, %v307
  %v324 = vpack.c.bf16 %v308, %v308
  %v325 = vpack.c.bf16 %v309, %v309
  %v326 = vpack.c.bf16 %v310, %v310
  %v327 = vpack.c.bf16 %v311, %v311
  %v328 = vpack.c.bf16 %v312, %v312
  %v329 = vpack.c.bf16 %v313, %v313
  %v330 = vpack.c.bf16 %v314, %v314
  %v331 = vpack.c.bf16 %v315, %v315
  %v332 = vpack.c.bf16 %v316, %v316
  %v333 = vpack.c.bf16 %v317, %v317
  %v334 = vpack.c.bf16 %v318, %v318
  %v335 = vpack.c.bf16 %v319, %v319
  %v336 = vpack.c.bf16 %v320, %v320
  %v337 = vpack.c.bf16 %v321, %v321
  %v338 = vrot.slane %v174, 1
  %vm340 = vcmask 1046528
  %v341 = vrot.slane %v159, 1
  %v342 = vrot.slane %v160, 1
  %v343 = vsel %vm340, %v341, %v342
  %v344 = vrot.slane %v161, 1
  %v345 = vsel %vm340, %v342, %v344
  %v346 = vrot.slane %v162, 1
  %v347 = vsel %vm340, %v344, %v346
  %v348 = vrot.slane %v163, 1
  %v349 = vsel %vm340, %v346, %v348
  %v350 = vrot.slane %v164, 1
  %v351 = vsel %vm340, %v348, %v350
  %v352 = vrot.slane %v165, 1
  %v353 = vsel %vm340, %v350, %v352
  %v354 = vrot.slane %v166, 1
  %v355 = vsel %vm340, %v352, %v354
  %v356 = vrot.slane %v167, 1
  %v357 = vsel %vm340, %v354, %v356
  %v358 = vrot.slane %v168, 1
  %v359 = vsel %vm340, %v356, %v358
  %v360 = vrot.slane %v169, 1
  %v361 = vsel %vm340, %v358, %v360
  %v362 = vrot.slane %v170, 1
  %v363 = vsel %vm340, %v360, %v362
  %v364 = vrot.slane %v171, 1
  %v365 = vsel %vm340, %v362, %v364
  %v366 = vrot.slane %v172, 1
  %v367 = vsel %vm340, %v364, %v366
  %v368 = vrot.slane %v173, 1
  %v369 = vsel %vm340, %v366, %v368
  %v370 = vsel %vm340, %v368, %v338
  %v387 = vsel %vm340, %v338, %v341
  %s388 = scalar_lea.vmem %s2, 256
  %v389 = vld [vmem:[%s388] sm:$0xff]
  %v390 = vld [vmem:[%s388 + $0x8] sm:$0xff]
  %v391 = vld [vmem:[%s388 + $0x10] sm:$0xff]
  %v392 = vld [vmem:[%s388 + $0x18] sm:$0xff]
  %v393 = vld [vmem:[%s388 + $0x20] sm:$0xff]
  %v394 = vld [vmem:[%s388 + $0x28] sm:$0xff]
  %v395 = vld [vmem:[%s388 + $0x30] sm:$0xff]
  %v396 = vld [vmem:[%s388 + $0x38] sm:$0xff]
  %v397 = vld [vmem:[%s388 + $0x40] sm:$0xff]
  %v398 = vld [vmem:[%s388 + $0x48] sm:$0xff]
  %v399 = vld [vmem:[%s388 + $0x50] sm:$0xff]
  %v400 = vld [vmem:[%s388 + $0x58] sm:$0xff]
  %v401 = vld [vmem:[%s388 + $0x60] sm:$0xff]
  %v402 = vld [vmem:[%s388 + $0x68] sm:$0xff]
  %v403 = vld [vmem:[%s388 + $0x70] sm:$0xff]
  %v404 = vld [vmem:[%s388 + $0x78] sm:$0xff]
  %v405 = vmul.f32 %v387, %v389
  %v406 = vmul.f32 %v343, %v390
  %v407 = vmul.f32 %v345, %v391
  %v408 = vmul.f32 %v347, %v392
  %v409 = vmul.f32 %v349, %v393
  %v410 = vmul.f32 %v351, %v394
  %v411 = vmul.f32 %v353, %v395
  %v412 = vmul.f32 %v355, %v396
  %v413 = vmul.f32 %v357, %v397
  %v414 = vmul.f32 %v359, %v398
  %v415 = vmul.f32 %v361, %v399
  %v416 = vmul.f32 %v363, %v400
  %v417 = vmul.f32 %v365, %v401
  %v418 = vmul.f32 %v367, %v402
  %v419 = vmul.f32 %v369, %v403
  %v420 = vmul.f32 %v370, %v404
  %v421 = vpack.c.bf16 %v405, %v405
  %v422 = vpack.c.bf16 %v406, %v406
  %v423 = vpack.c.bf16 %v407, %v407
  %v424 = vpack.c.bf16 %v408, %v408
  %v425 = vpack.c.bf16 %v409, %v409
  %v426 = vpack.c.bf16 %v410, %v410
  %v427 = vpack.c.bf16 %v411, %v411
  %v428 = vpack.c.bf16 %v412, %v412
  %v429 = vpack.c.bf16 %v413, %v413
  %v430 = vpack.c.bf16 %v414, %v414
  %v431 = vpack.c.bf16 %v415, %v415
  %v432 = vpack.c.bf16 %v416, %v416
  %v433 = vpack.c.bf16 %v417, %v417
  %v434 = vpack.c.bf16 %v418, %v418
  %v435 = vpack.c.bf16 %v419, %v419
  %v436 = vpack.c.bf16 %v420, %v420
  %s437 = scalar_lea.vmem %s2, 384
  %v438 = vld [vmem:[%s437] sm:$0xff]
  %v439 = vld [vmem:[%s437 + $0x8] sm:$0xff]
  %v440 = vld [vmem:[%s437 + $0x10] sm:$0xff]
  %v441 = vld [vmem:[%s437 + $0x18] sm:$0xff]
  %v442 = vld [vmem:[%s437 + $0x20] sm:$0xff]
  %v443 = vld [vmem:[%s437 + $0x28] sm:$0xff]
  %v444 = vld [vmem:[%s437 + $0x30] sm:$0xff]
  %v445 = vld [vmem:[%s437 + $0x38] sm:$0xff]
  %v446 = vld [vmem:[%s437 + $0x40] sm:$0xff]
  %v447 = vld [vmem:[%s437 + $0x48] sm:$0xff]
  %v448 = vld [vmem:[%s437 + $0x50] sm:$0xff]
  %v449 = vld [vmem:[%s437 + $0x58] sm:$0xff]
  %v450 = vld [vmem:[%s437 + $0x60] sm:$0xff]
  %v451 = vld [vmem:[%s437 + $0x68] sm:$0xff]
  %v452 = vld [vmem:[%s437 + $0x70] sm:$0xff]
  %v453 = vld [vmem:[%s437 + $0x78] sm:$0xff]
  %v454 = vmul.f32 %v240, %v438
  %v455 = vmul.f32 %v199, %v439
  %v456 = vmul.f32 %v201, %v440
  %v457 = vmul.f32 %v203, %v441
  %v458 = vmul.f32 %v205, %v442
  %v459 = vmul.f32 %v207, %v443
  %v460 = vmul.f32 %v209, %v444
  %v461 = vmul.f32 %v211, %v445
  %v462 = vmul.f32 %v213, %v446
  %v463 = vmul.f32 %v215, %v447
  %v464 = vmul.f32 %v217, %v448
  %v465 = vmul.f32 %v219, %v449
  %v466 = vmul.f32 %v221, %v450
  %v467 = vmul.f32 %v223, %v451
  %v468 = vmul.f32 %v224, %v452
  %v469 = vmul.f32 %v180, %v453
  %v470 = vpack.c.bf16 %v454, %v454
  %v471 = vpack.c.bf16 %v455, %v455
  %v472 = vpack.c.bf16 %v456, %v456
  %v473 = vpack.c.bf16 %v457, %v457
  %v474 = vpack.c.bf16 %v458, %v458
  %v475 = vpack.c.bf16 %v459, %v459
  %v476 = vpack.c.bf16 %v460, %v460
  %v477 = vpack.c.bf16 %v461, %v461
  %v478 = vpack.c.bf16 %v462, %v462
  %v479 = vpack.c.bf16 %v463, %v463
  %v480 = vpack.c.bf16 %v464, %v464
  %v481 = vpack.c.bf16 %v465, %v465
  %v482 = vpack.c.bf16 %v466, %v466
  %v483 = vpack.c.bf16 %v467, %v467
  %v484 = vpack.c.bf16 %v468, %v468
  %v485 = vpack.c.bf16 %v469, %v469
  %v486 = vpack.c.bf16 %v159, %v159
  %v487 = vpack.c.bf16 %v160, %v160
  %v488 = vpack.c.bf16 %v161, %v161
  %v489 = vpack.c.bf16 %v162, %v162
  %v490 = vpack.c.bf16 %v163, %v163
  %v491 = vpack.c.bf16 %v164, %v164
  %v492 = vpack.c.bf16 %v165, %v165
  %v493 = vpack.c.bf16 %v166, %v166
  %v494 = vpack.c.bf16 %v167, %v167
  %v495 = vpack.c.bf16 %v168, %v168
  %v496 = vpack.c.bf16 %v169, %v169
  %v497 = vpack.c.bf16 %v170, %v170
  %v498 = vpack.c.bf16 %v171, %v171
  %v499 = vpack.c.bf16 %v172, %v172
  %v500 = vpack.c.bf16 %v173, %v173
  %v501 = vpack.c.bf16 %v174, %v174
  %s502 = scalar_lea.vmem %s2, 640
  %v503 = vld [vmem:[%s502] sm:$0xff]
  %v504 = vld [vmem:[%s502 + $0x8] sm:$0xff]
  %v505 = vld [vmem:[%s502 + $0x10] sm:$0xff]
  %v506 = vld [vmem:[%s502 + $0x18] sm:$0xff]
  %v507 = vld [vmem:[%s502 + $0x20] sm:$0xff]
  %v508 = vld [vmem:[%s502 + $0x28] sm:$0xff]
  %v509 = vld [vmem:[%s502 + $0x30] sm:$0xff]
  %v510 = vld [vmem:[%s502 + $0x38] sm:$0xff]
  %v511 = vld [vmem:[%s502 + $0x40] sm:$0xff]
  %v512 = vld [vmem:[%s502 + $0x48] sm:$0xff]
  %v513 = vld [vmem:[%s502 + $0x50] sm:$0xff]
  %v514 = vld [vmem:[%s502 + $0x58] sm:$0xff]
  %v515 = vld [vmem:[%s502 + $0x60] sm:$0xff]
  %v516 = vld [vmem:[%s502 + $0x68] sm:$0xff]
  %v517 = vld [vmem:[%s502 + $0x70] sm:$0xff]
  %v518 = vld [vmem:[%s502 + $0x78] sm:$0xff]
  %v519 = vmul.f32 %v343, %v503
  %v520 = vmul.f32 %v345, %v504
  %v521 = vmul.f32 %v347, %v505
  %v522 = vmul.f32 %v349, %v506
  %v523 = vmul.f32 %v351, %v507
  %v524 = vmul.f32 %v353, %v508
  %v525 = vmul.f32 %v355, %v509
  %v526 = vmul.f32 %v357, %v510
  %v527 = vmul.f32 %v359, %v511
  %v528 = vmul.f32 %v361, %v512
  %v529 = vmul.f32 %v363, %v513
  %v530 = vmul.f32 %v365, %v514
  %v531 = vmul.f32 %v367, %v515
  %v532 = vmul.f32 %v369, %v516
  %v533 = vmul.f32 %v370, %v517
  %v534 = vmul.f32 %v387, %v518
  %v535 = vpack.c.bf16 %v519, %v519
  %v536 = vpack.c.bf16 %v520, %v520
  %v537 = vpack.c.bf16 %v521, %v521
  %v538 = vpack.c.bf16 %v522, %v522
  %v539 = vpack.c.bf16 %v523, %v523
  %v540 = vpack.c.bf16 %v524, %v524
  %v541 = vpack.c.bf16 %v525, %v525
  %v542 = vpack.c.bf16 %v526, %v526
  %v543 = vpack.c.bf16 %v527, %v527
  %v544 = vpack.c.bf16 %v528, %v528
  %v545 = vpack.c.bf16 %v529, %v529
  %v546 = vpack.c.bf16 %v530, %v530
  %v547 = vpack.c.bf16 %v531, %v531
  %v548 = vpack.c.bf16 %v532, %v532
  %v549 = vpack.c.bf16 %v533, %v533
  %v550 = vpack.c.bf16 %v534, %v534
  %s551 = scalar_lea.vmem %s2, 768
  %v552 = vld [vmem:[%s551] sm:$0xff]
  %v553 = vld [vmem:[%s551 + $0x8] sm:$0xff]
  %v554 = vld [vmem:[%s551 + $0x10] sm:$0xff]
  %v555 = vld [vmem:[%s551 + $0x18] sm:$0xff]
  %v556 = vld [vmem:[%s551 + $0x20] sm:$0xff]
  %v557 = vld [vmem:[%s551 + $0x28] sm:$0xff]
  %v558 = vld [vmem:[%s551 + $0x30] sm:$0xff]
  %v559 = vld [vmem:[%s551 + $0x38] sm:$0xff]
  %v560 = vld [vmem:[%s551 + $0x40] sm:$0xff]
  %v561 = vld [vmem:[%s551 + $0x48] sm:$0xff]
  %v562 = vld [vmem:[%s551 + $0x50] sm:$0xff]
  %v563 = vld [vmem:[%s551 + $0x58] sm:$0xff]
  %v564 = vld [vmem:[%s551 + $0x60] sm:$0xff]
  %v565 = vld [vmem:[%s551 + $0x68] sm:$0xff]
  %v566 = vld [vmem:[%s551 + $0x70] sm:$0xff]
  %v567 = vld [vmem:[%s551 + $0x78] sm:$0xff]
  %v568 = vmul.f32 %v199, %v552
  %v569 = vmul.f32 %v201, %v553
  %v570 = vmul.f32 %v203, %v554
  %v571 = vmul.f32 %v205, %v555
  %v572 = vmul.f32 %v207, %v556
  %v573 = vmul.f32 %v209, %v557
  %v574 = vmul.f32 %v211, %v558
  %v575 = vmul.f32 %v213, %v559
  %v576 = vmul.f32 %v215, %v560
  %v577 = vmul.f32 %v217, %v561
  %v578 = vmul.f32 %v219, %v562
  %v579 = vmul.f32 %v221, %v563
  %v580 = vmul.f32 %v223, %v564
  %v581 = vmul.f32 %v224, %v565
  %v582 = vmul.f32 %v180, %v566
  %v583 = vmul.f32 %v240, %v567
  %v584 = vpack.c.bf16 %v568, %v568
  %v585 = vpack.c.bf16 %v569, %v569
  %v586 = vpack.c.bf16 %v570, %v570
  %v587 = vpack.c.bf16 %v571, %v571
  %v588 = vpack.c.bf16 %v572, %v572
  %v589 = vpack.c.bf16 %v573, %v573
  %v590 = vpack.c.bf16 %v574, %v574
  %v591 = vpack.c.bf16 %v575, %v575
  %v592 = vpack.c.bf16 %v576, %v576
  %v593 = vpack.c.bf16 %v577, %v577
  %v594 = vpack.c.bf16 %v578, %v578
  %v595 = vpack.c.bf16 %v579, %v579
  %v596 = vpack.c.bf16 %v580, %v580
  %v597 = vpack.c.bf16 %v581, %v581
  %v598 = vpack.c.bf16 %v582, %v582
  %v599 = vpack.c.bf16 %v583, %v583
  %s600 = scalar_lea.vmem %s2, 896
  %v601 = vld [vmem:[%s600] sm:$0xff]
  %v602 = vld [vmem:[%s600 + $0x8] sm:$0xff]
  %v603 = vld [vmem:[%s600 + $0x10] sm:$0xff]
  %v604 = vld [vmem:[%s600 + $0x18] sm:$0xff]
  %v605 = vld [vmem:[%s600 + $0x20] sm:$0xff]
  %v606 = vld [vmem:[%s600 + $0x28] sm:$0xff]
  %v607 = vld [vmem:[%s600 + $0x30] sm:$0xff]
  %v608 = vld [vmem:[%s600 + $0x38] sm:$0xff]
  %v609 = vld [vmem:[%s600 + $0x40] sm:$0xff]
  %v610 = vld [vmem:[%s600 + $0x48] sm:$0xff]
  %v611 = vld [vmem:[%s600 + $0x50] sm:$0xff]
  %v612 = vld [vmem:[%s600 + $0x58] sm:$0xff]
  %v613 = vld [vmem:[%s600 + $0x60] sm:$0xff]
  %v614 = vld [vmem:[%s600 + $0x68] sm:$0xff]
  %v615 = vld [vmem:[%s600 + $0x70] sm:$0xff]
  %v616 = vld [vmem:[%s600 + $0x78] sm:$0xff]
  %v617 = vmul.f32 %v160, %v601
  %v618 = vmul.f32 %v161, %v602
  %v619 = vmul.f32 %v162, %v603
  %v620 = vmul.f32 %v163, %v604
  %v621 = vmul.f32 %v164, %v605
  %v622 = vmul.f32 %v165, %v606
  %v623 = vmul.f32 %v166, %v607
  %v624 = vmul.f32 %v167, %v608
  %v625 = vmul.f32 %v168, %v609
  %v626 = vmul.f32 %v169, %v610
  %v627 = vmul.f32 %v170, %v611
  %v628 = vmul.f32 %v171, %v612
  %v629 = vmul.f32 %v172, %v613
  %v630 = vmul.f32 %v173, %v614
  %v631 = vmul.f32 %v174, %v615
  %v632 = vmul.f32 %v159, %v616
  %v633 = vpack.c.bf16 %v617, %v617
  %v634 = vpack.c.bf16 %v618, %v618
  %v635 = vpack.c.bf16 %v619, %v619
  %v636 = vpack.c.bf16 %v620, %v620
  %v637 = vpack.c.bf16 %v621, %v621
  %v638 = vpack.c.bf16 %v622, %v622
  %v639 = vpack.c.bf16 %v623, %v623
  %v640 = vpack.c.bf16 %v624, %v624
  %v641 = vpack.c.bf16 %v625, %v625
  %v642 = vpack.c.bf16 %v626, %v626
  %v643 = vpack.c.bf16 %v627, %v627
  %v644 = vpack.c.bf16 %v628, %v628
  %v645 = vpack.c.bf16 %v629, %v629
  %v646 = vpack.c.bf16 %v630, %v630
  %v647 = vpack.c.bf16 %v631, %v631
  %v648 = vpack.c.bf16 %v632, %v632
  %s649 = scalar_lea.vmem %s2, 1024
  %v650 = vld [vmem:[%s649] sm:$0xff]
  %v651 = vld [vmem:[%s649 + $0x8] sm:$0xff]
  %v652 = vld [vmem:[%s649 + $0x10] sm:$0xff]
  %v653 = vld [vmem:[%s649 + $0x18] sm:$0xff]
  %v654 = vld [vmem:[%s649 + $0x20] sm:$0xff]
  %v655 = vld [vmem:[%s649 + $0x28] sm:$0xff]
  %v656 = vld [vmem:[%s649 + $0x30] sm:$0xff]
  %v657 = vld [vmem:[%s649 + $0x38] sm:$0xff]
  %v658 = vld [vmem:[%s649 + $0x40] sm:$0xff]
  %v659 = vld [vmem:[%s649 + $0x48] sm:$0xff]
  %v660 = vld [vmem:[%s649 + $0x50] sm:$0xff]
  %v661 = vld [vmem:[%s649 + $0x58] sm:$0xff]
  %v662 = vld [vmem:[%s649 + $0x60] sm:$0xff]
  %v663 = vld [vmem:[%s649 + $0x68] sm:$0xff]
  %v664 = vld [vmem:[%s649 + $0x70] sm:$0xff]
  %v665 = vld [vmem:[%s649 + $0x78] sm:$0xff]
  %v666 = vmul.f32 %v345, %v650
  %v667 = vmul.f32 %v347, %v651
  %v668 = vmul.f32 %v349, %v652
  %v669 = vmul.f32 %v351, %v653
  %v670 = vmul.f32 %v353, %v654
  %v671 = vmul.f32 %v355, %v655
  %v672 = vmul.f32 %v357, %v656
  %v673 = vmul.f32 %v359, %v657
  %v674 = vmul.f32 %v361, %v658
  %v675 = vmul.f32 %v363, %v659
  %v676 = vmul.f32 %v365, %v660
  %v677 = vmul.f32 %v367, %v661
  %v678 = vmul.f32 %v369, %v662
  %v679 = vmul.f32 %v370, %v663
  %v680 = vmul.f32 %v387, %v664
  %v681 = vmul.f32 %v343, %v665
  %v682 = vpack.c.bf16 %v666, %v666
  %v683 = vpack.c.bf16 %v667, %v667
  %v684 = vpack.c.bf16 %v668, %v668
  %v685 = vpack.c.bf16 %v669, %v669
  %v686 = vpack.c.bf16 %v670, %v670
  %v687 = vpack.c.bf16 %v671, %v671
  %v688 = vpack.c.bf16 %v672, %v672
  %v689 = vpack.c.bf16 %v673, %v673
  %v690 = vpack.c.bf16 %v674, %v674
  %v691 = vpack.c.bf16 %v675, %v675
  %v692 = vpack.c.bf16 %v676, %v676
  %v693 = vpack.c.bf16 %v677, %v677
  %v694 = vpack.c.bf16 %v678, %v678
  %v695 = vpack.c.bf16 %v679, %v679
  %v696 = vpack.c.bf16 %v680, %v680
  %v697 = vpack.c.bf16 %v681, %v681
  %v714 = vunpack.c.l.b16 %v273
  %v715 = vunpack.c.l.b16 %v274
  %v716 = vunpack.c.l.b16 %v275
  %v717 = vunpack.c.l.b16 %v276
  %v718 = vunpack.c.l.b16 %v277
  %v719 = vunpack.c.l.b16 %v278
  %v720 = vunpack.c.l.b16 %v279
  %v721 = vunpack.c.l.b16 %v280
  %v722 = vunpack.c.l.b16 %v281
  %v723 = vunpack.c.l.b16 %v282
  %v724 = vunpack.c.l.b16 %v283
  %v725 = vunpack.c.l.b16 %v284
  %v726 = vunpack.c.l.b16 %v285
  %v727 = vunpack.c.l.b16 %v286
  %v728 = vunpack.c.l.b16 %v287
  %v729 = vunpack.c.l.b16 %v288
  %v730 = vpack.c.b16 %v715, %v714
  %v731 = vpack.c.b16 %v717, %v716
  %v732 = vpack.c.b16 %v719, %v718
  %v733 = vpack.c.b16 %v721, %v720
  %v734 = vpack.c.b16 %v723, %v722
  %v735 = vpack.c.b16 %v725, %v724
  %v736 = vpack.c.b16 %v727, %v726
  %v737 = vpack.c.b16 %v729, %v728
  %v754 = vunpack.c.l.b16 %v322
  %v755 = vunpack.c.l.b16 %v323
  %v756 = vunpack.c.l.b16 %v324
  %v757 = vunpack.c.l.b16 %v325
  %v758 = vunpack.c.l.b16 %v326
  %v759 = vunpack.c.l.b16 %v327
  %v760 = vunpack.c.l.b16 %v328
  %v761 = vunpack.c.l.b16 %v329
  %v762 = vunpack.c.l.b16 %v330
  %v763 = vunpack.c.l.b16 %v331
  %v764 = vunpack.c.l.b16 %v332
  %v765 = vunpack.c.l.b16 %v333
  %v766 = vunpack.c.l.b16 %v334
  %v767 = vunpack.c.l.b16 %v335
  %v768 = vunpack.c.l.b16 %v336
  %v769 = vunpack.c.l.b16 %v337
  %v770 = vpack.c.b16 %v755, %v754
  %v771 = vpack.c.b16 %v757, %v756
  %v772 = vpack.c.b16 %v759, %v758
  %v773 = vpack.c.b16 %v761, %v760
  %v774 = vpack.c.b16 %v763, %v762
  %v775 = vpack.c.b16 %v765, %v764
  %v776 = vpack.c.b16 %v767, %v766
  %v777 = vpack.c.b16 %v769, %v768
  %778 = vrot.lane.b32.xlu0 %v770, 32
  %v779 = vpop.permute.xlu0 %778
  %780 = vrot.lane.b32.xlu0 %v771, 32
  %v781 = vpop.permute.xlu0 %780
  %782 = vrot.lane.b32.xlu0 %v772, 32
  %v783 = vpop.permute.xlu0 %782
  %784 = vrot.lane.b32.xlu0 %v773, 32
  %v785 = vpop.permute.xlu0 %784
  %786 = vrot.lane.b32.xlu0 %v774, 32
  %v787 = vpop.permute.xlu0 %786
  %788 = vrot.lane.b32.xlu0 %v775, 32
  %v789 = vpop.permute.xlu0 %788
  %790 = vrot.lane.b32.xlu0 %v776, 32
  %v791 = vpop.permute.xlu0 %790
  %792 = vrot.lane.b32.xlu0 %v777, 32
  %v793 = vpop.permute.xlu0 %792
  %v810 = vunpack.c.l.b16 %v421
  %v811 = vunpack.c.l.b16 %v422
  %v812 = vunpack.c.l.b16 %v423
  %v813 = vunpack.c.l.b16 %v424
  %v814 = vunpack.c.l.b16 %v425
  %v815 = vunpack.c.l.b16 %v426
  %v816 = vunpack.c.l.b16 %v427
  %v817 = vunpack.c.l.b16 %v428
  %v818 = vunpack.c.l.b16 %v429
  %v819 = vunpack.c.l.b16 %v430
  %v820 = vunpack.c.l.b16 %v431
  %v821 = vunpack.c.l.b16 %v432
  %v822 = vunpack.c.l.b16 %v433
  %v823 = vunpack.c.l.b16 %v434
  %v824 = vunpack.c.l.b16 %v435
  %v825 = vunpack.c.l.b16 %v436
  %v826 = vpack.c.b16 %v811, %v810
  %v827 = vpack.c.b16 %v813, %v812
  %v828 = vpack.c.b16 %v815, %v814
  %v829 = vpack.c.b16 %v817, %v816
  %v830 = vpack.c.b16 %v819, %v818
  %v831 = vpack.c.b16 %v821, %v820
  %v832 = vpack.c.b16 %v823, %v822
  %v833 = vpack.c.b16 %v825, %v824
  %834 = vrot.lane.b32.xlu0 %v826, 64
  %v835 = vpop.permute.xlu0 %834
  %836 = vrot.lane.b32.xlu0 %v827, 64
  %v837 = vpop.permute.xlu0 %836
  %838 = vrot.lane.b32.xlu0 %v828, 64
  %v839 = vpop.permute.xlu0 %838
  %840 = vrot.lane.b32.xlu0 %v829, 64
  %v841 = vpop.permute.xlu0 %840
  %842 = vrot.lane.b32.xlu0 %v830, 64
  %v843 = vpop.permute.xlu0 %842
  %844 = vrot.lane.b32.xlu0 %v831, 64
  %v845 = vpop.permute.xlu0 %844
  %846 = vrot.lane.b32.xlu0 %v832, 64
  %v847 = vpop.permute.xlu0 %846
  %848 = vrot.lane.b32.xlu0 %v833, 64
  %v849 = vpop.permute.xlu0 %848
  %v866 = vunpack.c.l.b16 %v470
  %v867 = vunpack.c.l.b16 %v471
  %v868 = vunpack.c.l.b16 %v472
  %v869 = vunpack.c.l.b16 %v473
  %v870 = vunpack.c.l.b16 %v474
  %v871 = vunpack.c.l.b16 %v475
  %v872 = vunpack.c.l.b16 %v476
  %v873 = vunpack.c.l.b16 %v477
  %v874 = vunpack.c.l.b16 %v478
  %v875 = vunpack.c.l.b16 %v479
  %v876 = vunpack.c.l.b16 %v480
  %v877 = vunpack.c.l.b16 %v481
  %v878 = vunpack.c.l.b16 %v482
  %v879 = vunpack.c.l.b16 %v483
  %v880 = vunpack.c.l.b16 %v484
  %v881 = vunpack.c.l.b16 %v485
  %v882 = vpack.c.b16 %v867, %v866
  %v883 = vpack.c.b16 %v869, %v868
  %v884 = vpack.c.b16 %v871, %v870
  %v885 = vpack.c.b16 %v873, %v872
  %v886 = vpack.c.b16 %v875, %v874
  %v887 = vpack.c.b16 %v877, %v876
  %v888 = vpack.c.b16 %v879, %v878
  %v889 = vpack.c.b16 %v881, %v880
  %890 = vrot.lane.b32.xlu0 %v882, 96
  %v891 = vpop.permute.xlu0 %890
  %892 = vrot.lane.b32.xlu0 %v883, 96
  %v893 = vpop.permute.xlu0 %892
  %894 = vrot.lane.b32.xlu0 %v884, 96
  %v895 = vpop.permute.xlu0 %894
  %896 = vrot.lane.b32.xlu0 %v885, 96
  %v897 = vpop.permute.xlu0 %896
  %898 = vrot.lane.b32.xlu0 %v886, 96
  %v899 = vpop.permute.xlu0 %898
  %900 = vrot.lane.b32.xlu0 %v887, 96
  %v901 = vpop.permute.xlu0 %900
  %902 = vrot.lane.b32.xlu0 %v888, 96
  %v903 = vpop.permute.xlu0 %902
  %904 = vrot.lane.b32.xlu0 %v889, 96
  %v905 = vpop.permute.xlu0 %904
  %v922 = vunpack.c.l.b16 %v486
  %v923 = vunpack.c.l.b16 %v487
  %v924 = vunpack.c.l.b16 %v488
  %v925 = vunpack.c.l.b16 %v489
  %v926 = vunpack.c.l.b16 %v490
  %v927 = vunpack.c.l.b16 %v491
  %v928 = vunpack.c.l.b16 %v492
  %v929 = vunpack.c.l.b16 %v493
  %v930 = vunpack.c.l.b16 %v494
  %v931 = vunpack.c.l.b16 %v495
  %v932 = vunpack.c.l.b16 %v496
  %v933 = vunpack.c.l.b16 %v497
  %v934 = vunpack.c.l.b16 %v498
  %v935 = vunpack.c.l.b16 %v499
  %v936 = vunpack.c.l.b16 %v500
  %v937 = vunpack.c.l.b16 %v501
  %v938 = vpack.c.b16 %v923, %v922
  %v939 = vpack.c.b16 %v925, %v924
  %v940 = vpack.c.b16 %v927, %v926
  %v941 = vpack.c.b16 %v929, %v928
  %v942 = vpack.c.b16 %v931, %v930
  %v943 = vpack.c.b16 %v933, %v932
  %v944 = vpack.c.b16 %v935, %v934
  %v945 = vpack.c.b16 %v937, %v936
  %v962 = vunpack.c.l.b16 %v535
  %v963 = vunpack.c.l.b16 %v536
  %v964 = vunpack.c.l.b16 %v537
  %v965 = vunpack.c.l.b16 %v538
  %v966 = vunpack.c.l.b16 %v539
  %v967 = vunpack.c.l.b16 %v540
  %v968 = vunpack.c.l.b16 %v541
  %v969 = vunpack.c.l.b16 %v542
  %v970 = vunpack.c.l.b16 %v543
  %v971 = vunpack.c.l.b16 %v544
  %v972 = vunpack.c.l.b16 %v545
  %v973 = vunpack.c.l.b16 %v546
  %v974 = vunpack.c.l.b16 %v547
  %v975 = vunpack.c.l.b16 %v548
  %v976 = vunpack.c.l.b16 %v549
  %v977 = vunpack.c.l.b16 %v550
  %v978 = vpack.c.b16 %v963, %v962
  %v979 = vpack.c.b16 %v965, %v964
  %v980 = vpack.c.b16 %v967, %v966
  %v981 = vpack.c.b16 %v969, %v968
  %v982 = vpack.c.b16 %v971, %v970
  %v983 = vpack.c.b16 %v973, %v972
  %v984 = vpack.c.b16 %v975, %v974
  %v985 = vpack.c.b16 %v977, %v976
  %986 = vrot.lane.b32.xlu0 %v978, 32
  %v987 = vpop.permute.xlu0 %986
  %988 = vrot.lane.b32.xlu0 %v979, 32
  %v989 = vpop.permute.xlu0 %988
  %990 = vrot.lane.b32.xlu0 %v980, 32
  %v991 = vpop.permute.xlu0 %990
  %992 = vrot.lane.b32.xlu0 %v981, 32
  %v993 = vpop.permute.xlu0 %992
  %994 = vrot.lane.b32.xlu0 %v982, 32
  %v995 = vpop.permute.xlu0 %994
  %996 = vrot.lane.b32.xlu0 %v983, 32
  %v997 = vpop.permute.xlu0 %996
  %998 = vrot.lane.b32.xlu0 %v984, 32
  %v999 = vpop.permute.xlu0 %998
  %1000 = vrot.lane.b32.xlu0 %v985, 32
  %v1001 = vpop.permute.xlu0 %1000
  %v1018 = vunpack.c.l.b16 %v584
  %v1019 = vunpack.c.l.b16 %v585
  %v1020 = vunpack.c.l.b16 %v586
  %v1021 = vunpack.c.l.b16 %v587
  %v1022 = vunpack.c.l.b16 %v588
  %v1023 = vunpack.c.l.b16 %v589
  %v1024 = vunpack.c.l.b16 %v590
  %v1025 = vunpack.c.l.b16 %v591
  %v1026 = vunpack.c.l.b16 %v592
  %v1027 = vunpack.c.l.b16 %v593
  %v1028 = vunpack.c.l.b16 %v594
  %v1029 = vunpack.c.l.b16 %v595
  %v1030 = vunpack.c.l.b16 %v596
  %v1031 = vunpack.c.l.b16 %v597
  %v1032 = vunpack.c.l.b16 %v598
  %v1033 = vunpack.c.l.b16 %v599
  %v1034 = vpack.c.b16 %v1019, %v1018
  %v1035 = vpack.c.b16 %v1021, %v1020
  %v1036 = vpack.c.b16 %v1023, %v1022
  %v1037 = vpack.c.b16 %v1025, %v1024
  %v1038 = vpack.c.b16 %v1027, %v1026
  %v1039 = vpack.c.b16 %v1029, %v1028
  %v1040 = vpack.c.b16 %v1031, %v1030
  %v1041 = vpack.c.b16 %v1033, %v1032
  %1042 = vrot.lane.b32.xlu0 %v1034, 64
  %v1043 = vpop.permute.xlu0 %1042
  %1044 = vrot.lane.b32.xlu0 %v1035, 64
  %v1045 = vpop.permute.xlu0 %1044
  %1046 = vrot.lane.b32.xlu0 %v1036, 64
  %v1047 = vpop.permute.xlu0 %1046
  %1048 = vrot.lane.b32.xlu0 %v1037, 64
  %v1049 = vpop.permute.xlu0 %1048
  %1050 = vrot.lane.b32.xlu0 %v1038, 64
  %v1051 = vpop.permute.xlu0 %1050
  %1052 = vrot.lane.b32.xlu0 %v1039, 64
  %v1053 = vpop.permute.xlu0 %1052
  %1054 = vrot.lane.b32.xlu0 %v1040, 64
  %v1055 = vpop.permute.xlu0 %1054
  %1056 = vrot.lane.b32.xlu0 %v1041, 64
  %v1057 = vpop.permute.xlu0 %1056
  %v1074 = vunpack.c.l.b16 %v633
  %v1075 = vunpack.c.l.b16 %v634
  %v1076 = vunpack.c.l.b16 %v635
  %v1077 = vunpack.c.l.b16 %v636
  %v1078 = vunpack.c.l.b16 %v637
  %v1079 = vunpack.c.l.b16 %v638
  %v1080 = vunpack.c.l.b16 %v639
  %v1081 = vunpack.c.l.b16 %v640
  %v1082 = vunpack.c.l.b16 %v641
  %v1083 = vunpack.c.l.b16 %v642
  %v1084 = vunpack.c.l.b16 %v643
  %v1085 = vunpack.c.l.b16 %v644
  %v1086 = vunpack.c.l.b16 %v645
  %v1087 = vunpack.c.l.b16 %v646
  %v1088 = vunpack.c.l.b16 %v647
  %v1089 = vunpack.c.l.b16 %v648
  %v1090 = vpack.c.b16 %v1075, %v1074
  %v1091 = vpack.c.b16 %v1077, %v1076
  %v1092 = vpack.c.b16 %v1079, %v1078
  %v1093 = vpack.c.b16 %v1081, %v1080
  %v1094 = vpack.c.b16 %v1083, %v1082
  %v1095 = vpack.c.b16 %v1085, %v1084
  %v1096 = vpack.c.b16 %v1087, %v1086
  %v1097 = vpack.c.b16 %v1089, %v1088
  %1098 = vrot.lane.b32.xlu0 %v1090, 96
  %v1099 = vpop.permute.xlu0 %1098
  %1100 = vrot.lane.b32.xlu0 %v1091, 96
  %v1101 = vpop.permute.xlu0 %1100
  %1102 = vrot.lane.b32.xlu0 %v1092, 96
  %v1103 = vpop.permute.xlu0 %1102
  %1104 = vrot.lane.b32.xlu0 %v1093, 96
  %v1105 = vpop.permute.xlu0 %1104
  %1106 = vrot.lane.b32.xlu0 %v1094, 96
  %v1107 = vpop.permute.xlu0 %1106
  %1108 = vrot.lane.b32.xlu0 %v1095, 96
  %v1109 = vpop.permute.xlu0 %1108
  %1110 = vrot.lane.b32.xlu0 %v1096, 96
  %v1111 = vpop.permute.xlu0 %1110
  %1112 = vrot.lane.b32.xlu0 %v1097, 96
  %v1113 = vpop.permute.xlu0 %1112
  %v1130 = vunpack.c.l.b16 %v682
  %v1131 = vunpack.c.l.b16 %v683
  %v1132 = vunpack.c.l.b16 %v684
  %v1133 = vunpack.c.l.b16 %v685
  %v1134 = vunpack.c.l.b16 %v686
  %v1135 = vunpack.c.l.b16 %v687
  %v1136 = vunpack.c.l.b16 %v688
  %v1137 = vunpack.c.l.b16 %v689
  %v1138 = vunpack.c.l.b16 %v690
  %v1139 = vunpack.c.l.b16 %v691
  %v1140 = vunpack.c.l.b16 %v692
  %v1141 = vunpack.c.l.b16 %v693
  %v1142 = vunpack.c.l.b16 %v694
  %v1143 = vunpack.c.l.b16 %v695
  %v1144 = vunpack.c.l.b16 %v696
  %v1145 = vunpack.c.l.b16 %v697
  %v1146 = vpack.c.b16 %v1131, %v1130
  %v1147 = vpack.c.b16 %v1133, %v1132
  %v1148 = vpack.c.b16 %v1135, %v1134
  %v1149 = vpack.c.b16 %v1137, %v1136
  %v1150 = vpack.c.b16 %v1139, %v1138
  %v1151 = vpack.c.b16 %v1141, %v1140
  %v1152 = vpack.c.b16 %v1143, %v1142
  %v1153 = vpack.c.b16 %v1145, %v1144
  %vm1154 = vcmask 261120
  %v1157 = vsel %vm1154, %v730, %v779
  %v1160 = vsel %vm1154, %v731, %v781
  %v1163 = vsel %vm1154, %v732, %v783
  %v1166 = vsel %vm1154, %v733, %v785
  %v1169 = vsel %vm1154, %v734, %v787
  %v1172 = vsel %vm1154, %v735, %v789
  %v1175 = vsel %vm1154, %v736, %v791
  %v1178 = vsel %vm1154, %v737, %v793
  %vm1179 = vcmask 523264
  %v1181 = vsel %vm1179, %v1157, %v835
  %v1183 = vsel %vm1179, %v1160, %v837
  %v1185 = vsel %vm1179, %v1163, %v839
  %v1187 = vsel %vm1179, %v1166, %v841
  %v1189 = vsel %vm1179, %v1169, %v843
  %v1191 = vsel %vm1179, %v1172, %v845
  %v1193 = vsel %vm1179, %v1175, %v847
  %v1195 = vsel %vm1179, %v1178, %v849
  %vm1196 = vcmask 785408
  %v1198 = vsel %vm1196, %v1181, %v891
  %v1201 = vsel %vm1196, %v1183, %v893
  %v1204 = vsel %vm1196, %v1185, %v895
  %v1207 = vsel %vm1196, %v1187, %v897
  %v1210 = vsel %vm1196, %v1189, %v899
  %v1213 = vsel %vm1196, %v1191, %v901
  %v1216 = vsel %vm1196, %v1193, %v903
  %v1219 = vsel %vm1196, %v1195, %v905
  %v1223 = vsel %vm1154, %v938, %v987
  %v1226 = vsel %vm1154, %v939, %v989
  %v1229 = vsel %vm1154, %v940, %v991
  %v1232 = vsel %vm1154, %v941, %v993
  %v1235 = vsel %vm1154, %v942, %v995
  %v1238 = vsel %vm1154, %v943, %v997
  %v1241 = vsel %vm1154, %v944, %v999
  %v1244 = vsel %vm1154, %v945, %v1001
  %v1246 = vsel %vm1179, %v1223, %v1043
  %v1248 = vsel %vm1179, %v1226, %v1045
  %v1250 = vsel %vm1179, %v1229, %v1047
  %v1252 = vsel %vm1179, %v1232, %v1049
  %v1254 = vsel %vm1179, %v1235, %v1051
  %v1256 = vsel %vm1179, %v1238, %v1053
  %v1258 = vsel %vm1179, %v1241, %v1055
  %v1260 = vsel %vm1179, %v1244, %v1057
  %v1262 = vsel %vm1196, %v1246, %v1099
  %v1265 = vsel %vm1196, %v1248, %v1101
  %v1268 = vsel %vm1196, %v1250, %v1103
  %v1271 = vsel %vm1196, %v1252, %v1105
  %v1274 = vsel %vm1196, %v1254, %v1107
  %v1277 = vsel %vm1196, %v1256, %v1109
  %v1280 = vsel %vm1196, %v1258, %v1111
  %v1283 = vsel %vm1196, %v1260, %v1113
  %v1285 = vld [vmem:[%s4] sm:$0xf]
  %v1286 = vld [vmem:[%s4 + $0x4] sm:$0xf]
  %v1287 = vld [vmem:[%s4 + $0x8] sm:$0xf]
  %v1288 = vld [vmem:[%s4 + $0xc] sm:$0xf]
  %v1289 = vld [vmem:[%s4 + $0x10] sm:$0xf]
  %v1290 = vld [vmem:[%s4 + $0x14] sm:$0xf]
  %v1291 = vld [vmem:[%s4 + $0x18] sm:$0xf]
  %v1292 = vld [vmem:[%s4 + $0x1c] sm:$0xf]
  %v1293 = vld [vmem:[%s4 + $0x20] sm:$0xf]
  %v1294 = vld [vmem:[%s4 + $0x24] sm:$0xf]
  %v1295 = vld [vmem:[%s4 + $0x28] sm:$0xf]
  %v1296 = vld [vmem:[%s4 + $0x2c] sm:$0xf]
  %v1297 = vld [vmem:[%s4 + $0x30] sm:$0xf]
  %v1298 = vld [vmem:[%s4 + $0x34] sm:$0xf]
  %v1299 = vld [vmem:[%s4 + $0x38] sm:$0xf]
  %v1300 = vld [vmem:[%s4 + $0x3c] sm:$0xf]
  %v1301 = vld [vmem:[%s4 + $0x40] sm:$0xf]
  %v1302 = vld [vmem:[%s4 + $0x44] sm:$0xf]
  %v1303 = vld [vmem:[%s4 + $0x48] sm:$0xf]
  %v1304 = vld [vmem:[%s4 + $0x4c] sm:$0xf]
  %v1305 = vld [vmem:[%s4 + $0x50] sm:$0xf]
  %v1306 = vld [vmem:[%s4 + $0x54] sm:$0xf]
  %v1307 = vld [vmem:[%s4 + $0x58] sm:$0xf]
  %v1308 = vld [vmem:[%s4 + $0x5c] sm:$0xf]
  %v1309 = vld [vmem:[%s4 + $0x60] sm:$0xf]
  %v1310 = vld [vmem:[%s4 + $0x64] sm:$0xf]
  %v1311 = vld [vmem:[%s4 + $0x68] sm:$0xf]
  %v1312 = vld [vmem:[%s4 + $0x6c] sm:$0xf]
  %v1313 = vld [vmem:[%s4 + $0x70] sm:$0xf]
  %v1314 = vld [vmem:[%s4 + $0x74] sm:$0xf]
  %v1315 = vld [vmem:[%s4 + $0x78] sm:$0xf]
  %v1316 = vld [vmem:[%s4 + $0x7c] sm:$0xf]
  %v1317 = vld [vmem:[%s4 + $0x80] sm:$0xf]
  %v1318 = vld [vmem:[%s4 + $0x84] sm:$0xf]
  %v1319 = vld [vmem:[%s4 + $0x88] sm:$0xf]
  %v1320 = vld [vmem:[%s4 + $0x8c] sm:$0xf]
  %v1357 = vunpack.c.l.b16 %v1285
  %v1358 = vunpack.c.l.b16 %v1286
  %v1359 = vunpack.c.l.b16 %v1287
  %v1360 = vunpack.c.l.b16 %v1288
  %v1361 = vunpack.c.l.b16 %v1289
  %v1362 = vunpack.c.l.b16 %v1290
  %v1363 = vunpack.c.l.b16 %v1291
  %v1364 = vunpack.c.l.b16 %v1292
  %v1365 = vunpack.c.l.b16 %v1293
  %v1366 = vunpack.c.l.b16 %v1294
  %v1367 = vunpack.c.l.b16 %v1295
  %v1368 = vunpack.c.l.b16 %v1296
  %v1369 = vunpack.c.l.b16 %v1297
  %v1370 = vunpack.c.l.b16 %v1298
  %v1371 = vunpack.c.l.b16 %v1299
  %v1372 = vunpack.c.l.b16 %v1300
  %v1373 = vunpack.c.l.b16 %v1301
  %v1374 = vunpack.c.l.b16 %v1302
  %v1375 = vunpack.c.l.b16 %v1303
  %v1376 = vunpack.c.l.b16 %v1304
  %v1377 = vunpack.c.l.b16 %v1305
  %v1378 = vunpack.c.l.b16 %v1306
  %v1379 = vunpack.c.l.b16 %v1307
  %v1380 = vunpack.c.l.b16 %v1308
  %v1381 = vunpack.c.l.b16 %v1309
  %v1382 = vunpack.c.l.b16 %v1310
  %v1383 = vunpack.c.l.b16 %v1311
  %v1384 = vunpack.c.l.b16 %v1312
  %v1385 = vunpack.c.l.b16 %v1313
  %v1386 = vunpack.c.l.b16 %v1314
  %v1387 = vunpack.c.l.b16 %v1315
  %v1388 = vunpack.c.l.b16 %v1316
  %v1389 = vunpack.c.l.b16 %v1317
  %v1390 = vunpack.c.l.b16 %v1318
  %v1391 = vunpack.c.l.b16 %v1319
  %v1392 = vunpack.c.l.b16 %v1320
  %v1393 = vpack.c.b16 %v1358, %v1357
  %v1394 = vpack.c.b16 %v1360, %v1359
  %v1395 = vpack.c.b16 %v1362, %v1361
  %v1396 = vpack.c.b16 %v1364, %v1363
  %v1397 = vpack.c.b16 %v1366, %v1365
  %v1398 = vpack.c.b16 %v1368, %v1367
  %v1399 = vpack.c.b16 %v1370, %v1369
  %v1400 = vpack.c.b16 %v1372, %v1371
  %v1401 = vpack.c.b16 %v1374, %v1373
  %v1402 = vpack.c.b16 %v1376, %v1375
  %v1403 = vpack.c.b16 %v1378, %v1377
  %v1404 = vpack.c.b16 %v1380, %v1379
  %v1405 = vpack.c.b16 %v1382, %v1381
  %v1406 = vpack.c.b16 %v1384, %v1383
  %v1407 = vpack.c.b16 %v1386, %v1385
  %v1408 = vpack.c.b16 %v1388, %v1387
  %v1409 = vpack.c.b16 %v1390, %v1389
  %v1410 = vpack.c.b16 %v1392, %v1391
  %v1430 = vsel %vm1154, %v1146, 0
  %v1433 = vsel %vm1154, %v1147, 0
  %v1436 = vsel %vm1154, %v1148, 0
  %v1439 = vsel %vm1154, %v1149, 0
  %v1442 = vsel %vm1154, %v1150, 0
  %v1445 = vsel %vm1154, %v1151, 0
  %v1448 = vsel %vm1154, %v1152, 0
  %v1451 = vsel %vm1154, %v1153, 0
  %1453 = vmatpush.bf16.msra.mxu0 %v1400
  %1454 = vmatpush.bf16.msra.mxu0 %v1399
  %1455 = vmatpush.bf16.msra.mxu0 %v1398
  %1456 = vmatpush.bf16.msra.mxu0 %v1397
  %1457 = vmatpush.bf16.msra.mxu0 %v1396
  %1458 = vmatpush.bf16.msra.mxu0 %v1395
  %1459 = vmatpush.bf16.msra.mxu0 %v1394
  %1460 = vmatpush.bf16.msra.mxu0 %v1393
  %1461 = vmatmul.bf16.gmra.mxu0 %v1198
  %v1462 = vpop.f32.mrf.mxu0
  %v1463 = vadd.f32 0.0, %v1462
  %v1464 = vpop.f32.mrf.mxu0
  %v1465 = vadd.f32 0.0, %v1464
  %1466 = vmatmul.bf16.gmra.mxu0 %v1201
  %v1467 = vpop.f32.mrf.mxu0
  %v1468 = vadd.f32 0.0, %v1467
  %v1469 = vpop.f32.mrf.mxu0
  %v1470 = vadd.f32 0.0, %v1469
  %1471 = vmatmul.bf16.gmra.mxu0 %v1204
  %v1472 = vpop.f32.mrf.mxu0
  %v1473 = vadd.f32 0.0, %v1472
  %v1474 = vpop.f32.mrf.mxu0
  %v1475 = vadd.f32 0.0, %v1474
  %1476 = vmatmul.bf16.gmra.mxu0 %v1207
  %v1477 = vpop.f32.mrf.mxu0
  %v1478 = vadd.f32 0.0, %v1477
  %v1479 = vpop.f32.mrf.mxu0
  %v1480 = vadd.f32 0.0, %v1479
  %1481 = vmatmul.bf16.gmra.mxu0 %v1210
  %v1482 = vpop.f32.mrf.mxu0
  %v1483 = vadd.f32 0.0, %v1482
  %v1484 = vpop.f32.mrf.mxu0
  %v1485 = vadd.f32 0.0, %v1484
  %1486 = vmatmul.bf16.gmra.mxu0 %v1213
  %v1487 = vpop.f32.mrf.mxu0
  %v1488 = vadd.f32 0.0, %v1487
  %v1489 = vpop.f32.mrf.mxu0
  %v1490 = vadd.f32 0.0, %v1489
  %1491 = vmatmul.bf16.gmra.mxu0 %v1216
  %v1492 = vpop.f32.mrf.mxu0
  %v1493 = vadd.f32 0.0, %v1492
  %v1494 = vpop.f32.mrf.mxu0
  %v1495 = vadd.f32 0.0, %v1494
  %1496 = vmatmul.bf16.gmra.mxu0 %v1219
  %v1497 = vpop.f32.mrf.mxu0
  %v1498 = vadd.f32 0.0, %v1497
  %v1499 = vpop.f32.mrf.mxu0
  %v1500 = vadd.f32 0.0, %v1499
  %1501 = vdwg.mxu0
  %1502 = vmatpush.bf16.msra.mxu0 %v1408
  %1503 = vmatpush.bf16.msra.mxu0 %v1407
  %1504 = vmatpush.bf16.msra.mxu0 %v1406
  %1505 = vmatpush.bf16.msra.mxu0 %v1405
  %1506 = vmatpush.bf16.msra.mxu0 %v1404
  %1507 = vmatpush.bf16.msra.mxu0 %v1403
  %1508 = vmatpush.bf16.msra.mxu0 %v1402
  %1509 = vmatpush.bf16.msra.mxu0 %v1401
  %1510 = vmatmul.bf16.gmra.mxu0 %v1262
  %v1511 = vpop.f32.mrf.mxu0
  %v1512 = vadd.f32 %v1463, %v1511
  %v1513 = vpop.f32.mrf.mxu0
  %v1514 = vadd.f32 %v1465, %v1513
  %1515 = vmatmul.bf16.gmra.mxu0 %v1265
  %v1516 = vpop.f32.mrf.mxu0
  %v1517 = vadd.f32 %v1468, %v1516
  %v1518 = vpop.f32.mrf.mxu0
  %v1519 = vadd.f32 %v1470, %v1518
  %1520 = vmatmul.bf16.gmra.mxu0 %v1268
  %v1521 = vpop.f32.mrf.mxu0
  %v1522 = vadd.f32 %v1473, %v1521
  %v1523 = vpop.f32.mrf.mxu0
  %v1524 = vadd.f32 %v1475, %v1523
  %1525 = vmatmul.bf16.gmra.mxu0 %v1271
  %v1526 = vpop.f32.mrf.mxu0
  %v1527 = vadd.f32 %v1478, %v1526
  %v1528 = vpop.f32.mrf.mxu0
  %v1529 = vadd.f32 %v1480, %v1528
  %1530 = vmatmul.bf16.gmra.mxu0 %v1274
  %v1531 = vpop.f32.mrf.mxu0
  %v1532 = vadd.f32 %v1483, %v1531
  %v1533 = vpop.f32.mrf.mxu0
  %v1534 = vadd.f32 %v1485, %v1533
  %1535 = vmatmul.bf16.gmra.mxu0 %v1277
  %v1536 = vpop.f32.mrf.mxu0
  %v1537 = vadd.f32 %v1488, %v1536
  %v1538 = vpop.f32.mrf.mxu0
  %v1539 = vadd.f32 %v1490, %v1538
  %1540 = vmatmul.bf16.gmra.mxu0 %v1280
  %v1541 = vpop.f32.mrf.mxu0
  %v1542 = vadd.f32 %v1493, %v1541
  %v1543 = vpop.f32.mrf.mxu0
  %v1544 = vadd.f32 %v1495, %v1543
  %1545 = vmatmul.bf16.gmra.mxu0 %v1283
  %v1546 = vpop.f32.mrf.mxu0
  %v1547 = vadd.f32 %v1498, %v1546
  %v1548 = vpop.f32.mrf.mxu0
  %v1549 = vadd.f32 %v1500, %v1548
  %1550 = vdwg.mxu0
  %1551 = vmatpush.bf16.msra.mxu0 0
  %1552 = vmatpush.bf16.msra.mxu0 0
  %1553 = vmatpush.bf16.msra.mxu0 0
  %1554 = vmatpush.bf16.msra.mxu0 0
  %1555 = vmatpush.bf16.msra.mxu0 0
  %1556 = vmatpush.bf16.msra.mxu0 0
  %1557 = vmatpush.bf16.msra.mxu0 %v1410
  %1558 = vmatpush.bf16.msra.mxu0 %v1409
  %1559 = vmatmul.bf16.gmra.mxu0 %v1430
  %v1560 = vpop.f32.mrf.mxu0
  %v1561 = vadd.f32 %v1512, %v1560
  %v1562 = vpop.f32.mrf.mxu0
  %v1563 = vadd.f32 %v1514, %v1562
  %1564 = vmatmul.bf16.gmra.mxu0 %v1433
  %v1565 = vpop.f32.mrf.mxu0
  %v1566 = vadd.f32 %v1517, %v1565
  %v1567 = vpop.f32.mrf.mxu0
  %v1568 = vadd.f32 %v1519, %v1567
  %1569 = vmatmul.bf16.gmra.mxu0 %v1436
  %v1570 = vpop.f32.mrf.mxu0
  %v1571 = vadd.f32 %v1522, %v1570
  %v1572 = vpop.f32.mrf.mxu0
  %v1573 = vadd.f32 %v1524, %v1572
  %1574 = vmatmul.bf16.gmra.mxu0 %v1439
  %v1575 = vpop.f32.mrf.mxu0
  %v1576 = vadd.f32 %v1527, %v1575
  %v1577 = vpop.f32.mrf.mxu0
  %v1578 = vadd.f32 %v1529, %v1577
  %1579 = vmatmul.bf16.gmra.mxu0 %v1442
  %v1580 = vpop.f32.mrf.mxu0
  %v1581 = vadd.f32 %v1532, %v1580
  %v1582 = vpop.f32.mrf.mxu0
  %v1583 = vadd.f32 %v1534, %v1582
  %1584 = vmatmul.bf16.gmra.mxu0 %v1445
  %v1585 = vpop.f32.mrf.mxu0
  %v1586 = vadd.f32 %v1537, %v1585
  %v1587 = vpop.f32.mrf.mxu0
  %v1588 = vadd.f32 %v1539, %v1587
  %1589 = vmatmul.bf16.gmra.mxu0 %v1448
  %v1590 = vpop.f32.mrf.mxu0
  %v1591 = vadd.f32 %v1542, %v1590
  %v1592 = vpop.f32.mrf.mxu0
  %v1593 = vadd.f32 %v1544, %v1592
  %1594 = vmatmul.bf16.gmra.mxu0 %v1451
  %v1595 = vpop.f32.mrf.mxu0
  %v1596 = vadd.f32 %v1547, %v1595
  %v1597 = vpop.f32.mrf.mxu0
  %v1598 = vadd.f32 %v1549, %v1597
  %1599 = vdwg.mxu0
  %v1600 = vsel %vm1154, %v1561, 0.0
  %1601 = vadd.xlane.f32.xlu0 %v1600
  %v1602 = vpop.xlane.xlu0 %1601
  %v1603 = vsel %vm1154, %v1563, 0.0
  %1604 = vadd.xlane.f32.xlu0 %v1603
  %v1605 = vpop.xlane.xlu0 %1604
  %v1606 = vsel %vm1154, %v1566, 0.0
  %1607 = vadd.xlane.f32.xlu0 %v1606
  %v1608 = vpop.xlane.xlu0 %1607
  %v1609 = vsel %vm1154, %v1568, 0.0
  %1610 = vadd.xlane.f32.xlu0 %v1609
  %v1611 = vpop.xlane.xlu0 %1610
  %v1612 = vsel %vm1154, %v1571, 0.0
  %1613 = vadd.xlane.f32.xlu0 %v1612
  %v1614 = vpop.xlane.xlu0 %1613
  %v1615 = vsel %vm1154, %v1573, 0.0
  %1616 = vadd.xlane.f32.xlu0 %v1615
  %v1617 = vpop.xlane.xlu0 %1616
  %v1618 = vsel %vm1154, %v1576, 0.0
  %1619 = vadd.xlane.f32.xlu0 %v1618
  %v1620 = vpop.xlane.xlu0 %1619
  %v1621 = vsel %vm1154, %v1578, 0.0
  %1622 = vadd.xlane.f32.xlu0 %v1621
  %v1623 = vpop.xlane.xlu0 %1622
  %v1624 = vsel %vm1154, %v1581, 0.0
  %1625 = vadd.xlane.f32.xlu0 %v1624
  %v1626 = vpop.xlane.xlu0 %1625
  %v1627 = vsel %vm1154, %v1583, 0.0
  %1628 = vadd.xlane.f32.xlu0 %v1627
  %v1629 = vpop.xlane.xlu0 %1628
  %v1630 = vsel %vm1154, %v1586, 0.0
  %1631 = vadd.xlane.f32.xlu0 %v1630
  %v1632 = vpop.xlane.xlu0 %1631
  %v1633 = vsel %vm1154, %v1588, 0.0
  %1634 = vadd.xlane.f32.xlu0 %v1633
  %v1635 = vpop.xlane.xlu0 %1634
  %v1636 = vsel %vm1154, %v1591, 0.0
  %1637 = vadd.xlane.f32.xlu0 %v1636
  %v1638 = vpop.xlane.xlu0 %1637
  %v1639 = vsel %vm1154, %v1593, 0.0
  %1640 = vadd.xlane.f32.xlu0 %v1639
  %v1641 = vpop.xlane.xlu0 %1640
  %v1642 = vsel %vm1154, %v1596, 0.0
  %1643 = vadd.xlane.f32.xlu0 %v1642
  %v1644 = vpop.xlane.xlu0 %1643
  %v1645 = vsel %vm1154, %v1598, 0.0
  %1646 = vadd.xlane.f32.xlu0 %v1645
  %v1647 = vpop.xlane.xlu0 %1646
  %v1648 = vadd.f32 %v1602, %v1605
  %v1649 = vadd.f32 %v1648, %v1608
  %v1650 = vadd.f32 %v1649, %v1611
  %v1651 = vadd.f32 %v1650, %v1614
  %v1652 = vadd.f32 %v1651, %v1617
  %v1653 = vadd.f32 %v1652, %v1620
  %v1654 = vadd.f32 %v1653, %v1623
  %v1655 = vrot.slane %v1654, 4
  %v1656 = vadd.f32 %v1654, %v1655
  %v1657 = vrot.slane %v1656, 2
  %v1658 = vadd.f32 %v1656, %v1657
  %v1659 = vrot.slane %v1658, 1
  %v1660 = vadd.f32 %v1658, %v1659
  %v1661 = vadd.f32 %v1626, %v1629
  %v1662 = vadd.f32 %v1661, %v1632
  %v1663 = vadd.f32 %v1662, %v1635
  %v1664 = vadd.f32 %v1663, %v1638
  %v1665 = vadd.f32 %v1664, %v1641
  %v1666 = vadd.f32 %v1665, %v1644
  %v1667 = vadd.f32 %v1666, %v1647
  %v1668 = vrot.slane %v1667, 4
  %v1669 = vadd.f32 %v1667, %v1668
  %v1670 = vrot.slane %v1669, 2
  %v1671 = vadd.f32 %v1669, %v1670
  %v1672 = vrot.slane %v1671, 1
  %v1673 = vadd.f32 %v1671, %v1672
  %v1674 = vrcp.pop 2048.0
  %v1675 = vmul.f32 2048.0, %v1674
  %v1676 = vsub.f32 1.0, %v1675
  %v1677 = vmul.f32 %v1674, %v1676
  %v1678 = vadd.f32 %v1674, %v1677
  %vm1679 = vweird.f32 %v1674
  %v1680 = vsel %vm1679, %v1674, %v1678
  %v1681 = vmul.f32 %v1660, %v1680
  %v1682 = vmul.f32 %v1673, %v1680
  %v1683 = vsub.f32 %v1561, %v1681
  %v1684 = vsub.f32 %v1563, %v1681
  %v1685 = vsub.f32 %v1566, %v1681
  %v1686 = vsub.f32 %v1568, %v1681
  %v1687 = vsub.f32 %v1571, %v1681
  %v1688 = vsub.f32 %v1573, %v1681
  %v1689 = vsub.f32 %v1576, %v1681
  %v1690 = vsub.f32 %v1578, %v1681
  %v1691 = vsub.f32 %v1581, %v1682
  %v1692 = vsub.f32 %v1583, %v1682
  %v1693 = vsub.f32 %v1586, %v1682
  %v1694 = vsub.f32 %v1588, %v1682
  %v1695 = vsub.f32 %v1591, %v1682
  %v1696 = vsub.f32 %v1593, %v1682
  %v1697 = vsub.f32 %v1596, %v1682
  %v1698 = vsub.f32 %v1598, %v1682
  %v1699 = vmul.f32 %v1683, %v1683
  %v1700 = vmul.f32 %v1684, %v1684
  %v1701 = vmul.f32 %v1685, %v1685
  %v1702 = vmul.f32 %v1686, %v1686
  %v1703 = vmul.f32 %v1687, %v1687
  %v1704 = vmul.f32 %v1688, %v1688
  %v1705 = vmul.f32 %v1689, %v1689
  %v1706 = vmul.f32 %v1690, %v1690
  %v1707 = vmul.f32 %v1691, %v1691
  %v1708 = vmul.f32 %v1692, %v1692
  %v1709 = vmul.f32 %v1693, %v1693
  %v1710 = vmul.f32 %v1694, %v1694
  %v1711 = vmul.f32 %v1695, %v1695
  %v1712 = vmul.f32 %v1696, %v1696
  %v1713 = vmul.f32 %v1697, %v1697
  %v1714 = vmul.f32 %v1698, %v1698
  %v1715 = vsel %vm1154, %v1699, 0.0
  %1716 = vadd.xlane.f32.xlu0 %v1715
  %v1717 = vpop.xlane.xlu0 %1716
  %v1718 = vsel %vm1154, %v1700, 0.0
  %1719 = vadd.xlane.f32.xlu0 %v1718
  %v1720 = vpop.xlane.xlu0 %1719
  %v1721 = vsel %vm1154, %v1701, 0.0
  %1722 = vadd.xlane.f32.xlu0 %v1721
  %v1723 = vpop.xlane.xlu0 %1722
  %v1724 = vsel %vm1154, %v1702, 0.0
  %1725 = vadd.xlane.f32.xlu0 %v1724
  %v1726 = vpop.xlane.xlu0 %1725
  %v1727 = vsel %vm1154, %v1703, 0.0
  %1728 = vadd.xlane.f32.xlu0 %v1727
  %v1729 = vpop.xlane.xlu0 %1728
  %v1730 = vsel %vm1154, %v1704, 0.0
  %1731 = vadd.xlane.f32.xlu0 %v1730
  %v1732 = vpop.xlane.xlu0 %1731
  %v1733 = vsel %vm1154, %v1705, 0.0
  %1734 = vadd.xlane.f32.xlu0 %v1733
  %v1735 = vpop.xlane.xlu0 %1734
  %v1736 = vsel %vm1154, %v1706, 0.0
  %1737 = vadd.xlane.f32.xlu0 %v1736
  %v1738 = vpop.xlane.xlu0 %1737
  %v1739 = vsel %vm1154, %v1707, 0.0
  %1740 = vadd.xlane.f32.xlu0 %v1739
  %v1741 = vpop.xlane.xlu0 %1740
  %v1742 = vsel %vm1154, %v1708, 0.0
  %1743 = vadd.xlane.f32.xlu0 %v1742
  %v1744 = vpop.xlane.xlu0 %1743
  %v1745 = vsel %vm1154, %v1709, 0.0
  %1746 = vadd.xlane.f32.xlu0 %v1745
  %v1747 = vpop.xlane.xlu0 %1746
  %v1748 = vsel %vm1154, %v1710, 0.0
  %1749 = vadd.xlane.f32.xlu0 %v1748
  %v1750 = vpop.xlane.xlu0 %1749
  %v1751 = vsel %vm1154, %v1711, 0.0
  %1752 = vadd.xlane.f32.xlu0 %v1751
  %v1753 = vpop.xlane.xlu0 %1752
  %v1754 = vsel %vm1154, %v1712, 0.0
  %1755 = vadd.xlane.f32.xlu0 %v1754
  %v1756 = vpop.xlane.xlu0 %1755
  %v1757 = vsel %vm1154, %v1713, 0.0
  %1758 = vadd.xlane.f32.xlu0 %v1757
  %v1759 = vpop.xlane.xlu0 %1758
  %v1760 = vsel %vm1154, %v1714, 0.0
  %1761 = vadd.xlane.f32.xlu0 %v1760
  %v1762 = vpop.xlane.xlu0 %1761
  %v1763 = vadd.f32 %v1717, %v1720
  %v1764 = vadd.f32 %v1763, %v1723
  %v1765 = vadd.f32 %v1764, %v1726
  %v1766 = vadd.f32 %v1765, %v1729
  %v1767 = vadd.f32 %v1766, %v1732
  %v1768 = vadd.f32 %v1767, %v1735
  %v1769 = vadd.f32 %v1768, %v1738
  %v1770 = vrot.slane %v1769, 4
  %v1771 = vadd.f32 %v1769, %v1770
  %v1772 = vrot.slane %v1771, 2
  %v1773 = vadd.f32 %v1771, %v1772
  %v1774 = vrot.slane %v1773, 1
  %v1775 = vadd.f32 %v1773, %v1774
  %v1776 = vadd.f32 %v1741, %v1744
  %v1777 = vadd.f32 %v1776, %v1747
  %v1778 = vadd.f32 %v1777, %v1750
  %v1779 = vadd.f32 %v1778, %v1753
  %v1780 = vadd.f32 %v1779, %v1756
  %v1781 = vadd.f32 %v1780, %v1759
  %v1782 = vadd.f32 %v1781, %v1762
  %v1783 = vrot.slane %v1782, 4
  %v1784 = vadd.f32 %v1782, %v1783
  %v1785 = vrot.slane %v1784, 2
  %v1786 = vadd.f32 %v1784, %v1785
  %v1787 = vrot.slane %v1786, 1
  %v1788 = vadd.f32 %v1786, %v1787
  %v1789 = vmul.f32 %v1775, %v1680
  %v1790 = vmul.f32 %v1788, %v1680
  %v1791 = vadd.f32 %v1789, 1e-05
  %v1792 = vadd.f32 %v1790, 1e-05
  %v1793 = vrsqrt.pop %v1791
  %v1794 = vmul.f32 %v1793, %v1791
  %v1795 = vmul.f32 %v1794, %v1793
  %v1796 = vmul.f32 0.5, %v1795
  %v1797 = vsub.f32 1.5, %v1796
  %v1798 = vmul.f32 %v1793, %v1797
  %vm1799 = vweird.f32 %v1791
  %vm1800 = vweird.f32 %v1793
  %vm1801 = vmor %vm1799, %vm1800
  %v1802 = vsel %vm1801, %v1793, %v1798
  %v1803 = vrsqrt.pop %v1792
  %v1804 = vmul.f32 %v1803, %v1792
  %v1805 = vmul.f32 %v1804, %v1803
  %v1806 = vmul.f32 0.5, %v1805
  %v1807 = vsub.f32 1.5, %v1806
  %v1808 = vmul.f32 %v1803, %v1807
  %vm1809 = vweird.f32 %v1792
  %vm1810 = vweird.f32 %v1803
  %vm1811 = vmor %vm1809, %vm1810
  %v1812 = vsel %vm1811, %v1803, %v1808
  %v1813 = vmul.f32 %v1683, %v1802
  %v1814 = vmul.f32 %v1684, %v1802
  %v1815 = vmul.f32 %v1685, %v1802
  %v1816 = vmul.f32 %v1686, %v1802
  %v1817 = vmul.f32 %v1687, %v1802
  %v1818 = vmul.f32 %v1688, %v1802
  %v1819 = vmul.f32 %v1689, %v1802
  %v1820 = vmul.f32 %v1690, %v1802
  %v1821 = vmul.f32 %v1691, %v1812
  %v1822 = vmul.f32 %v1692, %v1812
  %v1823 = vmul.f32 %v1693, %v1812
  %v1824 = vmul.f32 %v1694, %v1812
  %v1825 = vmul.f32 %v1695, %v1812
  %v1826 = vmul.f32 %v1696, %v1812
  %v1827 = vmul.f32 %v1697, %v1812
  %v1828 = vmul.f32 %v1698, %v1812
  %v1829 = vld [vmem:[%s5] sm:$0x1]
  %v1831 = vperm.slane %v1829, 0
  %v1833 = vmul.f32 %v1813, %v1831
  %v1834 = vmul.f32 %v1814, %v1831
  %v1835 = vmul.f32 %v1815, %v1831
  %v1836 = vmul.f32 %v1816, %v1831
  %v1837 = vmul.f32 %v1817, %v1831
  %v1838 = vmul.f32 %v1818, %v1831
  %v1839 = vmul.f32 %v1819, %v1831
  %v1840 = vmul.f32 %v1820, %v1831
  %v1841 = vmul.f32 %v1821, %v1831
  %v1842 = vmul.f32 %v1822, %v1831
  %v1843 = vmul.f32 %v1823, %v1831
  %v1844 = vmul.f32 %v1824, %v1831
  %v1845 = vmul.f32 %v1825, %v1831
  %v1846 = vmul.f32 %v1826, %v1831
  %v1847 = vmul.f32 %v1827, %v1831
  %v1848 = vmul.f32 %v1828, %v1831
  %v1849 = vld [vmem:[%s6] sm:$0x1]
  %v1851 = vperm.slane %v1849, 0
  %v1853 = vadd.f32 %v1833, %v1851
  %v1854 = vadd.f32 %v1834, %v1851
  %v1855 = vadd.f32 %v1835, %v1851
  %v1856 = vadd.f32 %v1836, %v1851
  %v1857 = vadd.f32 %v1837, %v1851
  %v1858 = vadd.f32 %v1838, %v1851
  %v1859 = vadd.f32 %v1839, %v1851
  %v1860 = vadd.f32 %v1840, %v1851
  %v1861 = vadd.f32 %v1841, %v1851
  %v1862 = vadd.f32 %v1842, %v1851
  %v1863 = vadd.f32 %v1843, %v1851
  %v1864 = vadd.f32 %v1844, %v1851
  %v1865 = vadd.f32 %v1845, %v1851
  %v1866 = vadd.f32 %v1846, %v1851
  %v1867 = vadd.f32 %v1847, %v1851
  %v1868 = vadd.f32 %v1848, %v1851
  %v1869 = vmul.f32 %v1853, 0.5
  %v1870 = vmul.f32 %v1854, 0.5
  %v1871 = vmul.f32 %v1855, 0.5
  %v1872 = vmul.f32 %v1856, 0.5
  %v1873 = vmul.f32 %v1857, 0.5
  %v1874 = vmul.f32 %v1858, 0.5
  %v1875 = vmul.f32 %v1859, 0.5
  %v1876 = vmul.f32 %v1860, 0.5
  %v1877 = vmul.f32 %v1861, 0.5
  %v1878 = vmul.f32 %v1862, 0.5
  %v1879 = vmul.f32 %v1863, 0.5
  %v1880 = vmul.f32 %v1864, 0.5
  %v1881 = vmul.f32 %v1865, 0.5
  %v1882 = vmul.f32 %v1866, 0.5
  %v1883 = vmul.f32 %v1867, 0.5
  %v1884 = vmul.f32 %v1868, 0.5
  %v1885 = vmul.f32 %v1853, 0.70710677
  %v1886 = vmul.f32 %v1854, 0.70710677
  %v1887 = vmul.f32 %v1855, 0.70710677
  %v1888 = vmul.f32 %v1856, 0.70710677
  %v1889 = vmul.f32 %v1857, 0.70710677
  %v1890 = vmul.f32 %v1858, 0.70710677
  %v1891 = vmul.f32 %v1859, 0.70710677
  %v1892 = vmul.f32 %v1860, 0.70710677
  %v1893 = vmul.f32 %v1861, 0.70710677
  %v1894 = vmul.f32 %v1862, 0.70710677
  %v1895 = vmul.f32 %v1863, 0.70710677
  %v1896 = vmul.f32 %v1864, 0.70710677
  %v1897 = vmul.f32 %v1865, 0.70710677
  %v1898 = vmul.f32 %v1866, 0.70710677
  %v1899 = vmul.f32 %v1867, 0.70710677
  %v1900 = vmul.f32 %v1868, 0.70710677
  %v1901 = vmul.f32 %v1885, %v1885
  %v1902 = vmin.f32 16.0, %v1901
  %v1903 = vmul.f32 %v1902, 2.1237322e-06
  %v1904 = vadd.f32 %v1903, 0.00028619796
  %v1905 = vmul.f32 %v1902, %v1904
  %v1906 = vadd.f32 %v1905, 0.0036580483
  %v1907 = vmul.f32 %v1902, %v1906
  %v1908 = vadd.f32 %v1907, 0.05243302
  %v1909 = vmul.f32 %v1902, %v1908
  %v1910 = vadd.f32 %v1909, 0.18741608
  %v1911 = vmul.f32 %v1902, %v1910
  %v1912 = vadd.f32 %v1911, 1.1283791
  %v1913 = vmul.f32 %v1885, %v1912
  %v1914 = vmul.f32 %v1902, 3.8918573e-05
  %v1915 = vadd.f32 %v1914, 0.001143296
  %v1916 = vmul.f32 %v1902, %v1915
  %v1917 = vadd.f32 %v1916, 0.014752088
  %v1918 = vmul.f32 %v1902, %v1917
  %v1919 = vadd.f32 %v1918, 0.112945676
  %v1920 = vmul.f32 %v1902, %v1919
  %v1921 = vadd.f32 %v1920, 0.4994258
  %v1922 = vmul.f32 %v1902, %v1921
  %v1923 = vadd.f32 %v1922, 1.0
  %v1924 = vrcp.pop %v1923
  %v1925 = vmul.f32 %v1923, %v1924
  %v1926 = vsub.f32 1.0, %v1925
  %v1927 = vmul.f32 %v1924, %v1926
  %v1928 = vadd.f32 %v1924, %v1927
  %vm1929 = vweird.f32 %v1923
  %vm1930 = vweird.f32 %v1924
  %vm1931 = vmor %vm1929, %vm1930
  %v1932 = vsel %vm1931, %v1924, %v1928
  %v1933 = vand.u32 2147483647, %v1923
  %vm1934 = vcmp.eq.f32.partialorder %v1933, 8.507059e+37
  %v1935 = vand.u32 %v1923, 2147483648
  %v1936 = vor.u32 1.1754944e-38, %v1935
  %v1937 = vsel %vm1934, %v1936, %v1932
  %v1938 = vmul.f32 %v1913, %v1937
  %v1939 = vmin.f32 %v1938, 1.0
  %v1940 = vmax.f32 %v1939, -1.0
  %v1941 = vmul.f32 %v1886, %v1886
  %v1942 = vmin.f32 16.0, %v1941
  %v1943 = vmul.f32 %v1942, 2.1237322e-06
  %v1944 = vadd.f32 %v1943, 0.00028619796
  %v1945 = vmul.f32 %v1942, %v1944
  %v1946 = vadd.f32 %v1945, 0.0036580483
  %v1947 = vmul.f32 %v1942, %v1946
  %v1948 = vadd.f32 %v1947, 0.05243302
  %v1949 = vmul.f32 %v1942, %v1948
  %v1950 = vadd.f32 %v1949, 0.18741608
  %v1951 = vmul.f32 %v1942, %v1950
  %v1952 = vadd.f32 %v1951, 1.1283791
  %v1953 = vmul.f32 %v1886, %v1952
  %v1954 = vmul.f32 %v1942, 3.8918573e-05
  %v1955 = vadd.f32 %v1954, 0.001143296
  %v1956 = vmul.f32 %v1942, %v1955
  %v1957 = vadd.f32 %v1956, 0.014752088
  %v1958 = vmul.f32 %v1942, %v1957
  %v1959 = vadd.f32 %v1958, 0.112945676
  %v1960 = vmul.f32 %v1942, %v1959
  %v1961 = vadd.f32 %v1960, 0.4994258
  %v1962 = vmul.f32 %v1942, %v1961
  %v1963 = vadd.f32 %v1962, 1.0
  %v1964 = vrcp.pop %v1963
  %v1965 = vmul.f32 %v1963, %v1964
  %v1966 = vsub.f32 1.0, %v1965
  %v1967 = vmul.f32 %v1964, %v1966
  %v1968 = vadd.f32 %v1964, %v1967
  %vm1969 = vweird.f32 %v1963
  %vm1970 = vweird.f32 %v1964
  %vm1971 = vmor %vm1969, %vm1970
  %v1972 = vsel %vm1971, %v1964, %v1968
  %v1973 = vand.u32 2147483647, %v1963
  %vm1974 = vcmp.eq.f32.partialorder %v1973, 8.507059e+37
  %v1975 = vand.u32 %v1963, 2147483648
  %v1976 = vor.u32 1.1754944e-38, %v1975
  %v1977 = vsel %vm1974, %v1976, %v1972
  %v1978 = vmul.f32 %v1953, %v1977
  %v1979 = vmin.f32 %v1978, 1.0
  %v1980 = vmax.f32 %v1979, -1.0
  %v1981 = vmul.f32 %v1887, %v1887
  %v1982 = vmin.f32 16.0, %v1981
  %v1983 = vmul.f32 %v1982, 2.1237322e-06
  %v1984 = vadd.f32 %v1983, 0.00028619796
  %v1985 = vmul.f32 %v1982, %v1984
  %v1986 = vadd.f32 %v1985, 0.0036580483
  %v1987 = vmul.f32 %v1982, %v1986
  %v1988 = vadd.f32 %v1987, 0.05243302
  %v1989 = vmul.f32 %v1982, %v1988
  %v1990 = vadd.f32 %v1989, 0.18741608
  %v1991 = vmul.f32 %v1982, %v1990
  %v1992 = vadd.f32 %v1991, 1.1283791
  %v1993 = vmul.f32 %v1887, %v1992
  %v1994 = vmul.f32 %v1982, 3.8918573e-05
  %v1995 = vadd.f32 %v1994, 0.001143296
  %v1996 = vmul.f32 %v1982, %v1995
  %v1997 = vadd.f32 %v1996, 0.014752088
  %v1998 = vmul.f32 %v1982, %v1997
  %v1999 = vadd.f32 %v1998, 0.112945676
  %v2000 = vmul.f32 %v1982, %v1999
  %v2001 = vadd.f32 %v2000, 0.4994258
  %v2002 = vmul.f32 %v1982, %v2001
  %v2003 = vadd.f32 %v2002, 1.0
  %v2004 = vrcp.pop %v2003
  %v2005 = vmul.f32 %v2003, %v2004
  %v2006 = vsub.f32 1.0, %v2005
  %v2007 = vmul.f32 %v2004, %v2006
  %v2008 = vadd.f32 %v2004, %v2007
  %vm2009 = vweird.f32 %v2003
  %vm2010 = vweird.f32 %v2004
  %vm2011 = vmor %vm2009, %vm2010
  %v2012 = vsel %vm2011, %v2004, %v2008
  %v2013 = vand.u32 2147483647, %v2003
  %vm2014 = vcmp.eq.f32.partialorder %v2013, 8.507059e+37
  %v2015 = vand.u32 %v2003, 2147483648
  %v2016 = vor.u32 1.1754944e-38, %v2015
  %v2017 = vsel %vm2014, %v2016, %v2012
  %v2018 = vmul.f32 %v1993, %v2017
  %v2019 = vmin.f32 %v2018, 1.0
  %v2020 = vmax.f32 %v2019, -1.0
  %v2021 = vmul.f32 %v1888, %v1888
  %v2022 = vmin.f32 16.0, %v2021
  %v2023 = vmul.f32 %v2022, 2.1237322e-06
  %v2024 = vadd.f32 %v2023, 0.00028619796
  %v2025 = vmul.f32 %v2022, %v2024
  %v2026 = vadd.f32 %v2025, 0.0036580483
  %v2027 = vmul.f32 %v2022, %v2026
  %v2028 = vadd.f32 %v2027, 0.05243302
  %v2029 = vmul.f32 %v2022, %v2028
  %v2030 = vadd.f32 %v2029, 0.18741608
  %v2031 = vmul.f32 %v2022, %v2030
  %v2032 = vadd.f32 %v2031, 1.1283791
  %v2033 = vmul.f32 %v1888, %v2032
  %v2034 = vmul.f32 %v2022, 3.8918573e-05
  %v2035 = vadd.f32 %v2034, 0.001143296
  %v2036 = vmul.f32 %v2022, %v2035
  %v2037 = vadd.f32 %v2036, 0.014752088
  %v2038 = vmul.f32 %v2022, %v2037
  %v2039 = vadd.f32 %v2038, 0.112945676
  %v2040 = vmul.f32 %v2022, %v2039
  %v2041 = vadd.f32 %v2040, 0.4994258
  %v2042 = vmul.f32 %v2022, %v2041
  %v2043 = vadd.f32 %v2042, 1.0
  %v2044 = vrcp.pop %v2043
  %v2045 = vmul.f32 %v2043, %v2044
  %v2046 = vsub.f32 1.0, %v2045
  %v2047 = vmul.f32 %v2044, %v2046
  %v2048 = vadd.f32 %v2044, %v2047
  %vm2049 = vweird.f32 %v2043
  %vm2050 = vweird.f32 %v2044
  %vm2051 = vmor %vm2049, %vm2050
  %v2052 = vsel %vm2051, %v2044, %v2048
  %v2053 = vand.u32 2147483647, %v2043
  %vm2054 = vcmp.eq.f32.partialorder %v2053, 8.507059e+37
  %v2055 = vand.u32 %v2043, 2147483648
  %v2056 = vor.u32 1.1754944e-38, %v2055
  %v2057 = vsel %vm2054, %v2056, %v2052
  %v2058 = vmul.f32 %v2033, %v2057
  %v2059 = vmin.f32 %v2058, 1.0
  %v2060 = vmax.f32 %v2059, -1.0
  %v2061 = vmul.f32 %v1889, %v1889
  %v2062 = vmin.f32 16.0, %v2061
  %v2063 = vmul.f32 %v2062, 2.1237322e-06
  %v2064 = vadd.f32 %v2063, 0.00028619796
  %v2065 = vmul.f32 %v2062, %v2064
  %v2066 = vadd.f32 %v2065, 0.0036580483
  %v2067 = vmul.f32 %v2062, %v2066
  %v2068 = vadd.f32 %v2067, 0.05243302
  %v2069 = vmul.f32 %v2062, %v2068
  %v2070 = vadd.f32 %v2069, 0.18741608
  %v2071 = vmul.f32 %v2062, %v2070
  %v2072 = vadd.f32 %v2071, 1.1283791
  %v2073 = vmul.f32 %v1889, %v2072
  %v2074 = vmul.f32 %v2062, 3.8918573e-05
  %v2075 = vadd.f32 %v2074, 0.001143296
  %v2076 = vmul.f32 %v2062, %v2075
  %v2077 = vadd.f32 %v2076, 0.014752088
  %v2078 = vmul.f32 %v2062, %v2077
  %v2079 = vadd.f32 %v2078, 0.112945676
  %v2080 = vmul.f32 %v2062, %v2079
  %v2081 = vadd.f32 %v2080, 0.4994258
  %v2082 = vmul.f32 %v2062, %v2081
  %v2083 = vadd.f32 %v2082, 1.0
  %v2084 = vrcp.pop %v2083
  %v2085 = vmul.f32 %v2083, %v2084
  %v2086 = vsub.f32 1.0, %v2085
  %v2087 = vmul.f32 %v2084, %v2086
  %v2088 = vadd.f32 %v2084, %v2087
  %vm2089 = vweird.f32 %v2083
  %vm2090 = vweird.f32 %v2084
  %vm2091 = vmor %vm2089, %vm2090
  %v2092 = vsel %vm2091, %v2084, %v2088
  %v2093 = vand.u32 2147483647, %v2083
  %vm2094 = vcmp.eq.f32.partialorder %v2093, 8.507059e+37
  %v2095 = vand.u32 %v2083, 2147483648
  %v2096 = vor.u32 1.1754944e-38, %v2095
  %v2097 = vsel %vm2094, %v2096, %v2092
  %v2098 = vmul.f32 %v2073, %v2097
  %v2099 = vmin.f32 %v2098, 1.0
  %v2100 = vmax.f32 %v2099, -1.0
  %v2101 = vmul.f32 %v1890, %v1890
  %v2102 = vmin.f32 16.0, %v2101
  %v2103 = vmul.f32 %v2102, 2.1237322e-06
  %v2104 = vadd.f32 %v2103, 0.00028619796
  %v2105 = vmul.f32 %v2102, %v2104
  %v2106 = vadd.f32 %v2105, 0.0036580483
  %v2107 = vmul.f32 %v2102, %v2106
  %v2108 = vadd.f32 %v2107, 0.05243302
  %v2109 = vmul.f32 %v2102, %v2108
  %v2110 = vadd.f32 %v2109, 0.18741608
  %v2111 = vmul.f32 %v2102, %v2110
  %v2112 = vadd.f32 %v2111, 1.1283791
  %v2113 = vmul.f32 %v1890, %v2112
  %v2114 = vmul.f32 %v2102, 3.8918573e-05
  %v2115 = vadd.f32 %v2114, 0.001143296
  %v2116 = vmul.f32 %v2102, %v2115
  %v2117 = vadd.f32 %v2116, 0.014752088
  %v2118 = vmul.f32 %v2102, %v2117
  %v2119 = vadd.f32 %v2118, 0.112945676
  %v2120 = vmul.f32 %v2102, %v2119
  %v2121 = vadd.f32 %v2120, 0.4994258
  %v2122 = vmul.f32 %v2102, %v2121
  %v2123 = vadd.f32 %v2122, 1.0
  %v2124 = vrcp.pop %v2123
  %v2125 = vmul.f32 %v2123, %v2124
  %v2126 = vsub.f32 1.0, %v2125
  %v2127 = vmul.f32 %v2124, %v2126
  %v2128 = vadd.f32 %v2124, %v2127
  %vm2129 = vweird.f32 %v2123
  %vm2130 = vweird.f32 %v2124
  %vm2131 = vmor %vm2129, %vm2130
  %v2132 = vsel %vm2131, %v2124, %v2128
  %v2133 = vand.u32 2147483647, %v2123
  %vm2134 = vcmp.eq.f32.partialorder %v2133, 8.507059e+37
  %v2135 = vand.u32 %v2123, 2147483648
  %v2136 = vor.u32 1.1754944e-38, %v2135
  %v2137 = vsel %vm2134, %v2136, %v2132
  %v2138 = vmul.f32 %v2113, %v2137
  %v2139 = vmin.f32 %v2138, 1.0
  %v2140 = vmax.f32 %v2139, -1.0
  %v2141 = vmul.f32 %v1891, %v1891
  %v2142 = vmin.f32 16.0, %v2141
  %v2143 = vmul.f32 %v2142, 2.1237322e-06
  %v2144 = vadd.f32 %v2143, 0.00028619796
  %v2145 = vmul.f32 %v2142, %v2144
  %v2146 = vadd.f32 %v2145, 0.0036580483
  %v2147 = vmul.f32 %v2142, %v2146
  %v2148 = vadd.f32 %v2147, 0.05243302
  %v2149 = vmul.f32 %v2142, %v2148
  %v2150 = vadd.f32 %v2149, 0.18741608
  %v2151 = vmul.f32 %v2142, %v2150
  %v2152 = vadd.f32 %v2151, 1.1283791
  %v2153 = vmul.f32 %v1891, %v2152
  %v2154 = vmul.f32 %v2142, 3.8918573e-05
  %v2155 = vadd.f32 %v2154, 0.001143296
  %v2156 = vmul.f32 %v2142, %v2155
  %v2157 = vadd.f32 %v2156, 0.014752088
  %v2158 = vmul.f32 %v2142, %v2157
  %v2159 = vadd.f32 %v2158, 0.112945676
  %v2160 = vmul.f32 %v2142, %v2159
  %v2161 = vadd.f32 %v2160, 0.4994258
  %v2162 = vmul.f32 %v2142, %v2161
  %v2163 = vadd.f32 %v2162, 1.0
  %v2164 = vrcp.pop %v2163
  %v2165 = vmul.f32 %v2163, %v2164
  %v2166 = vsub.f32 1.0, %v2165
  %v2167 = vmul.f32 %v2164, %v2166
  %v2168 = vadd.f32 %v2164, %v2167
  %vm2169 = vweird.f32 %v2163
  %vm2170 = vweird.f32 %v2164
  %vm2171 = vmor %vm2169, %vm2170
  %v2172 = vsel %vm2171, %v2164, %v2168
  %v2173 = vand.u32 2147483647, %v2163
  %vm2174 = vcmp.eq.f32.partialorder %v2173, 8.507059e+37
  %v2175 = vand.u32 %v2163, 2147483648
  %v2176 = vor.u32 1.1754944e-38, %v2175
  %v2177 = vsel %vm2174, %v2176, %v2172
  %v2178 = vmul.f32 %v2153, %v2177
  %v2179 = vmin.f32 %v2178, 1.0
  %v2180 = vmax.f32 %v2179, -1.0
  %v2181 = vmul.f32 %v1892, %v1892
  %v2182 = vmin.f32 16.0, %v2181
  %v2183 = vmul.f32 %v2182, 2.1237322e-06
  %v2184 = vadd.f32 %v2183, 0.00028619796
  %v2185 = vmul.f32 %v2182, %v2184
  %v2186 = vadd.f32 %v2185, 0.0036580483
  %v2187 = vmul.f32 %v2182, %v2186
  %v2188 = vadd.f32 %v2187, 0.05243302
  %v2189 = vmul.f32 %v2182, %v2188
  %v2190 = vadd.f32 %v2189, 0.18741608
  %v2191 = vmul.f32 %v2182, %v2190
  %v2192 = vadd.f32 %v2191, 1.1283791
  %v2193 = vmul.f32 %v1892, %v2192
  %v2194 = vmul.f32 %v2182, 3.8918573e-05
  %v2195 = vadd.f32 %v2194, 0.001143296
  %v2196 = vmul.f32 %v2182, %v2195
  %v2197 = vadd.f32 %v2196, 0.014752088
  %v2198 = vmul.f32 %v2182, %v2197
  %v2199 = vadd.f32 %v2198, 0.112945676
  %v2200 = vmul.f32 %v2182, %v2199
  %v2201 = vadd.f32 %v2200, 0.4994258
  %v2202 = vmul.f32 %v2182, %v2201
  %v2203 = vadd.f32 %v2202, 1.0
  %v2204 = vrcp.pop %v2203
  %v2205 = vmul.f32 %v2203, %v2204
  %v2206 = vsub.f32 1.0, %v2205
  %v2207 = vmul.f32 %v2204, %v2206
  %v2208 = vadd.f32 %v2204, %v2207
  %vm2209 = vweird.f32 %v2203
  %vm2210 = vweird.f32 %v2204
  %vm2211 = vmor %vm2209, %vm2210
  %v2212 = vsel %vm2211, %v2204, %v2208
  %v2213 = vand.u32 2147483647, %v2203
  %vm2214 = vcmp.eq.f32.partialorder %v2213, 8.507059e+37
  %v2215 = vand.u32 %v2203, 2147483648
  %v2216 = vor.u32 1.1754944e-38, %v2215
  %v2217 = vsel %vm2214, %v2216, %v2212
  %v2218 = vmul.f32 %v2193, %v2217
  %v2219 = vmin.f32 %v2218, 1.0
  %v2220 = vmax.f32 %v2219, -1.0
  %v2221 = vmul.f32 %v1893, %v1893
  %v2222 = vmin.f32 16.0, %v2221
  %v2223 = vmul.f32 %v2222, 2.1237322e-06
  %v2224 = vadd.f32 %v2223, 0.00028619796
  %v2225 = vmul.f32 %v2222, %v2224
  %v2226 = vadd.f32 %v2225, 0.0036580483
  %v2227 = vmul.f32 %v2222, %v2226
  %v2228 = vadd.f32 %v2227, 0.05243302
  %v2229 = vmul.f32 %v2222, %v2228
  %v2230 = vadd.f32 %v2229, 0.18741608
  %v2231 = vmul.f32 %v2222, %v2230
  %v2232 = vadd.f32 %v2231, 1.1283791
  %v2233 = vmul.f32 %v1893, %v2232
  %v2234 = vmul.f32 %v2222, 3.8918573e-05
  %v2235 = vadd.f32 %v2234, 0.001143296
  %v2236 = vmul.f32 %v2222, %v2235
  %v2237 = vadd.f32 %v2236, 0.014752088
  %v2238 = vmul.f32 %v2222, %v2237
  %v2239 = vadd.f32 %v2238, 0.112945676
  %v2240 = vmul.f32 %v2222, %v2239
  %v2241 = vadd.f32 %v2240, 0.4994258
  %v2242 = vmul.f32 %v2222, %v2241
  %v2243 = vadd.f32 %v2242, 1.0
  %v2244 = vrcp.pop %v2243
  %v2245 = vmul.f32 %v2243, %v2244
  %v2246 = vsub.f32 1.0, %v2245
  %v2247 = vmul.f32 %v2244, %v2246
  %v2248 = vadd.f32 %v2244, %v2247
  %vm2249 = vweird.f32 %v2243
  %vm2250 = vweird.f32 %v2244
  %vm2251 = vmor %vm2249, %vm2250
  %v2252 = vsel %vm2251, %v2244, %v2248
  %v2253 = vand.u32 2147483647, %v2243
  %vm2254 = vcmp.eq.f32.partialorder %v2253, 8.507059e+37
  %v2255 = vand.u32 %v2243, 2147483648
  %v2256 = vor.u32 1.1754944e-38, %v2255
  %v2257 = vsel %vm2254, %v2256, %v2252
  %v2258 = vmul.f32 %v2233, %v2257
  %v2259 = vmin.f32 %v2258, 1.0
  %v2260 = vmax.f32 %v2259, -1.0
  %v2261 = vmul.f32 %v1894, %v1894
  %v2262 = vmin.f32 16.0, %v2261
  %v2263 = vmul.f32 %v2262, 2.1237322e-06
  %v2264 = vadd.f32 %v2263, 0.00028619796
  %v2265 = vmul.f32 %v2262, %v2264
  %v2266 = vadd.f32 %v2265, 0.0036580483
  %v2267 = vmul.f32 %v2262, %v2266
  %v2268 = vadd.f32 %v2267, 0.05243302
  %v2269 = vmul.f32 %v2262, %v2268
  %v2270 = vadd.f32 %v2269, 0.18741608
  %v2271 = vmul.f32 %v2262, %v2270
  %v2272 = vadd.f32 %v2271, 1.1283791
  %v2273 = vmul.f32 %v1894, %v2272
  %v2274 = vmul.f32 %v2262, 3.8918573e-05
  %v2275 = vadd.f32 %v2274, 0.001143296
  %v2276 = vmul.f32 %v2262, %v2275
  %v2277 = vadd.f32 %v2276, 0.014752088
  %v2278 = vmul.f32 %v2262, %v2277
  %v2279 = vadd.f32 %v2278, 0.112945676
  %v2280 = vmul.f32 %v2262, %v2279
  %v2281 = vadd.f32 %v2280, 0.4994258
  %v2282 = vmul.f32 %v2262, %v2281
  %v2283 = vadd.f32 %v2282, 1.0
  %v2284 = vrcp.pop %v2283
  %v2285 = vmul.f32 %v2283, %v2284
  %v2286 = vsub.f32 1.0, %v2285
  %v2287 = vmul.f32 %v2284, %v2286
  %v2288 = vadd.f32 %v2284, %v2287
  %vm2289 = vweird.f32 %v2283
  %vm2290 = vweird.f32 %v2284
  %vm2291 = vmor %vm2289, %vm2290
  %v2292 = vsel %vm2291, %v2284, %v2288
  %v2293 = vand.u32 2147483647, %v2283
  %vm2294 = vcmp.eq.f32.partialorder %v2293, 8.507059e+37
  %v2295 = vand.u32 %v2283, 2147483648
  %v2296 = vor.u32 1.1754944e-38, %v2295
  %v2297 = vsel %vm2294, %v2296, %v2292
  %v2298 = vmul.f32 %v2273, %v2297
  %v2299 = vmin.f32 %v2298, 1.0
  %v2300 = vmax.f32 %v2299, -1.0
  %v2301 = vmul.f32 %v1895, %v1895
  %v2302 = vmin.f32 16.0, %v2301
  %v2303 = vmul.f32 %v2302, 2.1237322e-06
  %v2304 = vadd.f32 %v2303, 0.00028619796
  %v2305 = vmul.f32 %v2302, %v2304
  %v2306 = vadd.f32 %v2305, 0.0036580483
  %v2307 = vmul.f32 %v2302, %v2306
  %v2308 = vadd.f32 %v2307, 0.05243302
  %v2309 = vmul.f32 %v2302, %v2308
  %v2310 = vadd.f32 %v2309, 0.18741608
  %v2311 = vmul.f32 %v2302, %v2310
  %v2312 = vadd.f32 %v2311, 1.1283791
  %v2313 = vmul.f32 %v1895, %v2312
  %v2314 = vmul.f32 %v2302, 3.8918573e-05
  %v2315 = vadd.f32 %v2314, 0.001143296
  %v2316 = vmul.f32 %v2302, %v2315
  %v2317 = vadd.f32 %v2316, 0.014752088
  %v2318 = vmul.f32 %v2302, %v2317
  %v2319 = vadd.f32 %v2318, 0.112945676
  %v2320 = vmul.f32 %v2302, %v2319
  %v2321 = vadd.f32 %v2320, 0.4994258
  %v2322 = vmul.f32 %v2302, %v2321
  %v2323 = vadd.f32 %v2322, 1.0
  %v2324 = vrcp.pop %v2323
  %v2325 = vmul.f32 %v2323, %v2324
  %v2326 = vsub.f32 1.0, %v2325
  %v2327 = vmul.f32 %v2324, %v2326
  %v2328 = vadd.f32 %v2324, %v2327
  %vm2329 = vweird.f32 %v2323
  %vm2330 = vweird.f32 %v2324
  %vm2331 = vmor %vm2329, %vm2330
  %v2332 = vsel %vm2331, %v2324, %v2328
  %v2333 = vand.u32 2147483647, %v2323
  %vm2334 = vcmp.eq.f32.partialorder %v2333, 8.507059e+37
  %v2335 = vand.u32 %v2323, 2147483648
  %v2336 = vor.u32 1.1754944e-38, %v2335
  %v2337 = vsel %vm2334, %v2336, %v2332
  %v2338 = vmul.f32 %v2313, %v2337
  %v2339 = vmin.f32 %v2338, 1.0
  %v2340 = vmax.f32 %v2339, -1.0
  %v2341 = vmul.f32 %v1896, %v1896
  %v2342 = vmin.f32 16.0, %v2341
  %v2343 = vmul.f32 %v2342, 2.1237322e-06
  %v2344 = vadd.f32 %v2343, 0.00028619796
  %v2345 = vmul.f32 %v2342, %v2344
  %v2346 = vadd.f32 %v2345, 0.0036580483
  %v2347 = vmul.f32 %v2342, %v2346
  %v2348 = vadd.f32 %v2347, 0.05243302
  %v2349 = vmul.f32 %v2342, %v2348
  %v2350 = vadd.f32 %v2349, 0.18741608
  %v2351 = vmul.f32 %v2342, %v2350
  %v2352 = vadd.f32 %v2351, 1.1283791
  %v2353 = vmul.f32 %v1896, %v2352
  %v2354 = vmul.f32 %v2342, 3.8918573e-05
  %v2355 = vadd.f32 %v2354, 0.001143296
  %v2356 = vmul.f32 %v2342, %v2355
  %v2357 = vadd.f32 %v2356, 0.014752088
  %v2358 = vmul.f32 %v2342, %v2357
  %v2359 = vadd.f32 %v2358, 0.112945676
  %v2360 = vmul.f32 %v2342, %v2359
  %v2361 = vadd.f32 %v2360, 0.4994258
  %v2362 = vmul.f32 %v2342, %v2361
  %v2363 = vadd.f32 %v2362, 1.0
  %v2364 = vrcp.pop %v2363
  %v2365 = vmul.f32 %v2363, %v2364
  %v2366 = vsub.f32 1.0, %v2365
  %v2367 = vmul.f32 %v2364, %v2366
  %v2368 = vadd.f32 %v2364, %v2367
  %vm2369 = vweird.f32 %v2363
  %vm2370 = vweird.f32 %v2364
  %vm2371 = vmor %vm2369, %vm2370
  %v2372 = vsel %vm2371, %v2364, %v2368
  %v2373 = vand.u32 2147483647, %v2363
  %vm2374 = vcmp.eq.f32.partialorder %v2373, 8.507059e+37
  %v2375 = vand.u32 %v2363, 2147483648
  %v2376 = vor.u32 1.1754944e-38, %v2375
  %v2377 = vsel %vm2374, %v2376, %v2372
  %v2378 = vmul.f32 %v2353, %v2377
  %v2379 = vmin.f32 %v2378, 1.0
  %v2380 = vmax.f32 %v2379, -1.0
  %v2381 = vmul.f32 %v1897, %v1897
  %v2382 = vmin.f32 16.0, %v2381
  %v2383 = vmul.f32 %v2382, 2.1237322e-06
  %v2384 = vadd.f32 %v2383, 0.00028619796
  %v2385 = vmul.f32 %v2382, %v2384
  %v2386 = vadd.f32 %v2385, 0.0036580483
  %v2387 = vmul.f32 %v2382, %v2386
  %v2388 = vadd.f32 %v2387, 0.05243302
  %v2389 = vmul.f32 %v2382, %v2388
  %v2390 = vadd.f32 %v2389, 0.18741608
  %v2391 = vmul.f32 %v2382, %v2390
  %v2392 = vadd.f32 %v2391, 1.1283791
  %v2393 = vmul.f32 %v1897, %v2392
  %v2394 = vmul.f32 %v2382, 3.8918573e-05
  %v2395 = vadd.f32 %v2394, 0.001143296
  %v2396 = vmul.f32 %v2382, %v2395
  %v2397 = vadd.f32 %v2396, 0.014752088
  %v2398 = vmul.f32 %v2382, %v2397
  %v2399 = vadd.f32 %v2398, 0.112945676
  %v2400 = vmul.f32 %v2382, %v2399
  %v2401 = vadd.f32 %v2400, 0.4994258
  %v2402 = vmul.f32 %v2382, %v2401
  %v2403 = vadd.f32 %v2402, 1.0
  %v2404 = vrcp.pop %v2403
  %v2405 = vmul.f32 %v2403, %v2404
  %v2406 = vsub.f32 1.0, %v2405
  %v2407 = vmul.f32 %v2404, %v2406
  %v2408 = vadd.f32 %v2404, %v2407
  %vm2409 = vweird.f32 %v2403
  %vm2410 = vweird.f32 %v2404
  %vm2411 = vmor %vm2409, %vm2410
  %v2412 = vsel %vm2411, %v2404, %v2408
  %v2413 = vand.u32 2147483647, %v2403
  %vm2414 = vcmp.eq.f32.partialorder %v2413, 8.507059e+37
  %v2415 = vand.u32 %v2403, 2147483648
  %v2416 = vor.u32 1.1754944e-38, %v2415
  %v2417 = vsel %vm2414, %v2416, %v2412
  %v2418 = vmul.f32 %v2393, %v2417
  %v2419 = vmin.f32 %v2418, 1.0
  %v2420 = vmax.f32 %v2419, -1.0
  %v2421 = vmul.f32 %v1898, %v1898
  %v2422 = vmin.f32 16.0, %v2421
  %v2423 = vmul.f32 %v2422, 2.1237322e-06
  %v2424 = vadd.f32 %v2423, 0.00028619796
  %v2425 = vmul.f32 %v2422, %v2424
  %v2426 = vadd.f32 %v2425, 0.0036580483
  %v2427 = vmul.f32 %v2422, %v2426
  %v2428 = vadd.f32 %v2427, 0.05243302
  %v2429 = vmul.f32 %v2422, %v2428
  %v2430 = vadd.f32 %v2429, 0.18741608
  %v2431 = vmul.f32 %v2422, %v2430
  %v2432 = vadd.f32 %v2431, 1.1283791
  %v2433 = vmul.f32 %v1898, %v2432
  %v2434 = vmul.f32 %v2422, 3.8918573e-05
  %v2435 = vadd.f32 %v2434, 0.001143296
  %v2436 = vmul.f32 %v2422, %v2435
  %v2437 = vadd.f32 %v2436, 0.014752088
  %v2438 = vmul.f32 %v2422, %v2437
  %v2439 = vadd.f32 %v2438, 0.112945676
  %v2440 = vmul.f32 %v2422, %v2439
  %v2441 = vadd.f32 %v2440, 0.4994258
  %v2442 = vmul.f32 %v2422, %v2441
  %v2443 = vadd.f32 %v2442, 1.0
  %v2444 = vrcp.pop %v2443
  %v2445 = vmul.f32 %v2443, %v2444
  %v2446 = vsub.f32 1.0, %v2445
  %v2447 = vmul.f32 %v2444, %v2446
  %v2448 = vadd.f32 %v2444, %v2447
  %vm2449 = vweird.f32 %v2443
  %vm2450 = vweird.f32 %v2444
  %vm2451 = vmor %vm2449, %vm2450
  %v2452 = vsel %vm2451, %v2444, %v2448
  %v2453 = vand.u32 2147483647, %v2443
  %vm2454 = vcmp.eq.f32.partialorder %v2453, 8.507059e+37
  %v2455 = vand.u32 %v2443, 2147483648
  %v2456 = vor.u32 1.1754944e-38, %v2455
  %v2457 = vsel %vm2454, %v2456, %v2452
  %v2458 = vmul.f32 %v2433, %v2457
  %v2459 = vmin.f32 %v2458, 1.0
  %v2460 = vmax.f32 %v2459, -1.0
  %v2461 = vmul.f32 %v1899, %v1899
  %v2462 = vmin.f32 16.0, %v2461
  %v2463 = vmul.f32 %v2462, 2.1237322e-06
  %v2464 = vadd.f32 %v2463, 0.00028619796
  %v2465 = vmul.f32 %v2462, %v2464
  %v2466 = vadd.f32 %v2465, 0.0036580483
  %v2467 = vmul.f32 %v2462, %v2466
  %v2468 = vadd.f32 %v2467, 0.05243302
  %v2469 = vmul.f32 %v2462, %v2468
  %v2470 = vadd.f32 %v2469, 0.18741608
  %v2471 = vmul.f32 %v2462, %v2470
  %v2472 = vadd.f32 %v2471, 1.1283791
  %v2473 = vmul.f32 %v1899, %v2472
  %v2474 = vmul.f32 %v2462, 3.8918573e-05
  %v2475 = vadd.f32 %v2474, 0.001143296
  %v2476 = vmul.f32 %v2462, %v2475
  %v2477 = vadd.f32 %v2476, 0.014752088
  %v2478 = vmul.f32 %v2462, %v2477
  %v2479 = vadd.f32 %v2478, 0.112945676
  %v2480 = vmul.f32 %v2462, %v2479
  %v2481 = vadd.f32 %v2480, 0.4994258
  %v2482 = vmul.f32 %v2462, %v2481
  %v2483 = vadd.f32 %v2482, 1.0
  %v2484 = vrcp.pop %v2483
  %v2485 = vmul.f32 %v2483, %v2484
  %v2486 = vsub.f32 1.0, %v2485
  %v2487 = vmul.f32 %v2484, %v2486
  %v2488 = vadd.f32 %v2484, %v2487
  %vm2489 = vweird.f32 %v2483
  %vm2490 = vweird.f32 %v2484
  %vm2491 = vmor %vm2489, %vm2490
  %v2492 = vsel %vm2491, %v2484, %v2488
  %v2493 = vand.u32 2147483647, %v2483
  %vm2494 = vcmp.eq.f32.partialorder %v2493, 8.507059e+37
  %v2495 = vand.u32 %v2483, 2147483648
  %v2496 = vor.u32 1.1754944e-38, %v2495
  %v2497 = vsel %vm2494, %v2496, %v2492
  %v2498 = vmul.f32 %v2473, %v2497
  %v2499 = vmin.f32 %v2498, 1.0
  %v2500 = vmax.f32 %v2499, -1.0
  %v2501 = vmul.f32 %v1900, %v1900
  %v2502 = vmin.f32 16.0, %v2501
  %v2503 = vmul.f32 %v2502, 2.1237322e-06
  %v2504 = vadd.f32 %v2503, 0.00028619796
  %v2505 = vmul.f32 %v2502, %v2504
  %v2506 = vadd.f32 %v2505, 0.0036580483
  %v2507 = vmul.f32 %v2502, %v2506
  %v2508 = vadd.f32 %v2507, 0.05243302
  %v2509 = vmul.f32 %v2502, %v2508
  %v2510 = vadd.f32 %v2509, 0.18741608
  %v2511 = vmul.f32 %v2502, %v2510
  %v2512 = vadd.f32 %v2511, 1.1283791
  %v2513 = vmul.f32 %v1900, %v2512
  %v2514 = vmul.f32 %v2502, 3.8918573e-05
  %v2515 = vadd.f32 %v2514, 0.001143296
  %v2516 = vmul.f32 %v2502, %v2515
  %v2517 = vadd.f32 %v2516, 0.014752088
  %v2518 = vmul.f32 %v2502, %v2517
  %v2519 = vadd.f32 %v2518, 0.112945676
  %v2520 = vmul.f32 %v2502, %v2519
  %v2521 = vadd.f32 %v2520, 0.4994258
  %v2522 = vmul.f32 %v2502, %v2521
  %v2523 = vadd.f32 %v2522, 1.0
  %v2524 = vrcp.pop %v2523
  %v2525 = vmul.f32 %v2523, %v2524
  %v2526 = vsub.f32 1.0, %v2525
  %v2527 = vmul.f32 %v2524, %v2526
  %v2528 = vadd.f32 %v2524, %v2527
  %vm2529 = vweird.f32 %v2523
  %vm2530 = vweird.f32 %v2524
  %vm2531 = vmor %vm2529, %vm2530
  %v2532 = vsel %vm2531, %v2524, %v2528
  %v2533 = vand.u32 2147483647, %v2523
  %vm2534 = vcmp.eq.f32.partialorder %v2533, 8.507059e+37
  %v2535 = vand.u32 %v2523, 2147483648
  %v2536 = vor.u32 1.1754944e-38, %v2535
  %v2537 = vsel %vm2534, %v2536, %v2532
  %v2538 = vmul.f32 %v2513, %v2537
  %v2539 = vmin.f32 %v2538, 1.0
  %v2540 = vmax.f32 %v2539, -1.0
  %v2541 = vadd.f32 %v1940, 1.0
  %v2542 = vadd.f32 %v1980, 1.0
  %v2543 = vadd.f32 %v2020, 1.0
  %v2544 = vadd.f32 %v2060, 1.0
  %v2545 = vadd.f32 %v2100, 1.0
  %v2546 = vadd.f32 %v2140, 1.0
  %v2547 = vadd.f32 %v2180, 1.0
  %v2548 = vadd.f32 %v2220, 1.0
  %v2549 = vadd.f32 %v2260, 1.0
  %v2550 = vadd.f32 %v2300, 1.0
  %v2551 = vadd.f32 %v2340, 1.0
  %v2552 = vadd.f32 %v2380, 1.0
  %v2553 = vadd.f32 %v2420, 1.0
  %v2554 = vadd.f32 %v2460, 1.0
  %v2555 = vadd.f32 %v2500, 1.0
  %v2556 = vadd.f32 %v2540, 1.0
  %v2557 = vmul.f32 %v1869, %v2541
  %v2558 = vmul.f32 %v1870, %v2542
  %v2559 = vmul.f32 %v1871, %v2543
  %v2560 = vmul.f32 %v1872, %v2544
  %v2561 = vmul.f32 %v1873, %v2545
  %v2562 = vmul.f32 %v1874, %v2546
  %v2563 = vmul.f32 %v1875, %v2547
  %v2564 = vmul.f32 %v1876, %v2548
  %v2565 = vmul.f32 %v1877, %v2549
  %v2566 = vmul.f32 %v1878, %v2550
  %v2567 = vmul.f32 %v1879, %v2551
  %v2568 = vmul.f32 %v1880, %v2552
  %v2569 = vmul.f32 %v1881, %v2553
  %v2570 = vmul.f32 %v1882, %v2554
  %v2571 = vmul.f32 %v1883, %v2555
  %v2572 = vmul.f32 %v1884, %v2556
  %v2575 = vrot.slane %v2571, 7
  %v2576 = vrot.slane %v2572, 7
  %v2577 = vsel %vm177, %v2575, %v2576
  %v2594 = vrot.slane %v2557, 7
  %v2595 = vrot.slane %v2558, 7
  %v2596 = vsel %vm177, %v2594, %v2595
  %v2597 = vrot.slane %v2559, 7
  %v2598 = vsel %vm177, %v2595, %v2597
  %v2599 = vrot.slane %v2560, 7
  %v2600 = vsel %vm177, %v2597, %v2599
  %v2601 = vrot.slane %v2561, 7
  %v2602 = vsel %vm177, %v2599, %v2601
  %v2603 = vrot.slane %v2562, 7
  %v2604 = vsel %vm177, %v2601, %v2603
  %v2605 = vrot.slane %v2563, 7
  %v2606 = vsel %vm177, %v2603, %v2605
  %v2607 = vrot.slane %v2564, 7
  %v2608 = vsel %vm177, %v2605, %v2607
  %v2609 = vrot.slane %v2565, 7
  %v2610 = vsel %vm177, %v2607, %v2609
  %v2611 = vrot.slane %v2566, 7
  %v2612 = vsel %vm177, %v2609, %v2611
  %v2613 = vrot.slane %v2567, 7
  %v2614 = vsel %vm177, %v2611, %v2613
  %v2615 = vrot.slane %v2568, 7
  %v2616 = vsel %vm177, %v2613, %v2615
  %v2617 = vrot.slane %v2569, 7
  %v2618 = vsel %vm177, %v2615, %v2617
  %v2619 = vrot.slane %v2570, 7
  %v2620 = vsel %vm177, %v2617, %v2619
  %v2621 = vsel %vm177, %v2619, %v2575
  %v2637 = vsel %vm177, %v2576, %v2594
  %v2638 = vmul.f32 %v2577, %v241
  %v2639 = vmul.f32 %v2637, %v242
  %v2640 = vmul.f32 %v2596, %v243
  %v2641 = vmul.f32 %v2598, %v244
  %v2642 = vmul.f32 %v2600, %v245
  %v2643 = vmul.f32 %v2602, %v246
  %v2644 = vmul.f32 %v2604, %v247
  %v2645 = vmul.f32 %v2606, %v248
  %v2646 = vmul.f32 %v2608, %v249
  %v2647 = vmul.f32 %v2610, %v250
  %v2648 = vmul.f32 %v2612, %v251
  %v2649 = vmul.f32 %v2614, %v252
  %v2650 = vmul.f32 %v2616, %v253
  %v2651 = vmul.f32 %v2618, %v254
  %v2652 = vmul.f32 %v2620, %v255
  %v2653 = vmul.f32 %v2621, %v256
  %v2654 = vpack.c.bf16 %v2638, %v2638
  %v2655 = vpack.c.bf16 %v2639, %v2639
  %v2656 = vpack.c.bf16 %v2640, %v2640
  %v2657 = vpack.c.bf16 %v2641, %v2641
  %v2658 = vpack.c.bf16 %v2642, %v2642
  %v2659 = vpack.c.bf16 %v2643, %v2643
  %v2660 = vpack.c.bf16 %v2644, %v2644
  %v2661 = vpack.c.bf16 %v2645, %v2645
  %v2662 = vpack.c.bf16 %v2646, %v2646
  %v2663 = vpack.c.bf16 %v2647, %v2647
  %v2664 = vpack.c.bf16 %v2648, %v2648
  %v2665 = vpack.c.bf16 %v2649, %v2649
  %v2666 = vpack.c.bf16 %v2650, %v2650
  %v2667 = vpack.c.bf16 %v2651, %v2651
  %v2668 = vpack.c.bf16 %v2652, %v2652
  %v2669 = vpack.c.bf16 %v2653, %v2653
  %v2670 = vmul.f32 %v2572, %v290
  %v2671 = vmul.f32 %v2557, %v291
  %v2672 = vmul.f32 %v2558, %v292
  %v2673 = vmul.f32 %v2559, %v293
  %v2674 = vmul.f32 %v2560, %v294
  %v2675 = vmul.f32 %v2561, %v295
  %v2676 = vmul.f32 %v2562, %v296
  %v2677 = vmul.f32 %v2563, %v297
  %v2678 = vmul.f32 %v2564, %v298
  %v2679 = vmul.f32 %v2565, %v299
  %v2680 = vmul.f32 %v2566, %v300
  %v2681 = vmul.f32 %v2567, %v301
  %v2682 = vmul.f32 %v2568, %v302
  %v2683 = vmul.f32 %v2569, %v303
  %v2684 = vmul.f32 %v2570, %v304
  %v2685 = vmul.f32 %v2571, %v305
  %v2686 = vpack.c.bf16 %v2670, %v2670
  %v2687 = vpack.c.bf16 %v2671, %v2671
  %v2688 = vpack.c.bf16 %v2672, %v2672
  %v2689 = vpack.c.bf16 %v2673, %v2673
  %v2690 = vpack.c.bf16 %v2674, %v2674
  %v2691 = vpack.c.bf16 %v2675, %v2675
  %v2692 = vpack.c.bf16 %v2676, %v2676
  %v2693 = vpack.c.bf16 %v2677, %v2677
  %v2694 = vpack.c.bf16 %v2678, %v2678
  %v2695 = vpack.c.bf16 %v2679, %v2679
  %v2696 = vpack.c.bf16 %v2680, %v2680
  %v2697 = vpack.c.bf16 %v2681, %v2681
  %v2698 = vpack.c.bf16 %v2682, %v2682
  %v2699 = vpack.c.bf16 %v2683, %v2683
  %v2700 = vpack.c.bf16 %v2684, %v2684
  %v2701 = vpack.c.bf16 %v2685, %v2685
  %v2702 = vrot.slane %v2572, 1
  %v2704 = vrot.slane %v2557, 1
  %v2705 = vrot.slane %v2558, 1
  %v2706 = vsel %vm340, %v2704, %v2705
  %v2707 = vrot.slane %v2559, 1
  %v2708 = vsel %vm340, %v2705, %v2707
  %v2709 = vrot.slane %v2560, 1
  %v2710 = vsel %vm340, %v2707, %v2709
  %v2711 = vrot.slane %v2561, 1
  %v2712 = vsel %vm340, %v2709, %v2711
  %v2713 = vrot.slane %v2562, 1
  %v2714 = vsel %vm340, %v2711, %v2713
  %v2715 = vrot.slane %v2563, 1
  %v2716 = vsel %vm340, %v2713, %v2715
  %v2717 = vrot.slane %v2564, 1
  %v2718 = vsel %vm340, %v2715, %v2717
  %v2719 = vrot.slane %v2565, 1
  %v2720 = vsel %vm340, %v2717, %v2719
  %v2721 = vrot.slane %v2566, 1
  %v2722 = vsel %vm340, %v2719, %v2721
  %v2723 = vrot.slane %v2567, 1
  %v2724 = vsel %vm340, %v2721, %v2723
  %v2725 = vrot.slane %v2568, 1
  %v2726 = vsel %vm340, %v2723, %v2725
  %v2727 = vrot.slane %v2569, 1
  %v2728 = vsel %vm340, %v2725, %v2727
  %v2729 = vrot.slane %v2570, 1
  %v2730 = vsel %vm340, %v2727, %v2729
  %v2731 = vrot.slane %v2571, 1
  %v2732 = vsel %vm340, %v2729, %v2731
  %v2733 = vsel %vm340, %v2731, %v2702
  %v2750 = vsel %vm340, %v2702, %v2704
  %v2751 = vmul.f32 %v2750, %v389
  %v2752 = vmul.f32 %v2706, %v390
  %v2753 = vmul.f32 %v2708, %v391
  %v2754 = vmul.f32 %v2710, %v392
  %v2755 = vmul.f32 %v2712, %v393
  %v2756 = vmul.f32 %v2714, %v394
  %v2757 = vmul.f32 %v2716, %v395
  %v2758 = vmul.f32 %v2718, %v396
  %v2759 = vmul.f32 %v2720, %v397
  %v2760 = vmul.f32 %v2722, %v398
  %v2761 = vmul.f32 %v2724, %v399
  %v2762 = vmul.f32 %v2726, %v400
  %v2763 = vmul.f32 %v2728, %v401
  %v2764 = vmul.f32 %v2730, %v402
  %v2765 = vmul.f32 %v2732, %v403
  %v2766 = vmul.f32 %v2733, %v404
  %v2767 = vpack.c.bf16 %v2751, %v2751
  %v2768 = vpack.c.bf16 %v2752, %v2752
  %v2769 = vpack.c.bf16 %v2753, %v2753
  %v2770 = vpack.c.bf16 %v2754, %v2754
  %v2771 = vpack.c.bf16 %v2755, %v2755
  %v2772 = vpack.c.bf16 %v2756, %v2756
  %v2773 = vpack.c.bf16 %v2757, %v2757
  %v2774 = vpack.c.bf16 %v2758, %v2758
  %v2775 = vpack.c.bf16 %v2759, %v2759
  %v2776 = vpack.c.bf16 %v2760, %v2760
  %v2777 = vpack.c.bf16 %v2761, %v2761
  %v2778 = vpack.c.bf16 %v2762, %v2762
  %v2779 = vpack.c.bf16 %v2763, %v2763
  %v2780 = vpack.c.bf16 %v2764, %v2764
  %v2781 = vpack.c.bf16 %v2765, %v2765
  %v2782 = vpack.c.bf16 %v2766, %v2766
  %v2783 = vmul.f32 %v2637, %v438
  %v2784 = vmul.f32 %v2596, %v439
  %v2785 = vmul.f32 %v2598, %v440
  %v2786 = vmul.f32 %v2600, %v441
  %v2787 = vmul.f32 %v2602, %v442
  %v2788 = vmul.f32 %v2604, %v443
  %v2789 = vmul.f32 %v2606, %v444
  %v2790 = vmul.f32 %v2608, %v445
  %v2791 = vmul.f32 %v2610, %v446
  %v2792 = vmul.f32 %v2612, %v447
  %v2793 = vmul.f32 %v2614, %v448
  %v2794 = vmul.f32 %v2616, %v449
  %v2795 = vmul.f32 %v2618, %v450
  %v2796 = vmul.f32 %v2620, %v451
  %v2797 = vmul.f32 %v2621, %v452
  %v2798 = vmul.f32 %v2577, %v453
  %v2799 = vpack.c.bf16 %v2783, %v2783
  %v2800 = vpack.c.bf16 %v2784, %v2784
  %v2801 = vpack.c.bf16 %v2785, %v2785
  %v2802 = vpack.c.bf16 %v2786, %v2786
  %v2803 = vpack.c.bf16 %v2787, %v2787
  %v2804 = vpack.c.bf16 %v2788, %v2788
  %v2805 = vpack.c.bf16 %v2789, %v2789
  %v2806 = vpack.c.bf16 %v2790, %v2790
  %v2807 = vpack.c.bf16 %v2791, %v2791
  %v2808 = vpack.c.bf16 %v2792, %v2792
  %v2809 = vpack.c.bf16 %v2793, %v2793
  %v2810 = vpack.c.bf16 %v2794, %v2794
  %v2811 = vpack.c.bf16 %v2795, %v2795
  %v2812 = vpack.c.bf16 %v2796, %v2796
  %v2813 = vpack.c.bf16 %v2797, %v2797
  %v2814 = vpack.c.bf16 %v2798, %v2798
  %v2815 = vpack.c.bf16 %v2557, %v2557
  %v2816 = vpack.c.bf16 %v2558, %v2558
  %v2817 = vpack.c.bf16 %v2559, %v2559
  %v2818 = vpack.c.bf16 %v2560, %v2560
  %v2819 = vpack.c.bf16 %v2561, %v2561
  %v2820 = vpack.c.bf16 %v2562, %v2562
  %v2821 = vpack.c.bf16 %v2563, %v2563
  %v2822 = vpack.c.bf16 %v2564, %v2564
  %v2823 = vpack.c.bf16 %v2565, %v2565
  %v2824 = vpack.c.bf16 %v2566, %v2566
  %v2825 = vpack.c.bf16 %v2567, %v2567
  %v2826 = vpack.c.bf16 %v2568, %v2568
  %v2827 = vpack.c.bf16 %v2569, %v2569
  %v2828 = vpack.c.bf16 %v2570, %v2570
  %v2829 = vpack.c.bf16 %v2571, %v2571
  %v2830 = vpack.c.bf16 %v2572, %v2572
  %v2831 = vmul.f32 %v2706, %v503
  %v2832 = vmul.f32 %v2708, %v504
  %v2833 = vmul.f32 %v2710, %v505
  %v2834 = vmul.f32 %v2712, %v506
  %v2835 = vmul.f32 %v2714, %v507
  %v2836 = vmul.f32 %v2716, %v508
  %v2837 = vmul.f32 %v2718, %v509
  %v2838 = vmul.f32 %v2720, %v510
  %v2839 = vmul.f32 %v2722, %v511
  %v2840 = vmul.f32 %v2724, %v512
  %v2841 = vmul.f32 %v2726, %v513
  %v2842 = vmul.f32 %v2728, %v514
  %v2843 = vmul.f32 %v2730, %v515
  %v2844 = vmul.f32 %v2732, %v516
  %v2845 = vmul.f32 %v2733, %v517
  %v2846 = vmul.f32 %v2750, %v518
  %v2847 = vpack.c.bf16 %v2831, %v2831
  %v2848 = vpack.c.bf16 %v2832, %v2832
  %v2849 = vpack.c.bf16 %v2833, %v2833
  %v2850 = vpack.c.bf16 %v2834, %v2834
  %v2851 = vpack.c.bf16 %v2835, %v2835
  %v2852 = vpack.c.bf16 %v2836, %v2836
  %v2853 = vpack.c.bf16 %v2837, %v2837
  %v2854 = vpack.c.bf16 %v2838, %v2838
  %v2855 = vpack.c.bf16 %v2839, %v2839
  %v2856 = vpack.c.bf16 %v2840, %v2840
  %v2857 = vpack.c.bf16 %v2841, %v2841
  %v2858 = vpack.c.bf16 %v2842, %v2842
  %v2859 = vpack.c.bf16 %v2843, %v2843
  %v2860 = vpack.c.bf16 %v2844, %v2844
  %v2861 = vpack.c.bf16 %v2845, %v2845
  %v2862 = vpack.c.bf16 %v2846, %v2846
  %v2863 = vmul.f32 %v2596, %v552
  %v2864 = vmul.f32 %v2598, %v553
  %v2865 = vmul.f32 %v2600, %v554
  %v2866 = vmul.f32 %v2602, %v555
  %v2867 = vmul.f32 %v2604, %v556
  %v2868 = vmul.f32 %v2606, %v557
  %v2869 = vmul.f32 %v2608, %v558
  %v2870 = vmul.f32 %v2610, %v559
  %v2871 = vmul.f32 %v2612, %v560
  %v2872 = vmul.f32 %v2614, %v561
  %v2873 = vmul.f32 %v2616, %v562
  %v2874 = vmul.f32 %v2618, %v563
  %v2875 = vmul.f32 %v2620, %v564
  %v2876 = vmul.f32 %v2621, %v565
  %v2877 = vmul.f32 %v2577, %v566
  %v2878 = vmul.f32 %v2637, %v567
  %v2879 = vpack.c.bf16 %v2863, %v2863
  %v2880 = vpack.c.bf16 %v2864, %v2864
  %v2881 = vpack.c.bf16 %v2865, %v2865
  %v2882 = vpack.c.bf16 %v2866, %v2866
  %v2883 = vpack.c.bf16 %v2867, %v2867
  %v2884 = vpack.c.bf16 %v2868, %v2868
  %v2885 = vpack.c.bf16 %v2869, %v2869
  %v2886 = vpack.c.bf16 %v2870, %v2870
  %v2887 = vpack.c.bf16 %v2871, %v2871
  %v2888 = vpack.c.bf16 %v2872, %v2872
  %v2889 = vpack.c.bf16 %v2873, %v2873
  %v2890 = vpack.c.bf16 %v2874, %v2874
  %v2891 = vpack.c.bf16 %v2875, %v2875
  %v2892 = vpack.c.bf16 %v2876, %v2876
  %v2893 = vpack.c.bf16 %v2877, %v2877
  %v2894 = vpack.c.bf16 %v2878, %v2878
  %v2895 = vmul.f32 %v2558, %v601
  %v2896 = vmul.f32 %v2559, %v602
  %v2897 = vmul.f32 %v2560, %v603
  %v2898 = vmul.f32 %v2561, %v604
  %v2899 = vmul.f32 %v2562, %v605
  %v2900 = vmul.f32 %v2563, %v606
  %v2901 = vmul.f32 %v2564, %v607
  %v2902 = vmul.f32 %v2565, %v608
  %v2903 = vmul.f32 %v2566, %v609
  %v2904 = vmul.f32 %v2567, %v610
  %v2905 = vmul.f32 %v2568, %v611
  %v2906 = vmul.f32 %v2569, %v612
  %v2907 = vmul.f32 %v2570, %v613
  %v2908 = vmul.f32 %v2571, %v614
  %v2909 = vmul.f32 %v2572, %v615
  %v2910 = vmul.f32 %v2557, %v616
  %v2911 = vpack.c.bf16 %v2895, %v2895
  %v2912 = vpack.c.bf16 %v2896, %v2896
  %v2913 = vpack.c.bf16 %v2897, %v2897
  %v2914 = vpack.c.bf16 %v2898, %v2898
  %v2915 = vpack.c.bf16 %v2899, %v2899
  %v2916 = vpack.c.bf16 %v2900, %v2900
  %v2917 = vpack.c.bf16 %v2901, %v2901
  %v2918 = vpack.c.bf16 %v2902, %v2902
  %v2919 = vpack.c.bf16 %v2903, %v2903
  %v2920 = vpack.c.bf16 %v2904, %v2904
  %v2921 = vpack.c.bf16 %v2905, %v2905
  %v2922 = vpack.c.bf16 %v2906, %v2906
  %v2923 = vpack.c.bf16 %v2907, %v2907
  %v2924 = vpack.c.bf16 %v2908, %v2908
  %v2925 = vpack.c.bf16 %v2909, %v2909
  %v2926 = vpack.c.bf16 %v2910, %v2910
  %v2927 = vmul.f32 %v2708, %v650
  %v2928 = vmul.f32 %v2710, %v651
  %v2929 = vmul.f32 %v2712, %v652
  %v2930 = vmul.f32 %v2714, %v653
  %v2931 = vmul.f32 %v2716, %v654
  %v2932 = vmul.f32 %v2718, %v655
  %v2933 = vmul.f32 %v2720, %v656
  %v2934 = vmul.f32 %v2722, %v657
  %v2935 = vmul.f32 %v2724, %v658
  %v2936 = vmul.f32 %v2726, %v659
  %v2937 = vmul.f32 %v2728, %v660
  %v2938 = vmul.f32 %v2730, %v661
  %v2939 = vmul.f32 %v2732, %v662
  %v2940 = vmul.f32 %v2733, %v663
  %v2941 = vmul.f32 %v2750, %v664
  %v2942 = vmul.f32 %v2706, %v665
  %v2943 = vpack.c.bf16 %v2927, %v2927
  %v2944 = vpack.c.bf16 %v2928, %v2928
  %v2945 = vpack.c.bf16 %v2929, %v2929
  %v2946 = vpack.c.bf16 %v2930, %v2930
  %v2947 = vpack.c.bf16 %v2931, %v2931
  %v2948 = vpack.c.bf16 %v2932, %v2932
  %v2949 = vpack.c.bf16 %v2933, %v2933
  %v2950 = vpack.c.bf16 %v2934, %v2934
  %v2951 = vpack.c.bf16 %v2935, %v2935
  %v2952 = vpack.c.bf16 %v2936, %v2936
  %v2953 = vpack.c.bf16 %v2937, %v2937
  %v2954 = vpack.c.bf16 %v2938, %v2938
  %v2955 = vpack.c.bf16 %v2939, %v2939
  %v2956 = vpack.c.bf16 %v2940, %v2940
  %v2957 = vpack.c.bf16 %v2941, %v2941
  %v2958 = vpack.c.bf16 %v2942, %v2942
  %v2975 = vunpack.c.l.b16 %v2654
  %v2976 = vunpack.c.l.b16 %v2655
  %v2977 = vunpack.c.l.b16 %v2656
  %v2978 = vunpack.c.l.b16 %v2657
  %v2979 = vunpack.c.l.b16 %v2658
  %v2980 = vunpack.c.l.b16 %v2659
  %v2981 = vunpack.c.l.b16 %v2660
  %v2982 = vunpack.c.l.b16 %v2661
  %v2983 = vunpack.c.l.b16 %v2662
  %v2984 = vunpack.c.l.b16 %v2663
  %v2985 = vunpack.c.l.b16 %v2664
  %v2986 = vunpack.c.l.b16 %v2665
  %v2987 = vunpack.c.l.b16 %v2666
  %v2988 = vunpack.c.l.b16 %v2667
  %v2989 = vunpack.c.l.b16 %v2668
  %v2990 = vunpack.c.l.b16 %v2669
  %v2991 = vpack.c.b16 %v2976, %v2975
  %v2992 = vpack.c.b16 %v2978, %v2977
  %v2993 = vpack.c.b16 %v2980, %v2979
  %v2994 = vpack.c.b16 %v2982, %v2981
  %v2995 = vpack.c.b16 %v2984, %v2983
  %v2996 = vpack.c.b16 %v2986, %v2985
  %v2997 = vpack.c.b16 %v2988, %v2987
  %v2998 = vpack.c.b16 %v2990, %v2989
  %v3015 = vunpack.c.l.b16 %v2686
  %v3016 = vunpack.c.l.b16 %v2687
  %v3017 = vunpack.c.l.b16 %v2688
  %v3018 = vunpack.c.l.b16 %v2689
  %v3019 = vunpack.c.l.b16 %v2690
  %v3020 = vunpack.c.l.b16 %v2691
  %v3021 = vunpack.c.l.b16 %v2692
  %v3022 = vunpack.c.l.b16 %v2693
  %v3023 = vunpack.c.l.b16 %v2694
  %v3024 = vunpack.c.l.b16 %v2695
  %v3025 = vunpack.c.l.b16 %v2696
  %v3026 = vunpack.c.l.b16 %v2697
  %v3027 = vunpack.c.l.b16 %v2698
  %v3028 = vunpack.c.l.b16 %v2699
  %v3029 = vunpack.c.l.b16 %v2700
  %v3030 = vunpack.c.l.b16 %v2701
  %v3031 = vpack.c.b16 %v3016, %v3015
  %v3032 = vpack.c.b16 %v3018, %v3017
  %v3033 = vpack.c.b16 %v3020, %v3019
  %v3034 = vpack.c.b16 %v3022, %v3021
  %v3035 = vpack.c.b16 %v3024, %v3023
  %v3036 = vpack.c.b16 %v3026, %v3025
  %v3037 = vpack.c.b16 %v3028, %v3027
  %v3038 = vpack.c.b16 %v3030, %v3029
  %3039 = vrot.lane.b32.xlu0 %v3031, 32
  %v3040 = vpop.permute.xlu0 %3039
  %3041 = vrot.lane.b32.xlu0 %v3032, 32
  %v3042 = vpop.permute.xlu0 %3041
  %3043 = vrot.lane.b32.xlu0 %v3033, 32
  %v3044 = vpop.permute.xlu0 %3043
  %3045 = vrot.lane.b32.xlu0 %v3034, 32
  %v3046 = vpop.permute.xlu0 %3045
  %3047 = vrot.lane.b32.xlu0 %v3035, 32
  %v3048 = vpop.permute.xlu0 %3047
  %3049 = vrot.lane.b32.xlu0 %v3036, 32
  %v3050 = vpop.permute.xlu0 %3049
  %3051 = vrot.lane.b32.xlu0 %v3037, 32
  %v3052 = vpop.permute.xlu0 %3051
  %3053 = vrot.lane.b32.xlu0 %v3038, 32
  %v3054 = vpop.permute.xlu0 %3053
  %v3071 = vunpack.c.l.b16 %v2767
  %v3072 = vunpack.c.l.b16 %v2768
  %v3073 = vunpack.c.l.b16 %v2769
  %v3074 = vunpack.c.l.b16 %v2770
  %v3075 = vunpack.c.l.b16 %v2771
  %v3076 = vunpack.c.l.b16 %v2772
  %v3077 = vunpack.c.l.b16 %v2773
  %v3078 = vunpack.c.l.b16 %v2774
  %v3079 = vunpack.c.l.b16 %v2775
  %v3080 = vunpack.c.l.b16 %v2776
  %v3081 = vunpack.c.l.b16 %v2777
  %v3082 = vunpack.c.l.b16 %v2778
  %v3083 = vunpack.c.l.b16 %v2779
  %v3084 = vunpack.c.l.b16 %v2780
  %v3085 = vunpack.c.l.b16 %v2781
  %v3086 = vunpack.c.l.b16 %v2782
  %v3087 = vpack.c.b16 %v3072, %v3071
  %v3088 = vpack.c.b16 %v3074, %v3073
  %v3089 = vpack.c.b16 %v3076, %v3075
  %v3090 = vpack.c.b16 %v3078, %v3077
  %v3091 = vpack.c.b16 %v3080, %v3079
  %v3092 = vpack.c.b16 %v3082, %v3081
  %v3093 = vpack.c.b16 %v3084, %v3083
  %v3094 = vpack.c.b16 %v3086, %v3085
  %3095 = vrot.lane.b32.xlu0 %v3087, 64
  %v3096 = vpop.permute.xlu0 %3095
  %3097 = vrot.lane.b32.xlu0 %v3088, 64
  %v3098 = vpop.permute.xlu0 %3097
  %3099 = vrot.lane.b32.xlu0 %v3089, 64
  %v3100 = vpop.permute.xlu0 %3099
  %3101 = vrot.lane.b32.xlu0 %v3090, 64
  %v3102 = vpop.permute.xlu0 %3101
  %3103 = vrot.lane.b32.xlu0 %v3091, 64
  %v3104 = vpop.permute.xlu0 %3103
  %3105 = vrot.lane.b32.xlu0 %v3092, 64
  %v3106 = vpop.permute.xlu0 %3105
  %3107 = vrot.lane.b32.xlu0 %v3093, 64
  %v3108 = vpop.permute.xlu0 %3107
  %3109 = vrot.lane.b32.xlu0 %v3094, 64
  %v3110 = vpop.permute.xlu0 %3109
  %v3127 = vunpack.c.l.b16 %v2799
  %v3128 = vunpack.c.l.b16 %v2800
  %v3129 = vunpack.c.l.b16 %v2801
  %v3130 = vunpack.c.l.b16 %v2802
  %v3131 = vunpack.c.l.b16 %v2803
  %v3132 = vunpack.c.l.b16 %v2804
  %v3133 = vunpack.c.l.b16 %v2805
  %v3134 = vunpack.c.l.b16 %v2806
  %v3135 = vunpack.c.l.b16 %v2807
  %v3136 = vunpack.c.l.b16 %v2808
  %v3137 = vunpack.c.l.b16 %v2809
  %v3138 = vunpack.c.l.b16 %v2810
  %v3139 = vunpack.c.l.b16 %v2811
  %v3140 = vunpack.c.l.b16 %v2812
  %v3141 = vunpack.c.l.b16 %v2813
  %v3142 = vunpack.c.l.b16 %v2814
  %v3143 = vpack.c.b16 %v3128, %v3127
  %v3144 = vpack.c.b16 %v3130, %v3129
  %v3145 = vpack.c.b16 %v3132, %v3131
  %v3146 = vpack.c.b16 %v3134, %v3133
  %v3147 = vpack.c.b16 %v3136, %v3135
  %v3148 = vpack.c.b16 %v3138, %v3137
  %v3149 = vpack.c.b16 %v3140, %v3139
  %v3150 = vpack.c.b16 %v3142, %v3141
  %3151 = vrot.lane.b32.xlu0 %v3143, 96
  %v3152 = vpop.permute.xlu0 %3151
  %3153 = vrot.lane.b32.xlu0 %v3144, 96
  %v3154 = vpop.permute.xlu0 %3153
  %3155 = vrot.lane.b32.xlu0 %v3145, 96
  %v3156 = vpop.permute.xlu0 %3155
  %3157 = vrot.lane.b32.xlu0 %v3146, 96
  %v3158 = vpop.permute.xlu0 %3157
  %3159 = vrot.lane.b32.xlu0 %v3147, 96
  %v3160 = vpop.permute.xlu0 %3159
  %3161 = vrot.lane.b32.xlu0 %v3148, 96
  %v3162 = vpop.permute.xlu0 %3161
  %3163 = vrot.lane.b32.xlu0 %v3149, 96
  %v3164 = vpop.permute.xlu0 %3163
  %3165 = vrot.lane.b32.xlu0 %v3150, 96
  %v3166 = vpop.permute.xlu0 %3165
  %v3183 = vunpack.c.l.b16 %v2815
  %v3184 = vunpack.c.l.b16 %v2816
  %v3185 = vunpack.c.l.b16 %v2817
  %v3186 = vunpack.c.l.b16 %v2818
  %v3187 = vunpack.c.l.b16 %v2819
  %v3188 = vunpack.c.l.b16 %v2820
  %v3189 = vunpack.c.l.b16 %v2821
  %v3190 = vunpack.c.l.b16 %v2822
  %v3191 = vunpack.c.l.b16 %v2823
  %v3192 = vunpack.c.l.b16 %v2824
  %v3193 = vunpack.c.l.b16 %v2825
  %v3194 = vunpack.c.l.b16 %v2826
  %v3195 = vunpack.c.l.b16 %v2827
  %v3196 = vunpack.c.l.b16 %v2828
  %v3197 = vunpack.c.l.b16 %v2829
  %v3198 = vunpack.c.l.b16 %v2830
  %v3199 = vpack.c.b16 %v3184, %v3183
  %v3200 = vpack.c.b16 %v3186, %v3185
  %v3201 = vpack.c.b16 %v3188, %v3187
  %v3202 = vpack.c.b16 %v3190, %v3189
  %v3203 = vpack.c.b16 %v3192, %v3191
  %v3204 = vpack.c.b16 %v3194, %v3193
  %v3205 = vpack.c.b16 %v3196, %v3195
  %v3206 = vpack.c.b16 %v3198, %v3197
  %v3223 = vunpack.c.l.b16 %v2847
  %v3224 = vunpack.c.l.b16 %v2848
  %v3225 = vunpack.c.l.b16 %v2849
  %v3226 = vunpack.c.l.b16 %v2850
  %v3227 = vunpack.c.l.b16 %v2851
  %v3228 = vunpack.c.l.b16 %v2852
  %v3229 = vunpack.c.l.b16 %v2853
  %v3230 = vunpack.c.l.b16 %v2854
  %v3231 = vunpack.c.l.b16 %v2855
  %v3232 = vunpack.c.l.b16 %v2856
  %v3233 = vunpack.c.l.b16 %v2857
  %v3234 = vunpack.c.l.b16 %v2858
  %v3235 = vunpack.c.l.b16 %v2859
  %v3236 = vunpack.c.l.b16 %v2860
  %v3237 = vunpack.c.l.b16 %v2861
  %v3238 = vunpack.c.l.b16 %v2862
  %v3239 = vpack.c.b16 %v3224, %v3223
  %v3240 = vpack.c.b16 %v3226, %v3225
  %v3241 = vpack.c.b16 %v3228, %v3227
  %v3242 = vpack.c.b16 %v3230, %v3229
  %v3243 = vpack.c.b16 %v3232, %v3231
  %v3244 = vpack.c.b16 %v3234, %v3233
  %v3245 = vpack.c.b16 %v3236, %v3235
  %v3246 = vpack.c.b16 %v3238, %v3237
  %3247 = vrot.lane.b32.xlu0 %v3239, 32
  %v3248 = vpop.permute.xlu0 %3247
  %3249 = vrot.lane.b32.xlu0 %v3240, 32
  %v3250 = vpop.permute.xlu0 %3249
  %3251 = vrot.lane.b32.xlu0 %v3241, 32
  %v3252 = vpop.permute.xlu0 %3251
  %3253 = vrot.lane.b32.xlu0 %v3242, 32
  %v3254 = vpop.permute.xlu0 %3253
  %3255 = vrot.lane.b32.xlu0 %v3243, 32
  %v3256 = vpop.permute.xlu0 %3255
  %3257 = vrot.lane.b32.xlu0 %v3244, 32
  %v3258 = vpop.permute.xlu0 %3257
  %3259 = vrot.lane.b32.xlu0 %v3245, 32
  %v3260 = vpop.permute.xlu0 %3259
  %3261 = vrot.lane.b32.xlu0 %v3246, 32
  %v3262 = vpop.permute.xlu0 %3261
  %v3279 = vunpack.c.l.b16 %v2879
  %v3280 = vunpack.c.l.b16 %v2880
  %v3281 = vunpack.c.l.b16 %v2881
  %v3282 = vunpack.c.l.b16 %v2882
  %v3283 = vunpack.c.l.b16 %v2883
  %v3284 = vunpack.c.l.b16 %v2884
  %v3285 = vunpack.c.l.b16 %v2885
  %v3286 = vunpack.c.l.b16 %v2886
  %v3287 = vunpack.c.l.b16 %v2887
  %v3288 = vunpack.c.l.b16 %v2888
  %v3289 = vunpack.c.l.b16 %v2889
  %v3290 = vunpack.c.l.b16 %v2890
  %v3291 = vunpack.c.l.b16 %v2891
  %v3292 = vunpack.c.l.b16 %v2892
  %v3293 = vunpack.c.l.b16 %v2893
  %v3294 = vunpack.c.l.b16 %v2894
  %v3295 = vpack.c.b16 %v3280, %v3279
  %v3296 = vpack.c.b16 %v3282, %v3281
  %v3297 = vpack.c.b16 %v3284, %v3283
  %v3298 = vpack.c.b16 %v3286, %v3285
  %v3299 = vpack.c.b16 %v3288, %v3287
  %v3300 = vpack.c.b16 %v3290, %v3289
  %v3301 = vpack.c.b16 %v3292, %v3291
  %v3302 = vpack.c.b16 %v3294, %v3293
  %3303 = vrot.lane.b32.xlu0 %v3295, 64
  %v3304 = vpop.permute.xlu0 %3303
  %3305 = vrot.lane.b32.xlu0 %v3296, 64
  %v3306 = vpop.permute.xlu0 %3305
  %3307 = vrot.lane.b32.xlu0 %v3297, 64
  %v3308 = vpop.permute.xlu0 %3307
  %3309 = vrot.lane.b32.xlu0 %v3298, 64
  %v3310 = vpop.permute.xlu0 %3309
  %3311 = vrot.lane.b32.xlu0 %v3299, 64
  %v3312 = vpop.permute.xlu0 %3311
  %3313 = vrot.lane.b32.xlu0 %v3300, 64
  %v3314 = vpop.permute.xlu0 %3313
  %3315 = vrot.lane.b32.xlu0 %v3301, 64
  %v3316 = vpop.permute.xlu0 %3315
  %3317 = vrot.lane.b32.xlu0 %v3302, 64
  %v3318 = vpop.permute.xlu0 %3317
  %v3335 = vunpack.c.l.b16 %v2911
  %v3336 = vunpack.c.l.b16 %v2912
  %v3337 = vunpack.c.l.b16 %v2913
  %v3338 = vunpack.c.l.b16 %v2914
  %v3339 = vunpack.c.l.b16 %v2915
  %v3340 = vunpack.c.l.b16 %v2916
  %v3341 = vunpack.c.l.b16 %v2917
  %v3342 = vunpack.c.l.b16 %v2918
  %v3343 = vunpack.c.l.b16 %v2919
  %v3344 = vunpack.c.l.b16 %v2920
  %v3345 = vunpack.c.l.b16 %v2921
  %v3346 = vunpack.c.l.b16 %v2922
  %v3347 = vunpack.c.l.b16 %v2923
  %v3348 = vunpack.c.l.b16 %v2924
  %v3349 = vunpack.c.l.b16 %v2925
  %v3350 = vunpack.c.l.b16 %v2926
  %v3351 = vpack.c.b16 %v3336, %v3335
  %v3352 = vpack.c.b16 %v3338, %v3337
  %v3353 = vpack.c.b16 %v3340, %v3339
  %v3354 = vpack.c.b16 %v3342, %v3341
  %v3355 = vpack.c.b16 %v3344, %v3343
  %v3356 = vpack.c.b16 %v3346, %v3345
  %v3357 = vpack.c.b16 %v3348, %v3347
  %v3358 = vpack.c.b16 %v3350, %v3349
  %3359 = vrot.lane.b32.xlu0 %v3351, 96
  %v3360 = vpop.permute.xlu0 %3359
  %3361 = vrot.lane.b32.xlu0 %v3352, 96
  %v3362 = vpop.permute.xlu0 %3361
  %3363 = vrot.lane.b32.xlu0 %v3353, 96
  %v3364 = vpop.permute.xlu0 %3363
  %3365 = vrot.lane.b32.xlu0 %v3354, 96
  %v3366 = vpop.permute.xlu0 %3365
  %3367 = vrot.lane.b32.xlu0 %v3355, 96
  %v3368 = vpop.permute.xlu0 %3367
  %3369 = vrot.lane.b32.xlu0 %v3356, 96
  %v3370 = vpop.permute.xlu0 %3369
  %3371 = vrot.lane.b32.xlu0 %v3357, 96
  %v3372 = vpop.permute.xlu0 %3371
  %3373 = vrot.lane.b32.xlu0 %v3358, 96
  %v3374 = vpop.permute.xlu0 %3373
  %v3391 = vunpack.c.l.b16 %v2943
  %v3392 = vunpack.c.l.b16 %v2944
  %v3393 = vunpack.c.l.b16 %v2945
  %v3394 = vunpack.c.l.b16 %v2946
  %v3395 = vunpack.c.l.b16 %v2947
  %v3396 = vunpack.c.l.b16 %v2948
  %v3397 = vunpack.c.l.b16 %v2949
  %v3398 = vunpack.c.l.b16 %v2950
  %v3399 = vunpack.c.l.b16 %v2951
  %v3400 = vunpack.c.l.b16 %v2952
  %v3401 = vunpack.c.l.b16 %v2953
  %v3402 = vunpack.c.l.b16 %v2954
  %v3403 = vunpack.c.l.b16 %v2955
  %v3404 = vunpack.c.l.b16 %v2956
  %v3405 = vunpack.c.l.b16 %v2957
  %v3406 = vunpack.c.l.b16 %v2958
  %v3407 = vpack.c.b16 %v3392, %v3391
  %v3408 = vpack.c.b16 %v3394, %v3393
  %v3409 = vpack.c.b16 %v3396, %v3395
  %v3410 = vpack.c.b16 %v3398, %v3397
  %v3411 = vpack.c.b16 %v3400, %v3399
  %v3412 = vpack.c.b16 %v3402, %v3401
  %v3413 = vpack.c.b16 %v3404, %v3403
  %v3414 = vpack.c.b16 %v3406, %v3405
  %v3417 = vsel %vm1154, %v2991, %v3040
  %v3420 = vsel %vm1154, %v2992, %v3042
  %v3423 = vsel %vm1154, %v2993, %v3044
  %v3426 = vsel %vm1154, %v2994, %v3046
  %v3429 = vsel %vm1154, %v2995, %v3048
  %v3432 = vsel %vm1154, %v2996, %v3050
  %v3435 = vsel %vm1154, %v2997, %v3052
  %v3438 = vsel %vm1154, %v2998, %v3054
  %v3440 = vsel %vm1179, %v3417, %v3096
  %v3442 = vsel %vm1179, %v3420, %v3098
  %v3444 = vsel %vm1179, %v3423, %v3100
  %v3446 = vsel %vm1179, %v3426, %v3102
  %v3448 = vsel %vm1179, %v3429, %v3104
  %v3450 = vsel %vm1179, %v3432, %v3106
  %v3452 = vsel %vm1179, %v3435, %v3108
  %v3454 = vsel %vm1179, %v3438, %v3110
  %v3456 = vsel %vm1196, %v3440, %v3152
  %v3459 = vsel %vm1196, %v3442, %v3154
  %v3462 = vsel %vm1196, %v3444, %v3156
  %v3465 = vsel %vm1196, %v3446, %v3158
  %v3468 = vsel %vm1196, %v3448, %v3160
  %v3471 = vsel %vm1196, %v3450, %v3162
  %v3474 = vsel %vm1196, %v3452, %v3164
  %v3477 = vsel %vm1196, %v3454, %v3166
  %v3481 = vsel %vm1154, %v3199, %v3248
  %v3484 = vsel %vm1154, %v3200, %v3250
  %v3487 = vsel %vm1154, %v3201, %v3252
  %v3490 = vsel %vm1154, %v3202, %v3254
  %v3493 = vsel %vm1154, %v3203, %v3256
  %v3496 = vsel %vm1154, %v3204, %v3258
  %v3499 = vsel %vm1154, %v3205, %v3260
  %v3502 = vsel %vm1154, %v3206, %v3262
  %v3504 = vsel %vm1179, %v3481, %v3304
  %v3506 = vsel %vm1179, %v3484, %v3306
  %v3508 = vsel %vm1179, %v3487, %v3308
  %v3510 = vsel %vm1179, %v3490, %v3310
  %v3512 = vsel %vm1179, %v3493, %v3312
  %v3514 = vsel %vm1179, %v3496, %v3314
  %v3516 = vsel %vm1179, %v3499, %v3316
  %v3518 = vsel %vm1179, %v3502, %v3318
  %v3520 = vsel %vm1196, %v3504, %v3360
  %v3523 = vsel %vm1196, %v3506, %v3362
  %v3526 = vsel %vm1196, %v3508, %v3364
  %v3529 = vsel %vm1196, %v3510, %v3366
  %v3532 = vsel %vm1196, %v3512, %v3368
  %v3535 = vsel %vm1196, %v3514, %v3370
  %v3538 = vsel %vm1196, %v3516, %v3372
  %v3541 = vsel %vm1196, %v3518, %v3374
  %v3543 = vld [vmem:[%s7] sm:$0xf]
  %v3544 = vld [vmem:[%s7 + $0x4] sm:$0xf]
  %v3545 = vld [vmem:[%s7 + $0x8] sm:$0xf]
  %v3546 = vld [vmem:[%s7 + $0xc] sm:$0xf]
  %v3547 = vld [vmem:[%s7 + $0x10] sm:$0xf]
  %v3548 = vld [vmem:[%s7 + $0x14] sm:$0xf]
  %v3549 = vld [vmem:[%s7 + $0x18] sm:$0xf]
  %v3550 = vld [vmem:[%s7 + $0x1c] sm:$0xf]
  %v3551 = vld [vmem:[%s7 + $0x20] sm:$0xf]
  %v3552 = vld [vmem:[%s7 + $0x24] sm:$0xf]
  %v3553 = vld [vmem:[%s7 + $0x28] sm:$0xf]
  %v3554 = vld [vmem:[%s7 + $0x2c] sm:$0xf]
  %v3555 = vld [vmem:[%s7 + $0x30] sm:$0xf]
  %v3556 = vld [vmem:[%s7 + $0x34] sm:$0xf]
  %v3557 = vld [vmem:[%s7 + $0x38] sm:$0xf]
  %v3558 = vld [vmem:[%s7 + $0x3c] sm:$0xf]
  %v3559 = vld [vmem:[%s7 + $0x40] sm:$0xf]
  %v3560 = vld [vmem:[%s7 + $0x44] sm:$0xf]
  %v3561 = vld [vmem:[%s7 + $0x48] sm:$0xf]
  %v3562 = vld [vmem:[%s7 + $0x4c] sm:$0xf]
  %v3563 = vld [vmem:[%s7 + $0x50] sm:$0xf]
  %v3564 = vld [vmem:[%s7 + $0x54] sm:$0xf]
  %v3565 = vld [vmem:[%s7 + $0x58] sm:$0xf]
  %v3566 = vld [vmem:[%s7 + $0x5c] sm:$0xf]
  %v3567 = vld [vmem:[%s7 + $0x60] sm:$0xf]
  %v3568 = vld [vmem:[%s7 + $0x64] sm:$0xf]
  %v3569 = vld [vmem:[%s7 + $0x68] sm:$0xf]
  %v3570 = vld [vmem:[%s7 + $0x6c] sm:$0xf]
  %v3571 = vld [vmem:[%s7 + $0x70] sm:$0xf]
  %v3572 = vld [vmem:[%s7 + $0x74] sm:$0xf]
  %v3573 = vld [vmem:[%s7 + $0x78] sm:$0xf]
  %v3574 = vld [vmem:[%s7 + $0x7c] sm:$0xf]
  %v3575 = vld [vmem:[%s7 + $0x80] sm:$0xf]
  %v3576 = vld [vmem:[%s7 + $0x84] sm:$0xf]
  %v3577 = vld [vmem:[%s7 + $0x88] sm:$0xf]
  %v3578 = vld [vmem:[%s7 + $0x8c] sm:$0xf]
  %v3615 = vunpack.c.l.b16 %v3543
  %v3616 = vunpack.c.l.b16 %v3544
  %v3617 = vunpack.c.l.b16 %v3545
  %v3618 = vunpack.c.l.b16 %v3546
  %v3619 = vunpack.c.l.b16 %v3547
  %v3620 = vunpack.c.l.b16 %v3548
  %v3621 = vunpack.c.l.b16 %v3549
  %v3622 = vunpack.c.l.b16 %v3550
  %v3623 = vunpack.c.l.b16 %v3551
  %v3624 = vunpack.c.l.b16 %v3552
  %v3625 = vunpack.c.l.b16 %v3553
  %v3626 = vunpack.c.l.b16 %v3554
  %v3627 = vunpack.c.l.b16 %v3555
  %v3628 = vunpack.c.l.b16 %v3556
  %v3629 = vunpack.c.l.b16 %v3557
  %v3630 = vunpack.c.l.b16 %v3558
  %v3631 = vunpack.c.l.b16 %v3559
  %v3632 = vunpack.c.l.b16 %v3560
  %v3633 = vunpack.c.l.b16 %v3561
  %v3634 = vunpack.c.l.b16 %v3562
  %v3635 = vunpack.c.l.b16 %v3563
  %v3636 = vunpack.c.l.b16 %v3564
  %v3637 = vunpack.c.l.b16 %v3565
  %v3638 = vunpack.c.l.b16 %v3566
  %v3639 = vunpack.c.l.b16 %v3567
  %v3640 = vunpack.c.l.b16 %v3568
  %v3641 = vunpack.c.l.b16 %v3569
  %v3642 = vunpack.c.l.b16 %v3570
  %v3643 = vunpack.c.l.b16 %v3571
  %v3644 = vunpack.c.l.b16 %v3572
  %v3645 = vunpack.c.l.b16 %v3573
  %v3646 = vunpack.c.l.b16 %v3574
  %v3647 = vunpack.c.l.b16 %v3575
  %v3648 = vunpack.c.l.b16 %v3576
  %v3649 = vunpack.c.l.b16 %v3577
  %v3650 = vunpack.c.l.b16 %v3578
  %v3651 = vpack.c.b16 %v3616, %v3615
  %v3652 = vpack.c.b16 %v3618, %v3617
  %v3653 = vpack.c.b16 %v3620, %v3619
  %v3654 = vpack.c.b16 %v3622, %v3621
  %v3655 = vpack.c.b16 %v3624, %v3623
  %v3656 = vpack.c.b16 %v3626, %v3625
  %v3657 = vpack.c.b16 %v3628, %v3627
  %v3658 = vpack.c.b16 %v3630, %v3629
  %v3659 = vpack.c.b16 %v3632, %v3631
  %v3660 = vpack.c.b16 %v3634, %v3633
  %v3661 = vpack.c.b16 %v3636, %v3635
  %v3662 = vpack.c.b16 %v3638, %v3637
  %v3663 = vpack.c.b16 %v3640, %v3639
  %v3664 = vpack.c.b16 %v3642, %v3641
  %v3665 = vpack.c.b16 %v3644, %v3643
  %v3666 = vpack.c.b16 %v3646, %v3645
  %v3667 = vpack.c.b16 %v3648, %v3647
  %v3668 = vpack.c.b16 %v3650, %v3649
  %v3688 = vsel %vm1154, %v3407, 0
  %v3691 = vsel %vm1154, %v3408, 0
  %v3694 = vsel %vm1154, %v3409, 0
  %v3697 = vsel %vm1154, %v3410, 0
  %v3700 = vsel %vm1154, %v3411, 0
  %v3703 = vsel %vm1154, %v3412, 0
  %v3706 = vsel %vm1154, %v3413, 0
  %v3709 = vsel %vm1154, %v3414, 0
  %3711 = vmatpush.bf16.msra.mxu0 %v3658
  %3712 = vmatpush.bf16.msra.mxu0 %v3657
  %3713 = vmatpush.bf16.msra.mxu0 %v3656
  %3714 = vmatpush.bf16.msra.mxu0 %v3655
  %3715 = vmatpush.bf16.msra.mxu0 %v3654
  %3716 = vmatpush.bf16.msra.mxu0 %v3653
  %3717 = vmatpush.bf16.msra.mxu0 %v3652
  %3718 = vmatpush.bf16.msra.mxu0 %v3651
  %3719 = vmatmul.bf16.gmra.mxu0 %v3456
  %v3720 = vpop.f32.mrf.mxu0
  %v3721 = vadd.f32 0.0, %v3720
  %v3722 = vpop.f32.mrf.mxu0
  %v3723 = vadd.f32 0.0, %v3722
  %3724 = vmatmul.bf16.gmra.mxu0 %v3459
  %v3725 = vpop.f32.mrf.mxu0
  %v3726 = vadd.f32 0.0, %v3725
  %v3727 = vpop.f32.mrf.mxu0
  %v3728 = vadd.f32 0.0, %v3727
  %3729 = vmatmul.bf16.gmra.mxu0 %v3462
  %v3730 = vpop.f32.mrf.mxu0
  %v3731 = vadd.f32 0.0, %v3730
  %v3732 = vpop.f32.mrf.mxu0
  %v3733 = vadd.f32 0.0, %v3732
  %3734 = vmatmul.bf16.gmra.mxu0 %v3465
  %v3735 = vpop.f32.mrf.mxu0
  %v3736 = vadd.f32 0.0, %v3735
  %v3737 = vpop.f32.mrf.mxu0
  %v3738 = vadd.f32 0.0, %v3737
  %3739 = vmatmul.bf16.gmra.mxu0 %v3468
  %v3740 = vpop.f32.mrf.mxu0
  %v3741 = vadd.f32 0.0, %v3740
  %v3742 = vpop.f32.mrf.mxu0
  %v3743 = vadd.f32 0.0, %v3742
  %3744 = vmatmul.bf16.gmra.mxu0 %v3471
  %v3745 = vpop.f32.mrf.mxu0
  %v3746 = vadd.f32 0.0, %v3745
  %v3747 = vpop.f32.mrf.mxu0
  %v3748 = vadd.f32 0.0, %v3747
  %3749 = vmatmul.bf16.gmra.mxu0 %v3474
  %v3750 = vpop.f32.mrf.mxu0
  %v3751 = vadd.f32 0.0, %v3750
  %v3752 = vpop.f32.mrf.mxu0
  %v3753 = vadd.f32 0.0, %v3752
  %3754 = vmatmul.bf16.gmra.mxu0 %v3477
  %v3755 = vpop.f32.mrf.mxu0
  %v3756 = vadd.f32 0.0, %v3755
  %v3757 = vpop.f32.mrf.mxu0
  %v3758 = vadd.f32 0.0, %v3757
  %3759 = vdwg.mxu0
  %3760 = vmatpush.bf16.msra.mxu0 %v3666
  %3761 = vmatpush.bf16.msra.mxu0 %v3665
  %3762 = vmatpush.bf16.msra.mxu0 %v3664
  %3763 = vmatpush.bf16.msra.mxu0 %v3663
  %3764 = vmatpush.bf16.msra.mxu0 %v3662
  %3765 = vmatpush.bf16.msra.mxu0 %v3661
  %3766 = vmatpush.bf16.msra.mxu0 %v3660
  %3767 = vmatpush.bf16.msra.mxu0 %v3659
  %3768 = vmatmul.bf16.gmra.mxu0 %v3520
  %v3769 = vpop.f32.mrf.mxu0
  %v3770 = vadd.f32 %v3721, %v3769
  %v3771 = vpop.f32.mrf.mxu0
  %v3772 = vadd.f32 %v3723, %v3771
  %3773 = vmatmul.bf16.gmra.mxu0 %v3523
  %v3774 = vpop.f32.mrf.mxu0
  %v3775 = vadd.f32 %v3726, %v3774
  %v3776 = vpop.f32.mrf.mxu0
  %v3777 = vadd.f32 %v3728, %v3776
  %3778 = vmatmul.bf16.gmra.mxu0 %v3526
  %v3779 = vpop.f32.mrf.mxu0
  %v3780 = vadd.f32 %v3731, %v3779
  %v3781 = vpop.f32.mrf.mxu0
  %v3782 = vadd.f32 %v3733, %v3781
  %3783 = vmatmul.bf16.gmra.mxu0 %v3529
  %v3784 = vpop.f32.mrf.mxu0
  %v3785 = vadd.f32 %v3736, %v3784
  %v3786 = vpop.f32.mrf.mxu0
  %v3787 = vadd.f32 %v3738, %v3786
  %3788 = vmatmul.bf16.gmra.mxu0 %v3532
  %v3789 = vpop.f32.mrf.mxu0
  %v3790 = vadd.f32 %v3741, %v3789
  %v3791 = vpop.f32.mrf.mxu0
  %v3792 = vadd.f32 %v3743, %v3791
  %3793 = vmatmul.bf16.gmra.mxu0 %v3535
  %v3794 = vpop.f32.mrf.mxu0
  %v3795 = vadd.f32 %v3746, %v3794
  %v3796 = vpop.f32.mrf.mxu0
  %v3797 = vadd.f32 %v3748, %v3796
  %3798 = vmatmul.bf16.gmra.mxu0 %v3538
  %v3799 = vpop.f32.mrf.mxu0
  %v3800 = vadd.f32 %v3751, %v3799
  %v3801 = vpop.f32.mrf.mxu0
  %v3802 = vadd.f32 %v3753, %v3801
  %3803 = vmatmul.bf16.gmra.mxu0 %v3541
  %v3804 = vpop.f32.mrf.mxu0
  %v3805 = vadd.f32 %v3756, %v3804
  %v3806 = vpop.f32.mrf.mxu0
  %v3807 = vadd.f32 %v3758, %v3806
  %3808 = vdwg.mxu0
  %3809 = vmatpush.bf16.msra.mxu0 0
  %3810 = vmatpush.bf16.msra.mxu0 0
  %3811 = vmatpush.bf16.msra.mxu0 0
  %3812 = vmatpush.bf16.msra.mxu0 0
  %3813 = vmatpush.bf16.msra.mxu0 0
  %3814 = vmatpush.bf16.msra.mxu0 0
  %3815 = vmatpush.bf16.msra.mxu0 %v3668
  %3816 = vmatpush.bf16.msra.mxu0 %v3667
  %3817 = vmatmul.bf16.gmra.mxu0 %v3688
  %v3818 = vpop.f32.mrf.mxu0
  %v3819 = vadd.f32 %v3770, %v3818
  %v3820 = vpop.f32.mrf.mxu0
  %v3821 = vadd.f32 %v3772, %v3820
  %3822 = vmatmul.bf16.gmra.mxu0 %v3691
  %v3823 = vpop.f32.mrf.mxu0
  %v3824 = vadd.f32 %v3775, %v3823
  %v3825 = vpop.f32.mrf.mxu0
  %v3826 = vadd.f32 %v3777, %v3825
  %3827 = vmatmul.bf16.gmra.mxu0 %v3694
  %v3828 = vpop.f32.mrf.mxu0
  %v3829 = vadd.f32 %v3780, %v3828
  %v3830 = vpop.f32.mrf.mxu0
  %v3831 = vadd.f32 %v3782, %v3830
  %3832 = vmatmul.bf16.gmra.mxu0 %v3697
  %v3833 = vpop.f32.mrf.mxu0
  %v3834 = vadd.f32 %v3785, %v3833
  %v3835 = vpop.f32.mrf.mxu0
  %v3836 = vadd.f32 %v3787, %v3835
  %3837 = vmatmul.bf16.gmra.mxu0 %v3700
  %v3838 = vpop.f32.mrf.mxu0
  %v3839 = vadd.f32 %v3790, %v3838
  %v3840 = vpop.f32.mrf.mxu0
  %v3841 = vadd.f32 %v3792, %v3840
  %3842 = vmatmul.bf16.gmra.mxu0 %v3703
  %v3843 = vpop.f32.mrf.mxu0
  %v3844 = vadd.f32 %v3795, %v3843
  %v3845 = vpop.f32.mrf.mxu0
  %v3846 = vadd.f32 %v3797, %v3845
  %3847 = vmatmul.bf16.gmra.mxu0 %v3706
  %v3848 = vpop.f32.mrf.mxu0
  %v3849 = vadd.f32 %v3800, %v3848
  %v3850 = vpop.f32.mrf.mxu0
  %v3851 = vadd.f32 %v3802, %v3850
  %3852 = vmatmul.bf16.gmra.mxu0 %v3709
  %v3853 = vpop.f32.mrf.mxu0
  %v3854 = vadd.f32 %v3805, %v3853
  %v3855 = vpop.f32.mrf.mxu0
  %v3856 = vadd.f32 %v3807, %v3855
  %3857 = vdwg.mxu0
  %v3858 = vsel %vm1154, %v3819, 0.0
  %3859 = vadd.xlane.f32.xlu0 %v3858
  %v3860 = vpop.xlane.xlu0 %3859
  %v3861 = vsel %vm1154, %v3821, 0.0
  %3862 = vadd.xlane.f32.xlu0 %v3861
  %v3863 = vpop.xlane.xlu0 %3862
  %v3864 = vsel %vm1154, %v3824, 0.0
  %3865 = vadd.xlane.f32.xlu0 %v3864
  %v3866 = vpop.xlane.xlu0 %3865
  %v3867 = vsel %vm1154, %v3826, 0.0
  %3868 = vadd.xlane.f32.xlu0 %v3867
  %v3869 = vpop.xlane.xlu0 %3868
  %v3870 = vsel %vm1154, %v3829, 0.0
  %3871 = vadd.xlane.f32.xlu0 %v3870
  %v3872 = vpop.xlane.xlu0 %3871
  %v3873 = vsel %vm1154, %v3831, 0.0
  %3874 = vadd.xlane.f32.xlu0 %v3873
  %v3875 = vpop.xlane.xlu0 %3874
  %v3876 = vsel %vm1154, %v3834, 0.0
  %3877 = vadd.xlane.f32.xlu0 %v3876
  %v3878 = vpop.xlane.xlu0 %3877
  %v3879 = vsel %vm1154, %v3836, 0.0
  %3880 = vadd.xlane.f32.xlu0 %v3879
  %v3881 = vpop.xlane.xlu0 %3880
  %v3882 = vsel %vm1154, %v3839, 0.0
  %3883 = vadd.xlane.f32.xlu0 %v3882
  %v3884 = vpop.xlane.xlu0 %3883
  %v3885 = vsel %vm1154, %v3841, 0.0
  %3886 = vadd.xlane.f32.xlu0 %v3885
  %v3887 = vpop.xlane.xlu0 %3886
  %v3888 = vsel %vm1154, %v3844, 0.0
  %3889 = vadd.xlane.f32.xlu0 %v3888
  %v3890 = vpop.xlane.xlu0 %3889
  %v3891 = vsel %vm1154, %v3846, 0.0
  %3892 = vadd.xlane.f32.xlu0 %v3891
  %v3893 = vpop.xlane.xlu0 %3892
  %v3894 = vsel %vm1154, %v3849, 0.0
  %3895 = vadd.xlane.f32.xlu0 %v3894
  %v3896 = vpop.xlane.xlu0 %3895
  %v3897 = vsel %vm1154, %v3851, 0.0
  %3898 = vadd.xlane.f32.xlu0 %v3897
  %v3899 = vpop.xlane.xlu0 %3898
  %v3900 = vsel %vm1154, %v3854, 0.0
  %3901 = vadd.xlane.f32.xlu0 %v3900
  %v3902 = vpop.xlane.xlu0 %3901
  %v3903 = vsel %vm1154, %v3856, 0.0
  %3904 = vadd.xlane.f32.xlu0 %v3903
  %v3905 = vpop.xlane.xlu0 %3904
  %v3906 = vadd.f32 %v3860, %v3863
  %v3907 = vadd.f32 %v3906, %v3866
  %v3908 = vadd.f32 %v3907, %v3869
  %v3909 = vadd.f32 %v3908, %v3872
  %v3910 = vadd.f32 %v3909, %v3875
  %v3911 = vadd.f32 %v3910, %v3878
  %v3912 = vadd.f32 %v3911, %v3881
  %v3913 = vrot.slane %v3912, 4
  %v3914 = vadd.f32 %v3912, %v3913
  %v3915 = vrot.slane %v3914, 2
  %v3916 = vadd.f32 %v3914, %v3915
  %v3917 = vrot.slane %v3916, 1
  %v3918 = vadd.f32 %v3916, %v3917
  %v3919 = vadd.f32 %v3884, %v3887
  %v3920 = vadd.f32 %v3919, %v3890
  %v3921 = vadd.f32 %v3920, %v3893
  %v3922 = vadd.f32 %v3921, %v3896
  %v3923 = vadd.f32 %v3922, %v3899
  %v3924 = vadd.f32 %v3923, %v3902
  %v3925 = vadd.f32 %v3924, %v3905
  %v3926 = vrot.slane %v3925, 4
  %v3927 = vadd.f32 %v3925, %v3926
  %v3928 = vrot.slane %v3927, 2
  %v3929 = vadd.f32 %v3927, %v3928
  %v3930 = vrot.slane %v3929, 1
  %v3931 = vadd.f32 %v3929, %v3930
  %v3932 = vmul.f32 %v3918, %v1680
  %v3933 = vmul.f32 %v3931, %v1680
  %v3934 = vsub.f32 %v3819, %v3932
  %v3935 = vsub.f32 %v3821, %v3932
  %v3936 = vsub.f32 %v3824, %v3932
  %v3937 = vsub.f32 %v3826, %v3932
  %v3938 = vsub.f32 %v3829, %v3932
  %v3939 = vsub.f32 %v3831, %v3932
  %v3940 = vsub.f32 %v3834, %v3932
  %v3941 = vsub.f32 %v3836, %v3932
  %v3942 = vsub.f32 %v3839, %v3933
  %v3943 = vsub.f32 %v3841, %v3933
  %v3944 = vsub.f32 %v3844, %v3933
  %v3945 = vsub.f32 %v3846, %v3933
  %v3946 = vsub.f32 %v3849, %v3933
  %v3947 = vsub.f32 %v3851, %v3933
  %v3948 = vsub.f32 %v3854, %v3933
  %v3949 = vsub.f32 %v3856, %v3933
  %v3950 = vmul.f32 %v3934, %v3934
  %v3951 = vmul.f32 %v3935, %v3935
  %v3952 = vmul.f32 %v3936, %v3936
  %v3953 = vmul.f32 %v3937, %v3937
  %v3954 = vmul.f32 %v3938, %v3938
  %v3955 = vmul.f32 %v3939, %v3939
  %v3956 = vmul.f32 %v3940, %v3940
  %v3957 = vmul.f32 %v3941, %v3941
  %v3958 = vmul.f32 %v3942, %v3942
  %v3959 = vmul.f32 %v3943, %v3943
  %v3960 = vmul.f32 %v3944, %v3944
  %v3961 = vmul.f32 %v3945, %v3945
  %v3962 = vmul.f32 %v3946, %v3946
  %v3963 = vmul.f32 %v3947, %v3947
  %v3964 = vmul.f32 %v3948, %v3948
  %v3965 = vmul.f32 %v3949, %v3949
  %v3966 = vsel %vm1154, %v3950, 0.0
  %3967 = vadd.xlane.f32.xlu0 %v3966
  %v3968 = vpop.xlane.xlu0 %3967
  %v3969 = vsel %vm1154, %v3951, 0.0
  %3970 = vadd.xlane.f32.xlu0 %v3969
  %v3971 = vpop.xlane.xlu0 %3970
  %v3972 = vsel %vm1154, %v3952, 0.0
  %3973 = vadd.xlane.f32.xlu0 %v3972
  %v3974 = vpop.xlane.xlu0 %3973
  %v3975 = vsel %vm1154, %v3953, 0.0
  %3976 = vadd.xlane.f32.xlu0 %v3975
  %v3977 = vpop.xlane.xlu0 %3976
  %v3978 = vsel %vm1154, %v3954, 0.0
  %3979 = vadd.xlane.f32.xlu0 %v3978
  %v3980 = vpop.xlane.xlu0 %3979
  %v3981 = vsel %vm1154, %v3955, 0.0
  %3982 = vadd.xlane.f32.xlu0 %v3981
  %v3983 = vpop.xlane.xlu0 %3982
  %v3984 = vsel %vm1154, %v3956, 0.0
  %3985 = vadd.xlane.f32.xlu0 %v3984
  %v3986 = vpop.xlane.xlu0 %3985
  %v3987 = vsel %vm1154, %v3957, 0.0
  %3988 = vadd.xlane.f32.xlu0 %v3987
  %v3989 = vpop.xlane.xlu0 %3988
  %v3990 = vsel %vm1154, %v3958, 0.0
  %3991 = vadd.xlane.f32.xlu0 %v3990
  %v3992 = vpop.xlane.xlu0 %3991
  %v3993 = vsel %vm1154, %v3959, 0.0
  %3994 = vadd.xlane.f32.xlu0 %v3993
  %v3995 = vpop.xlane.xlu0 %3994
  %v3996 = vsel %vm1154, %v3960, 0.0
  %3997 = vadd.xlane.f32.xlu0 %v3996
  %v3998 = vpop.xlane.xlu0 %3997
  %v3999 = vsel %vm1154, %v3961, 0.0
  %4000 = vadd.xlane.f32.xlu0 %v3999
  %v4001 = vpop.xlane.xlu0 %4000
  %v4002 = vsel %vm1154, %v3962, 0.0
  %4003 = vadd.xlane.f32.xlu0 %v4002
  %v4004 = vpop.xlane.xlu0 %4003
  %v4005 = vsel %vm1154, %v3963, 0.0
  %4006 = vadd.xlane.f32.xlu0 %v4005
  %v4007 = vpop.xlane.xlu0 %4006
  %v4008 = vsel %vm1154, %v3964, 0.0
  %4009 = vadd.xlane.f32.xlu0 %v4008
  %v4010 = vpop.xlane.xlu0 %4009
  %v4011 = vsel %vm1154, %v3965, 0.0
  %4012 = vadd.xlane.f32.xlu0 %v4011
  %v4013 = vpop.xlane.xlu0 %4012
  %v4014 = vadd.f32 %v3968, %v3971
  %v4015 = vadd.f32 %v4014, %v3974
  %v4016 = vadd.f32 %v4015, %v3977
  %v4017 = vadd.f32 %v4016, %v3980
  %v4018 = vadd.f32 %v4017, %v3983
  %v4019 = vadd.f32 %v4018, %v3986
  %v4020 = vadd.f32 %v4019, %v3989
  %v4021 = vrot.slane %v4020, 4
  %v4022 = vadd.f32 %v4020, %v4021
  %v4023 = vrot.slane %v4022, 2
  %v4024 = vadd.f32 %v4022, %v4023
  %v4025 = vrot.slane %v4024, 1
  %v4026 = vadd.f32 %v4024, %v4025
  %v4027 = vadd.f32 %v3992, %v3995
  %v4028 = vadd.f32 %v4027, %v3998
  %v4029 = vadd.f32 %v4028, %v4001
  %v4030 = vadd.f32 %v4029, %v4004
  %v4031 = vadd.f32 %v4030, %v4007
  %v4032 = vadd.f32 %v4031, %v4010
  %v4033 = vadd.f32 %v4032, %v4013
  %v4034 = vrot.slane %v4033, 4
  %v4035 = vadd.f32 %v4033, %v4034
  %v4036 = vrot.slane %v4035, 2
  %v4037 = vadd.f32 %v4035, %v4036
  %v4038 = vrot.slane %v4037, 1
  %v4039 = vadd.f32 %v4037, %v4038
  %v4040 = vmul.f32 %v4026, %v1680
  %v4041 = vmul.f32 %v4039, %v1680
  %v4042 = vadd.f32 %v4040, 1e-05
  %v4043 = vadd.f32 %v4041, 1e-05
  %v4044 = vrsqrt.pop %v4042
  %v4045 = vmul.f32 %v4044, %v4042
  %v4046 = vmul.f32 %v4045, %v4044
  %v4047 = vmul.f32 0.5, %v4046
  %v4048 = vsub.f32 1.5, %v4047
  %v4049 = vmul.f32 %v4044, %v4048
  %vm4050 = vweird.f32 %v4042
  %vm4051 = vweird.f32 %v4044
  %vm4052 = vmor %vm4050, %vm4051
  %v4053 = vsel %vm4052, %v4044, %v4049
  %v4054 = vrsqrt.pop %v4043
  %v4055 = vmul.f32 %v4054, %v4043
  %v4056 = vmul.f32 %v4055, %v4054
  %v4057 = vmul.f32 0.5, %v4056
  %v4058 = vsub.f32 1.5, %v4057
  %v4059 = vmul.f32 %v4054, %v4058
  %vm4060 = vweird.f32 %v4043
  %vm4061 = vweird.f32 %v4054
  %vm4062 = vmor %vm4060, %vm4061
  %v4063 = vsel %vm4062, %v4054, %v4059
  %v4064 = vmul.f32 %v3934, %v4053
  %v4065 = vmul.f32 %v3935, %v4053
  %v4066 = vmul.f32 %v3936, %v4053
  %v4067 = vmul.f32 %v3937, %v4053
  %v4068 = vmul.f32 %v3938, %v4053
  %v4069 = vmul.f32 %v3939, %v4053
  %v4070 = vmul.f32 %v3940, %v4053
  %v4071 = vmul.f32 %v3941, %v4053
  %v4072 = vmul.f32 %v3942, %v4063
  %v4073 = vmul.f32 %v3943, %v4063
  %v4074 = vmul.f32 %v3944, %v4063
  %v4075 = vmul.f32 %v3945, %v4063
  %v4076 = vmul.f32 %v3946, %v4063
  %v4077 = vmul.f32 %v3947, %v4063
  %v4078 = vmul.f32 %v3948, %v4063
  %v4079 = vmul.f32 %v3949, %v4063
  %v4080 = vld [vmem:[%s8] sm:$0x1]
  %v4082 = vperm.slane %v4080, 0
  %v4084 = vmul.f32 %v4064, %v4082
  %v4085 = vmul.f32 %v4065, %v4082
  %v4086 = vmul.f32 %v4066, %v4082
  %v4087 = vmul.f32 %v4067, %v4082
  %v4088 = vmul.f32 %v4068, %v4082
  %v4089 = vmul.f32 %v4069, %v4082
  %v4090 = vmul.f32 %v4070, %v4082
  %v4091 = vmul.f32 %v4071, %v4082
  %v4092 = vmul.f32 %v4072, %v4082
  %v4093 = vmul.f32 %v4073, %v4082
  %v4094 = vmul.f32 %v4074, %v4082
  %v4095 = vmul.f32 %v4075, %v4082
  %v4096 = vmul.f32 %v4076, %v4082
  %v4097 = vmul.f32 %v4077, %v4082
  %v4098 = vmul.f32 %v4078, %v4082
  %v4099 = vmul.f32 %v4079, %v4082
  %v4100 = vld [vmem:[%s9] sm:$0x1]
  %v4102 = vperm.slane %v4100, 0
  %v4104 = vadd.f32 %v4084, %v4102
  %v4105 = vadd.f32 %v4085, %v4102
  %v4106 = vadd.f32 %v4086, %v4102
  %v4107 = vadd.f32 %v4087, %v4102
  %v4108 = vadd.f32 %v4088, %v4102
  %v4109 = vadd.f32 %v4089, %v4102
  %v4110 = vadd.f32 %v4090, %v4102
  %v4111 = vadd.f32 %v4091, %v4102
  %v4112 = vadd.f32 %v4092, %v4102
  %v4113 = vadd.f32 %v4093, %v4102
  %v4114 = vadd.f32 %v4094, %v4102
  %v4115 = vadd.f32 %v4095, %v4102
  %v4116 = vadd.f32 %v4096, %v4102
  %v4117 = vadd.f32 %v4097, %v4102
  %v4118 = vadd.f32 %v4098, %v4102
  %v4119 = vadd.f32 %v4099, %v4102
  %v4120 = vadd.f32 %v159, %v4104
  %v4121 = vadd.f32 %v160, %v4105
  %v4122 = vadd.f32 %v161, %v4106
  %v4123 = vadd.f32 %v162, %v4107
  %v4124 = vadd.f32 %v163, %v4108
  %v4125 = vadd.f32 %v164, %v4109
  %v4126 = vadd.f32 %v165, %v4110
  %v4127 = vadd.f32 %v166, %v4111
  %v4128 = vadd.f32 %v167, %v4112
  %v4129 = vadd.f32 %v168, %v4113
  %v4130 = vadd.f32 %v169, %v4114
  %v4131 = vadd.f32 %v170, %v4115
  %v4132 = vadd.f32 %v171, %v4116
  %v4133 = vadd.f32 %v172, %v4117
  %v4134 = vadd.f32 %v173, %v4118
  %v4135 = vadd.f32 %v174, %v4119
  %v4136 = vmul.f32 %v4120, 0.5
  %v4137 = vmul.f32 %v4121, 0.5
  %v4138 = vmul.f32 %v4122, 0.5
  %v4139 = vmul.f32 %v4123, 0.5
  %v4140 = vmul.f32 %v4124, 0.5
  %v4141 = vmul.f32 %v4125, 0.5
  %v4142 = vmul.f32 %v4126, 0.5
  %v4143 = vmul.f32 %v4127, 0.5
  %v4144 = vmul.f32 %v4128, 0.5
  %v4145 = vmul.f32 %v4129, 0.5
  %v4146 = vmul.f32 %v4130, 0.5
  %v4147 = vmul.f32 %v4131, 0.5
  %v4148 = vmul.f32 %v4132, 0.5
  %v4149 = vmul.f32 %v4133, 0.5
  %v4150 = vmul.f32 %v4134, 0.5
  %v4151 = vmul.f32 %v4135, 0.5
  %v4152 = vmul.f32 %v4120, 0.70710677
  %v4153 = vmul.f32 %v4121, 0.70710677
  %v4154 = vmul.f32 %v4122, 0.70710677
  %v4155 = vmul.f32 %v4123, 0.70710677
  %v4156 = vmul.f32 %v4124, 0.70710677
  %v4157 = vmul.f32 %v4125, 0.70710677
  %v4158 = vmul.f32 %v4126, 0.70710677
  %v4159 = vmul.f32 %v4127, 0.70710677
  %v4160 = vmul.f32 %v4128, 0.70710677
  %v4161 = vmul.f32 %v4129, 0.70710677
  %v4162 = vmul.f32 %v4130, 0.70710677
  %v4163 = vmul.f32 %v4131, 0.70710677
  %v4164 = vmul.f32 %v4132, 0.70710677
  %v4165 = vmul.f32 %v4133, 0.70710677
  %v4166 = vmul.f32 %v4134, 0.70710677
  %v4167 = vmul.f32 %v4135, 0.70710677
  %v4168 = vmul.f32 %v4152, %v4152
  %v4169 = vmin.f32 16.0, %v4168
  %v4170 = vmul.f32 %v4169, 2.1237322e-06
  %v4171 = vadd.f32 %v4170, 0.00028619796
  %v4172 = vmul.f32 %v4169, %v4171
  %v4173 = vadd.f32 %v4172, 0.0036580483
  %v4174 = vmul.f32 %v4169, %v4173
  %v4175 = vadd.f32 %v4174, 0.05243302
  %v4176 = vmul.f32 %v4169, %v4175
  %v4177 = vadd.f32 %v4176, 0.18741608
  %v4178 = vmul.f32 %v4169, %v4177
  %v4179 = vadd.f32 %v4178, 1.1283791
  %v4180 = vmul.f32 %v4152, %v4179
  %v4181 = vmul.f32 %v4169, 3.8918573e-05
  %v4182 = vadd.f32 %v4181, 0.001143296
  %v4183 = vmul.f32 %v4169, %v4182
  %v4184 = vadd.f32 %v4183, 0.014752088
  %v4185 = vmul.f32 %v4169, %v4184
  %v4186 = vadd.f32 %v4185, 0.112945676
  %v4187 = vmul.f32 %v4169, %v4186
  %v4188 = vadd.f32 %v4187, 0.4994258
  %v4189 = vmul.f32 %v4169, %v4188
  %v4190 = vadd.f32 %v4189, 1.0
  %v4191 = vrcp.pop %v4190
  %v4192 = vmul.f32 %v4190, %v4191
  %v4193 = vsub.f32 1.0, %v4192
  %v4194 = vmul.f32 %v4191, %v4193
  %v4195 = vadd.f32 %v4191, %v4194
  %vm4196 = vweird.f32 %v4190
  %vm4197 = vweird.f32 %v4191
  %vm4198 = vmor %vm4196, %vm4197
  %v4199 = vsel %vm4198, %v4191, %v4195
  %v4200 = vand.u32 2147483647, %v4190
  %vm4201 = vcmp.eq.f32.partialorder %v4200, 8.507059e+37
  %v4202 = vand.u32 %v4190, 2147483648
  %v4203 = vor.u32 1.1754944e-38, %v4202
  %v4204 = vsel %vm4201, %v4203, %v4199
  %v4205 = vmul.f32 %v4180, %v4204
  %v4206 = vmin.f32 %v4205, 1.0
  %v4207 = vmax.f32 %v4206, -1.0
  %v4208 = vmul.f32 %v4153, %v4153
  %v4209 = vmin.f32 16.0, %v4208
  %v4210 = vmul.f32 %v4209, 2.1237322e-06
  %v4211 = vadd.f32 %v4210, 0.00028619796
  %v4212 = vmul.f32 %v4209, %v4211
  %v4213 = vadd.f32 %v4212, 0.0036580483
  %v4214 = vmul.f32 %v4209, %v4213
  %v4215 = vadd.f32 %v4214, 0.05243302
  %v4216 = vmul.f32 %v4209, %v4215
  %v4217 = vadd.f32 %v4216, 0.18741608
  %v4218 = vmul.f32 %v4209, %v4217
  %v4219 = vadd.f32 %v4218, 1.1283791
  %v4220 = vmul.f32 %v4153, %v4219
  %v4221 = vmul.f32 %v4209, 3.8918573e-05
  %v4222 = vadd.f32 %v4221, 0.001143296
  %v4223 = vmul.f32 %v4209, %v4222
  %v4224 = vadd.f32 %v4223, 0.014752088
  %v4225 = vmul.f32 %v4209, %v4224
  %v4226 = vadd.f32 %v4225, 0.112945676
  %v4227 = vmul.f32 %v4209, %v4226
  %v4228 = vadd.f32 %v4227, 0.4994258
  %v4229 = vmul.f32 %v4209, %v4228
  %v4230 = vadd.f32 %v4229, 1.0
  %v4231 = vrcp.pop %v4230
  %v4232 = vmul.f32 %v4230, %v4231
  %v4233 = vsub.f32 1.0, %v4232
  %v4234 = vmul.f32 %v4231, %v4233
  %v4235 = vadd.f32 %v4231, %v4234
  %vm4236 = vweird.f32 %v4230
  %vm4237 = vweird.f32 %v4231
  %vm4238 = vmor %vm4236, %vm4237
  %v4239 = vsel %vm4238, %v4231, %v4235
  %v4240 = vand.u32 2147483647, %v4230
  %vm4241 = vcmp.eq.f32.partialorder %v4240, 8.507059e+37
  %v4242 = vand.u32 %v4230, 2147483648
  %v4243 = vor.u32 1.1754944e-38, %v4242
  %v4244 = vsel %vm4241, %v4243, %v4239
  %v4245 = vmul.f32 %v4220, %v4244
  %v4246 = vmin.f32 %v4245, 1.0
  %v4247 = vmax.f32 %v4246, -1.0
  %v4248 = vmul.f32 %v4154, %v4154
  %v4249 = vmin.f32 16.0, %v4248
  %v4250 = vmul.f32 %v4249, 2.1237322e-06
  %v4251 = vadd.f32 %v4250, 0.00028619796
  %v4252 = vmul.f32 %v4249, %v4251
  %v4253 = vadd.f32 %v4252, 0.0036580483
  %v4254 = vmul.f32 %v4249, %v4253
  %v4255 = vadd.f32 %v4254, 0.05243302
  %v4256 = vmul.f32 %v4249, %v4255
  %v4257 = vadd.f32 %v4256, 0.18741608
  %v4258 = vmul.f32 %v4249, %v4257
  %v4259 = vadd.f32 %v4258, 1.1283791
  %v4260 = vmul.f32 %v4154, %v4259
  %v4261 = vmul.f32 %v4249, 3.8918573e-05
  %v4262 = vadd.f32 %v4261, 0.001143296
  %v4263 = vmul.f32 %v4249, %v4262
  %v4264 = vadd.f32 %v4263, 0.014752088
  %v4265 = vmul.f32 %v4249, %v4264
  %v4266 = vadd.f32 %v4265, 0.112945676
  %v4267 = vmul.f32 %v4249, %v4266
  %v4268 = vadd.f32 %v4267, 0.4994258
  %v4269 = vmul.f32 %v4249, %v4268
  %v4270 = vadd.f32 %v4269, 1.0
  %v4271 = vrcp.pop %v4270
  %v4272 = vmul.f32 %v4270, %v4271
  %v4273 = vsub.f32 1.0, %v4272
  %v4274 = vmul.f32 %v4271, %v4273
  %v4275 = vadd.f32 %v4271, %v4274
  %vm4276 = vweird.f32 %v4270
  %vm4277 = vweird.f32 %v4271
  %vm4278 = vmor %vm4276, %vm4277
  %v4279 = vsel %vm4278, %v4271, %v4275
  %v4280 = vand.u32 2147483647, %v4270
  %vm4281 = vcmp.eq.f32.partialorder %v4280, 8.507059e+37
  %v4282 = vand.u32 %v4270, 2147483648
  %v4283 = vor.u32 1.1754944e-38, %v4282
  %v4284 = vsel %vm4281, %v4283, %v4279
  %v4285 = vmul.f32 %v4260, %v4284
  %v4286 = vmin.f32 %v4285, 1.0
  %v4287 = vmax.f32 %v4286, -1.0
  %v4288 = vmul.f32 %v4155, %v4155
  %v4289 = vmin.f32 16.0, %v4288
  %v4290 = vmul.f32 %v4289, 2.1237322e-06
  %v4291 = vadd.f32 %v4290, 0.00028619796
  %v4292 = vmul.f32 %v4289, %v4291
  %v4293 = vadd.f32 %v4292, 0.0036580483
  %v4294 = vmul.f32 %v4289, %v4293
  %v4295 = vadd.f32 %v4294, 0.05243302
  %v4296 = vmul.f32 %v4289, %v4295
  %v4297 = vadd.f32 %v4296, 0.18741608
  %v4298 = vmul.f32 %v4289, %v4297
  %v4299 = vadd.f32 %v4298, 1.1283791
  %v4300 = vmul.f32 %v4155, %v4299
  %v4301 = vmul.f32 %v4289, 3.8918573e-05
  %v4302 = vadd.f32 %v4301, 0.001143296
  %v4303 = vmul.f32 %v4289, %v4302
  %v4304 = vadd.f32 %v4303, 0.014752088
  %v4305 = vmul.f32 %v4289, %v4304
  %v4306 = vadd.f32 %v4305, 0.112945676
  %v4307 = vmul.f32 %v4289, %v4306
  %v4308 = vadd.f32 %v4307, 0.4994258
  %v4309 = vmul.f32 %v4289, %v4308
  %v4310 = vadd.f32 %v4309, 1.0
  %v4311 = vrcp.pop %v4310
  %v4312 = vmul.f32 %v4310, %v4311
  %v4313 = vsub.f32 1.0, %v4312
  %v4314 = vmul.f32 %v4311, %v4313
  %v4315 = vadd.f32 %v4311, %v4314
  %vm4316 = vweird.f32 %v4310
  %vm4317 = vweird.f32 %v4311
  %vm4318 = vmor %vm4316, %vm4317
  %v4319 = vsel %vm4318, %v4311, %v4315
  %v4320 = vand.u32 2147483647, %v4310
  %vm4321 = vcmp.eq.f32.partialorder %v4320, 8.507059e+37
  %v4322 = vand.u32 %v4310, 2147483648
  %v4323 = vor.u32 1.1754944e-38, %v4322
  %v4324 = vsel %vm4321, %v4323, %v4319
  %v4325 = vmul.f32 %v4300, %v4324
  %v4326 = vmin.f32 %v4325, 1.0
  %v4327 = vmax.f32 %v4326, -1.0
  %v4328 = vmul.f32 %v4156, %v4156
  %v4329 = vmin.f32 16.0, %v4328
  %v4330 = vmul.f32 %v4329, 2.1237322e-06
  %v4331 = vadd.f32 %v4330, 0.00028619796
  %v4332 = vmul.f32 %v4329, %v4331
  %v4333 = vadd.f32 %v4332, 0.0036580483
  %v4334 = vmul.f32 %v4329, %v4333
  %v4335 = vadd.f32 %v4334, 0.05243302
  %v4336 = vmul.f32 %v4329, %v4335
  %v4337 = vadd.f32 %v4336, 0.18741608
  %v4338 = vmul.f32 %v4329, %v4337
  %v4339 = vadd.f32 %v4338, 1.1283791
  %v4340 = vmul.f32 %v4156, %v4339
  %v4341 = vmul.f32 %v4329, 3.8918573e-05
  %v4342 = vadd.f32 %v4341, 0.001143296
  %v4343 = vmul.f32 %v4329, %v4342
  %v4344 = vadd.f32 %v4343, 0.014752088
  %v4345 = vmul.f32 %v4329, %v4344
  %v4346 = vadd.f32 %v4345, 0.112945676
  %v4347 = vmul.f32 %v4329, %v4346
  %v4348 = vadd.f32 %v4347, 0.4994258
  %v4349 = vmul.f32 %v4329, %v4348
  %v4350 = vadd.f32 %v4349, 1.0
  %v4351 = vrcp.pop %v4350
  %v4352 = vmul.f32 %v4350, %v4351
  %v4353 = vsub.f32 1.0, %v4352
  %v4354 = vmul.f32 %v4351, %v4353
  %v4355 = vadd.f32 %v4351, %v4354
  %vm4356 = vweird.f32 %v4350
  %vm4357 = vweird.f32 %v4351
  %vm4358 = vmor %vm4356, %vm4357
  %v4359 = vsel %vm4358, %v4351, %v4355
  %v4360 = vand.u32 2147483647, %v4350
  %vm4361 = vcmp.eq.f32.partialorder %v4360, 8.507059e+37
  %v4362 = vand.u32 %v4350, 2147483648
  %v4363 = vor.u32 1.1754944e-38, %v4362
  %v4364 = vsel %vm4361, %v4363, %v4359
  %v4365 = vmul.f32 %v4340, %v4364
  %v4366 = vmin.f32 %v4365, 1.0
  %v4367 = vmax.f32 %v4366, -1.0
  %v4368 = vmul.f32 %v4157, %v4157
  %v4369 = vmin.f32 16.0, %v4368
  %v4370 = vmul.f32 %v4369, 2.1237322e-06
  %v4371 = vadd.f32 %v4370, 0.00028619796
  %v4372 = vmul.f32 %v4369, %v4371
  %v4373 = vadd.f32 %v4372, 0.0036580483
  %v4374 = vmul.f32 %v4369, %v4373
  %v4375 = vadd.f32 %v4374, 0.05243302
  %v4376 = vmul.f32 %v4369, %v4375
  %v4377 = vadd.f32 %v4376, 0.18741608
  %v4378 = vmul.f32 %v4369, %v4377
  %v4379 = vadd.f32 %v4378, 1.1283791
  %v4380 = vmul.f32 %v4157, %v4379
  %v4381 = vmul.f32 %v4369, 3.8918573e-05
  %v4382 = vadd.f32 %v4381, 0.001143296
  %v4383 = vmul.f32 %v4369, %v4382
  %v4384 = vadd.f32 %v4383, 0.014752088
  %v4385 = vmul.f32 %v4369, %v4384
  %v4386 = vadd.f32 %v4385, 0.112945676
  %v4387 = vmul.f32 %v4369, %v4386
  %v4388 = vadd.f32 %v4387, 0.4994258
  %v4389 = vmul.f32 %v4369, %v4388
  %v4390 = vadd.f32 %v4389, 1.0
  %v4391 = vrcp.pop %v4390
  %v4392 = vmul.f32 %v4390, %v4391
  %v4393 = vsub.f32 1.0, %v4392
  %v4394 = vmul.f32 %v4391, %v4393
  %v4395 = vadd.f32 %v4391, %v4394
  %vm4396 = vweird.f32 %v4390
  %vm4397 = vweird.f32 %v4391
  %vm4398 = vmor %vm4396, %vm4397
  %v4399 = vsel %vm4398, %v4391, %v4395
  %v4400 = vand.u32 2147483647, %v4390
  %vm4401 = vcmp.eq.f32.partialorder %v4400, 8.507059e+37
  %v4402 = vand.u32 %v4390, 2147483648
  %v4403 = vor.u32 1.1754944e-38, %v4402
  %v4404 = vsel %vm4401, %v4403, %v4399
  %v4405 = vmul.f32 %v4380, %v4404
  %v4406 = vmin.f32 %v4405, 1.0
  %v4407 = vmax.f32 %v4406, -1.0
  %v4408 = vmul.f32 %v4158, %v4158
  %v4409 = vmin.f32 16.0, %v4408
  %v4410 = vmul.f32 %v4409, 2.1237322e-06
  %v4411 = vadd.f32 %v4410, 0.00028619796
  %v4412 = vmul.f32 %v4409, %v4411
  %v4413 = vadd.f32 %v4412, 0.0036580483
  %v4414 = vmul.f32 %v4409, %v4413
  %v4415 = vadd.f32 %v4414, 0.05243302
  %v4416 = vmul.f32 %v4409, %v4415
  %v4417 = vadd.f32 %v4416, 0.18741608
  %v4418 = vmul.f32 %v4409, %v4417
  %v4419 = vadd.f32 %v4418, 1.1283791
  %v4420 = vmul.f32 %v4158, %v4419
  %v4421 = vmul.f32 %v4409, 3.8918573e-05
  %v4422 = vadd.f32 %v4421, 0.001143296
  %v4423 = vmul.f32 %v4409, %v4422
  %v4424 = vadd.f32 %v4423, 0.014752088
  %v4425 = vmul.f32 %v4409, %v4424
  %v4426 = vadd.f32 %v4425, 0.112945676
  %v4427 = vmul.f32 %v4409, %v4426
  %v4428 = vadd.f32 %v4427, 0.4994258
  %v4429 = vmul.f32 %v4409, %v4428
  %v4430 = vadd.f32 %v4429, 1.0
  %v4431 = vrcp.pop %v4430
  %v4432 = vmul.f32 %v4430, %v4431
  %v4433 = vsub.f32 1.0, %v4432
  %v4434 = vmul.f32 %v4431, %v4433
  %v4435 = vadd.f32 %v4431, %v4434
  %vm4436 = vweird.f32 %v4430
  %vm4437 = vweird.f32 %v4431
  %vm4438 = vmor %vm4436, %vm4437
  %v4439 = vsel %vm4438, %v4431, %v4435
  %v4440 = vand.u32 2147483647, %v4430
  %vm4441 = vcmp.eq.f32.partialorder %v4440, 8.507059e+37
  %v4442 = vand.u32 %v4430, 2147483648
  %v4443 = vor.u32 1.1754944e-38, %v4442
  %v4444 = vsel %vm4441, %v4443, %v4439
  %v4445 = vmul.f32 %v4420, %v4444
  %v4446 = vmin.f32 %v4445, 1.0
  %v4447 = vmax.f32 %v4446, -1.0
  %v4448 = vmul.f32 %v4159, %v4159
  %v4449 = vmin.f32 16.0, %v4448
  %v4450 = vmul.f32 %v4449, 2.1237322e-06
  %v4451 = vadd.f32 %v4450, 0.00028619796
  %v4452 = vmul.f32 %v4449, %v4451
  %v4453 = vadd.f32 %v4452, 0.0036580483
  %v4454 = vmul.f32 %v4449, %v4453
  %v4455 = vadd.f32 %v4454, 0.05243302
  %v4456 = vmul.f32 %v4449, %v4455
  %v4457 = vadd.f32 %v4456, 0.18741608
  %v4458 = vmul.f32 %v4449, %v4457
  %v4459 = vadd.f32 %v4458, 1.1283791
  %v4460 = vmul.f32 %v4159, %v4459
  %v4461 = vmul.f32 %v4449, 3.8918573e-05
  %v4462 = vadd.f32 %v4461, 0.001143296
  %v4463 = vmul.f32 %v4449, %v4462
  %v4464 = vadd.f32 %v4463, 0.014752088
  %v4465 = vmul.f32 %v4449, %v4464
  %v4466 = vadd.f32 %v4465, 0.112945676
  %v4467 = vmul.f32 %v4449, %v4466
  %v4468 = vadd.f32 %v4467, 0.4994258
  %v4469 = vmul.f32 %v4449, %v4468
  %v4470 = vadd.f32 %v4469, 1.0
  %v4471 = vrcp.pop %v4470
  %v4472 = vmul.f32 %v4470, %v4471
  %v4473 = vsub.f32 1.0, %v4472
  %v4474 = vmul.f32 %v4471, %v4473
  %v4475 = vadd.f32 %v4471, %v4474
  %vm4476 = vweird.f32 %v4470
  %vm4477 = vweird.f32 %v4471
  %vm4478 = vmor %vm4476, %vm4477
  %v4479 = vsel %vm4478, %v4471, %v4475
  %v4480 = vand.u32 2147483647, %v4470
  %vm4481 = vcmp.eq.f32.partialorder %v4480, 8.507059e+37
  %v4482 = vand.u32 %v4470, 2147483648
  %v4483 = vor.u32 1.1754944e-38, %v4482
  %v4484 = vsel %vm4481, %v4483, %v4479
  %v4485 = vmul.f32 %v4460, %v4484
  %v4486 = vmin.f32 %v4485, 1.0
  %v4487 = vmax.f32 %v4486, -1.0
  %v4488 = vmul.f32 %v4160, %v4160
  %v4489 = vmin.f32 16.0, %v4488
  %v4490 = vmul.f32 %v4489, 2.1237322e-06
  %v4491 = vadd.f32 %v4490, 0.00028619796
  %v4492 = vmul.f32 %v4489, %v4491
  %v4493 = vadd.f32 %v4492, 0.0036580483
  %v4494 = vmul.f32 %v4489, %v4493
  %v4495 = vadd.f32 %v4494, 0.05243302
  %v4496 = vmul.f32 %v4489, %v4495
  %v4497 = vadd.f32 %v4496, 0.18741608
  %v4498 = vmul.f32 %v4489, %v4497
  %v4499 = vadd.f32 %v4498, 1.1283791
  %v4500 = vmul.f32 %v4160, %v4499
  %v4501 = vmul.f32 %v4489, 3.8918573e-05
  %v4502 = vadd.f32 %v4501, 0.001143296
  %v4503 = vmul.f32 %v4489, %v4502
  %v4504 = vadd.f32 %v4503, 0.014752088
  %v4505 = vmul.f32 %v4489, %v4504
  %v4506 = vadd.f32 %v4505, 0.112945676
  %v4507 = vmul.f32 %v4489, %v4506
  %v4508 = vadd.f32 %v4507, 0.4994258
  %v4509 = vmul.f32 %v4489, %v4508
  %v4510 = vadd.f32 %v4509, 1.0
  %v4511 = vrcp.pop %v4510
  %v4512 = vmul.f32 %v4510, %v4511
  %v4513 = vsub.f32 1.0, %v4512
  %v4514 = vmul.f32 %v4511, %v4513
  %v4515 = vadd.f32 %v4511, %v4514
  %vm4516 = vweird.f32 %v4510
  %vm4517 = vweird.f32 %v4511
  %vm4518 = vmor %vm4516, %vm4517
  %v4519 = vsel %vm4518, %v4511, %v4515
  %v4520 = vand.u32 2147483647, %v4510
  %vm4521 = vcmp.eq.f32.partialorder %v4520, 8.507059e+37
  %v4522 = vand.u32 %v4510, 2147483648
  %v4523 = vor.u32 1.1754944e-38, %v4522
  %v4524 = vsel %vm4521, %v4523, %v4519
  %v4525 = vmul.f32 %v4500, %v4524
  %v4526 = vmin.f32 %v4525, 1.0
  %v4527 = vmax.f32 %v4526, -1.0
  %v4528 = vmul.f32 %v4161, %v4161
  %v4529 = vmin.f32 16.0, %v4528
  %v4530 = vmul.f32 %v4529, 2.1237322e-06
  %v4531 = vadd.f32 %v4530, 0.00028619796
  %v4532 = vmul.f32 %v4529, %v4531
  %v4533 = vadd.f32 %v4532, 0.0036580483
  %v4534 = vmul.f32 %v4529, %v4533
  %v4535 = vadd.f32 %v4534, 0.05243302
  %v4536 = vmul.f32 %v4529, %v4535
  %v4537 = vadd.f32 %v4536, 0.18741608
  %v4538 = vmul.f32 %v4529, %v4537
  %v4539 = vadd.f32 %v4538, 1.1283791
  %v4540 = vmul.f32 %v4161, %v4539
  %v4541 = vmul.f32 %v4529, 3.8918573e-05
  %v4542 = vadd.f32 %v4541, 0.001143296
  %v4543 = vmul.f32 %v4529, %v4542
  %v4544 = vadd.f32 %v4543, 0.014752088
  %v4545 = vmul.f32 %v4529, %v4544
  %v4546 = vadd.f32 %v4545, 0.112945676
  %v4547 = vmul.f32 %v4529, %v4546
  %v4548 = vadd.f32 %v4547, 0.4994258
  %v4549 = vmul.f32 %v4529, %v4548
  %v4550 = vadd.f32 %v4549, 1.0
  %v4551 = vrcp.pop %v4550
  %v4552 = vmul.f32 %v4550, %v4551
  %v4553 = vsub.f32 1.0, %v4552
  %v4554 = vmul.f32 %v4551, %v4553
  %v4555 = vadd.f32 %v4551, %v4554
  %vm4556 = vweird.f32 %v4550
  %vm4557 = vweird.f32 %v4551
  %vm4558 = vmor %vm4556, %vm4557
  %v4559 = vsel %vm4558, %v4551, %v4555
  %v4560 = vand.u32 2147483647, %v4550
  %vm4561 = vcmp.eq.f32.partialorder %v4560, 8.507059e+37
  %v4562 = vand.u32 %v4550, 2147483648
  %v4563 = vor.u32 1.1754944e-38, %v4562
  %v4564 = vsel %vm4561, %v4563, %v4559
  %v4565 = vmul.f32 %v4540, %v4564
  %v4566 = vmin.f32 %v4565, 1.0
  %v4567 = vmax.f32 %v4566, -1.0
  %v4568 = vmul.f32 %v4162, %v4162
  %v4569 = vmin.f32 16.0, %v4568
  %v4570 = vmul.f32 %v4569, 2.1237322e-06
  %v4571 = vadd.f32 %v4570, 0.00028619796
  %v4572 = vmul.f32 %v4569, %v4571
  %v4573 = vadd.f32 %v4572, 0.0036580483
  %v4574 = vmul.f32 %v4569, %v4573
  %v4575 = vadd.f32 %v4574, 0.05243302
  %v4576 = vmul.f32 %v4569, %v4575
  %v4577 = vadd.f32 %v4576, 0.18741608
  %v4578 = vmul.f32 %v4569, %v4577
  %v4579 = vadd.f32 %v4578, 1.1283791
  %v4580 = vmul.f32 %v4162, %v4579
  %v4581 = vmul.f32 %v4569, 3.8918573e-05
  %v4582 = vadd.f32 %v4581, 0.001143296
  %v4583 = vmul.f32 %v4569, %v4582
  %v4584 = vadd.f32 %v4583, 0.014752088
  %v4585 = vmul.f32 %v4569, %v4584
  %v4586 = vadd.f32 %v4585, 0.112945676
  %v4587 = vmul.f32 %v4569, %v4586
  %v4588 = vadd.f32 %v4587, 0.4994258
  %v4589 = vmul.f32 %v4569, %v4588
  %v4590 = vadd.f32 %v4589, 1.0
  %v4591 = vrcp.pop %v4590
  %v4592 = vmul.f32 %v4590, %v4591
  %v4593 = vsub.f32 1.0, %v4592
  %v4594 = vmul.f32 %v4591, %v4593
  %v4595 = vadd.f32 %v4591, %v4594
  %vm4596 = vweird.f32 %v4590
  %vm4597 = vweird.f32 %v4591
  %vm4598 = vmor %vm4596, %vm4597
  %v4599 = vsel %vm4598, %v4591, %v4595
  %v4600 = vand.u32 2147483647, %v4590
  %vm4601 = vcmp.eq.f32.partialorder %v4600, 8.507059e+37
  %v4602 = vand.u32 %v4590, 2147483648
  %v4603 = vor.u32 1.1754944e-38, %v4602
  %v4604 = vsel %vm4601, %v4603, %v4599
  %v4605 = vmul.f32 %v4580, %v4604
  %v4606 = vmin.f32 %v4605, 1.0
  %v4607 = vmax.f32 %v4606, -1.0
  %v4608 = vmul.f32 %v4163, %v4163
  %v4609 = vmin.f32 16.0, %v4608
  %v4610 = vmul.f32 %v4609, 2.1237322e-06
  %v4611 = vadd.f32 %v4610, 0.00028619796
  %v4612 = vmul.f32 %v4609, %v4611
  %v4613 = vadd.f32 %v4612, 0.0036580483
  %v4614 = vmul.f32 %v4609, %v4613
  %v4615 = vadd.f32 %v4614, 0.05243302
  %v4616 = vmul.f32 %v4609, %v4615
  %v4617 = vadd.f32 %v4616, 0.18741608
  %v4618 = vmul.f32 %v4609, %v4617
  %v4619 = vadd.f32 %v4618, 1.1283791
  %v4620 = vmul.f32 %v4163, %v4619
  %v4621 = vmul.f32 %v4609, 3.8918573e-05
  %v4622 = vadd.f32 %v4621, 0.001143296
  %v4623 = vmul.f32 %v4609, %v4622
  %v4624 = vadd.f32 %v4623, 0.014752088
  %v4625 = vmul.f32 %v4609, %v4624
  %v4626 = vadd.f32 %v4625, 0.112945676
  %v4627 = vmul.f32 %v4609, %v4626
  %v4628 = vadd.f32 %v4627, 0.4994258
  %v4629 = vmul.f32 %v4609, %v4628
  %v4630 = vadd.f32 %v4629, 1.0
  %v4631 = vrcp.pop %v4630
  %v4632 = vmul.f32 %v4630, %v4631
  %v4633 = vsub.f32 1.0, %v4632
  %v4634 = vmul.f32 %v4631, %v4633
  %v4635 = vadd.f32 %v4631, %v4634
  %vm4636 = vweird.f32 %v4630
  %vm4637 = vweird.f32 %v4631
  %vm4638 = vmor %vm4636, %vm4637
  %v4639 = vsel %vm4638, %v4631, %v4635
  %v4640 = vand.u32 2147483647, %v4630
  %vm4641 = vcmp.eq.f32.partialorder %v4640, 8.507059e+37
  %v4642 = vand.u32 %v4630, 2147483648
  %v4643 = vor.u32 1.1754944e-38, %v4642
  %v4644 = vsel %vm4641, %v4643, %v4639
  %v4645 = vmul.f32 %v4620, %v4644
  %v4646 = vmin.f32 %v4645, 1.0
  %v4647 = vmax.f32 %v4646, -1.0
  %v4648 = vmul.f32 %v4164, %v4164
  %v4649 = vmin.f32 16.0, %v4648
  %v4650 = vmul.f32 %v4649, 2.1237322e-06
  %v4651 = vadd.f32 %v4650, 0.00028619796
  %v4652 = vmul.f32 %v4649, %v4651
  %v4653 = vadd.f32 %v4652, 0.0036580483
  %v4654 = vmul.f32 %v4649, %v4653
  %v4655 = vadd.f32 %v4654, 0.05243302
  %v4656 = vmul.f32 %v4649, %v4655
  %v4657 = vadd.f32 %v4656, 0.18741608
  %v4658 = vmul.f32 %v4649, %v4657
  %v4659 = vadd.f32 %v4658, 1.1283791
  %v4660 = vmul.f32 %v4164, %v4659
  %v4661 = vmul.f32 %v4649, 3.8918573e-05
  %v4662 = vadd.f32 %v4661, 0.001143296
  %v4663 = vmul.f32 %v4649, %v4662
  %v4664 = vadd.f32 %v4663, 0.014752088
  %v4665 = vmul.f32 %v4649, %v4664
  %v4666 = vadd.f32 %v4665, 0.112945676
  %v4667 = vmul.f32 %v4649, %v4666
  %v4668 = vadd.f32 %v4667, 0.4994258
  %v4669 = vmul.f32 %v4649, %v4668
  %v4670 = vadd.f32 %v4669, 1.0
  %v4671 = vrcp.pop %v4670
  %v4672 = vmul.f32 %v4670, %v4671
  %v4673 = vsub.f32 1.0, %v4672
  %v4674 = vmul.f32 %v4671, %v4673
  %v4675 = vadd.f32 %v4671, %v4674
  %vm4676 = vweird.f32 %v4670
  %vm4677 = vweird.f32 %v4671
  %vm4678 = vmor %vm4676, %vm4677
  %v4679 = vsel %vm4678, %v4671, %v4675
  %v4680 = vand.u32 2147483647, %v4670
  %vm4681 = vcmp.eq.f32.partialorder %v4680, 8.507059e+37
  %v4682 = vand.u32 %v4670, 2147483648
  %v4683 = vor.u32 1.1754944e-38, %v4682
  %v4684 = vsel %vm4681, %v4683, %v4679
  %v4685 = vmul.f32 %v4660, %v4684
  %v4686 = vmin.f32 %v4685, 1.0
  %v4687 = vmax.f32 %v4686, -1.0
  %v4688 = vmul.f32 %v4165, %v4165
  %v4689 = vmin.f32 16.0, %v4688
  %v4690 = vmul.f32 %v4689, 2.1237322e-06
  %v4691 = vadd.f32 %v4690, 0.00028619796
  %v4692 = vmul.f32 %v4689, %v4691
  %v4693 = vadd.f32 %v4692, 0.0036580483
  %v4694 = vmul.f32 %v4689, %v4693
  %v4695 = vadd.f32 %v4694, 0.05243302
  %v4696 = vmul.f32 %v4689, %v4695
  %v4697 = vadd.f32 %v4696, 0.18741608
  %v4698 = vmul.f32 %v4689, %v4697
  %v4699 = vadd.f32 %v4698, 1.1283791
  %v4700 = vmul.f32 %v4165, %v4699
  %v4701 = vmul.f32 %v4689, 3.8918573e-05
  %v4702 = vadd.f32 %v4701, 0.001143296
  %v4703 = vmul.f32 %v4689, %v4702
  %v4704 = vadd.f32 %v4703, 0.014752088
  %v4705 = vmul.f32 %v4689, %v4704
  %v4706 = vadd.f32 %v4705, 0.112945676
  %v4707 = vmul.f32 %v4689, %v4706
  %v4708 = vadd.f32 %v4707, 0.4994258
  %v4709 = vmul.f32 %v4689, %v4708
  %v4710 = vadd.f32 %v4709, 1.0
  %v4711 = vrcp.pop %v4710
  %v4712 = vmul.f32 %v4710, %v4711
  %v4713 = vsub.f32 1.0, %v4712
  %v4714 = vmul.f32 %v4711, %v4713
  %v4715 = vadd.f32 %v4711, %v4714
  %vm4716 = vweird.f32 %v4710
  %vm4717 = vweird.f32 %v4711
  %vm4718 = vmor %vm4716, %vm4717
  %v4719 = vsel %vm4718, %v4711, %v4715
  %v4720 = vand.u32 2147483647, %v4710
  %vm4721 = vcmp.eq.f32.partialorder %v4720, 8.507059e+37
  %v4722 = vand.u32 %v4710, 2147483648
  %v4723 = vor.u32 1.1754944e-38, %v4722
  %v4724 = vsel %vm4721, %v4723, %v4719
  %v4725 = vmul.f32 %v4700, %v4724
  %v4726 = vmin.f32 %v4725, 1.0
  %v4727 = vmax.f32 %v4726, -1.0
  %v4728 = vmul.f32 %v4166, %v4166
  %v4729 = vmin.f32 16.0, %v4728
  %v4730 = vmul.f32 %v4729, 2.1237322e-06
  %v4731 = vadd.f32 %v4730, 0.00028619796
  %v4732 = vmul.f32 %v4729, %v4731
  %v4733 = vadd.f32 %v4732, 0.0036580483
  %v4734 = vmul.f32 %v4729, %v4733
  %v4735 = vadd.f32 %v4734, 0.05243302
  %v4736 = vmul.f32 %v4729, %v4735
  %v4737 = vadd.f32 %v4736, 0.18741608
  %v4738 = vmul.f32 %v4729, %v4737
  %v4739 = vadd.f32 %v4738, 1.1283791
  %v4740 = vmul.f32 %v4166, %v4739
  %v4741 = vmul.f32 %v4729, 3.8918573e-05
  %v4742 = vadd.f32 %v4741, 0.001143296
  %v4743 = vmul.f32 %v4729, %v4742
  %v4744 = vadd.f32 %v4743, 0.014752088
  %v4745 = vmul.f32 %v4729, %v4744
  %v4746 = vadd.f32 %v4745, 0.112945676
  %v4747 = vmul.f32 %v4729, %v4746
  %v4748 = vadd.f32 %v4747, 0.4994258
  %v4749 = vmul.f32 %v4729, %v4748
  %v4750 = vadd.f32 %v4749, 1.0
  %v4751 = vrcp.pop %v4750
  %v4752 = vmul.f32 %v4750, %v4751
  %v4753 = vsub.f32 1.0, %v4752
  %v4754 = vmul.f32 %v4751, %v4753
  %v4755 = vadd.f32 %v4751, %v4754
  %vm4756 = vweird.f32 %v4750
  %vm4757 = vweird.f32 %v4751
  %vm4758 = vmor %vm4756, %vm4757
  %v4759 = vsel %vm4758, %v4751, %v4755
  %v4760 = vand.u32 2147483647, %v4750
  %vm4761 = vcmp.eq.f32.partialorder %v4760, 8.507059e+37
  %v4762 = vand.u32 %v4750, 2147483648
  %v4763 = vor.u32 1.1754944e-38, %v4762
  %v4764 = vsel %vm4761, %v4763, %v4759
  %v4765 = vmul.f32 %v4740, %v4764
  %v4766 = vmin.f32 %v4765, 1.0
  %v4767 = vmax.f32 %v4766, -1.0
  %v4768 = vmul.f32 %v4167, %v4167
  %v4769 = vmin.f32 16.0, %v4768
  %v4770 = vmul.f32 %v4769, 2.1237322e-06
  %v4771 = vadd.f32 %v4770, 0.00028619796
  %v4772 = vmul.f32 %v4769, %v4771
  %v4773 = vadd.f32 %v4772, 0.0036580483
  %v4774 = vmul.f32 %v4769, %v4773
  %v4775 = vadd.f32 %v4774, 0.05243302
  %v4776 = vmul.f32 %v4769, %v4775
  %v4777 = vadd.f32 %v4776, 0.18741608
  %v4778 = vmul.f32 %v4769, %v4777
  %v4779 = vadd.f32 %v4778, 1.1283791
  %v4780 = vmul.f32 %v4167, %v4779
  %v4781 = vmul.f32 %v4769, 3.8918573e-05
  %v4782 = vadd.f32 %v4781, 0.001143296
  %v4783 = vmul.f32 %v4769, %v4782
  %v4784 = vadd.f32 %v4783, 0.014752088
  %v4785 = vmul.f32 %v4769, %v4784
  %v4786 = vadd.f32 %v4785, 0.112945676
  %v4787 = vmul.f32 %v4769, %v4786
  %v4788 = vadd.f32 %v4787, 0.4994258
  %v4789 = vmul.f32 %v4769, %v4788
  %v4790 = vadd.f32 %v4789, 1.0
  %v4791 = vrcp.pop %v4790
  %v4792 = vmul.f32 %v4790, %v4791
  %v4793 = vsub.f32 1.0, %v4792
  %v4794 = vmul.f32 %v4791, %v4793
  %v4795 = vadd.f32 %v4791, %v4794
  %vm4796 = vweird.f32 %v4790
  %vm4797 = vweird.f32 %v4791
  %vm4798 = vmor %vm4796, %vm4797
  %v4799 = vsel %vm4798, %v4791, %v4795
  %v4800 = vand.u32 2147483647, %v4790
  %vm4801 = vcmp.eq.f32.partialorder %v4800, 8.507059e+37
  %v4802 = vand.u32 %v4790, 2147483648
  %v4803 = vor.u32 1.1754944e-38, %v4802
  %v4804 = vsel %vm4801, %v4803, %v4799
  %v4805 = vmul.f32 %v4780, %v4804
  %v4806 = vmin.f32 %v4805, 1.0
  %v4807 = vmax.f32 %v4806, -1.0
  %v4808 = vadd.f32 %v4207, 1.0
  %v4809 = vadd.f32 %v4247, 1.0
  %v4810 = vadd.f32 %v4287, 1.0
  %v4811 = vadd.f32 %v4327, 1.0
  %v4812 = vadd.f32 %v4367, 1.0
  %v4813 = vadd.f32 %v4407, 1.0
  %v4814 = vadd.f32 %v4447, 1.0
  %v4815 = vadd.f32 %v4487, 1.0
  %v4816 = vadd.f32 %v4527, 1.0
  %v4817 = vadd.f32 %v4567, 1.0
  %v4818 = vadd.f32 %v4607, 1.0
  %v4819 = vadd.f32 %v4647, 1.0
  %v4820 = vadd.f32 %v4687, 1.0
  %v4821 = vadd.f32 %v4727, 1.0
  %v4822 = vadd.f32 %v4767, 1.0
  %v4823 = vadd.f32 %v4807, 1.0
  %v4824 = vmul.f32 %v4136, %v4808
  %v4825 = vmul.f32 %v4137, %v4809
  %v4826 = vmul.f32 %v4138, %v4810
  %v4827 = vmul.f32 %v4139, %v4811
  %v4828 = vmul.f32 %v4140, %v4812
  %v4829 = vmul.f32 %v4141, %v4813
  %v4830 = vmul.f32 %v4142, %v4814
  %v4831 = vmul.f32 %v4143, %v4815
  %v4832 = vmul.f32 %v4144, %v4816
  %v4833 = vmul.f32 %v4145, %v4817
  %v4834 = vmul.f32 %v4146, %v4818
  %v4835 = vmul.f32 %v4147, %v4819
  %v4836 = vmul.f32 %v4148, %v4820
  %v4837 = vmul.f32 %v4149, %v4821
  %v4838 = vmul.f32 %v4150, %v4822
  %v4839 = vmul.f32 %v4151, %v4823
  %v4842 = vrot.slane %v4838, 7
  %v4843 = vrot.slane %v4839, 7
  %v4844 = vsel %vm177, %v4842, %v4843
  %v4861 = vrot.slane %v4824, 7
  %v4862 = vrot.slane %v4825, 7
  %v4863 = vsel %vm177, %v4861, %v4862
  %v4864 = vrot.slane %v4826, 7
  %v4865 = vsel %vm177, %v4862, %v4864
  %v4866 = vrot.slane %v4827, 7
  %v4867 = vsel %vm177, %v4864, %v4866
  %v4868 = vrot.slane %v4828, 7
  %v4869 = vsel %vm177, %v4866, %v4868
  %v4870 = vrot.slane %v4829, 7
  %v4871 = vsel %vm177, %v4868, %v4870
  %v4872 = vrot.slane %v4830, 7
  %v4873 = vsel %vm177, %v4870, %v4872
  %v4874 = vrot.slane %v4831, 7
  %v4875 = vsel %vm177, %v4872, %v4874
  %v4876 = vrot.slane %v4832, 7
  %v4877 = vsel %vm177, %v4874, %v4876
  %v4878 = vrot.slane %v4833, 7
  %v4879 = vsel %vm177, %v4876, %v4878
  %v4880 = vrot.slane %v4834, 7
  %v4881 = vsel %vm177, %v4878, %v4880
  %v4882 = vrot.slane %v4835, 7
  %v4883 = vsel %vm177, %v4880, %v4882
  %v4884 = vrot.slane %v4836, 7
  %v4885 = vsel %vm177, %v4882, %v4884
  %v4886 = vrot.slane %v4837, 7
  %v4887 = vsel %vm177, %v4884, %v4886
  %v4888 = vsel %vm177, %v4886, %v4842
  %v4904 = vsel %vm177, %v4843, %v4861
  %v4905 = vmul.f32 %v4844, %v241
  %v4906 = vmul.f32 %v4904, %v242
  %v4907 = vmul.f32 %v4863, %v243
  %v4908 = vmul.f32 %v4865, %v244
  %v4909 = vmul.f32 %v4867, %v245
  %v4910 = vmul.f32 %v4869, %v246
  %v4911 = vmul.f32 %v4871, %v247
  %v4912 = vmul.f32 %v4873, %v248
  %v4913 = vmul.f32 %v4875, %v249
  %v4914 = vmul.f32 %v4877, %v250
  %v4915 = vmul.f32 %v4879, %v251
  %v4916 = vmul.f32 %v4881, %v252
  %v4917 = vmul.f32 %v4883, %v253
  %v4918 = vmul.f32 %v4885, %v254
  %v4919 = vmul.f32 %v4887, %v255
  %v4920 = vmul.f32 %v4888, %v256
  %v4921 = vpack.c.bf16 %v4905, %v4905
  %v4922 = vpack.c.bf16 %v4906, %v4906
  %v4923 = vpack.c.bf16 %v4907, %v4907
  %v4924 = vpack.c.bf16 %v4908, %v4908
  %v4925 = vpack.c.bf16 %v4909, %v4909
  %v4926 = vpack.c.bf16 %v4910, %v4910
  %v4927 = vpack.c.bf16 %v4911, %v4911
  %v4928 = vpack.c.bf16 %v4912, %v4912
  %v4929 = vpack.c.bf16 %v4913, %v4913
  %v4930 = vpack.c.bf16 %v4914, %v4914
  %v4931 = vpack.c.bf16 %v4915, %v4915
  %v4932 = vpack.c.bf16 %v4916, %v4916
  %v4933 = vpack.c.bf16 %v4917, %v4917
  %v4934 = vpack.c.bf16 %v4918, %v4918
  %v4935 = vpack.c.bf16 %v4919, %v4919
  %v4936 = vpack.c.bf16 %v4920, %v4920
  %v4937 = vmul.f32 %v4839, %v290
  %v4938 = vmul.f32 %v4824, %v291
  %v4939 = vmul.f32 %v4825, %v292
  %v4940 = vmul.f32 %v4826, %v293
  %v4941 = vmul.f32 %v4827, %v294
  %v4942 = vmul.f32 %v4828, %v295
  %v4943 = vmul.f32 %v4829, %v296
  %v4944 = vmul.f32 %v4830, %v297
  %v4945 = vmul.f32 %v4831, %v298
  %v4946 = vmul.f32 %v4832, %v299
  %v4947 = vmul.f32 %v4833, %v300
  %v4948 = vmul.f32 %v4834, %v301
  %v4949 = vmul.f32 %v4835, %v302
  %v4950 = vmul.f32 %v4836, %v303
  %v4951 = vmul.f32 %v4837, %v304
  %v4952 = vmul.f32 %v4838, %v305
  %v4953 = vpack.c.bf16 %v4937, %v4937
  %v4954 = vpack.c.bf16 %v4938, %v4938
  %v4955 = vpack.c.bf16 %v4939, %v4939
  %v4956 = vpack.c.bf16 %v4940, %v4940
  %v4957 = vpack.c.bf16 %v4941, %v4941
  %v4958 = vpack.c.bf16 %v4942, %v4942
  %v4959 = vpack.c.bf16 %v4943, %v4943
  %v4960 = vpack.c.bf16 %v4944, %v4944
  %v4961 = vpack.c.bf16 %v4945, %v4945
  %v4962 = vpack.c.bf16 %v4946, %v4946
  %v4963 = vpack.c.bf16 %v4947, %v4947
  %v4964 = vpack.c.bf16 %v4948, %v4948
  %v4965 = vpack.c.bf16 %v4949, %v4949
  %v4966 = vpack.c.bf16 %v4950, %v4950
  %v4967 = vpack.c.bf16 %v4951, %v4951
  %v4968 = vpack.c.bf16 %v4952, %v4952
  %v4969 = vrot.slane %v4839, 1
  %v4971 = vrot.slane %v4824, 1
  %v4972 = vrot.slane %v4825, 1
  %v4973 = vsel %vm340, %v4971, %v4972
  %v4974 = vrot.slane %v4826, 1
  %v4975 = vsel %vm340, %v4972, %v4974
  %v4976 = vrot.slane %v4827, 1
  %v4977 = vsel %vm340, %v4974, %v4976
  %v4978 = vrot.slane %v4828, 1
  %v4979 = vsel %vm340, %v4976, %v4978
  %v4980 = vrot.slane %v4829, 1
  %v4981 = vsel %vm340, %v4978, %v4980
  %v4982 = vrot.slane %v4830, 1
  %v4983 = vsel %vm340, %v4980, %v4982
  %v4984 = vrot.slane %v4831, 1
  %v4985 = vsel %vm340, %v4982, %v4984
  %v4986 = vrot.slane %v4832, 1
  %v4987 = vsel %vm340, %v4984, %v4986
  %v4988 = vrot.slane %v4833, 1
  %v4989 = vsel %vm340, %v4986, %v4988
  %v4990 = vrot.slane %v4834, 1
  %v4991 = vsel %vm340, %v4988, %v4990
  %v4992 = vrot.slane %v4835, 1
  %v4993 = vsel %vm340, %v4990, %v4992
  %v4994 = vrot.slane %v4836, 1
  %v4995 = vsel %vm340, %v4992, %v4994
  %v4996 = vrot.slane %v4837, 1
  %v4997 = vsel %vm340, %v4994, %v4996
  %v4998 = vrot.slane %v4838, 1
  %v4999 = vsel %vm340, %v4996, %v4998
  %v5000 = vsel %vm340, %v4998, %v4969
  %v5017 = vsel %vm340, %v4969, %v4971
  %v5018 = vmul.f32 %v5017, %v389
  %v5019 = vmul.f32 %v4973, %v390
  %v5020 = vmul.f32 %v4975, %v391
  %v5021 = vmul.f32 %v4977, %v392
  %v5022 = vmul.f32 %v4979, %v393
  %v5023 = vmul.f32 %v4981, %v394
  %v5024 = vmul.f32 %v4983, %v395
  %v5025 = vmul.f32 %v4985, %v396
  %v5026 = vmul.f32 %v4987, %v397
  %v5027 = vmul.f32 %v4989, %v398
  %v5028 = vmul.f32 %v4991, %v399
  %v5029 = vmul.f32 %v4993, %v400
  %v5030 = vmul.f32 %v4995, %v401
  %v5031 = vmul.f32 %v4997, %v402
  %v5032 = vmul.f32 %v4999, %v403
  %v5033 = vmul.f32 %v5000, %v404
  %v5034 = vpack.c.bf16 %v5018, %v5018
  %v5035 = vpack.c.bf16 %v5019, %v5019
  %v5036 = vpack.c.bf16 %v5020, %v5020
  %v5037 = vpack.c.bf16 %v5021, %v5021
  %v5038 = vpack.c.bf16 %v5022, %v5022
  %v5039 = vpack.c.bf16 %v5023, %v5023
  %v5040 = vpack.c.bf16 %v5024, %v5024
  %v5041 = vpack.c.bf16 %v5025, %v5025
  %v5042 = vpack.c.bf16 %v5026, %v5026
  %v5043 = vpack.c.bf16 %v5027, %v5027
  %v5044 = vpack.c.bf16 %v5028, %v5028
  %v5045 = vpack.c.bf16 %v5029, %v5029
  %v5046 = vpack.c.bf16 %v5030, %v5030
  %v5047 = vpack.c.bf16 %v5031, %v5031
  %v5048 = vpack.c.bf16 %v5032, %v5032
  %v5049 = vpack.c.bf16 %v5033, %v5033
  %v5050 = vmul.f32 %v4904, %v438
  %v5051 = vmul.f32 %v4863, %v439
  %v5052 = vmul.f32 %v4865, %v440
  %v5053 = vmul.f32 %v4867, %v441
  %v5054 = vmul.f32 %v4869, %v442
  %v5055 = vmul.f32 %v4871, %v443
  %v5056 = vmul.f32 %v4873, %v444
  %v5057 = vmul.f32 %v4875, %v445
  %v5058 = vmul.f32 %v4877, %v446
  %v5059 = vmul.f32 %v4879, %v447
  %v5060 = vmul.f32 %v4881, %v448
  %v5061 = vmul.f32 %v4883, %v449
  %v5062 = vmul.f32 %v4885, %v450
  %v5063 = vmul.f32 %v4887, %v451
  %v5064 = vmul.f32 %v4888, %v452
  %v5065 = vmul.f32 %v4844, %v453
  %v5066 = vpack.c.bf16 %v5050, %v5050
  %v5067 = vpack.c.bf16 %v5051, %v5051
  %v5068 = vpack.c.bf16 %v5052, %v5052
  %v5069 = vpack.c.bf16 %v5053, %v5053
  %v5070 = vpack.c.bf16 %v5054, %v5054
  %v5071 = vpack.c.bf16 %v5055, %v5055
  %v5072 = vpack.c.bf16 %v5056, %v5056
  %v5073 = vpack.c.bf16 %v5057, %v5057
  %v5074 = vpack.c.bf16 %v5058, %v5058
  %v5075 = vpack.c.bf16 %v5059, %v5059
  %v5076 = vpack.c.bf16 %v5060, %v5060
  %v5077 = vpack.c.bf16 %v5061, %v5061
  %v5078 = vpack.c.bf16 %v5062, %v5062
  %v5079 = vpack.c.bf16 %v5063, %v5063
  %v5080 = vpack.c.bf16 %v5064, %v5064
  %v5081 = vpack.c.bf16 %v5065, %v5065
  %v5082 = vpack.c.bf16 %v4824, %v4824
  %v5083 = vpack.c.bf16 %v4825, %v4825
  %v5084 = vpack.c.bf16 %v4826, %v4826
  %v5085 = vpack.c.bf16 %v4827, %v4827
  %v5086 = vpack.c.bf16 %v4828, %v4828
  %v5087 = vpack.c.bf16 %v4829, %v4829
  %v5088 = vpack.c.bf16 %v4830, %v4830
  %v5089 = vpack.c.bf16 %v4831, %v4831
  %v5090 = vpack.c.bf16 %v4832, %v4832
  %v5091 = vpack.c.bf16 %v4833, %v4833
  %v5092 = vpack.c.bf16 %v4834, %v4834
  %v5093 = vpack.c.bf16 %v4835, %v4835
  %v5094 = vpack.c.bf16 %v4836, %v4836
  %v5095 = vpack.c.bf16 %v4837, %v4837
  %v5096 = vpack.c.bf16 %v4838, %v4838
  %v5097 = vpack.c.bf16 %v4839, %v4839
  %v5098 = vmul.f32 %v4973, %v503
  %v5099 = vmul.f32 %v4975, %v504
  %v5100 = vmul.f32 %v4977, %v505
  %v5101 = vmul.f32 %v4979, %v506
  %v5102 = vmul.f32 %v4981, %v507
  %v5103 = vmul.f32 %v4983, %v508
  %v5104 = vmul.f32 %v4985, %v509
  %v5105 = vmul.f32 %v4987, %v510
  %v5106 = vmul.f32 %v4989, %v511
  %v5107 = vmul.f32 %v4991, %v512
  %v5108 = vmul.f32 %v4993, %v513
  %v5109 = vmul.f32 %v4995, %v514
  %v5110 = vmul.f32 %v4997, %v515
  %v5111 = vmul.f32 %v4999, %v516
  %v5112 = vmul.f32 %v5000, %v517
  %v5113 = vmul.f32 %v5017, %v518
  %v5114 = vpack.c.bf16 %v5098, %v5098
  %v5115 = vpack.c.bf16 %v5099, %v5099
  %v5116 = vpack.c.bf16 %v5100, %v5100
  %v5117 = vpack.c.bf16 %v5101, %v5101
  %v5118 = vpack.c.bf16 %v5102, %v5102
  %v5119 = vpack.c.bf16 %v5103, %v5103
  %v5120 = vpack.c.bf16 %v5104, %v5104
  %v5121 = vpack.c.bf16 %v5105, %v5105
  %v5122 = vpack.c.bf16 %v5106, %v5106
  %v5123 = vpack.c.bf16 %v5107, %v5107
  %v5124 = vpack.c.bf16 %v5108, %v5108
  %v5125 = vpack.c.bf16 %v5109, %v5109
  %v5126 = vpack.c.bf16 %v5110, %v5110
  %v5127 = vpack.c.bf16 %v5111, %v5111
  %v5128 = vpack.c.bf16 %v5112, %v5112
  %v5129 = vpack.c.bf16 %v5113, %v5113
  %v5130 = vmul.f32 %v4863, %v552
  %v5131 = vmul.f32 %v4865, %v553
  %v5132 = vmul.f32 %v4867, %v554
  %v5133 = vmul.f32 %v4869, %v555
  %v5134 = vmul.f32 %v4871, %v556
  %v5135 = vmul.f32 %v4873, %v557
  %v5136 = vmul.f32 %v4875, %v558
  %v5137 = vmul.f32 %v4877, %v559
  %v5138 = vmul.f32 %v4879, %v560
  %v5139 = vmul.f32 %v4881, %v561
  %v5140 = vmul.f32 %v4883, %v562
  %v5141 = vmul.f32 %v4885, %v563
  %v5142 = vmul.f32 %v4887, %v564
  %v5143 = vmul.f32 %v4888, %v565
  %v5144 = vmul.f32 %v4844, %v566
  %v5145 = vmul.f32 %v4904, %v567
  %v5146 = vpack.c.bf16 %v5130, %v5130
  %v5147 = vpack.c.bf16 %v5131, %v5131
  %v5148 = vpack.c.bf16 %v5132, %v5132
  %v5149 = vpack.c.bf16 %v5133, %v5133
  %v5150 = vpack.c.bf16 %v5134, %v5134
  %v5151 = vpack.c.bf16 %v5135, %v5135
  %v5152 = vpack.c.bf16 %v5136, %v5136
  %v5153 = vpack.c.bf16 %v5137, %v5137
  %v5154 = vpack.c.bf16 %v5138, %v5138
  %v5155 = vpack.c.bf16 %v5139, %v5139
  %v5156 = vpack.c.bf16 %v5140, %v5140
  %v5157 = vpack.c.bf16 %v5141, %v5141
  %v5158 = vpack.c.bf16 %v5142, %v5142
  %v5159 = vpack.c.bf16 %v5143, %v5143
  %v5160 = vpack.c.bf16 %v5144, %v5144
  %v5161 = vpack.c.bf16 %v5145, %v5145
  %v5162 = vmul.f32 %v4825, %v601
  %v5163 = vmul.f32 %v4826, %v602
  %v5164 = vmul.f32 %v4827, %v603
  %v5165 = vmul.f32 %v4828, %v604
  %v5166 = vmul.f32 %v4829, %v605
  %v5167 = vmul.f32 %v4830, %v606
  %v5168 = vmul.f32 %v4831, %v607
  %v5169 = vmul.f32 %v4832, %v608
  %v5170 = vmul.f32 %v4833, %v609
  %v5171 = vmul.f32 %v4834, %v610
  %v5172 = vmul.f32 %v4835, %v611
  %v5173 = vmul.f32 %v4836, %v612
  %v5174 = vmul.f32 %v4837, %v613
  %v5175 = vmul.f32 %v4838, %v614
  %v5176 = vmul.f32 %v4839, %v615
  %v5177 = vmul.f32 %v4824, %v616
  %v5178 = vpack.c.bf16 %v5162, %v5162
  %v5179 = vpack.c.bf16 %v5163, %v5163
  %v5180 = vpack.c.bf16 %v5164, %v5164
  %v5181 = vpack.c.bf16 %v5165, %v5165
  %v5182 = vpack.c.bf16 %v5166, %v5166
  %v5183 = vpack.c.bf16 %v5167, %v5167
  %v5184 = vpack.c.bf16 %v5168, %v5168
  %v5185 = vpack.c.bf16 %v5169, %v5169
  %v5186 = vpack.c.bf16 %v5170, %v5170
  %v5187 = vpack.c.bf16 %v5171, %v5171
  %v5188 = vpack.c.bf16 %v5172, %v5172
  %v5189 = vpack.c.bf16 %v5173, %v5173
  %v5190 = vpack.c.bf16 %v5174, %v5174
  %v5191 = vpack.c.bf16 %v5175, %v5175
  %v5192 = vpack.c.bf16 %v5176, %v5176
  %v5193 = vpack.c.bf16 %v5177, %v5177
  %v5194 = vmul.f32 %v4975, %v650
  %v5195 = vmul.f32 %v4977, %v651
  %v5196 = vmul.f32 %v4979, %v652
  %v5197 = vmul.f32 %v4981, %v653
  %v5198 = vmul.f32 %v4983, %v654
  %v5199 = vmul.f32 %v4985, %v655
  %v5200 = vmul.f32 %v4987, %v656
  %v5201 = vmul.f32 %v4989, %v657
  %v5202 = vmul.f32 %v4991, %v658
  %v5203 = vmul.f32 %v4993, %v659
  %v5204 = vmul.f32 %v4995, %v660
  %v5205 = vmul.f32 %v4997, %v661
  %v5206 = vmul.f32 %v4999, %v662
  %v5207 = vmul.f32 %v5000, %v663
  %v5208 = vmul.f32 %v5017, %v664
  %v5209 = vmul.f32 %v4973, %v665
  %v5210 = vpack.c.bf16 %v5194, %v5194
  %v5211 = vpack.c.bf16 %v5195, %v5195
  %v5212 = vpack.c.bf16 %v5196, %v5196
  %v5213 = vpack.c.bf16 %v5197, %v5197
  %v5214 = vpack.c.bf16 %v5198, %v5198
  %v5215 = vpack.c.bf16 %v5199, %v5199
  %v5216 = vpack.c.bf16 %v5200, %v5200
  %v5217 = vpack.c.bf16 %v5201, %v5201
  %v5218 = vpack.c.bf16 %v5202, %v5202
  %v5219 = vpack.c.bf16 %v5203, %v5203
  %v5220 = vpack.c.bf16 %v5204, %v5204
  %v5221 = vpack.c.bf16 %v5205, %v5205
  %v5222 = vpack.c.bf16 %v5206, %v5206
  %v5223 = vpack.c.bf16 %v5207, %v5207
  %v5224 = vpack.c.bf16 %v5208, %v5208
  %v5225 = vpack.c.bf16 %v5209, %v5209
  %v5242 = vunpack.c.l.b16 %v4921
  %v5243 = vunpack.c.l.b16 %v4922
  %v5244 = vunpack.c.l.b16 %v4923
  %v5245 = vunpack.c.l.b16 %v4924
  %v5246 = vunpack.c.l.b16 %v4925
  %v5247 = vunpack.c.l.b16 %v4926
  %v5248 = vunpack.c.l.b16 %v4927
  %v5249 = vunpack.c.l.b16 %v4928
  %v5250 = vunpack.c.l.b16 %v4929
  %v5251 = vunpack.c.l.b16 %v4930
  %v5252 = vunpack.c.l.b16 %v4931
  %v5253 = vunpack.c.l.b16 %v4932
  %v5254 = vunpack.c.l.b16 %v4933
  %v5255 = vunpack.c.l.b16 %v4934
  %v5256 = vunpack.c.l.b16 %v4935
  %v5257 = vunpack.c.l.b16 %v4936
  %v5258 = vpack.c.b16 %v5243, %v5242
  %v5259 = vpack.c.b16 %v5245, %v5244
  %v5260 = vpack.c.b16 %v5247, %v5246
  %v5261 = vpack.c.b16 %v5249, %v5248
  %v5262 = vpack.c.b16 %v5251, %v5250
  %v5263 = vpack.c.b16 %v5253, %v5252
  %v5264 = vpack.c.b16 %v5255, %v5254
  %v5265 = vpack.c.b16 %v5257, %v5256
  %v5282 = vunpack.c.l.b16 %v4953
  %v5283 = vunpack.c.l.b16 %v4954
  %v5284 = vunpack.c.l.b16 %v4955
  %v5285 = vunpack.c.l.b16 %v4956
  %v5286 = vunpack.c.l.b16 %v4957
  %v5287 = vunpack.c.l.b16 %v4958
  %v5288 = vunpack.c.l.b16 %v4959
  %v5289 = vunpack.c.l.b16 %v4960
  %v5290 = vunpack.c.l.b16 %v4961
  %v5291 = vunpack.c.l.b16 %v4962
  %v5292 = vunpack.c.l.b16 %v4963
  %v5293 = vunpack.c.l.b16 %v4964
  %v5294 = vunpack.c.l.b16 %v4965
  %v5295 = vunpack.c.l.b16 %v4966
  %v5296 = vunpack.c.l.b16 %v4967
  %v5297 = vunpack.c.l.b16 %v4968
  %v5298 = vpack.c.b16 %v5283, %v5282
  %v5299 = vpack.c.b16 %v5285, %v5284
  %v5300 = vpack.c.b16 %v5287, %v5286
  %v5301 = vpack.c.b16 %v5289, %v5288
  %v5302 = vpack.c.b16 %v5291, %v5290
  %v5303 = vpack.c.b16 %v5293, %v5292
  %v5304 = vpack.c.b16 %v5295, %v5294
  %v5305 = vpack.c.b16 %v5297, %v5296
  %5306 = vrot.lane.b32.xlu0 %v5298, 32
  %v5307 = vpop.permute.xlu0 %5306
  %5308 = vrot.lane.b32.xlu0 %v5299, 32
  %v5309 = vpop.permute.xlu0 %5308
  %5310 = vrot.lane.b32.xlu0 %v5300, 32
  %v5311 = vpop.permute.xlu0 %5310
  %5312 = vrot.lane.b32.xlu0 %v5301, 32
  %v5313 = vpop.permute.xlu0 %5312
  %5314 = vrot.lane.b32.xlu0 %v5302, 32
  %v5315 = vpop.permute.xlu0 %5314
  %5316 = vrot.lane.b32.xlu0 %v5303, 32
  %v5317 = vpop.permute.xlu0 %5316
  %5318 = vrot.lane.b32.xlu0 %v5304, 32
  %v5319 = vpop.permute.xlu0 %5318
  %5320 = vrot.lane.b32.xlu0 %v5305, 32
  %v5321 = vpop.permute.xlu0 %5320
  %v5338 = vunpack.c.l.b16 %v5034
  %v5339 = vunpack.c.l.b16 %v5035
  %v5340 = vunpack.c.l.b16 %v5036
  %v5341 = vunpack.c.l.b16 %v5037
  %v5342 = vunpack.c.l.b16 %v5038
  %v5343 = vunpack.c.l.b16 %v5039
  %v5344 = vunpack.c.l.b16 %v5040
  %v5345 = vunpack.c.l.b16 %v5041
  %v5346 = vunpack.c.l.b16 %v5042
  %v5347 = vunpack.c.l.b16 %v5043
  %v5348 = vunpack.c.l.b16 %v5044
  %v5349 = vunpack.c.l.b16 %v5045
  %v5350 = vunpack.c.l.b16 %v5046
  %v5351 = vunpack.c.l.b16 %v5047
  %v5352 = vunpack.c.l.b16 %v5048
  %v5353 = vunpack.c.l.b16 %v5049
  %v5354 = vpack.c.b16 %v5339, %v5338
  %v5355 = vpack.c.b16 %v5341, %v5340
  %v5356 = vpack.c.b16 %v5343, %v5342
  %v5357 = vpack.c.b16 %v5345, %v5344
  %v5358 = vpack.c.b16 %v5347, %v5346
  %v5359 = vpack.c.b16 %v5349, %v5348
  %v5360 = vpack.c.b16 %v5351, %v5350
  %v5361 = vpack.c.b16 %v5353, %v5352
  %5362 = vrot.lane.b32.xlu0 %v5354, 64
  %v5363 = vpop.permute.xlu0 %5362
  %5364 = vrot.lane.b32.xlu0 %v5355, 64
  %v5365 = vpop.permute.xlu0 %5364
  %5366 = vrot.lane.b32.xlu0 %v5356, 64
  %v5367 = vpop.permute.xlu0 %5366
  %5368 = vrot.lane.b32.xlu0 %v5357, 64
  %v5369 = vpop.permute.xlu0 %5368
  %5370 = vrot.lane.b32.xlu0 %v5358, 64
  %v5371 = vpop.permute.xlu0 %5370
  %5372 = vrot.lane.b32.xlu0 %v5359, 64
  %v5373 = vpop.permute.xlu0 %5372
  %5374 = vrot.lane.b32.xlu0 %v5360, 64
  %v5375 = vpop.permute.xlu0 %5374
  %5376 = vrot.lane.b32.xlu0 %v5361, 64
  %v5377 = vpop.permute.xlu0 %5376
  %v5394 = vunpack.c.l.b16 %v5066
  %v5395 = vunpack.c.l.b16 %v5067
  %v5396 = vunpack.c.l.b16 %v5068
  %v5397 = vunpack.c.l.b16 %v5069
  %v5398 = vunpack.c.l.b16 %v5070
  %v5399 = vunpack.c.l.b16 %v5071
  %v5400 = vunpack.c.l.b16 %v5072
  %v5401 = vunpack.c.l.b16 %v5073
  %v5402 = vunpack.c.l.b16 %v5074
  %v5403 = vunpack.c.l.b16 %v5075
  %v5404 = vunpack.c.l.b16 %v5076
  %v5405 = vunpack.c.l.b16 %v5077
  %v5406 = vunpack.c.l.b16 %v5078
  %v5407 = vunpack.c.l.b16 %v5079
  %v5408 = vunpack.c.l.b16 %v5080
  %v5409 = vunpack.c.l.b16 %v5081
  %v5410 = vpack.c.b16 %v5395, %v5394
  %v5411 = vpack.c.b16 %v5397, %v5396
  %v5412 = vpack.c.b16 %v5399, %v5398
  %v5413 = vpack.c.b16 %v5401, %v5400
  %v5414 = vpack.c.b16 %v5403, %v5402
  %v5415 = vpack.c.b16 %v5405, %v5404
  %v5416 = vpack.c.b16 %v5407, %v5406
  %v5417 = vpack.c.b16 %v5409, %v5408
  %5418 = vrot.lane.b32.xlu0 %v5410, 96
  %v5419 = vpop.permute.xlu0 %5418
  %5420 = vrot.lane.b32.xlu0 %v5411, 96
  %v5421 = vpop.permute.xlu0 %5420
  %5422 = vrot.lane.b32.xlu0 %v5412, 96
  %v5423 = vpop.permute.xlu0 %5422
  %5424 = vrot.lane.b32.xlu0 %v5413, 96
  %v5425 = vpop.permute.xlu0 %5424
  %5426 = vrot.lane.b32.xlu0 %v5414, 96
  %v5427 = vpop.permute.xlu0 %5426
  %5428 = vrot.lane.b32.xlu0 %v5415, 96
  %v5429 = vpop.permute.xlu0 %5428
  %5430 = vrot.lane.b32.xlu0 %v5416, 96
  %v5431 = vpop.permute.xlu0 %5430
  %5432 = vrot.lane.b32.xlu0 %v5417, 96
  %v5433 = vpop.permute.xlu0 %5432
  %v5450 = vunpack.c.l.b16 %v5082
  %v5451 = vunpack.c.l.b16 %v5083
  %v5452 = vunpack.c.l.b16 %v5084
  %v5453 = vunpack.c.l.b16 %v5085
  %v5454 = vunpack.c.l.b16 %v5086
  %v5455 = vunpack.c.l.b16 %v5087
  %v5456 = vunpack.c.l.b16 %v5088
  %v5457 = vunpack.c.l.b16 %v5089
  %v5458 = vunpack.c.l.b16 %v5090
  %v5459 = vunpack.c.l.b16 %v5091
  %v5460 = vunpack.c.l.b16 %v5092
  %v5461 = vunpack.c.l.b16 %v5093
  %v5462 = vunpack.c.l.b16 %v5094
  %v5463 = vunpack.c.l.b16 %v5095
  %v5464 = vunpack.c.l.b16 %v5096
  %v5465 = vunpack.c.l.b16 %v5097
  %v5466 = vpack.c.b16 %v5451, %v5450
  %v5467 = vpack.c.b16 %v5453, %v5452
  %v5468 = vpack.c.b16 %v5455, %v5454
  %v5469 = vpack.c.b16 %v5457, %v5456
  %v5470 = vpack.c.b16 %v5459, %v5458
  %v5471 = vpack.c.b16 %v5461, %v5460
  %v5472 = vpack.c.b16 %v5463, %v5462
  %v5473 = vpack.c.b16 %v5465, %v5464
  %v5490 = vunpack.c.l.b16 %v5114
  %v5491 = vunpack.c.l.b16 %v5115
  %v5492 = vunpack.c.l.b16 %v5116
  %v5493 = vunpack.c.l.b16 %v5117
  %v5494 = vunpack.c.l.b16 %v5118
  %v5495 = vunpack.c.l.b16 %v5119
  %v5496 = vunpack.c.l.b16 %v5120
  %v5497 = vunpack.c.l.b16 %v5121
  %v5498 = vunpack.c.l.b16 %v5122
  %v5499 = vunpack.c.l.b16 %v5123
  %v5500 = vunpack.c.l.b16 %v5124
  %v5501 = vunpack.c.l.b16 %v5125
  %v5502 = vunpack.c.l.b16 %v5126
  %v5503 = vunpack.c.l.b16 %v5127
  %v5504 = vunpack.c.l.b16 %v5128
  %v5505 = vunpack.c.l.b16 %v5129
  %v5506 = vpack.c.b16 %v5491, %v5490
  %v5507 = vpack.c.b16 %v5493, %v5492
  %v5508 = vpack.c.b16 %v5495, %v5494
  %v5509 = vpack.c.b16 %v5497, %v5496
  %v5510 = vpack.c.b16 %v5499, %v5498
  %v5511 = vpack.c.b16 %v5501, %v5500
  %v5512 = vpack.c.b16 %v5503, %v5502
  %v5513 = vpack.c.b16 %v5505, %v5504
  %5514 = vrot.lane.b32.xlu0 %v5506, 32
  %v5515 = vpop.permute.xlu0 %5514
  %5516 = vrot.lane.b32.xlu0 %v5507, 32
  %v5517 = vpop.permute.xlu0 %5516
  %5518 = vrot.lane.b32.xlu0 %v5508, 32
  %v5519 = vpop.permute.xlu0 %5518
  %5520 = vrot.lane.b32.xlu0 %v5509, 32
  %v5521 = vpop.permute.xlu0 %5520
  %5522 = vrot.lane.b32.xlu0 %v5510, 32
  %v5523 = vpop.permute.xlu0 %5522
  %5524 = vrot.lane.b32.xlu0 %v5511, 32
  %v5525 = vpop.permute.xlu0 %5524
  %5526 = vrot.lane.b32.xlu0 %v5512, 32
  %v5527 = vpop.permute.xlu0 %5526
  %5528 = vrot.lane.b32.xlu0 %v5513, 32
  %v5529 = vpop.permute.xlu0 %5528
  %v5546 = vunpack.c.l.b16 %v5146
  %v5547 = vunpack.c.l.b16 %v5147
  %v5548 = vunpack.c.l.b16 %v5148
  %v5549 = vunpack.c.l.b16 %v5149
  %v5550 = vunpack.c.l.b16 %v5150
  %v5551 = vunpack.c.l.b16 %v5151
  %v5552 = vunpack.c.l.b16 %v5152
  %v5553 = vunpack.c.l.b16 %v5153
  %v5554 = vunpack.c.l.b16 %v5154
  %v5555 = vunpack.c.l.b16 %v5155
  %v5556 = vunpack.c.l.b16 %v5156
  %v5557 = vunpack.c.l.b16 %v5157
  %v5558 = vunpack.c.l.b16 %v5158
  %v5559 = vunpack.c.l.b16 %v5159
  %v5560 = vunpack.c.l.b16 %v5160
  %v5561 = vunpack.c.l.b16 %v5161
  %v5562 = vpack.c.b16 %v5547, %v5546
  %v5563 = vpack.c.b16 %v5549, %v5548
  %v5564 = vpack.c.b16 %v5551, %v5550
  %v5565 = vpack.c.b16 %v5553, %v5552
  %v5566 = vpack.c.b16 %v5555, %v5554
  %v5567 = vpack.c.b16 %v5557, %v5556
  %v5568 = vpack.c.b16 %v5559, %v5558
  %v5569 = vpack.c.b16 %v5561, %v5560
  %5570 = vrot.lane.b32.xlu0 %v5562, 64
  %v5571 = vpop.permute.xlu0 %5570
  %5572 = vrot.lane.b32.xlu0 %v5563, 64
  %v5573 = vpop.permute.xlu0 %5572
  %5574 = vrot.lane.b32.xlu0 %v5564, 64
  %v5575 = vpop.permute.xlu0 %5574
  %5576 = vrot.lane.b32.xlu0 %v5565, 64
  %v5577 = vpop.permute.xlu0 %5576
  %5578 = vrot.lane.b32.xlu0 %v5566, 64
  %v5579 = vpop.permute.xlu0 %5578
  %5580 = vrot.lane.b32.xlu0 %v5567, 64
  %v5581 = vpop.permute.xlu0 %5580
  %5582 = vrot.lane.b32.xlu0 %v5568, 64
  %v5583 = vpop.permute.xlu0 %5582
  %5584 = vrot.lane.b32.xlu0 %v5569, 64
  %v5585 = vpop.permute.xlu0 %5584
  %v5602 = vunpack.c.l.b16 %v5178
  %v5603 = vunpack.c.l.b16 %v5179
  %v5604 = vunpack.c.l.b16 %v5180
  %v5605 = vunpack.c.l.b16 %v5181
  %v5606 = vunpack.c.l.b16 %v5182
  %v5607 = vunpack.c.l.b16 %v5183
  %v5608 = vunpack.c.l.b16 %v5184
  %v5609 = vunpack.c.l.b16 %v5185
  %v5610 = vunpack.c.l.b16 %v5186
  %v5611 = vunpack.c.l.b16 %v5187
  %v5612 = vunpack.c.l.b16 %v5188
  %v5613 = vunpack.c.l.b16 %v5189
  %v5614 = vunpack.c.l.b16 %v5190
  %v5615 = vunpack.c.l.b16 %v5191
  %v5616 = vunpack.c.l.b16 %v5192
  %v5617 = vunpack.c.l.b16 %v5193
  %v5618 = vpack.c.b16 %v5603, %v5602
  %v5619 = vpack.c.b16 %v5605, %v5604
  %v5620 = vpack.c.b16 %v5607, %v5606
  %v5621 = vpack.c.b16 %v5609, %v5608
  %v5622 = vpack.c.b16 %v5611, %v5610
  %v5623 = vpack.c.b16 %v5613, %v5612
  %v5624 = vpack.c.b16 %v5615, %v5614
  %v5625 = vpack.c.b16 %v5617, %v5616
  %5626 = vrot.lane.b32.xlu0 %v5618, 96
  %v5627 = vpop.permute.xlu0 %5626
  %5628 = vrot.lane.b32.xlu0 %v5619, 96
  %v5629 = vpop.permute.xlu0 %5628
  %5630 = vrot.lane.b32.xlu0 %v5620, 96
  %v5631 = vpop.permute.xlu0 %5630
  %5632 = vrot.lane.b32.xlu0 %v5621, 96
  %v5633 = vpop.permute.xlu0 %5632
  %5634 = vrot.lane.b32.xlu0 %v5622, 96
  %v5635 = vpop.permute.xlu0 %5634
  %5636 = vrot.lane.b32.xlu0 %v5623, 96
  %v5637 = vpop.permute.xlu0 %5636
  %5638 = vrot.lane.b32.xlu0 %v5624, 96
  %v5639 = vpop.permute.xlu0 %5638
  %5640 = vrot.lane.b32.xlu0 %v5625, 96
  %v5641 = vpop.permute.xlu0 %5640
  %v5658 = vunpack.c.l.b16 %v5210
  %v5659 = vunpack.c.l.b16 %v5211
  %v5660 = vunpack.c.l.b16 %v5212
  %v5661 = vunpack.c.l.b16 %v5213
  %v5662 = vunpack.c.l.b16 %v5214
  %v5663 = vunpack.c.l.b16 %v5215
  %v5664 = vunpack.c.l.b16 %v5216
  %v5665 = vunpack.c.l.b16 %v5217
  %v5666 = vunpack.c.l.b16 %v5218
  %v5667 = vunpack.c.l.b16 %v5219
  %v5668 = vunpack.c.l.b16 %v5220
  %v5669 = vunpack.c.l.b16 %v5221
  %v5670 = vunpack.c.l.b16 %v5222
  %v5671 = vunpack.c.l.b16 %v5223
  %v5672 = vunpack.c.l.b16 %v5224
  %v5673 = vunpack.c.l.b16 %v5225
  %v5674 = vpack.c.b16 %v5659, %v5658
  %v5675 = vpack.c.b16 %v5661, %v5660
  %v5676 = vpack.c.b16 %v5663, %v5662
  %v5677 = vpack.c.b16 %v5665, %v5664
  %v5678 = vpack.c.b16 %v5667, %v5666
  %v5679 = vpack.c.b16 %v5669, %v5668
  %v5680 = vpack.c.b16 %v5671, %v5670
  %v5681 = vpack.c.b16 %v5673, %v5672
  %v5684 = vsel %vm1154, %v5258, %v5307
  %v5687 = vsel %vm1154, %v5259, %v5309
  %v5690 = vsel %vm1154, %v5260, %v5311
  %v5693 = vsel %vm1154, %v5261, %v5313
  %v5696 = vsel %vm1154, %v5262, %v5315
  %v5699 = vsel %vm1154, %v5263, %v5317
  %v5702 = vsel %vm1154, %v5264, %v5319
  %v5705 = vsel %vm1154, %v5265, %v5321
  %v5707 = vsel %vm1179, %v5684, %v5363
  %v5709 = vsel %vm1179, %v5687, %v5365
  %v5711 = vsel %vm1179, %v5690, %v5367
  %v5713 = vsel %vm1179, %v5693, %v5369
  %v5715 = vsel %vm1179, %v5696, %v5371
  %v5717 = vsel %vm1179, %v5699, %v5373
  %v5719 = vsel %vm1179, %v5702, %v5375
  %v5721 = vsel %vm1179, %v5705, %v5377
  %v5723 = vsel %vm1196, %v5707, %v5419
  %v5726 = vsel %vm1196, %v5709, %v5421
  %v5729 = vsel %vm1196, %v5711, %v5423
  %v5732 = vsel %vm1196, %v5713, %v5425
  %v5735 = vsel %vm1196, %v5715, %v5427
  %v5738 = vsel %vm1196, %v5717, %v5429
  %v5741 = vsel %vm1196, %v5719, %v5431
  %v5744 = vsel %vm1196, %v5721, %v5433
  %v5748 = vsel %vm1154, %v5466, %v5515
  %v5751 = vsel %vm1154, %v5467, %v5517
  %v5754 = vsel %vm1154, %v5468, %v5519
  %v5757 = vsel %vm1154, %v5469, %v5521
  %v5760 = vsel %vm1154, %v5470, %v5523
  %v5763 = vsel %vm1154, %v5471, %v5525
  %v5766 = vsel %vm1154, %v5472, %v5527
  %v5769 = vsel %vm1154, %v5473, %v5529
  %v5771 = vsel %vm1179, %v5748, %v5571
  %v5773 = vsel %vm1179, %v5751, %v5573
  %v5775 = vsel %vm1179, %v5754, %v5575
  %v5777 = vsel %vm1179, %v5757, %v5577
  %v5779 = vsel %vm1179, %v5760, %v5579
  %v5781 = vsel %vm1179, %v5763, %v5581
  %v5783 = vsel %vm1179, %v5766, %v5583
  %v5785 = vsel %vm1179, %v5769, %v5585
  %v5787 = vsel %vm1196, %v5771, %v5627
  %v5790 = vsel %vm1196, %v5773, %v5629
  %v5793 = vsel %vm1196, %v5775, %v5631
  %v5796 = vsel %vm1196, %v5777, %v5633
  %v5799 = vsel %vm1196, %v5779, %v5635
  %v5802 = vsel %vm1196, %v5781, %v5637
  %v5805 = vsel %vm1196, %v5783, %v5639
  %v5808 = vsel %vm1196, %v5785, %v5641
  %v5810 = vld [vmem:[%s10] sm:$0xf]
  %v5811 = vld [vmem:[%s10 + $0x4] sm:$0xf]
  %v5812 = vld [vmem:[%s10 + $0x8] sm:$0xf]
  %v5813 = vld [vmem:[%s10 + $0xc] sm:$0xf]
  %v5814 = vld [vmem:[%s10 + $0x10] sm:$0xf]
  %v5815 = vld [vmem:[%s10 + $0x14] sm:$0xf]
  %v5816 = vld [vmem:[%s10 + $0x18] sm:$0xf]
  %v5817 = vld [vmem:[%s10 + $0x1c] sm:$0xf]
  %v5818 = vld [vmem:[%s10 + $0x20] sm:$0xf]
  %v5819 = vld [vmem:[%s10 + $0x24] sm:$0xf]
  %v5820 = vld [vmem:[%s10 + $0x28] sm:$0xf]
  %v5821 = vld [vmem:[%s10 + $0x2c] sm:$0xf]
  %v5822 = vld [vmem:[%s10 + $0x30] sm:$0xf]
  %v5823 = vld [vmem:[%s10 + $0x34] sm:$0xf]
  %v5824 = vld [vmem:[%s10 + $0x38] sm:$0xf]
  %v5825 = vld [vmem:[%s10 + $0x3c] sm:$0xf]
  %v5826 = vld [vmem:[%s10 + $0x40] sm:$0xf]
  %v5827 = vld [vmem:[%s10 + $0x44] sm:$0xf]
  %v5828 = vld [vmem:[%s10 + $0x48] sm:$0xf]
  %v5829 = vld [vmem:[%s10 + $0x4c] sm:$0xf]
  %v5830 = vld [vmem:[%s10 + $0x50] sm:$0xf]
  %v5831 = vld [vmem:[%s10 + $0x54] sm:$0xf]
  %v5832 = vld [vmem:[%s10 + $0x58] sm:$0xf]
  %v5833 = vld [vmem:[%s10 + $0x5c] sm:$0xf]
  %v5834 = vld [vmem:[%s10 + $0x60] sm:$0xf]
  %v5835 = vld [vmem:[%s10 + $0x64] sm:$0xf]
  %v5836 = vld [vmem:[%s10 + $0x68] sm:$0xf]
  %v5837 = vld [vmem:[%s10 + $0x6c] sm:$0xf]
  %v5838 = vld [vmem:[%s10 + $0x70] sm:$0xf]
  %v5839 = vld [vmem:[%s10 + $0x74] sm:$0xf]
  %v5840 = vld [vmem:[%s10 + $0x78] sm:$0xf]
  %v5841 = vld [vmem:[%s10 + $0x7c] sm:$0xf]
  %v5842 = vld [vmem:[%s10 + $0x80] sm:$0xf]
  %v5843 = vld [vmem:[%s10 + $0x84] sm:$0xf]
  %v5844 = vld [vmem:[%s10 + $0x88] sm:$0xf]
  %v5845 = vld [vmem:[%s10 + $0x8c] sm:$0xf]
  %v5882 = vunpack.c.l.b16 %v5810
  %v5883 = vunpack.c.l.b16 %v5811
  %v5884 = vunpack.c.l.b16 %v5812
  %v5885 = vunpack.c.l.b16 %v5813
  %v5886 = vunpack.c.l.b16 %v5814
  %v5887 = vunpack.c.l.b16 %v5815
  %v5888 = vunpack.c.l.b16 %v5816
  %v5889 = vunpack.c.l.b16 %v5817
  %v5890 = vunpack.c.l.b16 %v5818
  %v5891 = vunpack.c.l.b16 %v5819
  %v5892 = vunpack.c.l.b16 %v5820
  %v5893 = vunpack.c.l.b16 %v5821
  %v5894 = vunpack.c.l.b16 %v5822
  %v5895 = vunpack.c.l.b16 %v5823
  %v5896 = vunpack.c.l.b16 %v5824
  %v5897 = vunpack.c.l.b16 %v5825
  %v5898 = vunpack.c.l.b16 %v5826
  %v5899 = vunpack.c.l.b16 %v5827
  %v5900 = vunpack.c.l.b16 %v5828
  %v5901 = vunpack.c.l.b16 %v5829
  %v5902 = vunpack.c.l.b16 %v5830
  %v5903 = vunpack.c.l.b16 %v5831
  %v5904 = vunpack.c.l.b16 %v5832
  %v5905 = vunpack.c.l.b16 %v5833
  %v5906 = vunpack.c.l.b16 %v5834
  %v5907 = vunpack.c.l.b16 %v5835
  %v5908 = vunpack.c.l.b16 %v5836
  %v5909 = vunpack.c.l.b16 %v5837
  %v5910 = vunpack.c.l.b16 %v5838
  %v5911 = vunpack.c.l.b16 %v5839
  %v5912 = vunpack.c.l.b16 %v5840
  %v5913 = vunpack.c.l.b16 %v5841
  %v5914 = vunpack.c.l.b16 %v5842
  %v5915 = vunpack.c.l.b16 %v5843
  %v5916 = vunpack.c.l.b16 %v5844
  %v5917 = vunpack.c.l.b16 %v5845
  %v5918 = vpack.c.b16 %v5883, %v5882
  %v5919 = vpack.c.b16 %v5885, %v5884
  %v5920 = vpack.c.b16 %v5887, %v5886
  %v5921 = vpack.c.b16 %v5889, %v5888
  %v5922 = vpack.c.b16 %v5891, %v5890
  %v5923 = vpack.c.b16 %v5893, %v5892
  %v5924 = vpack.c.b16 %v5895, %v5894
  %v5925 = vpack.c.b16 %v5897, %v5896
  %v5926 = vpack.c.b16 %v5899, %v5898
  %v5927 = vpack.c.b16 %v5901, %v5900
  %v5928 = vpack.c.b16 %v5903, %v5902
  %v5929 = vpack.c.b16 %v5905, %v5904
  %v5930 = vpack.c.b16 %v5907, %v5906
  %v5931 = vpack.c.b16 %v5909, %v5908
  %v5932 = vpack.c.b16 %v5911, %v5910
  %v5933 = vpack.c.b16 %v5913, %v5912
  %v5934 = vpack.c.b16 %v5915, %v5914
  %v5935 = vpack.c.b16 %v5917, %v5916
  %v5955 = vsel %vm1154, %v5674, 0
  %v5958 = vsel %vm1154, %v5675, 0
  %v5961 = vsel %vm1154, %v5676, 0
  %v5964 = vsel %vm1154, %v5677, 0
  %v5967 = vsel %vm1154, %v5678, 0
  %v5970 = vsel %vm1154, %v5679, 0
  %v5973 = vsel %vm1154, %v5680, 0
  %v5976 = vsel %vm1154, %v5681, 0
  %5978 = vmatpush.bf16.msra.mxu0 %v5925
  %5979 = vmatpush.bf16.msra.mxu0 %v5924
  %5980 = vmatpush.bf16.msra.mxu0 %v5923
  %5981 = vmatpush.bf16.msra.mxu0 %v5922
  %5982 = vmatpush.bf16.msra.mxu0 %v5921
  %5983 = vmatpush.bf16.msra.mxu0 %v5920
  %5984 = vmatpush.bf16.msra.mxu0 %v5919
  %5985 = vmatpush.bf16.msra.mxu0 %v5918
  %5986 = vmatmul.bf16.gmra.mxu0 %v5723
  %v5987 = vpop.f32.mrf.mxu0
  %v5988 = vadd.f32 0.0, %v5987
  %v5989 = vpop.f32.mrf.mxu0
  %v5990 = vadd.f32 0.0, %v5989
  %5991 = vmatmul.bf16.gmra.mxu0 %v5726
  %v5992 = vpop.f32.mrf.mxu0
  %v5993 = vadd.f32 0.0, %v5992
  %v5994 = vpop.f32.mrf.mxu0
  %v5995 = vadd.f32 0.0, %v5994
  %5996 = vmatmul.bf16.gmra.mxu0 %v5729
  %v5997 = vpop.f32.mrf.mxu0
  %v5998 = vadd.f32 0.0, %v5997
  %v5999 = vpop.f32.mrf.mxu0
  %v6000 = vadd.f32 0.0, %v5999
  %6001 = vmatmul.bf16.gmra.mxu0 %v5732
  %v6002 = vpop.f32.mrf.mxu0
  %v6003 = vadd.f32 0.0, %v6002
  %v6004 = vpop.f32.mrf.mxu0
  %v6005 = vadd.f32 0.0, %v6004
  %6006 = vmatmul.bf16.gmra.mxu0 %v5735
  %v6007 = vpop.f32.mrf.mxu0
  %v6008 = vadd.f32 0.0, %v6007
  %v6009 = vpop.f32.mrf.mxu0
  %v6010 = vadd.f32 0.0, %v6009
  %6011 = vmatmul.bf16.gmra.mxu0 %v5738
  %v6012 = vpop.f32.mrf.mxu0
  %v6013 = vadd.f32 0.0, %v6012
  %v6014 = vpop.f32.mrf.mxu0
  %v6015 = vadd.f32 0.0, %v6014
  %6016 = vmatmul.bf16.gmra.mxu0 %v5741
  %v6017 = vpop.f32.mrf.mxu0
  %v6018 = vadd.f32 0.0, %v6017
  %v6019 = vpop.f32.mrf.mxu0
  %v6020 = vadd.f32 0.0, %v6019
  %6021 = vmatmul.bf16.gmra.mxu0 %v5744
  %v6022 = vpop.f32.mrf.mxu0
  %v6023 = vadd.f32 0.0, %v6022
  %v6024 = vpop.f32.mrf.mxu0
  %v6025 = vadd.f32 0.0, %v6024
  %6026 = vdwg.mxu0
  %6027 = vmatpush.bf16.msra.mxu0 %v5933
  %6028 = vmatpush.bf16.msra.mxu0 %v5932
  %6029 = vmatpush.bf16.msra.mxu0 %v5931
  %6030 = vmatpush.bf16.msra.mxu0 %v5930
  %6031 = vmatpush.bf16.msra.mxu0 %v5929
  %6032 = vmatpush.bf16.msra.mxu0 %v5928
  %6033 = vmatpush.bf16.msra.mxu0 %v5927
  %6034 = vmatpush.bf16.msra.mxu0 %v5926
  %6035 = vmatmul.bf16.gmra.mxu0 %v5787
  %v6036 = vpop.f32.mrf.mxu0
  %v6037 = vadd.f32 %v5988, %v6036
  %v6038 = vpop.f32.mrf.mxu0
  %v6039 = vadd.f32 %v5990, %v6038
  %6040 = vmatmul.bf16.gmra.mxu0 %v5790
  %v6041 = vpop.f32.mrf.mxu0
  %v6042 = vadd.f32 %v5993, %v6041
  %v6043 = vpop.f32.mrf.mxu0
  %v6044 = vadd.f32 %v5995, %v6043
  %6045 = vmatmul.bf16.gmra.mxu0 %v5793
  %v6046 = vpop.f32.mrf.mxu0
  %v6047 = vadd.f32 %v5998, %v6046
  %v6048 = vpop.f32.mrf.mxu0
  %v6049 = vadd.f32 %v6000, %v6048
  %6050 = vmatmul.bf16.gmra.mxu0 %v5796
  %v6051 = vpop.f32.mrf.mxu0
  %v6052 = vadd.f32 %v6003, %v6051
  %v6053 = vpop.f32.mrf.mxu0
  %v6054 = vadd.f32 %v6005, %v6053
  %6055 = vmatmul.bf16.gmra.mxu0 %v5799
  %v6056 = vpop.f32.mrf.mxu0
  %v6057 = vadd.f32 %v6008, %v6056
  %v6058 = vpop.f32.mrf.mxu0
  %v6059 = vadd.f32 %v6010, %v6058
  %6060 = vmatmul.bf16.gmra.mxu0 %v5802
  %v6061 = vpop.f32.mrf.mxu0
  %v6062 = vadd.f32 %v6013, %v6061
  %v6063 = vpop.f32.mrf.mxu0
  %v6064 = vadd.f32 %v6015, %v6063
  %6065 = vmatmul.bf16.gmra.mxu0 %v5805
  %v6066 = vpop.f32.mrf.mxu0
  %v6067 = vadd.f32 %v6018, %v6066
  %v6068 = vpop.f32.mrf.mxu0
  %v6069 = vadd.f32 %v6020, %v6068
  %6070 = vmatmul.bf16.gmra.mxu0 %v5808
  %v6071 = vpop.f32.mrf.mxu0
  %v6072 = vadd.f32 %v6023, %v6071
  %v6073 = vpop.f32.mrf.mxu0
  %v6074 = vadd.f32 %v6025, %v6073
  %6075 = vdwg.mxu0
  %6076 = vmatpush.bf16.msra.mxu0 0
  %6077 = vmatpush.bf16.msra.mxu0 0
  %6078 = vmatpush.bf16.msra.mxu0 0
  %6079 = vmatpush.bf16.msra.mxu0 0
  %6080 = vmatpush.bf16.msra.mxu0 0
  %6081 = vmatpush.bf16.msra.mxu0 0
  %6082 = vmatpush.bf16.msra.mxu0 %v5935
  %6083 = vmatpush.bf16.msra.mxu0 %v5934
  %6084 = vmatmul.bf16.gmra.mxu0 %v5955
  %v6085 = vpop.f32.mrf.mxu0
  %v6086 = vadd.f32 %v6037, %v6085
  %v6087 = vpop.f32.mrf.mxu0
  %v6088 = vadd.f32 %v6039, %v6087
  %6089 = vmatmul.bf16.gmra.mxu0 %v5958
  %v6090 = vpop.f32.mrf.mxu0
  %v6091 = vadd.f32 %v6042, %v6090
  %v6092 = vpop.f32.mrf.mxu0
  %v6093 = vadd.f32 %v6044, %v6092
  %6094 = vmatmul.bf16.gmra.mxu0 %v5961
  %v6095 = vpop.f32.mrf.mxu0
  %v6096 = vadd.f32 %v6047, %v6095
  %v6097 = vpop.f32.mrf.mxu0
  %v6098 = vadd.f32 %v6049, %v6097
  %6099 = vmatmul.bf16.gmra.mxu0 %v5964
  %v6100 = vpop.f32.mrf.mxu0
  %v6101 = vadd.f32 %v6052, %v6100
  %v6102 = vpop.f32.mrf.mxu0
  %v6103 = vadd.f32 %v6054, %v6102
  %6104 = vmatmul.bf16.gmra.mxu0 %v5967
  %v6105 = vpop.f32.mrf.mxu0
  %v6106 = vadd.f32 %v6057, %v6105
  %v6107 = vpop.f32.mrf.mxu0
  %v6108 = vadd.f32 %v6059, %v6107
  %6109 = vmatmul.bf16.gmra.mxu0 %v5970
  %v6110 = vpop.f32.mrf.mxu0
  %v6111 = vadd.f32 %v6062, %v6110
  %v6112 = vpop.f32.mrf.mxu0
  %v6113 = vadd.f32 %v6064, %v6112
  %6114 = vmatmul.bf16.gmra.mxu0 %v5973
  %v6115 = vpop.f32.mrf.mxu0
  %v6116 = vadd.f32 %v6067, %v6115
  %v6117 = vpop.f32.mrf.mxu0
  %v6118 = vadd.f32 %v6069, %v6117
  %6119 = vmatmul.bf16.gmra.mxu0 %v5976
  %v6120 = vpop.f32.mrf.mxu0
  %v6121 = vadd.f32 %v6072, %v6120
  %v6122 = vpop.f32.mrf.mxu0
  %v6123 = vadd.f32 %v6074, %v6122
  %6124 = vdwg.mxu0
  %v6125 = vsel %vm1179, %v6086, 0.0
  %6126 = vadd.xlane.f32.xlu0 %v6125
  %v6127 = vpop.xlane.xlu0 %6126
  %v6128 = vsel %vm1179, %v6088, 0.0
  %6129 = vadd.xlane.f32.xlu0 %v6128
  %v6130 = vpop.xlane.xlu0 %6129
  %v6131 = vsel %vm1179, %v6091, 0.0
  %6132 = vadd.xlane.f32.xlu0 %v6131
  %v6133 = vpop.xlane.xlu0 %6132
  %v6134 = vsel %vm1179, %v6093, 0.0
  %6135 = vadd.xlane.f32.xlu0 %v6134
  %v6136 = vpop.xlane.xlu0 %6135
  %v6137 = vsel %vm1179, %v6096, 0.0
  %6138 = vadd.xlane.f32.xlu0 %v6137
  %v6139 = vpop.xlane.xlu0 %6138
  %v6140 = vsel %vm1179, %v6098, 0.0
  %6141 = vadd.xlane.f32.xlu0 %v6140
  %v6142 = vpop.xlane.xlu0 %6141
  %v6143 = vsel %vm1179, %v6101, 0.0
  %6144 = vadd.xlane.f32.xlu0 %v6143
  %v6145 = vpop.xlane.xlu0 %6144
  %v6146 = vsel %vm1179, %v6103, 0.0
  %6147 = vadd.xlane.f32.xlu0 %v6146
  %v6148 = vpop.xlane.xlu0 %6147
  %v6149 = vsel %vm1179, %v6106, 0.0
  %6150 = vadd.xlane.f32.xlu0 %v6149
  %v6151 = vpop.xlane.xlu0 %6150
  %v6152 = vsel %vm1179, %v6108, 0.0
  %6153 = vadd.xlane.f32.xlu0 %v6152
  %v6154 = vpop.xlane.xlu0 %6153
  %v6155 = vsel %vm1179, %v6111, 0.0
  %6156 = vadd.xlane.f32.xlu0 %v6155
  %v6157 = vpop.xlane.xlu0 %6156
  %v6158 = vsel %vm1179, %v6113, 0.0
  %6159 = vadd.xlane.f32.xlu0 %v6158
  %v6160 = vpop.xlane.xlu0 %6159
  %v6161 = vsel %vm1179, %v6116, 0.0
  %6162 = vadd.xlane.f32.xlu0 %v6161
  %v6163 = vpop.xlane.xlu0 %6162
  %v6164 = vsel %vm1179, %v6118, 0.0
  %6165 = vadd.xlane.f32.xlu0 %v6164
  %v6166 = vpop.xlane.xlu0 %6165
  %v6167 = vsel %vm1179, %v6121, 0.0
  %6168 = vadd.xlane.f32.xlu0 %v6167
  %v6169 = vpop.xlane.xlu0 %6168
  %v6170 = vsel %vm1179, %v6123, 0.0
  %6171 = vadd.xlane.f32.xlu0 %v6170
  %v6172 = vpop.xlane.xlu0 %6171
  %v6173 = vadd.f32 %v6127, %v6130
  %v6174 = vadd.f32 %v6173, %v6133
  %v6175 = vadd.f32 %v6174, %v6136
  %v6176 = vadd.f32 %v6175, %v6139
  %v6177 = vadd.f32 %v6176, %v6142
  %v6178 = vadd.f32 %v6177, %v6145
  %v6179 = vadd.f32 %v6178, %v6148
  %v6180 = vrot.slane %v6179, 4
  %v6181 = vadd.f32 %v6179, %v6180
  %v6182 = vrot.slane %v6181, 2
  %v6183 = vadd.f32 %v6181, %v6182
  %v6184 = vrot.slane %v6183, 1
  %v6185 = vadd.f32 %v6183, %v6184
  %v6186 = vadd.f32 %v6151, %v6154
  %v6187 = vadd.f32 %v6186, %v6157
  %v6188 = vadd.f32 %v6187, %v6160
  %v6189 = vadd.f32 %v6188, %v6163
  %v6190 = vadd.f32 %v6189, %v6166
  %v6191 = vadd.f32 %v6190, %v6169
  %v6192 = vadd.f32 %v6191, %v6172
  %v6193 = vrot.slane %v6192, 4
  %v6194 = vadd.f32 %v6192, %v6193
  %v6195 = vrot.slane %v6194, 2
  %v6196 = vadd.f32 %v6194, %v6195
  %v6197 = vrot.slane %v6196, 1
  %v6198 = vadd.f32 %v6196, %v6197
  %v6199 = vrcp.pop 4096.0
  %v6200 = vmul.f32 4096.0, %v6199
  %v6201 = vsub.f32 1.0, %v6200
  %v6202 = vmul.f32 %v6199, %v6201
  %v6203 = vadd.f32 %v6199, %v6202
  %vm6204 = vweird.f32 %v6199
  %v6205 = vsel %vm6204, %v6199, %v6203
  %v6206 = vmul.f32 %v6185, %v6205
  %v6207 = vmul.f32 %v6198, %v6205
  %v6208 = vsub.f32 %v6086, %v6206
  %v6209 = vsub.f32 %v6088, %v6206
  %v6210 = vsub.f32 %v6091, %v6206
  %v6211 = vsub.f32 %v6093, %v6206
  %v6212 = vsub.f32 %v6096, %v6206
  %v6213 = vsub.f32 %v6098, %v6206
  %v6214 = vsub.f32 %v6101, %v6206
  %v6215 = vsub.f32 %v6103, %v6206
  %v6216 = vsub.f32 %v6106, %v6207
  %v6217 = vsub.f32 %v6108, %v6207
  %v6218 = vsub.f32 %v6111, %v6207
  %v6219 = vsub.f32 %v6113, %v6207
  %v6220 = vsub.f32 %v6116, %v6207
  %v6221 = vsub.f32 %v6118, %v6207
  %v6222 = vsub.f32 %v6121, %v6207
  %v6223 = vsub.f32 %v6123, %v6207
  %v6224 = vmul.f32 %v6208, %v6208
  %v6225 = vmul.f32 %v6209, %v6209
  %v6226 = vmul.f32 %v6210, %v6210
  %v6227 = vmul.f32 %v6211, %v6211
  %v6228 = vmul.f32 %v6212, %v6212
  %v6229 = vmul.f32 %v6213, %v6213
  %v6230 = vmul.f32 %v6214, %v6214
  %v6231 = vmul.f32 %v6215, %v6215
  %v6232 = vmul.f32 %v6216, %v6216
  %v6233 = vmul.f32 %v6217, %v6217
  %v6234 = vmul.f32 %v6218, %v6218
  %v6235 = vmul.f32 %v6219, %v6219
  %v6236 = vmul.f32 %v6220, %v6220
  %v6237 = vmul.f32 %v6221, %v6221
  %v6238 = vmul.f32 %v6222, %v6222
  %v6239 = vmul.f32 %v6223, %v6223
  %v6240 = vsel %vm1179, %v6224, 0.0
  %6241 = vadd.xlane.f32.xlu0 %v6240
  %v6242 = vpop.xlane.xlu0 %6241
  %v6243 = vsel %vm1179, %v6225, 0.0
  %6244 = vadd.xlane.f32.xlu0 %v6243
  %v6245 = vpop.xlane.xlu0 %6244
  %v6246 = vsel %vm1179, %v6226, 0.0
  %6247 = vadd.xlane.f32.xlu0 %v6246
  %v6248 = vpop.xlane.xlu0 %6247
  %v6249 = vsel %vm1179, %v6227, 0.0
  %6250 = vadd.xlane.f32.xlu0 %v6249
  %v6251 = vpop.xlane.xlu0 %6250
  %v6252 = vsel %vm1179, %v6228, 0.0
  %6253 = vadd.xlane.f32.xlu0 %v6252
  %v6254 = vpop.xlane.xlu0 %6253
  %v6255 = vsel %vm1179, %v6229, 0.0
  %6256 = vadd.xlane.f32.xlu0 %v6255
  %v6257 = vpop.xlane.xlu0 %6256
  %v6258 = vsel %vm1179, %v6230, 0.0
  %6259 = vadd.xlane.f32.xlu0 %v6258
  %v6260 = vpop.xlane.xlu0 %6259
  %v6261 = vsel %vm1179, %v6231, 0.0
  %6262 = vadd.xlane.f32.xlu0 %v6261
  %v6263 = vpop.xlane.xlu0 %6262
  %v6264 = vsel %vm1179, %v6232, 0.0
  %6265 = vadd.xlane.f32.xlu0 %v6264
  %v6266 = vpop.xlane.xlu0 %6265
  %v6267 = vsel %vm1179, %v6233, 0.0
  %6268 = vadd.xlane.f32.xlu0 %v6267
  %v6269 = vpop.xlane.xlu0 %6268
  %v6270 = vsel %vm1179, %v6234, 0.0
  %6271 = vadd.xlane.f32.xlu0 %v6270
  %v6272 = vpop.xlane.xlu0 %6271
  %v6273 = vsel %vm1179, %v6235, 0.0
  %6274 = vadd.xlane.f32.xlu0 %v6273
  %v6275 = vpop.xlane.xlu0 %6274
  %v6276 = vsel %vm1179, %v6236, 0.0
  %6277 = vadd.xlane.f32.xlu0 %v6276
  %v6278 = vpop.xlane.xlu0 %6277
  %v6279 = vsel %vm1179, %v6237, 0.0
  %6280 = vadd.xlane.f32.xlu0 %v6279
  %v6281 = vpop.xlane.xlu0 %6280
  %v6282 = vsel %vm1179, %v6238, 0.0
  %6283 = vadd.xlane.f32.xlu0 %v6282
  %v6284 = vpop.xlane.xlu0 %6283
  %v6285 = vsel %vm1179, %v6239, 0.0
  %6286 = vadd.xlane.f32.xlu0 %v6285
  %v6287 = vpop.xlane.xlu0 %6286
  %v6288 = vadd.f32 %v6242, %v6245
  %v6289 = vadd.f32 %v6288, %v6248
  %v6290 = vadd.f32 %v6289, %v6251
  %v6291 = vadd.f32 %v6290, %v6254
  %v6292 = vadd.f32 %v6291, %v6257
  %v6293 = vadd.f32 %v6292, %v6260
  %v6294 = vadd.f32 %v6293, %v6263
  %v6295 = vrot.slane %v6294, 4
  %v6296 = vadd.f32 %v6294, %v6295
  %v6297 = vrot.slane %v6296, 2
  %v6298 = vadd.f32 %v6296, %v6297
  %v6299 = vrot.slane %v6298, 1
  %v6300 = vadd.f32 %v6298, %v6299
  %v6301 = vadd.f32 %v6266, %v6269
  %v6302 = vadd.f32 %v6301, %v6272
  %v6303 = vadd.f32 %v6302, %v6275
  %v6304 = vadd.f32 %v6303, %v6278
  %v6305 = vadd.f32 %v6304, %v6281
  %v6306 = vadd.f32 %v6305, %v6284
  %v6307 = vadd.f32 %v6306, %v6287
  %v6308 = vrot.slane %v6307, 4
  %v6309 = vadd.f32 %v6307, %v6308
  %v6310 = vrot.slane %v6309, 2
  %v6311 = vadd.f32 %v6309, %v6310
  %v6312 = vrot.slane %v6311, 1
  %v6313 = vadd.f32 %v6311, %v6312
  %v6314 = vmul.f32 %v6300, %v6205
  %v6315 = vmul.f32 %v6313, %v6205
  %v6316 = vadd.f32 %v6314, 1e-05
  %v6317 = vadd.f32 %v6315, 1e-05
  %v6318 = vrsqrt.pop %v6316
  %v6319 = vmul.f32 %v6318, %v6316
  %v6320 = vmul.f32 %v6319, %v6318
  %v6321 = vmul.f32 0.5, %v6320
  %v6322 = vsub.f32 1.5, %v6321
  %v6323 = vmul.f32 %v6318, %v6322
  %vm6324 = vweird.f32 %v6316
  %vm6325 = vweird.f32 %v6318
  %vm6326 = vmor %vm6324, %vm6325
  %v6327 = vsel %vm6326, %v6318, %v6323
  %v6328 = vrsqrt.pop %v6317
  %v6329 = vmul.f32 %v6328, %v6317
  %v6330 = vmul.f32 %v6329, %v6328
  %v6331 = vmul.f32 0.5, %v6330
  %v6332 = vsub.f32 1.5, %v6331
  %v6333 = vmul.f32 %v6328, %v6332
  %vm6334 = vweird.f32 %v6317
  %vm6335 = vweird.f32 %v6328
  %vm6336 = vmor %vm6334, %vm6335
  %v6337 = vsel %vm6336, %v6328, %v6333
  %v6338 = vmul.f32 %v6208, %v6327
  %v6339 = vmul.f32 %v6209, %v6327
  %v6340 = vmul.f32 %v6210, %v6327
  %v6341 = vmul.f32 %v6211, %v6327
  %v6342 = vmul.f32 %v6212, %v6327
  %v6343 = vmul.f32 %v6213, %v6327
  %v6344 = vmul.f32 %v6214, %v6327
  %v6345 = vmul.f32 %v6215, %v6327
  %v6346 = vmul.f32 %v6216, %v6337
  %v6347 = vmul.f32 %v6217, %v6337
  %v6348 = vmul.f32 %v6218, %v6337
  %v6349 = vmul.f32 %v6219, %v6337
  %v6350 = vmul.f32 %v6220, %v6337
  %v6351 = vmul.f32 %v6221, %v6337
  %v6352 = vmul.f32 %v6222, %v6337
  %v6353 = vmul.f32 %v6223, %v6337
  %v6354 = vld [vmem:[%s11] sm:$0x1]
  %v6356 = vperm.slane %v6354, 0
  %v6358 = vmul.f32 %v6338, %v6356
  %v6359 = vmul.f32 %v6339, %v6356
  %v6360 = vmul.f32 %v6340, %v6356
  %v6361 = vmul.f32 %v6341, %v6356
  %v6362 = vmul.f32 %v6342, %v6356
  %v6363 = vmul.f32 %v6343, %v6356
  %v6364 = vmul.f32 %v6344, %v6356
  %v6365 = vmul.f32 %v6345, %v6356
  %v6366 = vmul.f32 %v6346, %v6356
  %v6367 = vmul.f32 %v6347, %v6356
  %v6368 = vmul.f32 %v6348, %v6356
  %v6369 = vmul.f32 %v6349, %v6356
  %v6370 = vmul.f32 %v6350, %v6356
  %v6371 = vmul.f32 %v6351, %v6356
  %v6372 = vmul.f32 %v6352, %v6356
  %v6373 = vmul.f32 %v6353, %v6356
  %v6374 = vld [vmem:[%s12] sm:$0x1]
  %v6376 = vperm.slane %v6374, 0
  %v6378 = vadd.f32 %v6358, %v6376
  %v6379 = vadd.f32 %v6359, %v6376
  %v6380 = vadd.f32 %v6360, %v6376
  %v6381 = vadd.f32 %v6361, %v6376
  %v6382 = vadd.f32 %v6362, %v6376
  %v6383 = vadd.f32 %v6363, %v6376
  %v6384 = vadd.f32 %v6364, %v6376
  %v6385 = vadd.f32 %v6365, %v6376
  %v6386 = vadd.f32 %v6366, %v6376
  %v6387 = vadd.f32 %v6367, %v6376
  %v6388 = vadd.f32 %v6368, %v6376
  %v6389 = vadd.f32 %v6369, %v6376
  %v6390 = vadd.f32 %v6370, %v6376
  %v6391 = vadd.f32 %v6371, %v6376
  %v6392 = vadd.f32 %v6372, %v6376
  %v6393 = vadd.f32 %v6373, %v6376
  %v6394 = vmul.f32 %v6378, 0.5
  %v6395 = vmul.f32 %v6379, 0.5
  %v6396 = vmul.f32 %v6380, 0.5
  %v6397 = vmul.f32 %v6381, 0.5
  %v6398 = vmul.f32 %v6382, 0.5
  %v6399 = vmul.f32 %v6383, 0.5
  %v6400 = vmul.f32 %v6384, 0.5
  %v6401 = vmul.f32 %v6385, 0.5
  %v6402 = vmul.f32 %v6386, 0.5
  %v6403 = vmul.f32 %v6387, 0.5
  %v6404 = vmul.f32 %v6388, 0.5
  %v6405 = vmul.f32 %v6389, 0.5
  %v6406 = vmul.f32 %v6390, 0.5
  %v6407 = vmul.f32 %v6391, 0.5
  %v6408 = vmul.f32 %v6392, 0.5
  %v6409 = vmul.f32 %v6393, 0.5
  %v6410 = vmul.f32 %v6378, 0.70710677
  %v6411 = vmul.f32 %v6379, 0.70710677
  %v6412 = vmul.f32 %v6380, 0.70710677
  %v6413 = vmul.f32 %v6381, 0.70710677
  %v6414 = vmul.f32 %v6382, 0.70710677
  %v6415 = vmul.f32 %v6383, 0.70710677
  %v6416 = vmul.f32 %v6384, 0.70710677
  %v6417 = vmul.f32 %v6385, 0.70710677
  %v6418 = vmul.f32 %v6386, 0.70710677
  %v6419 = vmul.f32 %v6387, 0.70710677
  %v6420 = vmul.f32 %v6388, 0.70710677
  %v6421 = vmul.f32 %v6389, 0.70710677
  %v6422 = vmul.f32 %v6390, 0.70710677
  %v6423 = vmul.f32 %v6391, 0.70710677
  %v6424 = vmul.f32 %v6392, 0.70710677
  %v6425 = vmul.f32 %v6393, 0.70710677
  %v6426 = vmul.f32 %v6410, %v6410
  %v6427 = vmin.f32 16.0, %v6426
  %v6428 = vmul.f32 %v6427, 2.1237322e-06
  %v6429 = vadd.f32 %v6428, 0.00028619796
  %v6430 = vmul.f32 %v6427, %v6429
  %v6431 = vadd.f32 %v6430, 0.0036580483
  %v6432 = vmul.f32 %v6427, %v6431
  %v6433 = vadd.f32 %v6432, 0.05243302
  %v6434 = vmul.f32 %v6427, %v6433
  %v6435 = vadd.f32 %v6434, 0.18741608
  %v6436 = vmul.f32 %v6427, %v6435
  %v6437 = vadd.f32 %v6436, 1.1283791
  %v6438 = vmul.f32 %v6410, %v6437
  %v6439 = vmul.f32 %v6427, 3.8918573e-05
  %v6440 = vadd.f32 %v6439, 0.001143296
  %v6441 = vmul.f32 %v6427, %v6440
  %v6442 = vadd.f32 %v6441, 0.014752088
  %v6443 = vmul.f32 %v6427, %v6442
  %v6444 = vadd.f32 %v6443, 0.112945676
  %v6445 = vmul.f32 %v6427, %v6444
  %v6446 = vadd.f32 %v6445, 0.4994258
  %v6447 = vmul.f32 %v6427, %v6446
  %v6448 = vadd.f32 %v6447, 1.0
  %v6449 = vrcp.pop %v6448
  %v6450 = vmul.f32 %v6448, %v6449
  %v6451 = vsub.f32 1.0, %v6450
  %v6452 = vmul.f32 %v6449, %v6451
  %v6453 = vadd.f32 %v6449, %v6452
  %vm6454 = vweird.f32 %v6448
  %vm6455 = vweird.f32 %v6449
  %vm6456 = vmor %vm6454, %vm6455
  %v6457 = vsel %vm6456, %v6449, %v6453
  %v6458 = vand.u32 2147483647, %v6448
  %vm6459 = vcmp.eq.f32.partialorder %v6458, 8.507059e+37
  %v6460 = vand.u32 %v6448, 2147483648
  %v6461 = vor.u32 1.1754944e-38, %v6460
  %v6462 = vsel %vm6459, %v6461, %v6457
  %v6463 = vmul.f32 %v6438, %v6462
  %v6464 = vmin.f32 %v6463, 1.0
  %v6465 = vmax.f32 %v6464, -1.0
  %v6466 = vmul.f32 %v6411, %v6411
  %v6467 = vmin.f32 16.0, %v6466
  %v6468 = vmul.f32 %v6467, 2.1237322e-06
  %v6469 = vadd.f32 %v6468, 0.00028619796
  %v6470 = vmul.f32 %v6467, %v6469
  %v6471 = vadd.f32 %v6470, 0.0036580483
  %v6472 = vmul.f32 %v6467, %v6471
  %v6473 = vadd.f32 %v6472, 0.05243302
  %v6474 = vmul.f32 %v6467, %v6473
  %v6475 = vadd.f32 %v6474, 0.18741608
  %v6476 = vmul.f32 %v6467, %v6475
  %v6477 = vadd.f32 %v6476, 1.1283791
  %v6478 = vmul.f32 %v6411, %v6477
  %v6479 = vmul.f32 %v6467, 3.8918573e-05
  %v6480 = vadd.f32 %v6479, 0.001143296
  %v6481 = vmul.f32 %v6467, %v6480
  %v6482 = vadd.f32 %v6481, 0.014752088
  %v6483 = vmul.f32 %v6467, %v6482
  %v6484 = vadd.f32 %v6483, 0.112945676
  %v6485 = vmul.f32 %v6467, %v6484
  %v6486 = vadd.f32 %v6485, 0.4994258
  %v6487 = vmul.f32 %v6467, %v6486
  %v6488 = vadd.f32 %v6487, 1.0
  %v6489 = vrcp.pop %v6488
  %v6490 = vmul.f32 %v6488, %v6489
  %v6491 = vsub.f32 1.0, %v6490
  %v6492 = vmul.f32 %v6489, %v6491
  %v6493 = vadd.f32 %v6489, %v6492
  %vm6494 = vweird.f32 %v6488
  %vm6495 = vweird.f32 %v6489
  %vm6496 = vmor %vm6494, %vm6495
  %v6497 = vsel %vm6496, %v6489, %v6493
  %v6498 = vand.u32 2147483647, %v6488
  %vm6499 = vcmp.eq.f32.partialorder %v6498, 8.507059e+37
  %v6500 = vand.u32 %v6488, 2147483648
  %v6501 = vor.u32 1.1754944e-38, %v6500
  %v6502 = vsel %vm6499, %v6501, %v6497
  %v6503 = vmul.f32 %v6478, %v6502
  %v6504 = vmin.f32 %v6503, 1.0
  %v6505 = vmax.f32 %v6504, -1.0
  %v6506 = vmul.f32 %v6412, %v6412
  %v6507 = vmin.f32 16.0, %v6506
  %v6508 = vmul.f32 %v6507, 2.1237322e-06
  %v6509 = vadd.f32 %v6508, 0.00028619796
  %v6510 = vmul.f32 %v6507, %v6509
  %v6511 = vadd.f32 %v6510, 0.0036580483
  %v6512 = vmul.f32 %v6507, %v6511
  %v6513 = vadd.f32 %v6512, 0.05243302
  %v6514 = vmul.f32 %v6507, %v6513
  %v6515 = vadd.f32 %v6514, 0.18741608
  %v6516 = vmul.f32 %v6507, %v6515
  %v6517 = vadd.f32 %v6516, 1.1283791
  %v6518 = vmul.f32 %v6412, %v6517
  %v6519 = vmul.f32 %v6507, 3.8918573e-05
  %v6520 = vadd.f32 %v6519, 0.001143296
  %v6521 = vmul.f32 %v6507, %v6520
  %v6522 = vadd.f32 %v6521, 0.014752088
  %v6523 = vmul.f32 %v6507, %v6522
  %v6524 = vadd.f32 %v6523, 0.112945676
  %v6525 = vmul.f32 %v6507, %v6524
  %v6526 = vadd.f32 %v6525, 0.4994258
  %v6527 = vmul.f32 %v6507, %v6526
  %v6528 = vadd.f32 %v6527, 1.0
  %v6529 = vrcp.pop %v6528
  %v6530 = vmul.f32 %v6528, %v6529
  %v6531 = vsub.f32 1.0, %v6530
  %v6532 = vmul.f32 %v6529, %v6531
  %v6533 = vadd.f32 %v6529, %v6532
  %vm6534 = vweird.f32 %v6528
  %vm6535 = vweird.f32 %v6529
  %vm6536 = vmor %vm6534, %vm6535
  %v6537 = vsel %vm6536, %v6529, %v6533
  %v6538 = vand.u32 2147483647, %v6528
  %vm6539 = vcmp.eq.f32.partialorder %v6538, 8.507059e+37
  %v6540 = vand.u32 %v6528, 2147483648
  %v6541 = vor.u32 1.1754944e-38, %v6540
  %v6542 = vsel %vm6539, %v6541, %v6537
  %v6543 = vmul.f32 %v6518, %v6542
  %v6544 = vmin.f32 %v6543, 1.0
  %v6545 = vmax.f32 %v6544, -1.0
  %v6546 = vmul.f32 %v6413, %v6413
  %v6547 = vmin.f32 16.0, %v6546
  %v6548 = vmul.f32 %v6547, 2.1237322e-06
  %v6549 = vadd.f32 %v6548, 0.00028619796
  %v6550 = vmul.f32 %v6547, %v6549
  %v6551 = vadd.f32 %v6550, 0.0036580483
  %v6552 = vmul.f32 %v6547, %v6551
  %v6553 = vadd.f32 %v6552, 0.05243302
  %v6554 = vmul.f32 %v6547, %v6553
  %v6555 = vadd.f32 %v6554, 0.18741608
  %v6556 = vmul.f32 %v6547, %v6555
  %v6557 = vadd.f32 %v6556, 1.1283791
  %v6558 = vmul.f32 %v6413, %v6557
  %v6559 = vmul.f32 %v6547, 3.8918573e-05
  %v6560 = vadd.f32 %v6559, 0.001143296
  %v6561 = vmul.f32 %v6547, %v6560
  %v6562 = vadd.f32 %v6561, 0.014752088
  %v6563 = vmul.f32 %v6547, %v6562
  %v6564 = vadd.f32 %v6563, 0.112945676
  %v6565 = vmul.f32 %v6547, %v6564
  %v6566 = vadd.f32 %v6565, 0.4994258
  %v6567 = vmul.f32 %v6547, %v6566
  %v6568 = vadd.f32 %v6567, 1.0
  %v6569 = vrcp.pop %v6568
  %v6570 = vmul.f32 %v6568, %v6569
  %v6571 = vsub.f32 1.0, %v6570
  %v6572 = vmul.f32 %v6569, %v6571
  %v6573 = vadd.f32 %v6569, %v6572
  %vm6574 = vweird.f32 %v6568
  %vm6575 = vweird.f32 %v6569
  %vm6576 = vmor %vm6574, %vm6575
  %v6577 = vsel %vm6576, %v6569, %v6573
  %v6578 = vand.u32 2147483647, %v6568
  %vm6579 = vcmp.eq.f32.partialorder %v6578, 8.507059e+37
  %v6580 = vand.u32 %v6568, 2147483648
  %v6581 = vor.u32 1.1754944e-38, %v6580
  %v6582 = vsel %vm6579, %v6581, %v6577
  %v6583 = vmul.f32 %v6558, %v6582
  %v6584 = vmin.f32 %v6583, 1.0
  %v6585 = vmax.f32 %v6584, -1.0
  %v6586 = vmul.f32 %v6414, %v6414
  %v6587 = vmin.f32 16.0, %v6586
  %v6588 = vmul.f32 %v6587, 2.1237322e-06
  %v6589 = vadd.f32 %v6588, 0.00028619796
  %v6590 = vmul.f32 %v6587, %v6589
  %v6591 = vadd.f32 %v6590, 0.0036580483
  %v6592 = vmul.f32 %v6587, %v6591
  %v6593 = vadd.f32 %v6592, 0.05243302
  %v6594 = vmul.f32 %v6587, %v6593
  %v6595 = vadd.f32 %v6594, 0.18741608
  %v6596 = vmul.f32 %v6587, %v6595
  %v6597 = vadd.f32 %v6596, 1.1283791
  %v6598 = vmul.f32 %v6414, %v6597
  %v6599 = vmul.f32 %v6587, 3.8918573e-05
  %v6600 = vadd.f32 %v6599, 0.001143296
  %v6601 = vmul.f32 %v6587, %v6600
  %v6602 = vadd.f32 %v6601, 0.014752088
  %v6603 = vmul.f32 %v6587, %v6602
  %v6604 = vadd.f32 %v6603, 0.112945676
  %v6605 = vmul.f32 %v6587, %v6604
  %v6606 = vadd.f32 %v6605, 0.4994258
  %v6607 = vmul.f32 %v6587, %v6606
  %v6608 = vadd.f32 %v6607, 1.0
  %v6609 = vrcp.pop %v6608
  %v6610 = vmul.f32 %v6608, %v6609
  %v6611 = vsub.f32 1.0, %v6610
  %v6612 = vmul.f32 %v6609, %v6611
  %v6613 = vadd.f32 %v6609, %v6612
  %vm6614 = vweird.f32 %v6608
  %vm6615 = vweird.f32 %v6609
  %vm6616 = vmor %vm6614, %vm6615
  %v6617 = vsel %vm6616, %v6609, %v6613
  %v6618 = vand.u32 2147483647, %v6608
  %vm6619 = vcmp.eq.f32.partialorder %v6618, 8.507059e+37
  %v6620 = vand.u32 %v6608, 2147483648
  %v6621 = vor.u32 1.1754944e-38, %v6620
  %v6622 = vsel %vm6619, %v6621, %v6617
  %v6623 = vmul.f32 %v6598, %v6622
  %v6624 = vmin.f32 %v6623, 1.0
  %v6625 = vmax.f32 %v6624, -1.0
  %v6626 = vmul.f32 %v6415, %v6415
  %v6627 = vmin.f32 16.0, %v6626
  %v6628 = vmul.f32 %v6627, 2.1237322e-06
  %v6629 = vadd.f32 %v6628, 0.00028619796
  %v6630 = vmul.f32 %v6627, %v6629
  %v6631 = vadd.f32 %v6630, 0.0036580483
  %v6632 = vmul.f32 %v6627, %v6631
  %v6633 = vadd.f32 %v6632, 0.05243302
  %v6634 = vmul.f32 %v6627, %v6633
  %v6635 = vadd.f32 %v6634, 0.18741608
  %v6636 = vmul.f32 %v6627, %v6635
  %v6637 = vadd.f32 %v6636, 1.1283791
  %v6638 = vmul.f32 %v6415, %v6637
  %v6639 = vmul.f32 %v6627, 3.8918573e-05
  %v6640 = vadd.f32 %v6639, 0.001143296
  %v6641 = vmul.f32 %v6627, %v6640
  %v6642 = vadd.f32 %v6641, 0.014752088
  %v6643 = vmul.f32 %v6627, %v6642
  %v6644 = vadd.f32 %v6643, 0.112945676
  %v6645 = vmul.f32 %v6627, %v6644
  %v6646 = vadd.f32 %v6645, 0.4994258
  %v6647 = vmul.f32 %v6627, %v6646
  %v6648 = vadd.f32 %v6647, 1.0
  %v6649 = vrcp.pop %v6648
  %v6650 = vmul.f32 %v6648, %v6649
  %v6651 = vsub.f32 1.0, %v6650
  %v6652 = vmul.f32 %v6649, %v6651
  %v6653 = vadd.f32 %v6649, %v6652
  %vm6654 = vweird.f32 %v6648
  %vm6655 = vweird.f32 %v6649
  %vm6656 = vmor %vm6654, %vm6655
  %v6657 = vsel %vm6656, %v6649, %v6653
  %v6658 = vand.u32 2147483647, %v6648
  %vm6659 = vcmp.eq.f32.partialorder %v6658, 8.507059e+37
  %v6660 = vand.u32 %v6648, 2147483648
  %v6661 = vor.u32 1.1754944e-38, %v6660
  %v6662 = vsel %vm6659, %v6661, %v6657
  %v6663 = vmul.f32 %v6638, %v6662
  %v6664 = vmin.f32 %v6663, 1.0
  %v6665 = vmax.f32 %v6664, -1.0
  %v6666 = vmul.f32 %v6416, %v6416
  %v6667 = vmin.f32 16.0, %v6666
  %v6668 = vmul.f32 %v6667, 2.1237322e-06
  %v6669 = vadd.f32 %v6668, 0.00028619796
  %v6670 = vmul.f32 %v6667, %v6669
  %v6671 = vadd.f32 %v6670, 0.0036580483
  %v6672 = vmul.f32 %v6667, %v6671
  %v6673 = vadd.f32 %v6672, 0.05243302
  %v6674 = vmul.f32 %v6667, %v6673
  %v6675 = vadd.f32 %v6674, 0.18741608
  %v6676 = vmul.f32 %v6667, %v6675
  %v6677 = vadd.f32 %v6676, 1.1283791
  %v6678 = vmul.f32 %v6416, %v6677
  %v6679 = vmul.f32 %v6667, 3.8918573e-05
  %v6680 = vadd.f32 %v6679, 0.001143296
  %v6681 = vmul.f32 %v6667, %v6680
  %v6682 = vadd.f32 %v6681, 0.014752088
  %v6683 = vmul.f32 %v6667, %v6682
  %v6684 = vadd.f32 %v6683, 0.112945676
  %v6685 = vmul.f32 %v6667, %v6684
  %v6686 = vadd.f32 %v6685, 0.4994258
  %v6687 = vmul.f32 %v6667, %v6686
  %v6688 = vadd.f32 %v6687, 1.0
  %v6689 = vrcp.pop %v6688
  %v6690 = vmul.f32 %v6688, %v6689
  %v6691 = vsub.f32 1.0, %v6690
  %v6692 = vmul.f32 %v6689, %v6691
  %v6693 = vadd.f32 %v6689, %v6692
  %vm6694 = vweird.f32 %v6688
  %vm6695 = vweird.f32 %v6689
  %vm6696 = vmor %vm6694, %vm6695
  %v6697 = vsel %vm6696, %v6689, %v6693
  %v6698 = vand.u32 2147483647, %v6688
  %vm6699 = vcmp.eq.f32.partialorder %v6698, 8.507059e+37
  %v6700 = vand.u32 %v6688, 2147483648
  %v6701 = vor.u32 1.1754944e-38, %v6700
  %v6702 = vsel %vm6699, %v6701, %v6697
  %v6703 = vmul.f32 %v6678, %v6702
  %v6704 = vmin.f32 %v6703, 1.0
  %v6705 = vmax.f32 %v6704, -1.0
  %v6706 = vmul.f32 %v6417, %v6417
  %v6707 = vmin.f32 16.0, %v6706
  %v6708 = vmul.f32 %v6707, 2.1237322e-06
  %v6709 = vadd.f32 %v6708, 0.00028619796
  %v6710 = vmul.f32 %v6707, %v6709
  %v6711 = vadd.f32 %v6710, 0.0036580483
  %v6712 = vmul.f32 %v6707, %v6711
  %v6713 = vadd.f32 %v6712, 0.05243302
  %v6714 = vmul.f32 %v6707, %v6713
  %v6715 = vadd.f32 %v6714, 0.18741608
  %v6716 = vmul.f32 %v6707, %v6715
  %v6717 = vadd.f32 %v6716, 1.1283791
  %v6718 = vmul.f32 %v6417, %v6717
  %v6719 = vmul.f32 %v6707, 3.8918573e-05
  %v6720 = vadd.f32 %v6719, 0.001143296
  %v6721 = vmul.f32 %v6707, %v6720
  %v6722 = vadd.f32 %v6721, 0.014752088
  %v6723 = vmul.f32 %v6707, %v6722
  %v6724 = vadd.f32 %v6723, 0.112945676
  %v6725 = vmul.f32 %v6707, %v6724
  %v6726 = vadd.f32 %v6725, 0.4994258
  %v6727 = vmul.f32 %v6707, %v6726
  %v6728 = vadd.f32 %v6727, 1.0
  %v6729 = vrcp.pop %v6728
  %v6730 = vmul.f32 %v6728, %v6729
  %v6731 = vsub.f32 1.0, %v6730
  %v6732 = vmul.f32 %v6729, %v6731
  %v6733 = vadd.f32 %v6729, %v6732
  %vm6734 = vweird.f32 %v6728
  %vm6735 = vweird.f32 %v6729
  %vm6736 = vmor %vm6734, %vm6735
  %v6737 = vsel %vm6736, %v6729, %v6733
  %v6738 = vand.u32 2147483647, %v6728
  %vm6739 = vcmp.eq.f32.partialorder %v6738, 8.507059e+37
  %v6740 = vand.u32 %v6728, 2147483648
  %v6741 = vor.u32 1.1754944e-38, %v6740
  %v6742 = vsel %vm6739, %v6741, %v6737
  %v6743 = vmul.f32 %v6718, %v6742
  %v6744 = vmin.f32 %v6743, 1.0
  %v6745 = vmax.f32 %v6744, -1.0
  %v6746 = vmul.f32 %v6418, %v6418
  %v6747 = vmin.f32 16.0, %v6746
  %v6748 = vmul.f32 %v6747, 2.1237322e-06
  %v6749 = vadd.f32 %v6748, 0.00028619796
  %v6750 = vmul.f32 %v6747, %v6749
  %v6751 = vadd.f32 %v6750, 0.0036580483
  %v6752 = vmul.f32 %v6747, %v6751
  %v6753 = vadd.f32 %v6752, 0.05243302
  %v6754 = vmul.f32 %v6747, %v6753
  %v6755 = vadd.f32 %v6754, 0.18741608
  %v6756 = vmul.f32 %v6747, %v6755
  %v6757 = vadd.f32 %v6756, 1.1283791
  %v6758 = vmul.f32 %v6418, %v6757
  %v6759 = vmul.f32 %v6747, 3.8918573e-05
  %v6760 = vadd.f32 %v6759, 0.001143296
  %v6761 = vmul.f32 %v6747, %v6760
  %v6762 = vadd.f32 %v6761, 0.014752088
  %v6763 = vmul.f32 %v6747, %v6762
  %v6764 = vadd.f32 %v6763, 0.112945676
  %v6765 = vmul.f32 %v6747, %v6764
  %v6766 = vadd.f32 %v6765, 0.4994258
  %v6767 = vmul.f32 %v6747, %v6766
  %v6768 = vadd.f32 %v6767, 1.0
  %v6769 = vrcp.pop %v6768
  %v6770 = vmul.f32 %v6768, %v6769
  %v6771 = vsub.f32 1.0, %v6770
  %v6772 = vmul.f32 %v6769, %v6771
  %v6773 = vadd.f32 %v6769, %v6772
  %vm6774 = vweird.f32 %v6768
  %vm6775 = vweird.f32 %v6769
  %vm6776 = vmor %vm6774, %vm6775
  %v6777 = vsel %vm6776, %v6769, %v6773
  %v6778 = vand.u32 2147483647, %v6768
  %vm6779 = vcmp.eq.f32.partialorder %v6778, 8.507059e+37
  %v6780 = vand.u32 %v6768, 2147483648
  %v6781 = vor.u32 1.1754944e-38, %v6780
  %v6782 = vsel %vm6779, %v6781, %v6777
  %v6783 = vmul.f32 %v6758, %v6782
  %v6784 = vmin.f32 %v6783, 1.0
  %v6785 = vmax.f32 %v6784, -1.0
  %v6786 = vmul.f32 %v6419, %v6419
  %v6787 = vmin.f32 16.0, %v6786
  %v6788 = vmul.f32 %v6787, 2.1237322e-06
  %v6789 = vadd.f32 %v6788, 0.00028619796
  %v6790 = vmul.f32 %v6787, %v6789
  %v6791 = vadd.f32 %v6790, 0.0036580483
  %v6792 = vmul.f32 %v6787, %v6791
  %v6793 = vadd.f32 %v6792, 0.05243302
  %v6794 = vmul.f32 %v6787, %v6793
  %v6795 = vadd.f32 %v6794, 0.18741608
  %v6796 = vmul.f32 %v6787, %v6795
  %v6797 = vadd.f32 %v6796, 1.1283791
  %v6798 = vmul.f32 %v6419, %v6797
  %v6799 = vmul.f32 %v6787, 3.8918573e-05
  %v6800 = vadd.f32 %v6799, 0.001143296
  %v6801 = vmul.f32 %v6787, %v6800
  %v6802 = vadd.f32 %v6801, 0.014752088
  %v6803 = vmul.f32 %v6787, %v6802
  %v6804 = vadd.f32 %v6803, 0.112945676
  %v6805 = vmul.f32 %v6787, %v6804
  %v6806 = vadd.f32 %v6805, 0.4994258
  %v6807 = vmul.f32 %v6787, %v6806
  %v6808 = vadd.f32 %v6807, 1.0
  %v6809 = vrcp.pop %v6808
  %v6810 = vmul.f32 %v6808, %v6809
  %v6811 = vsub.f32 1.0, %v6810
  %v6812 = vmul.f32 %v6809, %v6811
  %v6813 = vadd.f32 %v6809, %v6812
  %vm6814 = vweird.f32 %v6808
  %vm6815 = vweird.f32 %v6809
  %vm6816 = vmor %vm6814, %vm6815
  %v6817 = vsel %vm6816, %v6809, %v6813
  %v6818 = vand.u32 2147483647, %v6808
  %vm6819 = vcmp.eq.f32.partialorder %v6818, 8.507059e+37
  %v6820 = vand.u32 %v6808, 2147483648
  %v6821 = vor.u32 1.1754944e-38, %v6820
  %v6822 = vsel %vm6819, %v6821, %v6817
  %v6823 = vmul.f32 %v6798, %v6822
  %v6824 = vmin.f32 %v6823, 1.0
  %v6825 = vmax.f32 %v6824, -1.0
  %v6826 = vmul.f32 %v6420, %v6420
  %v6827 = vmin.f32 16.0, %v6826
  %v6828 = vmul.f32 %v6827, 2.1237322e-06
  %v6829 = vadd.f32 %v6828, 0.00028619796
  %v6830 = vmul.f32 %v6827, %v6829
  %v6831 = vadd.f32 %v6830, 0.0036580483
  %v6832 = vmul.f32 %v6827, %v6831
  %v6833 = vadd.f32 %v6832, 0.05243302
  %v6834 = vmul.f32 %v6827, %v6833
  %v6835 = vadd.f32 %v6834, 0.18741608
  %v6836 = vmul.f32 %v6827, %v6835
  %v6837 = vadd.f32 %v6836, 1.1283791
  %v6838 = vmul.f32 %v6420, %v6837
  %v6839 = vmul.f32 %v6827, 3.8918573e-05
  %v6840 = vadd.f32 %v6839, 0.001143296
  %v6841 = vmul.f32 %v6827, %v6840
  %v6842 = vadd.f32 %v6841, 0.014752088
  %v6843 = vmul.f32 %v6827, %v6842
  %v6844 = vadd.f32 %v6843, 0.112945676
  %v6845 = vmul.f32 %v6827, %v6844
  %v6846 = vadd.f32 %v6845, 0.4994258
  %v6847 = vmul.f32 %v6827, %v6846
  %v6848 = vadd.f32 %v6847, 1.0
  %v6849 = vrcp.pop %v6848
  %v6850 = vmul.f32 %v6848, %v6849
  %v6851 = vsub.f32 1.0, %v6850
  %v6852 = vmul.f32 %v6849, %v6851
  %v6853 = vadd.f32 %v6849, %v6852
  %vm6854 = vweird.f32 %v6848
  %vm6855 = vweird.f32 %v6849
  %vm6856 = vmor %vm6854, %vm6855
  %v6857 = vsel %vm6856, %v6849, %v6853
  %v6858 = vand.u32 2147483647, %v6848
  %vm6859 = vcmp.eq.f32.partialorder %v6858, 8.507059e+37
  %v6860 = vand.u32 %v6848, 2147483648
  %v6861 = vor.u32 1.1754944e-38, %v6860
  %v6862 = vsel %vm6859, %v6861, %v6857
  %v6863 = vmul.f32 %v6838, %v6862
  %v6864 = vmin.f32 %v6863, 1.0
  %v6865 = vmax.f32 %v6864, -1.0
  %v6866 = vmul.f32 %v6421, %v6421
  %v6867 = vmin.f32 16.0, %v6866
  %v6868 = vmul.f32 %v6867, 2.1237322e-06
  %v6869 = vadd.f32 %v6868, 0.00028619796
  %v6870 = vmul.f32 %v6867, %v6869
  %v6871 = vadd.f32 %v6870, 0.0036580483
  %v6872 = vmul.f32 %v6867, %v6871
  %v6873 = vadd.f32 %v6872, 0.05243302
  %v6874 = vmul.f32 %v6867, %v6873
  %v6875 = vadd.f32 %v6874, 0.18741608
  %v6876 = vmul.f32 %v6867, %v6875
  %v6877 = vadd.f32 %v6876, 1.1283791
  %v6878 = vmul.f32 %v6421, %v6877
  %v6879 = vmul.f32 %v6867, 3.8918573e-05
  %v6880 = vadd.f32 %v6879, 0.001143296
  %v6881 = vmul.f32 %v6867, %v6880
  %v6882 = vadd.f32 %v6881, 0.014752088
  %v6883 = vmul.f32 %v6867, %v6882
  %v6884 = vadd.f32 %v6883, 0.112945676
  %v6885 = vmul.f32 %v6867, %v6884
  %v6886 = vadd.f32 %v6885, 0.4994258
  %v6887 = vmul.f32 %v6867, %v6886
  %v6888 = vadd.f32 %v6887, 1.0
  %v6889 = vrcp.pop %v6888
  %v6890 = vmul.f32 %v6888, %v6889
  %v6891 = vsub.f32 1.0, %v6890
  %v6892 = vmul.f32 %v6889, %v6891
  %v6893 = vadd.f32 %v6889, %v6892
  %vm6894 = vweird.f32 %v6888
  %vm6895 = vweird.f32 %v6889
  %vm6896 = vmor %vm6894, %vm6895
  %v6897 = vsel %vm6896, %v6889, %v6893
  %v6898 = vand.u32 2147483647, %v6888
  %vm6899 = vcmp.eq.f32.partialorder %v6898, 8.507059e+37
  %v6900 = vand.u32 %v6888, 2147483648
  %v6901 = vor.u32 1.1754944e-38, %v6900
  %v6902 = vsel %vm6899, %v6901, %v6897
  %v6903 = vmul.f32 %v6878, %v6902
  %v6904 = vmin.f32 %v6903, 1.0
  %v6905 = vmax.f32 %v6904, -1.0
  %v6906 = vmul.f32 %v6422, %v6422
  %v6907 = vmin.f32 16.0, %v6906
  %v6908 = vmul.f32 %v6907, 2.1237322e-06
  %v6909 = vadd.f32 %v6908, 0.00028619796
  %v6910 = vmul.f32 %v6907, %v6909
  %v6911 = vadd.f32 %v6910, 0.0036580483
  %v6912 = vmul.f32 %v6907, %v6911
  %v6913 = vadd.f32 %v6912, 0.05243302
  %v6914 = vmul.f32 %v6907, %v6913
  %v6915 = vadd.f32 %v6914, 0.18741608
  %v6916 = vmul.f32 %v6907, %v6915
  %v6917 = vadd.f32 %v6916, 1.1283791
  %v6918 = vmul.f32 %v6422, %v6917
  %v6919 = vmul.f32 %v6907, 3.8918573e-05
  %v6920 = vadd.f32 %v6919, 0.001143296
  %v6921 = vmul.f32 %v6907, %v6920
  %v6922 = vadd.f32 %v6921, 0.014752088
  %v6923 = vmul.f32 %v6907, %v6922
  %v6924 = vadd.f32 %v6923, 0.112945676
  %v6925 = vmul.f32 %v6907, %v6924
  %v6926 = vadd.f32 %v6925, 0.4994258
  %v6927 = vmul.f32 %v6907, %v6926
  %v6928 = vadd.f32 %v6927, 1.0
  %v6929 = vrcp.pop %v6928
  %v6930 = vmul.f32 %v6928, %v6929
  %v6931 = vsub.f32 1.0, %v6930
  %v6932 = vmul.f32 %v6929, %v6931
  %v6933 = vadd.f32 %v6929, %v6932
  %vm6934 = vweird.f32 %v6928
  %vm6935 = vweird.f32 %v6929
  %vm6936 = vmor %vm6934, %vm6935
  %v6937 = vsel %vm6936, %v6929, %v6933
  %v6938 = vand.u32 2147483647, %v6928
  %vm6939 = vcmp.eq.f32.partialorder %v6938, 8.507059e+37
  %v6940 = vand.u32 %v6928, 2147483648
  %v6941 = vor.u32 1.1754944e-38, %v6940
  %v6942 = vsel %vm6939, %v6941, %v6937
  %v6943 = vmul.f32 %v6918, %v6942
  %v6944 = vmin.f32 %v6943, 1.0
  %v6945 = vmax.f32 %v6944, -1.0
  %v6946 = vmul.f32 %v6423, %v6423
  %v6947 = vmin.f32 16.0, %v6946
  %v6948 = vmul.f32 %v6947, 2.1237322e-06
  %v6949 = vadd.f32 %v6948, 0.00028619796
  %v6950 = vmul.f32 %v6947, %v6949
  %v6951 = vadd.f32 %v6950, 0.0036580483
  %v6952 = vmul.f32 %v6947, %v6951
  %v6953 = vadd.f32 %v6952, 0.05243302
  %v6954 = vmul.f32 %v6947, %v6953
  %v6955 = vadd.f32 %v6954, 0.18741608
  %v6956 = vmul.f32 %v6947, %v6955
  %v6957 = vadd.f32 %v6956, 1.1283791
  %v6958 = vmul.f32 %v6423, %v6957
  %v6959 = vmul.f32 %v6947, 3.8918573e-05
  %v6960 = vadd.f32 %v6959, 0.001143296
  %v6961 = vmul.f32 %v6947, %v6960
  %v6962 = vadd.f32 %v6961, 0.014752088
  %v6963 = vmul.f32 %v6947, %v6962
  %v6964 = vadd.f32 %v6963, 0.112945676
  %v6965 = vmul.f32 %v6947, %v6964
  %v6966 = vadd.f32 %v6965, 0.4994258
  %v6967 = vmul.f32 %v6947, %v6966
  %v6968 = vadd.f32 %v6967, 1.0
  %v6969 = vrcp.pop %v6968
  %v6970 = vmul.f32 %v6968, %v6969
  %v6971 = vsub.f32 1.0, %v6970
  %v6972 = vmul.f32 %v6969, %v6971
  %v6973 = vadd.f32 %v6969, %v6972
  %vm6974 = vweird.f32 %v6968
  %vm6975 = vweird.f32 %v6969
  %vm6976 = vmor %vm6974, %vm6975
  %v6977 = vsel %vm6976, %v6969, %v6973
  %v6978 = vand.u32 2147483647, %v6968
  %vm6979 = vcmp.eq.f32.partialorder %v6978, 8.507059e+37
  %v6980 = vand.u32 %v6968, 2147483648
  %v6981 = vor.u32 1.1754944e-38, %v6980
  %v6982 = vsel %vm6979, %v6981, %v6977
  %v6983 = vmul.f32 %v6958, %v6982
  %v6984 = vmin.f32 %v6983, 1.0
  %v6985 = vmax.f32 %v6984, -1.0
  %v6986 = vmul.f32 %v6424, %v6424
  %v6987 = vmin.f32 16.0, %v6986
  %v6988 = vmul.f32 %v6987, 2.1237322e-06
  %v6989 = vadd.f32 %v6988, 0.00028619796
  %v6990 = vmul.f32 %v6987, %v6989
  %v6991 = vadd.f32 %v6990, 0.0036580483
  %v6992 = vmul.f32 %v6987, %v6991
  %v6993 = vadd.f32 %v6992, 0.05243302
  %v6994 = vmul.f32 %v6987, %v6993
  %v6995 = vadd.f32 %v6994, 0.18741608
  %v6996 = vmul.f32 %v6987, %v6995
  %v6997 = vadd.f32 %v6996, 1.1283791
  %v6998 = vmul.f32 %v6424, %v6997
  %v6999 = vmul.f32 %v6987, 3.8918573e-05
  %v7000 = vadd.f32 %v6999, 0.001143296
  %v7001 = vmul.f32 %v6987, %v7000
  %v7002 = vadd.f32 %v7001, 0.014752088
  %v7003 = vmul.f32 %v6987, %v7002
  %v7004 = vadd.f32 %v7003, 0.112945676
  %v7005 = vmul.f32 %v6987, %v7004
  %v7006 = vadd.f32 %v7005, 0.4994258
  %v7007 = vmul.f32 %v6987, %v7006
  %v7008 = vadd.f32 %v7007, 1.0
  %v7009 = vrcp.pop %v7008
  %v7010 = vmul.f32 %v7008, %v7009
  %v7011 = vsub.f32 1.0, %v7010
  %v7012 = vmul.f32 %v7009, %v7011
  %v7013 = vadd.f32 %v7009, %v7012
  %vm7014 = vweird.f32 %v7008
  %vm7015 = vweird.f32 %v7009
  %vm7016 = vmor %vm7014, %vm7015
  %v7017 = vsel %vm7016, %v7009, %v7013
  %v7018 = vand.u32 2147483647, %v7008
  %vm7019 = vcmp.eq.f32.partialorder %v7018, 8.507059e+37
  %v7020 = vand.u32 %v7008, 2147483648
  %v7021 = vor.u32 1.1754944e-38, %v7020
  %v7022 = vsel %vm7019, %v7021, %v7017
  %v7023 = vmul.f32 %v6998, %v7022
  %v7024 = vmin.f32 %v7023, 1.0
  %v7025 = vmax.f32 %v7024, -1.0
  %v7026 = vmul.f32 %v6425, %v6425
  %v7027 = vmin.f32 16.0, %v7026
  %v7028 = vmul.f32 %v7027, 2.1237322e-06
  %v7029 = vadd.f32 %v7028, 0.00028619796
  %v7030 = vmul.f32 %v7027, %v7029
  %v7031 = vadd.f32 %v7030, 0.0036580483
  %v7032 = vmul.f32 %v7027, %v7031
  %v7033 = vadd.f32 %v7032, 0.05243302
  %v7034 = vmul.f32 %v7027, %v7033
  %v7035 = vadd.f32 %v7034, 0.18741608
  %v7036 = vmul.f32 %v7027, %v7035
  %v7037 = vadd.f32 %v7036, 1.1283791
  %v7038 = vmul.f32 %v6425, %v7037
  %v7039 = vmul.f32 %v7027, 3.8918573e-05
  %v7040 = vadd.f32 %v7039, 0.001143296
  %v7041 = vmul.f32 %v7027, %v7040
  %v7042 = vadd.f32 %v7041, 0.014752088
  %v7043 = vmul.f32 %v7027, %v7042
  %v7044 = vadd.f32 %v7043, 0.112945676
  %v7045 = vmul.f32 %v7027, %v7044
  %v7046 = vadd.f32 %v7045, 0.4994258
  %v7047 = vmul.f32 %v7027, %v7046
  %v7048 = vadd.f32 %v7047, 1.0
  %v7049 = vrcp.pop %v7048
  %v7050 = vmul.f32 %v7048, %v7049
  %v7051 = vsub.f32 1.0, %v7050
  %v7052 = vmul.f32 %v7049, %v7051
  %v7053 = vadd.f32 %v7049, %v7052
  %vm7054 = vweird.f32 %v7048
  %vm7055 = vweird.f32 %v7049
  %vm7056 = vmor %vm7054, %vm7055
  %v7057 = vsel %vm7056, %v7049, %v7053
  %v7058 = vand.u32 2147483647, %v7048
  %vm7059 = vcmp.eq.f32.partialorder %v7058, 8.507059e+37
  %v7060 = vand.u32 %v7048, 2147483648
  %v7061 = vor.u32 1.1754944e-38, %v7060
  %v7062 = vsel %vm7059, %v7061, %v7057
  %v7063 = vmul.f32 %v7038, %v7062
  %v7064 = vmin.f32 %v7063, 1.0
  %v7065 = vmax.f32 %v7064, -1.0
  %v7066 = vadd.f32 %v6465, 1.0
  %v7067 = vadd.f32 %v6505, 1.0
  %v7068 = vadd.f32 %v6545, 1.0
  %v7069 = vadd.f32 %v6585, 1.0
  %v7070 = vadd.f32 %v6625, 1.0
  %v7071 = vadd.f32 %v6665, 1.0
  %v7072 = vadd.f32 %v6705, 1.0
  %v7073 = vadd.f32 %v6745, 1.0
  %v7074 = vadd.f32 %v6785, 1.0
  %v7075 = vadd.f32 %v6825, 1.0
  %v7076 = vadd.f32 %v6865, 1.0
  %v7077 = vadd.f32 %v6905, 1.0
  %v7078 = vadd.f32 %v6945, 1.0
  %v7079 = vadd.f32 %v6985, 1.0
  %v7080 = vadd.f32 %v7025, 1.0
  %v7081 = vadd.f32 %v7065, 1.0
  %v7082 = vmul.f32 %v6394, %v7066
  %v7083 = vmul.f32 %v6395, %v7067
  %v7084 = vmul.f32 %v6396, %v7068
  %v7085 = vmul.f32 %v6397, %v7069
  %v7086 = vmul.f32 %v6398, %v7070
  %v7087 = vmul.f32 %v6399, %v7071
  %v7088 = vmul.f32 %v6400, %v7072
  %v7089 = vmul.f32 %v6401, %v7073
  %v7090 = vmul.f32 %v6402, %v7074
  %v7091 = vmul.f32 %v6403, %v7075
  %v7092 = vmul.f32 %v6404, %v7076
  %v7093 = vmul.f32 %v6405, %v7077
  %v7094 = vmul.f32 %v6406, %v7078
  %v7095 = vmul.f32 %v6407, %v7079
  %v7096 = vmul.f32 %v6408, %v7080
  %v7097 = vmul.f32 %v6409, %v7081
  %v7100 = vrot.slane %v7096, 7
  %v7101 = vrot.slane %v7097, 7
  %v7102 = vsel %vm177, %v7100, %v7101
  %v7119 = vrot.slane %v7082, 7
  %v7120 = vrot.slane %v7083, 7
  %v7121 = vsel %vm177, %v7119, %v7120
  %v7122 = vrot.slane %v7084, 7
  %v7123 = vsel %vm177, %v7120, %v7122
  %v7124 = vrot.slane %v7085, 7
  %v7125 = vsel %vm177, %v7122, %v7124
  %v7126 = vrot.slane %v7086, 7
  %v7127 = vsel %vm177, %v7124, %v7126
  %v7128 = vrot.slane %v7087, 7
  %v7129 = vsel %vm177, %v7126, %v7128
  %v7130 = vrot.slane %v7088, 7
  %v7131 = vsel %vm177, %v7128, %v7130
  %v7132 = vrot.slane %v7089, 7
  %v7133 = vsel %vm177, %v7130, %v7132
  %v7134 = vrot.slane %v7090, 7
  %v7135 = vsel %vm177, %v7132, %v7134
  %v7136 = vrot.slane %v7091, 7
  %v7137 = vsel %vm177, %v7134, %v7136
  %v7138 = vrot.slane %v7092, 7
  %v7139 = vsel %vm177, %v7136, %v7138
  %v7140 = vrot.slane %v7093, 7
  %v7141 = vsel %vm177, %v7138, %v7140
  %v7142 = vrot.slane %v7094, 7
  %v7143 = vsel %vm177, %v7140, %v7142
  %v7144 = vrot.slane %v7095, 7
  %v7145 = vsel %vm177, %v7142, %v7144
  %v7146 = vsel %vm177, %v7144, %v7100
  %v7162 = vsel %vm177, %v7101, %v7119
  %v7163 = vld [vmem:[%s3] sm:$0xff]
  %v7164 = vld [vmem:[%s3 + $0x8] sm:$0xff]
  %v7165 = vld [vmem:[%s3 + $0x10] sm:$0xff]
  %v7166 = vld [vmem:[%s3 + $0x18] sm:$0xff]
  %v7167 = vld [vmem:[%s3 + $0x20] sm:$0xff]
  %v7168 = vld [vmem:[%s3 + $0x28] sm:$0xff]
  %v7169 = vld [vmem:[%s3 + $0x30] sm:$0xff]
  %v7170 = vld [vmem:[%s3 + $0x38] sm:$0xff]
  %v7171 = vld [vmem:[%s3 + $0x40] sm:$0xff]
  %v7172 = vld [vmem:[%s3 + $0x48] sm:$0xff]
  %v7173 = vld [vmem:[%s3 + $0x50] sm:$0xff]
  %v7174 = vld [vmem:[%s3 + $0x58] sm:$0xff]
  %v7175 = vld [vmem:[%s3 + $0x60] sm:$0xff]
  %v7176 = vld [vmem:[%s3 + $0x68] sm:$0xff]
  %v7177 = vld [vmem:[%s3 + $0x70] sm:$0xff]
  %v7178 = vld [vmem:[%s3 + $0x78] sm:$0xff]
  %v7179 = vmul.f32 %v7102, %v7163
  %v7180 = vmul.f32 %v7162, %v7164
  %v7181 = vmul.f32 %v7121, %v7165
  %v7182 = vmul.f32 %v7123, %v7166
  %v7183 = vmul.f32 %v7125, %v7167
  %v7184 = vmul.f32 %v7127, %v7168
  %v7185 = vmul.f32 %v7129, %v7169
  %v7186 = vmul.f32 %v7131, %v7170
  %v7187 = vmul.f32 %v7133, %v7171
  %v7188 = vmul.f32 %v7135, %v7172
  %v7189 = vmul.f32 %v7137, %v7173
  %v7190 = vmul.f32 %v7139, %v7174
  %v7191 = vmul.f32 %v7141, %v7175
  %v7192 = vmul.f32 %v7143, %v7176
  %v7193 = vmul.f32 %v7145, %v7177
  %v7194 = vmul.f32 %v7146, %v7178
  %v7195 = vpack.c.bf16 %v7179, %v7179
  %v7196 = vpack.c.bf16 %v7180, %v7180
  %v7197 = vpack.c.bf16 %v7181, %v7181
  %v7198 = vpack.c.bf16 %v7182, %v7182
  %v7199 = vpack.c.bf16 %v7183, %v7183
  %v7200 = vpack.c.bf16 %v7184, %v7184
  %v7201 = vpack.c.bf16 %v7185, %v7185
  %v7202 = vpack.c.bf16 %v7186, %v7186
  %v7203 = vpack.c.bf16 %v7187, %v7187
  %v7204 = vpack.c.bf16 %v7188, %v7188
  %v7205 = vpack.c.bf16 %v7189, %v7189
  %v7206 = vpack.c.bf16 %v7190, %v7190
  %v7207 = vpack.c.bf16 %v7191, %v7191
  %v7208 = vpack.c.bf16 %v7192, %v7192
  %v7209 = vpack.c.bf16 %v7193, %v7193
  %v7210 = vpack.c.bf16 %v7194, %v7194
  %vm7211 = vcmask 519168
  %7212 = vst.msk [vmem:[#allocation2] sm:$0xf] %vm7211, %v7195
  %7213 = vst.msk [vmem:[#allocation2 + $0x14] sm:$0xf] %vm7211, %v7196
  %7214 = vst.msk [vmem:[#allocation2 + $0x28] sm:$0xf] %vm7211, %v7197
  %7215 = vst.msk [vmem:[#allocation2 + $0x3c] sm:$0xf] %vm7211, %v7198
  %7216 = vst.msk [vmem:[#allocation2 + $0x50] sm:$0xf] %vm7211, %v7199
  %7217 = vst.msk [vmem:[#allocation2 + $0x64] sm:$0xf] %vm7211, %v7200
  %7218 = vst.msk [vmem:[#allocation2 + $0x78] sm:$0xf] %vm7211, %v7201
  %7219 = vst.msk [vmem:[#allocation2 + $0x8c] sm:$0xf] %vm7211, %v7202
  %7220 = vst.msk [vmem:[#allocation2 + $0xa0] sm:$0xf] %vm7211, %v7203
  %7221 = vst.msk [vmem:[#allocation2 + $0xb4] sm:$0xf] %vm7211, %v7204
  %7222 = vst.msk [vmem:[#allocation2 + $0xc8] sm:$0xf] %vm7211, %v7205
  %7223 = vst.msk [vmem:[#allocation2 + $0xdc] sm:$0xf] %vm7211, %v7206
  %7224 = vst.msk [vmem:[#allocation2 + $0xf0] sm:$0xf] %vm7211, %v7207
  %7225 = vst.msk [vmem:[#allocation2 + $0x104] sm:$0xf] %vm7211, %v7208
  %7226 = vst.msk [vmem:[#allocation2 + $0x118] sm:$0xf] %vm7211, %v7209
  %7227 = vst.msk [vmem:[#allocation2 + $0x12c] sm:$0xf] %vm7211, %v7210
  %s7228 = scalar_lea.vmem %s3, 128
  %v7229 = vld [vmem:[%s7228] sm:$0xff]
  %v7230 = vld [vmem:[%s7228 + $0x8] sm:$0xff]
  %v7231 = vld [vmem:[%s7228 + $0x10] sm:$0xff]
  %v7232 = vld [vmem:[%s7228 + $0x18] sm:$0xff]
  %v7233 = vld [vmem:[%s7228 + $0x20] sm:$0xff]
  %v7234 = vld [vmem:[%s7228 + $0x28] sm:$0xff]
  %v7235 = vld [vmem:[%s7228 + $0x30] sm:$0xff]
  %v7236 = vld [vmem:[%s7228 + $0x38] sm:$0xff]
  %v7237 = vld [vmem:[%s7228 + $0x40] sm:$0xff]
  %v7238 = vld [vmem:[%s7228 + $0x48] sm:$0xff]
  %v7239 = vld [vmem:[%s7228 + $0x50] sm:$0xff]
  %v7240 = vld [vmem:[%s7228 + $0x58] sm:$0xff]
  %v7241 = vld [vmem:[%s7228 + $0x60] sm:$0xff]
  %v7242 = vld [vmem:[%s7228 + $0x68] sm:$0xff]
  %v7243 = vld [vmem:[%s7228 + $0x70] sm:$0xff]
  %v7244 = vld [vmem:[%s7228 + $0x78] sm:$0xff]
  %v7245 = vmul.f32 %v7097, %v7229
  %v7246 = vmul.f32 %v7082, %v7230
  %v7247 = vmul.f32 %v7083, %v7231
  %v7248 = vmul.f32 %v7084, %v7232
  %v7249 = vmul.f32 %v7085, %v7233
  %v7250 = vmul.f32 %v7086, %v7234
  %v7251 = vmul.f32 %v7087, %v7235
  %v7252 = vmul.f32 %v7088, %v7236
  %v7253 = vmul.f32 %v7089, %v7237
  %v7254 = vmul.f32 %v7090, %v7238
  %v7255 = vmul.f32 %v7091, %v7239
  %v7256 = vmul.f32 %v7092, %v7240
  %v7257 = vmul.f32 %v7093, %v7241
  %v7258 = vmul.f32 %v7094, %v7242
  %v7259 = vmul.f32 %v7095, %v7243
  %v7260 = vmul.f32 %v7096, %v7244
  %v7261 = vpack.c.bf16 %v7245, %v7245
  %v7262 = vpack.c.bf16 %v7246, %v7246
  %v7263 = vpack.c.bf16 %v7247, %v7247
  %v7264 = vpack.c.bf16 %v7248, %v7248
  %v7265 = vpack.c.bf16 %v7249, %v7249
  %v7266 = vpack.c.bf16 %v7250, %v7250
  %v7267 = vpack.c.bf16 %v7251, %v7251
  %v7268 = vpack.c.bf16 %v7252, %v7252
  %v7269 = vpack.c.bf16 %v7253, %v7253
  %v7270 = vpack.c.bf16 %v7254, %v7254
  %v7271 = vpack.c.bf16 %v7255, %v7255
  %v7272 = vpack.c.bf16 %v7256, %v7256
  %v7273 = vpack.c.bf16 %v7257, %v7257
  %v7274 = vpack.c.bf16 %v7258, %v7258
  %v7275 = vpack.c.bf16 %v7259, %v7259
  %v7276 = vpack.c.bf16 %v7260, %v7260
  %7293 = vrot.lane.b32.xlu0 %v7261, 64
  %v7294 = vpop.permute.xlu0 %7293
  %7295 = vrot.lane.b32.xlu0 %v7262, 64
  %v7296 = vpop.permute.xlu0 %7295
  %7297 = vrot.lane.b32.xlu0 %v7263, 64
  %v7298 = vpop.permute.xlu0 %7297
  %7299 = vrot.lane.b32.xlu0 %v7264, 64
  %v7300 = vpop.permute.xlu0 %7299
  %7301 = vrot.lane.b32.xlu0 %v7265, 64
  %v7302 = vpop.permute.xlu0 %7301
  %7303 = vrot.lane.b32.xlu0 %v7266, 64
  %v7304 = vpop.permute.xlu0 %7303
  %7305 = vrot.lane.b32.xlu0 %v7267, 64
  %v7306 = vpop.permute.xlu0 %7305
  %7307 = vrot.lane.b32.xlu0 %v7268, 64
  %v7308 = vpop.permute.xlu0 %7307
  %7309 = vrot.lane.b32.xlu0 %v7269, 64
  %v7310 = vpop.permute.xlu0 %7309
  %7311 = vrot.lane.b32.xlu0 %v7270, 64
  %v7312 = vpop.permute.xlu0 %7311
  %7313 = vrot.lane.b32.xlu0 %v7271, 64
  %v7314 = vpop.permute.xlu0 %7313
  %7315 = vrot.lane.b32.xlu0 %v7272, 64
  %v7316 = vpop.permute.xlu0 %7315
  %7317 = vrot.lane.b32.xlu0 %v7273, 64
  %v7318 = vpop.permute.xlu0 %7317
  %7319 = vrot.lane.b32.xlu0 %v7274, 64
  %v7320 = vpop.permute.xlu0 %7319
  %7321 = vrot.lane.b32.xlu0 %v7275, 64
  %v7322 = vpop.permute.xlu0 %7321
  %7323 = vrot.lane.b32.xlu0 %v7276, 64
  %v7324 = vpop.permute.xlu0 %7323
  %vm7341 = vcmask 1043968
  %7342 = vst.msk [vmem:[#allocation2] sm:$0xf] %vm7341, %v7294
  %7343 = vst.msk [vmem:[#allocation2 + $0x14] sm:$0xf] %vm7341, %v7296
  %7344 = vst.msk [vmem:[#allocation2 + $0x28] sm:$0xf] %vm7341, %v7298
  %7345 = vst.msk [vmem:[#allocation2 + $0x3c] sm:$0xf] %vm7341, %v7300
  %7346 = vst.msk [vmem:[#allocation2 + $0x50] sm:$0xf] %vm7341, %v7302
  %7347 = vst.msk [vmem:[#allocation2 + $0x64] sm:$0xf] %vm7341, %v7304
  %7348 = vst.msk [vmem:[#allocation2 + $0x78] sm:$0xf] %vm7341, %v7306
  %7349 = vst.msk [vmem:[#allocation2 + $0x8c] sm:$0xf] %vm7341, %v7308
  %7350 = vst.msk [vmem:[#allocation2 + $0xa0] sm:$0xf] %vm7341, %v7310
  %7351 = vst.msk [vmem:[#allocation2 + $0xb4] sm:$0xf] %vm7341, %v7312
  %7352 = vst.msk [vmem:[#allocation2 + $0xc8] sm:$0xf] %vm7341, %v7314
  %7353 = vst.msk [vmem:[#allocation2 + $0xdc] sm:$0xf] %vm7341, %v7316
  %7354 = vst.msk [vmem:[#allocation2 + $0xf0] sm:$0xf] %vm7341, %v7318
  %7355 = vst.msk [vmem:[#allocation2 + $0x104] sm:$0xf] %vm7341, %v7320
  %7356 = vst.msk [vmem:[#allocation2 + $0x118] sm:$0xf] %vm7341, %v7322
  %7357 = vst.msk [vmem:[#allocation2 + $0x12c] sm:$0xf] %vm7341, %v7324
  %v7358 = vrot.slane %v7097, 1
  %v7360 = vrot.slane %v7082, 1
  %v7361 = vrot.slane %v7083, 1
  %v7362 = vsel %vm340, %v7360, %v7361
  %v7363 = vrot.slane %v7084, 1
  %v7364 = vsel %vm340, %v7361, %v7363
  %v7365 = vrot.slane %v7085, 1
  %v7366 = vsel %vm340, %v7363, %v7365
  %v7367 = vrot.slane %v7086, 1
  %v7368 = vsel %vm340, %v7365, %v7367
  %v7369 = vrot.slane %v7087, 1
  %v7370 = vsel %vm340, %v7367, %v7369
  %v7371 = vrot.slane %v7088, 1
  %v7372 = vsel %vm340, %v7369, %v7371
  %v7373 = vrot.slane %v7089, 1
  %v7374 = vsel %vm340, %v7371, %v7373
  %v7375 = vrot.slane %v7090, 1
  %v7376 = vsel %vm340, %v7373, %v7375
  %v7377 = vrot.slane %v7091, 1
  %v7378 = vsel %vm340, %v7375, %v7377
  %v7379 = vrot.slane %v7092, 1
  %v7380 = vsel %vm340, %v7377, %v7379
  %v7381 = vrot.slane %v7093, 1
  %v7382 = vsel %vm340, %v7379, %v7381
  %v7383 = vrot.slane %v7094, 1
  %v7384 = vsel %vm340, %v7381, %v7383
  %v7385 = vrot.slane %v7095, 1
  %v7386 = vsel %vm340, %v7383, %v7385
  %v7387 = vrot.slane %v7096, 1
  %v7388 = vsel %vm340, %v7385, %v7387
  %v7389 = vsel %vm340, %v7387, %v7358
  %v7406 = vsel %vm340, %v7358, %v7360
  %s7407 = scalar_lea.vmem %s3, 256
  %v7408 = vld [vmem:[%s7407] sm:$0xff]
  %v7409 = vld [vmem:[%s7407 + $0x8] sm:$0xff]
  %v7410 = vld [vmem:[%s7407 + $0x10] sm:$0xff]
  %v7411 = vld [vmem:[%s7407 + $0x18] sm:$0xff]
  %v7412 = vld [vmem:[%s7407 + $0x20] sm:$0xff]
  %v7413 = vld [vmem:[%s7407 + $0x28] sm:$0xff]
  %v7414 = vld [vmem:[%s7407 + $0x30] sm:$0xff]
  %v7415 = vld [vmem:[%s7407 + $0x38] sm:$0xff]
  %v7416 = vld [vmem:[%s7407 + $0x40] sm:$0xff]
  %v7417 = vld [vmem:[%s7407 + $0x48] sm:$0xff]
  %v7418 = vld [vmem:[%s7407 + $0x50] sm:$0xff]
  %v7419 = vld [vmem:[%s7407 + $0x58] sm:$0xff]
  %v7420 = vld [vmem:[%s7407 + $0x60] sm:$0xff]
  %v7421 = vld [vmem:[%s7407 + $0x68] sm:$0xff]
  %v7422 = vld [vmem:[%s7407 + $0x70] sm:$0xff]
  %v7423 = vld [vmem:[%s7407 + $0x78] sm:$0xff]
  %v7424 = vmul.f32 %v7406, %v7408
  %v7425 = vmul.f32 %v7362, %v7409
  %v7426 = vmul.f32 %v7364, %v7410
  %v7427 = vmul.f32 %v7366, %v7411
  %v7428 = vmul.f32 %v7368, %v7412
  %v7429 = vmul.f32 %v7370, %v7413
  %v7430 = vmul.f32 %v7372, %v7414
  %v7431 = vmul.f32 %v7374, %v7415
  %v7432 = vmul.f32 %v7376, %v7416
  %v7433 = vmul.f32 %v7378, %v7417
  %v7434 = vmul.f32 %v7380, %v7418
  %v7435 = vmul.f32 %v7382, %v7419
  %v7436 = vmul.f32 %v7384, %v7420
  %v7437 = vmul.f32 %v7386, %v7421
  %v7438 = vmul.f32 %v7388, %v7422
  %v7439 = vmul.f32 %v7389, %v7423
  %v7440 = vpack.c.bf16 %v7424, %v7424
  %v7441 = vpack.c.bf16 %v7425, %v7425
  %v7442 = vpack.c.bf16 %v7426, %v7426
  %v7443 = vpack.c.bf16 %v7427, %v7427
  %v7444 = vpack.c.bf16 %v7428, %v7428
  %v7445 = vpack.c.bf16 %v7429, %v7429
  %v7446 = vpack.c.bf16 %v7430, %v7430
  %v7447 = vpack.c.bf16 %v7431, %v7431
  %v7448 = vpack.c.bf16 %v7432, %v7432
  %v7449 = vpack.c.bf16 %v7433, %v7433
  %v7450 = vpack.c.bf16 %v7434, %v7434
  %v7451 = vpack.c.bf16 %v7435, %v7435
  %v7452 = vpack.c.bf16 %v7436, %v7436
  %v7453 = vpack.c.bf16 %v7437, %v7437
  %v7454 = vpack.c.bf16 %v7438, %v7438
  %v7455 = vpack.c.bf16 %v7439, %v7439
  %7456 = vst.msk [vmem:[#allocation2 + $0x4] sm:$0xf] %vm7211, %v7440
  %7457 = vst.msk [vmem:[#allocation2 + $0x18] sm:$0xf] %vm7211, %v7441
  %7458 = vst.msk [vmem:[#allocation2 + $0x2c] sm:$0xf] %vm7211, %v7442
  %7459 = vst.msk [vmem:[#allocation2 + $0x40] sm:$0xf] %vm7211, %v7443
  %7460 = vst.msk [vmem:[#allocation2 + $0x54] sm:$0xf] %vm7211, %v7444
  %7461 = vst.msk [vmem:[#allocation2 + $0x68] sm:$0xf] %vm7211, %v7445
  %7462 = vst.msk [vmem:[#allocation2 + $0x7c] sm:$0xf] %vm7211, %v7446
  %7463 = vst.msk [vmem:[#allocation2 + $0x90] sm:$0xf] %vm7211, %v7447
  %7464 = vst.msk [vmem:[#allocation2 + $0xa4] sm:$0xf] %vm7211, %v7448
  %7465 = vst.msk [vmem:[#allocation2 + $0xb8] sm:$0xf] %vm7211, %v7449
  %7466 = vst.msk [vmem:[#allocation2 + $0xcc] sm:$0xf] %vm7211, %v7450
  %7467 = vst.msk [vmem:[#allocation2 + $0xe0] sm:$0xf] %vm7211, %v7451
  %7468 = vst.msk [vmem:[#allocation2 + $0xf4] sm:$0xf] %vm7211, %v7452
  %7469 = vst.msk [vmem:[#allocation2 + $0x108] sm:$0xf] %vm7211, %v7453
  %7470 = vst.msk [vmem:[#allocation2 + $0x11c] sm:$0xf] %vm7211, %v7454
  %7471 = vst.msk [vmem:[#allocation2 + $0x130] sm:$0xf] %vm7211, %v7455
  %s7472 = scalar_lea.vmem %s3, 384
  %v7473 = vld [vmem:[%s7472] sm:$0xff]
  %v7474 = vld [vmem:[%s7472 + $0x8] sm:$0xff]
  %v7475 = vld [vmem:[%s7472 + $0x10] sm:$0xff]
  %v7476 = vld [vmem:[%s7472 + $0x18] sm:$0xff]
  %v7477 = vld [vmem:[%s7472 + $0x20] sm:$0xff]
  %v7478 = vld [vmem:[%s7472 + $0x28] sm:$0xff]
  %v7479 = vld [vmem:[%s7472 + $0x30] sm:$0xff]
  %v7480 = vld [vmem:[%s7472 + $0x38] sm:$0xff]
  %v7481 = vld [vmem:[%s7472 + $0x40] sm:$0xff]
  %v7482 = vld [vmem:[%s7472 + $0x48] sm:$0xff]
  %v7483 = vld [vmem:[%s7472 + $0x50] sm:$0xff]
  %v7484 = vld [vmem:[%s7472 + $0x58] sm:$0xff]
  %v7485 = vld [vmem:[%s7472 + $0x60] sm:$0xff]
  %v7486 = vld [vmem:[%s7472 + $0x68] sm:$0xff]
  %v7487 = vld [vmem:[%s7472 + $0x70] sm:$0xff]
  %v7488 = vld [vmem:[%s7472 + $0x78] sm:$0xff]
  %v7489 = vmul.f32 %v7162, %v7473
  %v7490 = vmul.f32 %v7121, %v7474
  %v7491 = vmul.f32 %v7123, %v7475
  %v7492 = vmul.f32 %v7125, %v7476
  %v7493 = vmul.f32 %v7127, %v7477
  %v7494 = vmul.f32 %v7129, %v7478
  %v7495 = vmul.f32 %v7131, %v7479
  %v7496 = vmul.f32 %v7133, %v7480
  %v7497 = vmul.f32 %v7135, %v7481
  %v7498 = vmul.f32 %v7137, %v7482
  %v7499 = vmul.f32 %v7139, %v7483
  %v7500 = vmul.f32 %v7141, %v7484
  %v7501 = vmul.f32 %v7143, %v7485
  %v7502 = vmul.f32 %v7145, %v7486
  %v7503 = vmul.f32 %v7146, %v7487
  %v7504 = vmul.f32 %v7102, %v7488
  %v7505 = vpack.c.bf16 %v7489, %v7489
  %v7506 = vpack.c.bf16 %v7490, %v7490
  %v7507 = vpack.c.bf16 %v7491, %v7491
  %v7508 = vpack.c.bf16 %v7492, %v7492
  %v7509 = vpack.c.bf16 %v7493, %v7493
  %v7510 = vpack.c.bf16 %v7494, %v7494
  %v7511 = vpack.c.bf16 %v7495, %v7495
  %v7512 = vpack.c.bf16 %v7496, %v7496
  %v7513 = vpack.c.bf16 %v7497, %v7497
  %v7514 = vpack.c.bf16 %v7498, %v7498
  %v7515 = vpack.c.bf16 %v7499, %v7499
  %v7516 = vpack.c.bf16 %v7500, %v7500
  %v7517 = vpack.c.bf16 %v7501, %v7501
  %v7518 = vpack.c.bf16 %v7502, %v7502
  %v7519 = vpack.c.bf16 %v7503, %v7503
  %v7520 = vpack.c.bf16 %v7504, %v7504
  %7537 = vrot.lane.b32.xlu0 %v7505, 64
  %v7538 = vpop.permute.xlu0 %7537
  %7539 = vrot.lane.b32.xlu0 %v7506, 64
  %v7540 = vpop.permute.xlu0 %7539
  %7541 = vrot.lane.b32.xlu0 %v7507, 64
  %v7542 = vpop.permute.xlu0 %7541
  %7543 = vrot.lane.b32.xlu0 %v7508, 64
  %v7544 = vpop.permute.xlu0 %7543
  %7545 = vrot.lane.b32.xlu0 %v7509, 64
  %v7546 = vpop.permute.xlu0 %7545
  %7547 = vrot.lane.b32.xlu0 %v7510, 64
  %v7548 = vpop.permute.xlu0 %7547
  %7549 = vrot.lane.b32.xlu0 %v7511, 64
  %v7550 = vpop.permute.xlu0 %7549
  %7551 = vrot.lane.b32.xlu0 %v7512, 64
  %v7552 = vpop.permute.xlu0 %7551
  %7553 = vrot.lane.b32.xlu0 %v7513, 64
  %v7554 = vpop.permute.xlu0 %7553
  %7555 = vrot.lane.b32.xlu0 %v7514, 64
  %v7556 = vpop.permute.xlu0 %7555
  %7557 = vrot.lane.b32.xlu0 %v7515, 64
  %v7558 = vpop.permute.xlu0 %7557
  %7559 = vrot.lane.b32.xlu0 %v7516, 64
  %v7560 = vpop.permute.xlu0 %7559
  %7561 = vrot.lane.b32.xlu0 %v7517, 64
  %v7562 = vpop.permute.xlu0 %7561
  %7563 = vrot.lane.b32.xlu0 %v7518, 64
  %v7564 = vpop.permute.xlu0 %7563
  %7565 = vrot.lane.b32.xlu0 %v7519, 64
  %v7566 = vpop.permute.xlu0 %7565
  %7567 = vrot.lane.b32.xlu0 %v7520, 64
  %v7568 = vpop.permute.xlu0 %7567
  %7585 = vst.msk [vmem:[#allocation2 + $0x4] sm:$0xf] %vm7341, %v7538
  %7586 = vst.msk [vmem:[#allocation2 + $0x18] sm:$0xf] %vm7341, %v7540
  %7587 = vst.msk [vmem:[#allocation2 + $0x2c] sm:$0xf] %vm7341, %v7542
  %7588 = vst.msk [vmem:[#allocation2 + $0x40] sm:$0xf] %vm7341, %v7544
  %7589 = vst.msk [vmem:[#allocation2 + $0x54] sm:$0xf] %vm7341, %v7546
  %7590 = vst.msk [vmem:[#allocation2 + $0x68] sm:$0xf] %vm7341, %v7548
  %7591 = vst.msk [vmem:[#allocation2 + $0x7c] sm:$0xf] %vm7341, %v7550
  %7592 = vst.msk [vmem:[#allocation2 + $0x90] sm:$0xf] %vm7341, %v7552
  %7593 = vst.msk [vmem:[#allocation2 + $0xa4] sm:$0xf] %vm7341, %v7554
  %7594 = vst.msk [vmem:[#allocation2 + $0xb8] sm:$0xf] %vm7341, %v7556
  %7595 = vst.msk [vmem:[#allocation2 + $0xcc] sm:$0xf] %vm7341, %v7558
  %7596 = vst.msk [vmem:[#allocation2 + $0xe0] sm:$0xf] %vm7341, %v7560
  %7597 = vst.msk [vmem:[#allocation2 + $0xf4] sm:$0xf] %vm7341, %v7562
  %7598 = vst.msk [vmem:[#allocation2 + $0x108] sm:$0xf] %vm7341, %v7564
  %7599 = vst.msk [vmem:[#allocation2 + $0x11c] sm:$0xf] %vm7341, %v7566
  %7600 = vst.msk [vmem:[#allocation2 + $0x130] sm:$0xf] %vm7341, %v7568
  %v7601 = vpack.c.bf16 %v7082, %v7082
  %v7602 = vpack.c.bf16 %v7083, %v7083
  %v7603 = vpack.c.bf16 %v7084, %v7084
  %v7604 = vpack.c.bf16 %v7085, %v7085
  %v7605 = vpack.c.bf16 %v7086, %v7086
  %v7606 = vpack.c.bf16 %v7087, %v7087
  %v7607 = vpack.c.bf16 %v7088, %v7088
  %v7608 = vpack.c.bf16 %v7089, %v7089
  %v7609 = vpack.c.bf16 %v7090, %v7090
  %v7610 = vpack.c.bf16 %v7091, %v7091
  %v7611 = vpack.c.bf16 %v7092, %v7092
  %v7612 = vpack.c.bf16 %v7093, %v7093
  %v7613 = vpack.c.bf16 %v7094, %v7094
  %v7614 = vpack.c.bf16 %v7095, %v7095
  %v7615 = vpack.c.bf16 %v7096, %v7096
  %v7616 = vpack.c.bf16 %v7097, %v7097
  %7617 = vst.msk [vmem:[#allocation2 + $0x8] sm:$0xf] %vm7211, %v7601
  %7618 = vst.msk [vmem:[#allocation2 + $0x1c] sm:$0xf] %vm7211, %v7602
  %7619 = vst.msk [vmem:[#allocation2 + $0x30] sm:$0xf] %vm7211, %v7603
  %7620 = vst.msk [vmem:[#allocation2 + $0x44] sm:$0xf] %vm7211, %v7604
  %7621 = vst.msk [vmem:[#allocation2 + $0x58] sm:$0xf] %vm7211, %v7605
  %7622 = vst.msk [vmem:[#allocation2 + $0x6c] sm:$0xf] %vm7211, %v7606
  %7623 = vst.msk [vmem:[#allocation2 + $0x80] sm:$0xf] %vm7211, %v7607
  %7624 = vst.msk [vmem:[#allocation2 + $0x94] sm:$0xf] %vm7211, %v7608
  %7625 = vst.msk [vmem:[#allocation2 + $0xa8] sm:$0xf] %vm7211, %v7609
  %7626 = vst.msk [vmem:[#allocation2 + $0xbc] sm:$0xf] %vm7211, %v7610
  %7627 = vst.msk [vmem:[#allocation2 + $0xd0] sm:$0xf] %vm7211, %v7611
  %7628 = vst.msk [vmem:[#allocation2 + $0xe4] sm:$0xf] %vm7211, %v7612
  %7629 = vst.msk [vmem:[#allocation2 + $0xf8] sm:$0xf] %vm7211, %v7613
  %7630 = vst.msk [vmem:[#allocation2 + $0x10c] sm:$0xf] %vm7211, %v7614
  %7631 = vst.msk [vmem:[#allocation2 + $0x120] sm:$0xf] %vm7211, %v7615
  %7632 = vst.msk [vmem:[#allocation2 + $0x134] sm:$0xf] %vm7211, %v7616
  %s7633 = scalar_lea.vmem %s3, 640
  %v7634 = vld [vmem:[%s7633] sm:$0xff]
  %v7635 = vld [vmem:[%s7633 + $0x8] sm:$0xff]
  %v7636 = vld [vmem:[%s7633 + $0x10] sm:$0xff]
  %v7637 = vld [vmem:[%s7633 + $0x18] sm:$0xff]
  %v7638 = vld [vmem:[%s7633 + $0x20] sm:$0xff]
  %v7639 = vld [vmem:[%s7633 + $0x28] sm:$0xff]
  %v7640 = vld [vmem:[%s7633 + $0x30] sm:$0xff]
  %v7641 = vld [vmem:[%s7633 + $0x38] sm:$0xff]
  %v7642 = vld [vmem:[%s7633 + $0x40] sm:$0xff]
  %v7643 = vld [vmem:[%s7633 + $0x48] sm:$0xff]
  %v7644 = vld [vmem:[%s7633 + $0x50] sm:$0xff]
  %v7645 = vld [vmem:[%s7633 + $0x58] sm:$0xff]
  %v7646 = vld [vmem:[%s7633 + $0x60] sm:$0xff]
  %v7647 = vld [vmem:[%s7633 + $0x68] sm:$0xff]
  %v7648 = vld [vmem:[%s7633 + $0x70] sm:$0xff]
  %v7649 = vld [vmem:[%s7633 + $0x78] sm:$0xff]
  %v7650 = vmul.f32 %v7362, %v7634
  %v7651 = vmul.f32 %v7364, %v7635
  %v7652 = vmul.f32 %v7366, %v7636
  %v7653 = vmul.f32 %v7368, %v7637
  %v7654 = vmul.f32 %v7370, %v7638
  %v7655 = vmul.f32 %v7372, %v7639
  %v7656 = vmul.f32 %v7374, %v7640
  %v7657 = vmul.f32 %v7376, %v7641
  %v7658 = vmul.f32 %v7378, %v7642
  %v7659 = vmul.f32 %v7380, %v7643
  %v7660 = vmul.f32 %v7382, %v7644
  %v7661 = vmul.f32 %v7384, %v7645
  %v7662 = vmul.f32 %v7386, %v7646
  %v7663 = vmul.f32 %v7388, %v7647
  %v7664 = vmul.f32 %v7389, %v7648
  %v7665 = vmul.f32 %v7406, %v7649
  %v7666 = vpack.c.bf16 %v7650, %v7650
  %v7667 = vpack.c.bf16 %v7651, %v7651
  %v7668 = vpack.c.bf16 %v7652, %v7652
  %v7669 = vpack.c.bf16 %v7653, %v7653
  %v7670 = vpack.c.bf16 %v7654, %v7654
  %v7671 = vpack.c.bf16 %v7655, %v7655
  %v7672 = vpack.c.bf16 %v7656, %v7656
  %v7673 = vpack.c.bf16 %v7657, %v7657
  %v7674 = vpack.c.bf16 %v7658, %v7658
  %v7675 = vpack.c.bf16 %v7659, %v7659
  %v7676 = vpack.c.bf16 %v7660, %v7660
  %v7677 = vpack.c.bf16 %v7661, %v7661
  %v7678 = vpack.c.bf16 %v7662, %v7662
  %v7679 = vpack.c.bf16 %v7663, %v7663
  %v7680 = vpack.c.bf16 %v7664, %v7664
  %v7681 = vpack.c.bf16 %v7665, %v7665
  %7698 = vrot.lane.b32.xlu0 %v7666, 64
  %v7699 = vpop.permute.xlu0 %7698
  %7700 = vrot.lane.b32.xlu0 %v7667, 64
  %v7701 = vpop.permute.xlu0 %7700
  %7702 = vrot.lane.b32.xlu0 %v7668, 64
  %v7703 = vpop.permute.xlu0 %7702
  %7704 = vrot.lane.b32.xlu0 %v7669, 64
  %v7705 = vpop.permute.xlu0 %7704
  %7706 = vrot.lane.b32.xlu0 %v7670, 64
  %v7707 = vpop.permute.xlu0 %7706
  %7708 = vrot.lane.b32.xlu0 %v7671, 64
  %v7709 = vpop.permute.xlu0 %7708
  %7710 = vrot.lane.b32.xlu0 %v7672, 64
  %v7711 = vpop.permute.xlu0 %7710
  %7712 = vrot.lane.b32.xlu0 %v7673, 64
  %v7713 = vpop.permute.xlu0 %7712
  %7714 = vrot.lane.b32.xlu0 %v7674, 64
  %v7715 = vpop.permute.xlu0 %7714
  %7716 = vrot.lane.b32.xlu0 %v7675, 64
  %v7717 = vpop.permute.xlu0 %7716
  %7718 = vrot.lane.b32.xlu0 %v7676, 64
  %v7719 = vpop.permute.xlu0 %7718
  %7720 = vrot.lane.b32.xlu0 %v7677, 64
  %v7721 = vpop.permute.xlu0 %7720
  %7722 = vrot.lane.b32.xlu0 %v7678, 64
  %v7723 = vpop.permute.xlu0 %7722
  %7724 = vrot.lane.b32.xlu0 %v7679, 64
  %v7725 = vpop.permute.xlu0 %7724
  %7726 = vrot.lane.b32.xlu0 %v7680, 64
  %v7727 = vpop.permute.xlu0 %7726
  %7728 = vrot.lane.b32.xlu0 %v7681, 64
  %v7729 = vpop.permute.xlu0 %7728
  %7746 = vst.msk [vmem:[#allocation2 + $0x8] sm:$0xf] %vm7341, %v7699
  %7747 = vst.msk [vmem:[#allocation2 + $0x1c] sm:$0xf] %vm7341, %v7701
  %7748 = vst.msk [vmem:[#allocation2 + $0x30] sm:$0xf] %vm7341, %v7703
  %7749 = vst.msk [vmem:[#allocation2 + $0x44] sm:$0xf] %vm7341, %v7705
  %7750 = vst.msk [vmem:[#allocation2 + $0x58] sm:$0xf] %vm7341, %v7707
  %7751 = vst.msk [vmem:[#allocation2 + $0x6c] sm:$0xf] %vm7341, %v7709
  %7752 = vst.msk [vmem:[#allocation2 + $0x80] sm:$0xf] %vm7341, %v7711
  %7753 = vst.msk [vmem:[#allocation2 + $0x94] sm:$0xf] %vm7341, %v7713
  %7754 = vst.msk [vmem:[#allocation2 + $0xa8] sm:$0xf] %vm7341, %v7715
  %7755 = vst.msk [vmem:[#allocation2 + $0xbc] sm:$0xf] %vm7341, %v7717
  %7756 = vst.msk [vmem:[#allocation2 + $0xd0] sm:$0xf] %vm7341, %v7719
  %7757 = vst.msk [vmem:[#allocation2 + $0xe4] sm:$0xf] %vm7341, %v7721
  %7758 = vst.msk [vmem:[#allocation2 + $0xf8] sm:$0xf] %vm7341, %v7723
  %7759 = vst.msk [vmem:[#allocation2 + $0x10c] sm:$0xf] %vm7341, %v7725
  %7760 = vst.msk [vmem:[#allocation2 + $0x120] sm:$0xf] %vm7341, %v7727
  %7761 = vst.msk [vmem:[#allocation2 + $0x134] sm:$0xf] %vm7341, %v7729
  %s7762 = scalar_lea.vmem %s3, 768
  %v7763 = vld [vmem:[%s7762] sm:$0xff]
  %v7764 = vld [vmem:[%s7762 + $0x8] sm:$0xff]
  %v7765 = vld [vmem:[%s7762 + $0x10] sm:$0xff]
  %v7766 = vld [vmem:[%s7762 + $0x18] sm:$0xff]
  %v7767 = vld [vmem:[%s7762 + $0x20] sm:$0xff]
  %v7768 = vld [vmem:[%s7762 + $0x28] sm:$0xff]
  %v7769 = vld [vmem:[%s7762 + $0x30] sm:$0xff]
  %v7770 = vld [vmem:[%s7762 + $0x38] sm:$0xff]
  %v7771 = vld [vmem:[%s7762 + $0x40] sm:$0xff]
  %v7772 = vld [vmem:[%s7762 + $0x48] sm:$0xff]
  %v7773 = vld [vmem:[%s7762 + $0x50] sm:$0xff]
  %v7774 = vld [vmem:[%s7762 + $0x58] sm:$0xff]
  %v7775 = vld [vmem:[%s7762 + $0x60] sm:$0xff]
  %v7776 = vld [vmem:[%s7762 + $0x68] sm:$0xff]
  %v7777 = vld [vmem:[%s7762 + $0x70] sm:$0xff]
  %v7778 = vld [vmem:[%s7762 + $0x78] sm:$0xff]
  %v7779 = vmul.f32 %v7121, %v7763
  %v7780 = vmul.f32 %v7123, %v7764
  %v7781 = vmul.f32 %v7125, %v7765
  %v7782 = vmul.f32 %v7127, %v7766
  %v7783 = vmul.f32 %v7129, %v7767
  %v7784 = vmul.f32 %v7131, %v7768
  %v7785 = vmul.f32 %v7133, %v7769
  %v7786 = vmul.f32 %v7135, %v7770
  %v7787 = vmul.f32 %v7137, %v7771
  %v7788 = vmul.f32 %v7139, %v7772
  %v7789 = vmul.f32 %v7141, %v7773
  %v7790 = vmul.f32 %v7143, %v7774
  %v7791 = vmul.f32 %v7145, %v7775
  %v7792 = vmul.f32 %v7146, %v7776
  %v7793 = vmul.f32 %v7102, %v7777
  %v7794 = vmul.f32 %v7162, %v7778
  %v7795 = vpack.c.bf16 %v7779, %v7779
  %v7796 = vpack.c.bf16 %v7780, %v7780
  %v7797 = vpack.c.bf16 %v7781, %v7781
  %v7798 = vpack.c.bf16 %v7782, %v7782
  %v7799 = vpack.c.bf16 %v7783, %v7783
  %v7800 = vpack.c.bf16 %v7784, %v7784
  %v7801 = vpack.c.bf16 %v7785, %v7785
  %v7802 = vpack.c.bf16 %v7786, %v7786
  %v7803 = vpack.c.bf16 %v7787, %v7787
  %v7804 = vpack.c.bf16 %v7788, %v7788
  %v7805 = vpack.c.bf16 %v7789, %v7789
  %v7806 = vpack.c.bf16 %v7790, %v7790
  %v7807 = vpack.c.bf16 %v7791, %v7791
  %v7808 = vpack.c.bf16 %v7792, %v7792
  %v7809 = vpack.c.bf16 %v7793, %v7793
  %v7810 = vpack.c.bf16 %v7794, %v7794
  %7811 = vst.msk [vmem:[#allocation2 + $0xc] sm:$0xf] %vm7211, %v7795
  %7812 = vst.msk [vmem:[#allocation2 + $0x20] sm:$0xf] %vm7211, %v7796
  %7813 = vst.msk [vmem:[#allocation2 + $0x34] sm:$0xf] %vm7211, %v7797
  %7814 = vst.msk [vmem:[#allocation2 + $0x48] sm:$0xf] %vm7211, %v7798
  %7815 = vst.msk [vmem:[#allocation2 + $0x5c] sm:$0xf] %vm7211, %v7799
  %7816 = vst.msk [vmem:[#allocation2 + $0x70] sm:$0xf] %vm7211, %v7800
  %7817 = vst.msk [vmem:[#allocation2 + $0x84] sm:$0xf] %vm7211, %v7801
  %7818 = vst.msk [vmem:[#allocation2 + $0x98] sm:$0xf] %vm7211, %v7802
  %7819 = vst.msk [vmem:[#allocation2 + $0xac] sm:$0xf] %vm7211, %v7803
  %7820 = vst.msk [vmem:[#allocation2 + $0xc0] sm:$0xf] %vm7211, %v7804
  %7821 = vst.msk [vmem:[#allocation2 + $0xd4] sm:$0xf] %vm7211, %v7805
  %7822 = vst.msk [vmem:[#allocation2 + $0xe8] sm:$0xf] %vm7211, %v7806
  %7823 = vst.msk [vmem:[#allocation2 + $0xfc] sm:$0xf] %vm7211, %v7807
  %7824 = vst.msk [vmem:[#allocation2 + $0x110] sm:$0xf] %vm7211, %v7808
  %7825 = vst.msk [vmem:[#allocation2 + $0x124] sm:$0xf] %vm7211, %v7809
  %7826 = vst.msk [vmem:[#allocation2 + $0x138] sm:$0xf] %vm7211, %v7810
  %s7827 = scalar_lea.vmem %s3, 896
  %v7828 = vld [vmem:[%s7827] sm:$0xff]
  %v7829 = vld [vmem:[%s7827 + $0x8] sm:$0xff]
  %v7830 = vld [vmem:[%s7827 + $0x10] sm:$0xff]
  %v7831 = vld [vmem:[%s7827 + $0x18] sm:$0xff]
  %v7832 = vld [vmem:[%s7827 + $0x20] sm:$0xff]
  %v7833 = vld [vmem:[%s7827 + $0x28] sm:$0xff]
  %v7834 = vld [vmem:[%s7827 + $0x30] sm:$0xff]
  %v7835 = vld [vmem:[%s7827 + $0x38] sm:$0xff]
  %v7836 = vld [vmem:[%s7827 + $0x40] sm:$0xff]
  %v7837 = vld [vmem:[%s7827 + $0x48] sm:$0xff]
  %v7838 = vld [vmem:[%s7827 + $0x50] sm:$0xff]
  %v7839 = vld [vmem:[%s7827 + $0x58] sm:$0xff]
  %v7840 = vld [vmem:[%s7827 + $0x60] sm:$0xff]
  %v7841 = vld [vmem:[%s7827 + $0x68] sm:$0xff]
  %v7842 = vld [vmem:[%s7827 + $0x70] sm:$0xff]
  %v7843 = vld [vmem:[%s7827 + $0x78] sm:$0xff]
  %v7844 = vmul.f32 %v7083, %v7828
  %v7845 = vmul.f32 %v7084, %v7829
  %v7846 = vmul.f32 %v7085, %v7830
  %v7847 = vmul.f32 %v7086, %v7831
  %v7848 = vmul.f32 %v7087, %v7832
  %v7849 = vmul.f32 %v7088, %v7833
  %v7850 = vmul.f32 %v7089, %v7834
  %v7851 = vmul.f32 %v7090, %v7835
  %v7852 = vmul.f32 %v7091, %v7836
  %v7853 = vmul.f32 %v7092, %v7837
  %v7854 = vmul.f32 %v7093, %v7838
  %v7855 = vmul.f32 %v7094, %v7839
  %v7856 = vmul.f32 %v7095, %v7840
  %v7857 = vmul.f32 %v7096, %v7841
  %v7858 = vmul.f32 %v7097, %v7842
  %v7859 = vmul.f32 %v7082, %v7843
  %v7860 = vpack.c.bf16 %v7844, %v7844
  %v7861 = vpack.c.bf16 %v7845, %v7845
  %v7862 = vpack.c.bf16 %v7846, %v7846
  %v7863 = vpack.c.bf16 %v7847, %v7847
  %v7864 = vpack.c.bf16 %v7848, %v7848
  %v7865 = vpack.c.bf16 %v7849, %v7849
  %v7866 = vpack.c.bf16 %v7850, %v7850
  %v7867 = vpack.c.bf16 %v7851, %v7851
  %v7868 = vpack.c.bf16 %v7852, %v7852
  %v7869 = vpack.c.bf16 %v7853, %v7853
  %v7870 = vpack.c.bf16 %v7854, %v7854
  %v7871 = vpack.c.bf16 %v7855, %v7855
  %v7872 = vpack.c.bf16 %v7856, %v7856
  %v7873 = vpack.c.bf16 %v7857, %v7857
  %v7874 = vpack.c.bf16 %v7858, %v7858
  %v7875 = vpack.c.bf16 %v7859, %v7859
  %7892 = vrot.lane.b32.xlu0 %v7860, 64
  %v7893 = vpop.permute.xlu0 %7892
  %7894 = vrot.lane.b32.xlu0 %v7861, 64
  %v7895 = vpop.permute.xlu0 %7894
  %7896 = vrot.lane.b32.xlu0 %v7862, 64
  %v7897 = vpop.permute.xlu0 %7896
  %7898 = vrot.lane.b32.xlu0 %v7863, 64
  %v7899 = vpop.permute.xlu0 %7898
  %7900 = vrot.lane.b32.xlu0 %v7864, 64
  %v7901 = vpop.permute.xlu0 %7900
  %7902 = vrot.lane.b32.xlu0 %v7865, 64
  %v7903 = vpop.permute.xlu0 %7902
  %7904 = vrot.lane.b32.xlu0 %v7866, 64
  %v7905 = vpop.permute.xlu0 %7904
  %7906 = vrot.lane.b32.xlu0 %v7867, 64
  %v7907 = vpop.permute.xlu0 %7906
  %7908 = vrot.lane.b32.xlu0 %v7868, 64
  %v7909 = vpop.permute.xlu0 %7908
  %7910 = vrot.lane.b32.xlu0 %v7869, 64
  %v7911 = vpop.permute.xlu0 %7910
  %7912 = vrot.lane.b32.xlu0 %v7870, 64
  %v7913 = vpop.permute.xlu0 %7912
  %7914 = vrot.lane.b32.xlu0 %v7871, 64
  %v7915 = vpop.permute.xlu0 %7914
  %7916 = vrot.lane.b32.xlu0 %v7872, 64
  %v7917 = vpop.permute.xlu0 %7916
  %7918 = vrot.lane.b32.xlu0 %v7873, 64
  %v7919 = vpop.permute.xlu0 %7918
  %7920 = vrot.lane.b32.xlu0 %v7874, 64
  %v7921 = vpop.permute.xlu0 %7920
  %7922 = vrot.lane.b32.xlu0 %v7875, 64
  %v7923 = vpop.permute.xlu0 %7922
  %7940 = vst.msk [vmem:[#allocation2 + $0xc] sm:$0xf] %vm7341, %v7893
  %7941 = vst.msk [vmem:[#allocation2 + $0x20] sm:$0xf] %vm7341, %v7895
  %7942 = vst.msk [vmem:[#allocation2 + $0x34] sm:$0xf] %vm7341, %v7897
  %7943 = vst.msk [vmem:[#allocation2 + $0x48] sm:$0xf] %vm7341, %v7899
  %7944 = vst.msk [vmem:[#allocation2 + $0x5c] sm:$0xf] %vm7341, %v7901
  %7945 = vst.msk [vmem:[#allocation2 + $0x70] sm:$0xf] %vm7341, %v7903
  %7946 = vst.msk [vmem:[#allocation2 + $0x84] sm:$0xf] %vm7341, %v7905
  %7947 = vst.msk [vmem:[#allocation2 + $0x98] sm:$0xf] %vm7341, %v7907
  %7948 = vst.msk [vmem:[#allocation2 + $0xac] sm:$0xf] %vm7341, %v7909
  %7949 = vst.msk [vmem:[#allocation2 + $0xc0] sm:$0xf] %vm7341, %v7911
  %7950 = vst.msk [vmem:[#allocation2 + $0xd4] sm:$0xf] %vm7341, %v7913
  %7951 = vst.msk [vmem:[#allocation2 + $0xe8] sm:$0xf] %vm7341, %v7915
  %7952 = vst.msk [vmem:[#allocation2 + $0xfc] sm:$0xf] %vm7341, %v7917
  %7953 = vst.msk [vmem:[#allocation2 + $0x110] sm:$0xf] %vm7341, %v7919
  %7954 = vst.msk [vmem:[#allocation2 + $0x124] sm:$0xf] %vm7341, %v7921
  %7955 = vst.msk [vmem:[#allocation2 + $0x138] sm:$0xf] %vm7341, %v7923
  %s7956 = scalar_lea.vmem %s3, 1024
  %v7957 = vld [vmem:[%s7956] sm:$0xff]
  %v7958 = vld [vmem:[%s7956 + $0x8] sm:$0xff]
  %v7959 = vld [vmem:[%s7956 + $0x10] sm:$0xff]
  %v7960 = vld [vmem:[%s7956 + $0x18] sm:$0xff]
  %v7961 = vld [vmem:[%s7956 + $0x20] sm:$0xff]
  %v7962 = vld [vmem:[%s7956 + $0x28] sm:$0xff]
  %v7963 = vld [vmem:[%s7956 + $0x30] sm:$0xff]
  %v7964 = vld [vmem:[%s7956 + $0x38] sm:$0xff]
  %v7965 = vld [vmem:[%s7956 + $0x40] sm:$0xff]
  %v7966 = vld [vmem:[%s7956 + $0x48] sm:$0xff]
  %v7967 = vld [vmem:[%s7956 + $0x50] sm:$0xff]
  %v7968 = vld [vmem:[%s7956 + $0x58] sm:$0xff]
  %v7969 = vld [vmem:[%s7956 + $0x60] sm:$0xff]
  %v7970 = vld [vmem:[%s7956 + $0x68] sm:$0xff]
  %v7971 = vld [vmem:[%s7956 + $0x70] sm:$0xff]
  %v7972 = vld [vmem:[%s7956 + $0x78] sm:$0xff]
  %v7973 = vmul.f32 %v7364, %v7957
  %v7974 = vmul.f32 %v7366, %v7958
  %v7975 = vmul.f32 %v7368, %v7959
  %v7976 = vmul.f32 %v7370, %v7960
  %v7977 = vmul.f32 %v7372, %v7961
  %v7978 = vmul.f32 %v7374, %v7962
  %v7979 = vmul.f32 %v7376, %v7963
  %v7980 = vmul.f32 %v7378, %v7964
  %v7981 = vmul.f32 %v7380, %v7965
  %v7982 = vmul.f32 %v7382, %v7966
  %v7983 = vmul.f32 %v7384, %v7967
  %v7984 = vmul.f32 %v7386, %v7968
  %v7985 = vmul.f32 %v7388, %v7969
  %v7986 = vmul.f32 %v7389, %v7970
  %v7987 = vmul.f32 %v7406, %v7971
  %v7988 = vmul.f32 %v7362, %v7972
  %v7989 = vpack.c.bf16 %v7973, %v7973
  %v7990 = vpack.c.bf16 %v7974, %v7974
  %v7991 = vpack.c.bf16 %v7975, %v7975
  %v7992 = vpack.c.bf16 %v7976, %v7976
  %v7993 = vpack.c.bf16 %v7977, %v7977
  %v7994 = vpack.c.bf16 %v7978, %v7978
  %v7995 = vpack.c.bf16 %v7979, %v7979
  %v7996 = vpack.c.bf16 %v7980, %v7980
  %v7997 = vpack.c.bf16 %v7981, %v7981
  %v7998 = vpack.c.bf16 %v7982, %v7982
  %v7999 = vpack.c.bf16 %v7983, %v7983
  %v8000 = vpack.c.bf16 %v7984, %v7984
  %v8001 = vpack.c.bf16 %v7985, %v7985
  %v8002 = vpack.c.bf16 %v7986, %v7986
  %v8003 = vpack.c.bf16 %v7987, %v7987
  %v8004 = vpack.c.bf16 %v7988, %v7988
  %8005 = vst.msk [vmem:[#allocation2 + $0x10] sm:$0xf] %vm7211, %v7989
  %8006 = vst.msk [vmem:[#allocation2 + $0x24] sm:$0xf] %vm7211, %v7990
  %8007 = vst.msk [vmem:[#allocation2 + $0x38] sm:$0xf] %vm7211, %v7991
  %8008 = vst.msk [vmem:[#allocation2 + $0x4c] sm:$0xf] %vm7211, %v7992
  %8009 = vst.msk [vmem:[#allocation2 + $0x60] sm:$0xf] %vm7211, %v7993
  %8010 = vst.msk [vmem:[#allocation2 + $0x74] sm:$0xf] %vm7211, %v7994
  %8011 = vst.msk [vmem:[#allocation2 + $0x88] sm:$0xf] %vm7211, %v7995
  %8012 = vst.msk [vmem:[#allocation2 + $0x9c] sm:$0xf] %vm7211, %v7996
  %8013 = vst.msk [vmem:[#allocation2 + $0xb0] sm:$0xf] %vm7211, %v7997
  %8014 = vst.msk [vmem:[#allocation2 + $0xc4] sm:$0xf] %vm7211, %v7998
  %8015 = vst.msk [vmem:[#allocation2 + $0xd8] sm:$0xf] %vm7211, %v7999
  %8016 = vst.msk [vmem:[#allocation2 + $0xec] sm:$0xf] %vm7211, %v8000
  %8017 = vst.msk [vmem:[#allocation2 + $0x100] sm:$0xf] %vm7211, %v8001
  %8018 = vst.msk [vmem:[#allocation2 + $0x114] sm:$0xf] %vm7211, %v8002
  %8019 = vst.msk [vmem:[#allocation2 + $0x128] sm:$0xf] %vm7211, %v8003
  %8020 = vst.msk [vmem:[#allocation2 + $0x13c] sm:$0xf] %vm7211, %v8004
  %v8021 = vld [vmem:[#allocation2] sm:$0xff]
  %v8022 = vld [vmem:[#allocation2 + $0x8] sm:$0xff]
  %v8023 = vld [vmem:[#allocation2 + $0x10] sm:$0xf]
  %v8024 = vld [vmem:[#allocation2 + $0x14] sm:$0xff]
  %v8025 = vld [vmem:[#allocation2 + $0x1c] sm:$0xff]
  %v8026 = vld [vmem:[#allocation2 + $0x24] sm:$0xf]
  %v8027 = vld [vmem:[#allocation2 + $0x28] sm:$0xff]
  %v8028 = vld [vmem:[#allocation2 + $0x30] sm:$0xff]
  %v8029 = vld [vmem:[#allocation2 + $0x38] sm:$0xf]
  %v8030 = vld [vmem:[#allocation2 + $0x3c] sm:$0xff]
  %v8031 = vld [vmem:[#allocation2 + $0x44] sm:$0xff]
  %v8032 = vld [vmem:[#allocation2 + $0x4c] sm:$0xf]
  %v8033 = vld [vmem:[#allocation2 + $0x50] sm:$0xff]
  %v8034 = vld [vmem:[#allocation2 + $0x58] sm:$0xff]
  %v8035 = vld [vmem:[#allocation2 + $0x60] sm:$0xf]
  %v8036 = vld [vmem:[#allocation2 + $0x64] sm:$0xff]
  %v8037 = vld [vmem:[#allocation2 + $0x6c] sm:$0xff]
  %v8038 = vld [vmem:[#allocation2 + $0x74] sm:$0xf]
  %v8039 = vld [vmem:[#allocation2 + $0x78] sm:$0xff]
  %v8040 = vld [vmem:[#allocation2 + $0x80] sm:$0xff]
  %v8041 = vld [vmem:[#allocation2 + $0x88] sm:$0xf]
  %v8042 = vld [vmem:[#allocation2 + $0x8c] sm:$0xff]
  %v8043 = vld [vmem:[#allocation2 + $0x94] sm:$0xff]
  %v8044 = vld [vmem:[#allocation2 + $0x9c] sm:$0xf]
  %v8045 = vld [vmem:[#allocation2 + $0xa0] sm:$0xff]
  %v8046 = vld [vmem:[#allocation2 + $0xa8] sm:$0xff]
  %v8047 = vld [vmem:[#allocation2 + $0xb0] sm:$0xf]
  %v8048 = vld [vmem:[#allocation2 + $0xb4] sm:$0xff]
  %v8049 = vld [vmem:[#allocation2 + $0xbc] sm:$0xff]
  %v8050 = vld [vmem:[#allocation2 + $0xc4] sm:$0xf]
  %v8051 = vld [vmem:[#allocation2 + $0xc8] sm:$0xff]
  %v8052 = vld [vmem:[#allocation2 + $0xd0] sm:$0xff]
  %v8053 = vld [vmem:[#allocation2 + $0xd8] sm:$0xf]
  %v8054 = vld [vmem:[#allocation2 + $0xdc] sm:$0xff]
  %v8055 = vld [vmem:[#allocation2 + $0xe4] sm:$0xff]
  %v8056 = vld [vmem:[#allocation2 + $0xec] sm:$0xf]
  %v8057 = vld [vmem:[#allocation2 + $0xf0] sm:$0xff]
  %v8058 = vld [vmem:[#allocation2 + $0xf8] sm:$0xff]
  %v8059 = vld [vmem:[#allocation2 + $0x100] sm:$0xf]
  %v8060 = vld [vmem:[#allocation2 + $0x104] sm:$0xff]
  %v8061 = vld [vmem:[#allocation2 + $0x10c] sm:$0xff]
  %v8062 = vld [vmem:[#allocation2 + $0x114] sm:$0xf]
  %v8063 = vld [vmem:[#allocation2 + $0x118] sm:$0xff]
  %v8064 = vld [vmem:[#allocation2 + $0x120] sm:$0xff]
  %v8065 = vld [vmem:[#allocation2 + $0x128] sm:$0xf]
  %v8066 = vld [vmem:[#allocation2 + $0x12c] sm:$0xff]
  %v8067 = vld [vmem:[#allocation2 + $0x134] sm:$0xff]
  %v8068 = vld [vmem:[#allocation2 + $0x13c] sm:$0xf]
  %v8069 = vld [vmem:[%s13] sm:$0xf]
  %v8070 = vld [vmem:[%s13 + $0x4] sm:$0xf]
  %v8071 = vld [vmem:[%s13 + $0x8] sm:$0xf]
  %v8072 = vld [vmem:[%s13 + $0xc] sm:$0xf]
  %v8073 = vld [vmem:[%s13 + $0x10] sm:$0xf]
  %v8074 = vld [vmem:[%s13 + $0x14] sm:$0xf]
  %v8075 = vld [vmem:[%s13 + $0x18] sm:$0xf]
  %v8076 = vld [vmem:[%s13 + $0x1c] sm:$0xf]
  %v8077 = vld [vmem:[%s13 + $0x20] sm:$0xf]
  %v8078 = vld [vmem:[%s13 + $0x24] sm:$0xf]
  %v8079 = vld [vmem:[%s13 + $0x28] sm:$0xf]
  %v8080 = vld [vmem:[%s13 + $0x2c] sm:$0xf]
  %v8081 = vld [vmem:[%s13 + $0x30] sm:$0xf]
  %v8082 = vld [vmem:[%s13 + $0x34] sm:$0xf]
  %v8083 = vld [vmem:[%s13 + $0x38] sm:$0xf]
  %v8084 = vld [vmem:[%s13 + $0x3c] sm:$0xf]
  %v8085 = vld [vmem:[%s13 + $0x40] sm:$0xf]
  %v8086 = vld [vmem:[%s13 + $0x44] sm:$0xf]
  %v8087 = vld [vmem:[%s13 + $0x48] sm:$0xf]
  %v8088 = vld [vmem:[%s13 + $0x4c] sm:$0xf]
  %v8089 = vld [vmem:[%s13 + $0x50] sm:$0xf]
  %v8090 = vld [vmem:[%s13 + $0x54] sm:$0xf]
  %v8091 = vld [vmem:[%s13 + $0x58] sm:$0xf]
  %v8092 = vld [vmem:[%s13 + $0x5c] sm:$0xf]
  %v8093 = vld [vmem:[%s13 + $0x60] sm:$0xf]
  %v8094 = vld [vmem:[%s13 + $0x64] sm:$0xf]
  %v8095 = vld [vmem:[%s13 + $0x68] sm:$0xf]
  %v8096 = vld [vmem:[%s13 + $0x6c] sm:$0xf]
  %v8097 = vld [vmem:[%s13 + $0x70] sm:$0xf]
  %v8098 = vld [vmem:[%s13 + $0x74] sm:$0xf]
  %v8099 = vld [vmem:[%s13 + $0x78] sm:$0xf]
  %v8100 = vld [vmem:[%s13 + $0x7c] sm:$0xf]
  %v8101 = vld [vmem:[%s13 + $0x80] sm:$0xf]
  %v8102 = vld [vmem:[%s13 + $0x84] sm:$0xf]
  %v8103 = vld [vmem:[%s13 + $0x88] sm:$0xf]
  %v8104 = vld [vmem:[%s13 + $0x8c] sm:$0xf]
  %v8105 = vld [vmem:[%s13 + $0x90] sm:$0xf]
  %v8106 = vld [vmem:[%s13 + $0x94] sm:$0xf]
  %v8107 = vld [vmem:[%s13 + $0x98] sm:$0xf]
  %v8108 = vld [vmem:[%s13 + $0x9c] sm:$0xf]
  %v8109 = vld [vmem:[%s13 + $0xa0] sm:$0xf]
  %v8110 = vld [vmem:[%s13 + $0xa4] sm:$0xf]
  %v8111 = vld [vmem:[%s13 + $0xa8] sm:$0xf]
  %v8112 = vld [vmem:[%s13 + $0xac] sm:$0xf]
  %v8113 = vld [vmem:[%s13 + $0xb0] sm:$0xf]
  %v8114 = vld [vmem:[%s13 + $0xb4] sm:$0xf]
  %v8115 = vld [vmem:[%s13 + $0xb8] sm:$0xf]
  %v8116 = vld [vmem:[%s13 + $0xbc] sm:$0xf]
  %v8117 = vld [vmem:[%s13 + $0xc0] sm:$0xf]
  %v8118 = vld [vmem:[%s13 + $0xc4] sm:$0xf]
  %v8119 = vld [vmem:[%s13 + $0xc8] sm:$0xf]
  %v8120 = vld [vmem:[%s13 + $0xcc] sm:$0xf]
  %v8121 = vld [vmem:[%s13 + $0xd0] sm:$0xf]
  %v8122 = vld [vmem:[%s13 + $0xd4] sm:$0xf]
  %v8123 = vld [vmem:[%s13 + $0xd8] sm:$0xf]
  %v8124 = vld [vmem:[%s13 + $0xdc] sm:$0xf]
  %v8125 = vld [vmem:[%s13 + $0xe0] sm:$0xf]
  %v8126 = vld [vmem:[%s13 + $0xe4] sm:$0xf]
  %v8127 = vld [vmem:[%s13 + $0xe8] sm:$0xf]
  %v8128 = vld [vmem:[%s13 + $0xec] sm:$0xf]
  %v8129 = vld [vmem:[%s13 + $0xf0] sm:$0xf]
  %v8130 = vld [vmem:[%s13 + $0xf4] sm:$0xf]
  %v8131 = vld [vmem:[%s13 + $0xf8] sm:$0xf]
  %v8132 = vld [vmem:[%s13 + $0xfc] sm:$0xf]
  %v8133 = vld [vmem:[%s13 + $0x100] sm:$0xf]
  %v8134 = vld [vmem:[%s13 + $0x104] sm:$0xf]
  %v8135 = vld [vmem:[%s13 + $0x108] sm:$0xf]
  %v8136 = vld [vmem:[%s13 + $0x10c] sm:$0xf]
  %v8137 = vld [vmem:[%s13 + $0x110] sm:$0xf]
  %v8138 = vld [vmem:[%s13 + $0x114] sm:$0xf]
  %v8139 = vld [vmem:[%s13 + $0x118] sm:$0xf]
  %v8140 = vld [vmem:[%s13 + $0x11c] sm:$0xf]
  %v8189 = vunpack.c.l.b16 %v8021
  %v8190 = vunpack.c.h.b16 %v8021
  %v8191 = vunpack.c.l.b16 %v8022
  %v8192 = vunpack.c.h.b16 %v8022
  %v8193 = vunpack.c.l.b16 %v8023
  %v8194 = vunpack.c.l.b16 %v8024
  %v8195 = vunpack.c.h.b16 %v8024
  %v8196 = vunpack.c.l.b16 %v8025
  %v8197 = vunpack.c.h.b16 %v8025
  %v8198 = vunpack.c.l.b16 %v8026
  %v8199 = vunpack.c.l.b16 %v8027
  %v8200 = vunpack.c.h.b16 %v8027
  %v8201 = vunpack.c.l.b16 %v8028
  %v8202 = vunpack.c.h.b16 %v8028
  %v8203 = vunpack.c.l.b16 %v8029
  %v8204 = vunpack.c.l.b16 %v8030
  %v8205 = vunpack.c.h.b16 %v8030
  %v8206 = vunpack.c.l.b16 %v8031
  %v8207 = vunpack.c.h.b16 %v8031
  %v8208 = vunpack.c.l.b16 %v8032
  %v8209 = vunpack.c.l.b16 %v8033
  %v8210 = vunpack.c.h.b16 %v8033
  %v8211 = vunpack.c.l.b16 %v8034
  %v8212 = vunpack.c.h.b16 %v8034
  %v8213 = vunpack.c.l.b16 %v8035
  %v8214 = vunpack.c.l.b16 %v8036
  %v8215 = vunpack.c.h.b16 %v8036
  %v8216 = vunpack.c.l.b16 %v8037
  %v8217 = vunpack.c.h.b16 %v8037
  %v8218 = vunpack.c.l.b16 %v8038
  %v8219 = vunpack.c.l.b16 %v8039
  %v8220 = vunpack.c.h.b16 %v8039
  %v8221 = vunpack.c.l.b16 %v8040
  %v8222 = vunpack.c.h.b16 %v8040
  %v8223 = vunpack.c.l.b16 %v8041
  %v8224 = vunpack.c.l.b16 %v8042
  %v8225 = vunpack.c.h.b16 %v8042
  %v8226 = vunpack.c.l.b16 %v8043
  %v8227 = vunpack.c.h.b16 %v8043
  %v8228 = vunpack.c.l.b16 %v8044
  %v8229 = vunpack.c.l.b16 %v8045
  %v8230 = vunpack.c.h.b16 %v8045
  %v8231 = vunpack.c.l.b16 %v8046
  %v8232 = vunpack.c.h.b16 %v8046
  %v8233 = vunpack.c.l.b16 %v8047
  %v8234 = vunpack.c.l.b16 %v8048
  %v8235 = vunpack.c.h.b16 %v8048
  %v8236 = vunpack.c.l.b16 %v8049
  %v8237 = vunpack.c.h.b16 %v8049
  %v8238 = vunpack.c.l.b16 %v8050
  %v8239 = vunpack.c.l.b16 %v8051
  %v8240 = vunpack.c.h.b16 %v8051
  %v8241 = vunpack.c.l.b16 %v8052
  %v8242 = vunpack.c.h.b16 %v8052
  %v8243 = vunpack.c.l.b16 %v8053
  %v8244 = vunpack.c.l.b16 %v8054
  %v8245 = vunpack.c.h.b16 %v8054
  %v8246 = vunpack.c.l.b16 %v8055
  %v8247 = vunpack.c.h.b16 %v8055
  %v8248 = vunpack.c.l.b16 %v8056
  %v8249 = vunpack.c.l.b16 %v8057
  %v8250 = vunpack.c.h.b16 %v8057
  %v8251 = vunpack.c.l.b16 %v8058
  %v8252 = vunpack.c.h.b16 %v8058
  %v8253 = vunpack.c.l.b16 %v8059
  %v8254 = vunpack.c.l.b16 %v8060
  %v8255 = vunpack.c.h.b16 %v8060
  %v8256 = vunpack.c.l.b16 %v8061
  %v8257 = vunpack.c.h.b16 %v8061
  %v8258 = vunpack.c.l.b16 %v8062
  %v8259 = vunpack.c.l.b16 %v8063
  %v8260 = vunpack.c.h.b16 %v8063
  %v8261 = vunpack.c.l.b16 %v8064
  %v8262 = vunpack.c.h.b16 %v8064
  %v8263 = vunpack.c.l.b16 %v8065
  %v8264 = vunpack.c.l.b16 %v8066
  %v8265 = vunpack.c.h.b16 %v8066
  %v8266 = vunpack.c.l.b16 %v8067
  %v8267 = vunpack.c.h.b16 %v8067
  %v8268 = vunpack.c.l.b16 %v8068
  %v8269 = vpack.c.b16 %v8194, %v8189
  %v8270 = vpack.c.b16 %v8195, %v8190
  %v8271 = vpack.c.b16 %v8196, %v8191
  %v8272 = vpack.c.b16 %v8197, %v8192
  %v8273 = vpack.c.b16 %v8198, %v8193
  %v8274 = vpack.c.b16 %v8204, %v8199
  %v8275 = vpack.c.b16 %v8205, %v8200
  %v8276 = vpack.c.b16 %v8206, %v8201
  %v8277 = vpack.c.b16 %v8207, %v8202
  %v8278 = vpack.c.b16 %v8208, %v8203
  %v8279 = vpack.c.b16 %v8214, %v8209
  %v8280 = vpack.c.b16 %v8215, %v8210
  %v8281 = vpack.c.b16 %v8216, %v8211
  %v8282 = vpack.c.b16 %v8217, %v8212
  %v8283 = vpack.c.b16 %v8218, %v8213
  %v8284 = vpack.c.b16 %v8224, %v8219
  %v8285 = vpack.c.b16 %v8225, %v8220
  %v8286 = vpack.c.b16 %v8226, %v8221
  %v8287 = vpack.c.b16 %v8227, %v8222
  %v8288 = vpack.c.b16 %v8228, %v8223
  %v8289 = vpack.c.b16 %v8234, %v8229
  %v8290 = vpack.c.b16 %v8235, %v8230
  %v8291 = vpack.c.b16 %v8236, %v8231
  %v8292 = vpack.c.b16 %v8237, %v8232
  %v8293 = vpack.c.b16 %v8238, %v8233
  %v8294 = vpack.c.b16 %v8244, %v8239
  %v8295 = vpack.c.b16 %v8245, %v8240
  %v8296 = vpack.c.b16 %v8246, %v8241
  %v8297 = vpack.c.b16 %v8247, %v8242
  %v8298 = vpack.c.b16 %v8248, %v8243
  %v8299 = vpack.c.b16 %v8254, %v8249
  %v8300 = vpack.c.b16 %v8255, %v8250
  %v8301 = vpack.c.b16 %v8256, %v8251
  %v8302 = vpack.c.b16 %v8257, %v8252
  %v8303 = vpack.c.b16 %v8258, %v8253
  %v8304 = vpack.c.b16 %v8264, %v8259
  %v8305 = vpack.c.b16 %v8265, %v8260
  %v8306 = vpack.c.b16 %v8266, %v8261
  %v8307 = vpack.c.b16 %v8267, %v8262
  %v8308 = vpack.c.b16 %v8268, %v8263
  %v8413 = vunpack.c.l.b16 %v8069
  %v8414 = vunpack.c.l.b16 %v8070
  %v8415 = vunpack.c.l.b16 %v8071
  %v8416 = vunpack.c.l.b16 %v8072
  %v8417 = vunpack.c.l.b16 %v8073
  %v8418 = vunpack.c.l.b16 %v8074
  %v8419 = vunpack.c.l.b16 %v8075
  %v8420 = vunpack.c.l.b16 %v8076
  %v8421 = vunpack.c.l.b16 %v8077
  %v8422 = vunpack.c.l.b16 %v8078
  %v8423 = vunpack.c.l.b16 %v8079
  %v8424 = vunpack.c.l.b16 %v8080
  %v8425 = vunpack.c.l.b16 %v8081
  %v8426 = vunpack.c.l.b16 %v8082
  %v8427 = vunpack.c.l.b16 %v8083
  %v8428 = vunpack.c.l.b16 %v8084
  %v8429 = vunpack.c.l.b16 %v8085
  %v8430 = vunpack.c.l.b16 %v8086
  %v8431 = vunpack.c.l.b16 %v8087
  %v8432 = vunpack.c.l.b16 %v8088
  %v8433 = vunpack.c.l.b16 %v8089
  %v8434 = vunpack.c.l.b16 %v8090
  %v8435 = vunpack.c.l.b16 %v8091
  %v8436 = vunpack.c.l.b16 %v8092
  %v8437 = vunpack.c.l.b16 %v8093
  %v8438 = vunpack.c.l.b16 %v8094
  %v8439 = vunpack.c.l.b16 %v8095
  %v8440 = vunpack.c.l.b16 %v8096
  %v8441 = vunpack.c.l.b16 %v8097
  %v8442 = vunpack.c.l.b16 %v8098
  %v8443 = vunpack.c.l.b16 %v8099
  %v8444 = vunpack.c.l.b16 %v8100
  %v8445 = vunpack.c.l.b16 %v8101
  %v8446 = vunpack.c.l.b16 %v8102
  %v8447 = vunpack.c.l.b16 %v8103
  %v8448 = vunpack.c.l.b16 %v8104
  %v8449 = vunpack.c.l.b16 %v8105
  %v8450 = vunpack.c.l.b16 %v8106
  %v8451 = vunpack.c.l.b16 %v8107
  %v8452 = vunpack.c.l.b16 %v8108
  %v8453 = vunpack.c.l.b16 %v8109
  %v8454 = vunpack.c.l.b16 %v8110
  %v8455 = vunpack.c.l.b16 %v8111
  %v8456 = vunpack.c.l.b16 %v8112
  %v8457 = vunpack.c.l.b16 %v8113
  %v8458 = vunpack.c.l.b16 %v8114
  %v8459 = vunpack.c.l.b16 %v8115
  %v8460 = vunpack.c.l.b16 %v8116
  %v8461 = vunpack.c.l.b16 %v8117
  %v8462 = vunpack.c.l.b16 %v8118
  %v8463 = vunpack.c.l.b16 %v8119
  %v8464 = vunpack.c.l.b16 %v8120
  %v8465 = vunpack.c.l.b16 %v8121
  %v8466 = vunpack.c.l.b16 %v8122
  %v8467 = vunpack.c.l.b16 %v8123
  %v8468 = vunpack.c.l.b16 %v8124
  %v8469 = vunpack.c.l.b16 %v8125
  %v8470 = vunpack.c.l.b16 %v8126
  %v8471 = vunpack.c.l.b16 %v8127
  %v8472 = vunpack.c.l.b16 %v8128
  %v8473 = vunpack.c.l.b16 %v8129
  %v8474 = vunpack.c.l.b16 %v8130
  %v8475 = vunpack.c.l.b16 %v8131
  %v8476 = vunpack.c.l.b16 %v8132
  %v8477 = vunpack.c.l.b16 %v8133
  %v8478 = vunpack.c.l.b16 %v8134
  %v8479 = vunpack.c.l.b16 %v8135
  %v8480 = vunpack.c.l.b16 %v8136
  %v8481 = vunpack.c.l.b16 %v8137
  %v8482 = vunpack.c.l.b16 %v8138
  %v8483 = vunpack.c.l.b16 %v8139
  %v8484 = vunpack.c.l.b16 %v8140
  %v8485 = vpack.c.b16 %v8414, %v8413
  %v8486 = vpack.c.b16 %v8416, %v8415
  %v8487 = vpack.c.b16 %v8418, %v8417
  %v8488 = vpack.c.b16 %v8420, %v8419
  %v8489 = vpack.c.b16 %v8422, %v8421
  %v8490 = vpack.c.b16 %v8424, %v8423
  %v8491 = vpack.c.b16 %v8426, %v8425
  %v8492 = vpack.c.b16 %v8428, %v8427
  %v8493 = vpack.c.b16 %v8430, %v8429
  %v8494 = vpack.c.b16 %v8432, %v8431
  %v8495 = vpack.c.b16 %v8434, %v8433
  %v8496 = vpack.c.b16 %v8436, %v8435
  %v8497 = vpack.c.b16 %v8438, %v8437
  %v8498 = vpack.c.b16 %v8440, %v8439
  %v8499 = vpack.c.b16 %v8442, %v8441
  %v8500 = vpack.c.b16 %v8444, %v8443
  %v8501 = vpack.c.b16 %v8446, %v8445
  %v8502 = vpack.c.b16 %v8448, %v8447
  %v8503 = vpack.c.b16 %v8450, %v8449
  %v8504 = vpack.c.b16 %v8452, %v8451
  %v8505 = vpack.c.b16 %v8454, %v8453
  %v8506 = vpack.c.b16 %v8456, %v8455
  %v8507 = vpack.c.b16 %v8458, %v8457
  %v8508 = vpack.c.b16 %v8460, %v8459
  %v8509 = vpack.c.b16 %v8462, %v8461
  %v8510 = vpack.c.b16 %v8464, %v8463
  %v8511 = vpack.c.b16 %v8466, %v8465
  %v8512 = vpack.c.b16 %v8468, %v8467
  %v8513 = vpack.c.b16 %v8470, %v8469
  %v8514 = vpack.c.b16 %v8472, %v8471
  %v8515 = vpack.c.b16 %v8474, %v8473
  %v8516 = vpack.c.b16 %v8476, %v8475
  %v8517 = vpack.c.b16 %v8478, %v8477
  %v8518 = vpack.c.b16 %v8480, %v8479
  %v8519 = vpack.c.b16 %v8482, %v8481
  %v8520 = vpack.c.b16 %v8484, %v8483
  %v8558 = vsel %vm1179, %v8273, 0
  %v8561 = vsel %vm1179, %v8278, 0
  %v8564 = vsel %vm1179, %v8283, 0
  %v8567 = vsel %vm1179, %v8288, 0
  %v8570 = vsel %vm1179, %v8293, 0
  %v8573 = vsel %vm1179, %v8298, 0
  %v8576 = vsel %vm1179, %v8303, 0
  %v8579 = vsel %vm1179, %v8308, 0
  %8581 = vmatpush.bf16.msra.mxu0 %v8492
  %8582 = vmatpush.bf16.msra.mxu0 %v8491
  %8583 = vmatpush.bf16.msra.mxu0 %v8490
  %8584 = vmatpush.bf16.msra.mxu0 %v8489
  %8585 = vmatpush.bf16.msra.mxu0 %v8488
  %8586 = vmatpush.bf16.msra.mxu0 %v8487
  %8587 = vmatpush.bf16.msra.mxu0 %v8486
  %8588 = vmatpush.bf16.msra.mxu0 %v8485
  %8589 = vmatmul.bf16.gmra.mxu0 %v8269
  %v8590 = vpop.f32.mrf.mxu0
  %v8591 = vadd.f32 0.0, %v8590
  %v8592 = vpop.f32.mrf.mxu0
  %v8593 = vadd.f32 0.0, %v8592
  %8594 = vmatmul.bf16.gmra.mxu0 %v8274
  %v8595 = vpop.f32.mrf.mxu0
  %v8596 = vadd.f32 0.0, %v8595
  %v8597 = vpop.f32.mrf.mxu0
  %v8598 = vadd.f32 0.0, %v8597
  %8599 = vmatmul.bf16.gmra.mxu0 %v8279
  %v8600 = vpop.f32.mrf.mxu0
  %v8601 = vadd.f32 0.0, %v8600
  %v8602 = vpop.f32.mrf.mxu0
  %v8603 = vadd.f32 0.0, %v8602
  %8604 = vmatmul.bf16.gmra.mxu0 %v8284
  %v8605 = vpop.f32.mrf.mxu0
  %v8606 = vadd.f32 0.0, %v8605
  %v8607 = vpop.f32.mrf.mxu0
  %v8608 = vadd.f32 0.0, %v8607
  %8609 = vmatmul.bf16.gmra.mxu0 %v8289
  %v8610 = vpop.f32.mrf.mxu0
  %v8611 = vadd.f32 0.0, %v8610
  %v8612 = vpop.f32.mrf.mxu0
  %v8613 = vadd.f32 0.0, %v8612
  %8614 = vmatmul.bf16.gmra.mxu0 %v8294
  %v8615 = vpop.f32.mrf.mxu0
  %v8616 = vadd.f32 0.0, %v8615
  %v8617 = vpop.f32.mrf.mxu0
  %v8618 = vadd.f32 0.0, %v8617
  %8619 = vmatmul.bf16.gmra.mxu0 %v8299
  %v8620 = vpop.f32.mrf.mxu0
  %v8621 = vadd.f32 0.0, %v8620
  %v8622 = vpop.f32.mrf.mxu0
  %v8623 = vadd.f32 0.0, %v8622
  %8624 = vmatmul.bf16.gmra.mxu0 %v8304
  %v8625 = vpop.f32.mrf.mxu0
  %v8626 = vadd.f32 0.0, %v8625
  %v8627 = vpop.f32.mrf.mxu0
  %v8628 = vadd.f32 0.0, %v8627
  %8629 = vdwg.mxu0
  %8630 = vmatpush.bf16.msra.mxu0 %v8500
  %8631 = vmatpush.bf16.msra.mxu0 %v8499
  %8632 = vmatpush.bf16.msra.mxu0 %v8498
  %8633 = vmatpush.bf16.msra.mxu0 %v8497
  %8634 = vmatpush.bf16.msra.mxu0 %v8496
  %8635 = vmatpush.bf16.msra.mxu0 %v8495
  %8636 = vmatpush.bf16.msra.mxu0 %v8494
  %8637 = vmatpush.bf16.msra.mxu0 %v8493
  %8638 = vmatmul.bf16.gmra.mxu0 %v8270
  %v8639 = vpop.f32.mrf.mxu0
  %v8640 = vadd.f32 %v8591, %v8639
  %v8641 = vpop.f32.mrf.mxu0
  %v8642 = vadd.f32 %v8593, %v8641
  %8643 = vmatmul.bf16.gmra.mxu0 %v8275
  %v8644 = vpop.f32.mrf.mxu0
  %v8645 = vadd.f32 %v8596, %v8644
  %v8646 = vpop.f32.mrf.mxu0
  %v8647 = vadd.f32 %v8598, %v8646
  %8648 = vmatmul.bf16.gmra.mxu0 %v8280
  %v8649 = vpop.f32.mrf.mxu0
  %v8650 = vadd.f32 %v8601, %v8649
  %v8651 = vpop.f32.mrf.mxu0
  %v8652 = vadd.f32 %v8603, %v8651
  %8653 = vmatmul.bf16.gmra.mxu0 %v8285
  %v8654 = vpop.f32.mrf.mxu0
  %v8655 = vadd.f32 %v8606, %v8654
  %v8656 = vpop.f32.mrf.mxu0
  %v8657 = vadd.f32 %v8608, %v8656
  %8658 = vmatmul.bf16.gmra.mxu0 %v8290
  %v8659 = vpop.f32.mrf.mxu0
  %v8660 = vadd.f32 %v8611, %v8659
  %v8661 = vpop.f32.mrf.mxu0
  %v8662 = vadd.f32 %v8613, %v8661
  %8663 = vmatmul.bf16.gmra.mxu0 %v8295
  %v8664 = vpop.f32.mrf.mxu0
  %v8665 = vadd.f32 %v8616, %v8664
  %v8666 = vpop.f32.mrf.mxu0
  %v8667 = vadd.f32 %v8618, %v8666
  %8668 = vmatmul.bf16.gmra.mxu0 %v8300
  %v8669 = vpop.f32.mrf.mxu0
  %v8670 = vadd.f32 %v8621, %v8669
  %v8671 = vpop.f32.mrf.mxu0
  %v8672 = vadd.f32 %v8623, %v8671
  %8673 = vmatmul.bf16.gmra.mxu0 %v8305
  %v8674 = vpop.f32.mrf.mxu0
  %v8675 = vadd.f32 %v8626, %v8674
  %v8676 = vpop.f32.mrf.mxu0
  %v8677 = vadd.f32 %v8628, %v8676
  %8678 = vdwg.mxu0
  %8679 = vmatpush.bf16.msra.mxu0 %v8508
  %8680 = vmatpush.bf16.msra.mxu0 %v8507
  %8681 = vmatpush.bf16.msra.mxu0 %v8506
  %8682 = vmatpush.bf16.msra.mxu0 %v8505
  %8683 = vmatpush.bf16.msra.mxu0 %v8504
  %8684 = vmatpush.bf16.msra.mxu0 %v8503
  %8685 = vmatpush.bf16.msra.mxu0 %v8502
  %8686 = vmatpush.bf16.msra.mxu0 %v8501
  %8687 = vmatmul.bf16.gmra.mxu0 %v8271
  %v8688 = vpop.f32.mrf.mxu0
  %v8689 = vadd.f32 %v8640, %v8688
  %v8690 = vpop.f32.mrf.mxu0
  %v8691 = vadd.f32 %v8642, %v8690
  %8692 = vmatmul.bf16.gmra.mxu0 %v8276
  %v8693 = vpop.f32.mrf.mxu0
  %v8694 = vadd.f32 %v8645, %v8693
  %v8695 = vpop.f32.mrf.mxu0
  %v8696 = vadd.f32 %v8647, %v8695
  %8697 = vmatmul.bf16.gmra.mxu0 %v8281
  %v8698 = vpop.f32.mrf.mxu0
  %v8699 = vadd.f32 %v8650, %v8698
  %v8700 = vpop.f32.mrf.mxu0
  %v8701 = vadd.f32 %v8652, %v8700
  %8702 = vmatmul.bf16.gmra.mxu0 %v8286
  %v8703 = vpop.f32.mrf.mxu0
  %v8704 = vadd.f32 %v8655, %v8703
  %v8705 = vpop.f32.mrf.mxu0
  %v8706 = vadd.f32 %v8657, %v8705
  %8707 = vmatmul.bf16.gmra.mxu0 %v8291
  %v8708 = vpop.f32.mrf.mxu0
  %v8709 = vadd.f32 %v8660, %v8708
  %v8710 = vpop.f32.mrf.mxu0
  %v8711 = vadd.f32 %v8662, %v8710
  %8712 = vmatmul.bf16.gmra.mxu0 %v8296
  %v8713 = vpop.f32.mrf.mxu0
  %v8714 = vadd.f32 %v8665, %v8713
  %v8715 = vpop.f32.mrf.mxu0
  %v8716 = vadd.f32 %v8667, %v8715
  %8717 = vmatmul.bf16.gmra.mxu0 %v8301
  %v8718 = vpop.f32.mrf.mxu0
  %v8719 = vadd.f32 %v8670, %v8718
  %v8720 = vpop.f32.mrf.mxu0
  %v8721 = vadd.f32 %v8672, %v8720
  %8722 = vmatmul.bf16.gmra.mxu0 %v8306
  %v8723 = vpop.f32.mrf.mxu0
  %v8724 = vadd.f32 %v8675, %v8723
  %v8725 = vpop.f32.mrf.mxu0
  %v8726 = vadd.f32 %v8677, %v8725
  %8727 = vdwg.mxu0
  %8728 = vmatpush.bf16.msra.mxu0 %v8516
  %8729 = vmatpush.bf16.msra.mxu0 %v8515
  %8730 = vmatpush.bf16.msra.mxu0 %v8514
  %8731 = vmatpush.bf16.msra.mxu0 %v8513
  %8732 = vmatpush.bf16.msra.mxu0 %v8512
  %8733 = vmatpush.bf16.msra.mxu0 %v8511
  %8734 = vmatpush.bf16.msra.mxu0 %v8510
  %8735 = vmatpush.bf16.msra.mxu0 %v8509
  %8736 = vmatmul.bf16.gmra.mxu0 %v8272
  %v8737 = vpop.f32.mrf.mxu0
  %v8738 = vadd.f32 %v8689, %v8737
  %v8739 = vpop.f32.mrf.mxu0
  %v8740 = vadd.f32 %v8691, %v8739
  %8741 = vmatmul.bf16.gmra.mxu0 %v8277
  %v8742 = vpop.f32.mrf.mxu0
  %v8743 = vadd.f32 %v8694, %v8742
  %v8744 = vpop.f32.mrf.mxu0
  %v8745 = vadd.f32 %v8696, %v8744
  %8746 = vmatmul.bf16.gmra.mxu0 %v8282
  %v8747 = vpop.f32.mrf.mxu0
  %v8748 = vadd.f32 %v8699, %v8747
  %v8749 = vpop.f32.mrf.mxu0
  %v8750 = vadd.f32 %v8701, %v8749
  %8751 = vmatmul.bf16.gmra.mxu0 %v8287
  %v8752 = vpop.f32.mrf.mxu0
  %v8753 = vadd.f32 %v8704, %v8752
  %v8754 = vpop.f32.mrf.mxu0
  %v8755 = vadd.f32 %v8706, %v8754
  %8756 = vmatmul.bf16.gmra.mxu0 %v8292
  %v8757 = vpop.f32.mrf.mxu0
  %v8758 = vadd.f32 %v8709, %v8757
  %v8759 = vpop.f32.mrf.mxu0
  %v8760 = vadd.f32 %v8711, %v8759
  %8761 = vmatmul.bf16.gmra.mxu0 %v8297
  %v8762 = vpop.f32.mrf.mxu0
  %v8763 = vadd.f32 %v8714, %v8762
  %v8764 = vpop.f32.mrf.mxu0
  %v8765 = vadd.f32 %v8716, %v8764
  %8766 = vmatmul.bf16.gmra.mxu0 %v8302
  %v8767 = vpop.f32.mrf.mxu0
  %v8768 = vadd.f32 %v8719, %v8767
  %v8769 = vpop.f32.mrf.mxu0
  %v8770 = vadd.f32 %v8721, %v8769
  %8771 = vmatmul.bf16.gmra.mxu0 %v8307
  %v8772 = vpop.f32.mrf.mxu0
  %v8773 = vadd.f32 %v8724, %v8772
  %v8774 = vpop.f32.mrf.mxu0
  %v8775 = vadd.f32 %v8726, %v8774
  %8776 = vdwg.mxu0
  %8777 = vmatpush.bf16.msra.mxu0 0
  %8778 = vmatpush.bf16.msra.mxu0 0
  %8779 = vmatpush.bf16.msra.mxu0 0
  %8780 = vmatpush.bf16.msra.mxu0 0
  %8781 = vmatpush.bf16.msra.mxu0 %v8520
  %8782 = vmatpush.bf16.msra.mxu0 %v8519
  %8783 = vmatpush.bf16.msra.mxu0 %v8518
  %8784 = vmatpush.bf16.msra.mxu0 %v8517
  %8785 = vmatmul.bf16.gmra.mxu0 %v8558
  %v8786 = vpop.f32.mrf.mxu0
  %v8787 = vadd.f32 %v8738, %v8786
  %v8788 = vpop.f32.mrf.mxu0
  %v8789 = vadd.f32 %v8740, %v8788
  %8790 = vmatmul.bf16.gmra.mxu0 %v8561
  %v8791 = vpop.f32.mrf.mxu0
  %v8792 = vadd.f32 %v8743, %v8791
  %v8793 = vpop.f32.mrf.mxu0
  %v8794 = vadd.f32 %v8745, %v8793
  %8795 = vmatmul.bf16.gmra.mxu0 %v8564
  %v8796 = vpop.f32.mrf.mxu0
  %v8797 = vadd.f32 %v8748, %v8796
  %v8798 = vpop.f32.mrf.mxu0
  %v8799 = vadd.f32 %v8750, %v8798
  %8800 = vmatmul.bf16.gmra.mxu0 %v8567
  %v8801 = vpop.f32.mrf.mxu0
  %v8802 = vadd.f32 %v8753, %v8801
  %v8803 = vpop.f32.mrf.mxu0
  %v8804 = vadd.f32 %v8755, %v8803
  %8805 = vmatmul.bf16.gmra.mxu0 %v8570
  %v8806 = vpop.f32.mrf.mxu0
  %v8807 = vadd.f32 %v8758, %v8806
  %v8808 = vpop.f32.mrf.mxu0
  %v8809 = vadd.f32 %v8760, %v8808
  %8810 = vmatmul.bf16.gmra.mxu0 %v8573
  %v8811 = vpop.f32.mrf.mxu0
  %v8812 = vadd.f32 %v8763, %v8811
  %v8813 = vpop.f32.mrf.mxu0
  %v8814 = vadd.f32 %v8765, %v8813
  %8815 = vmatmul.bf16.gmra.mxu0 %v8576
  %v8816 = vpop.f32.mrf.mxu0
  %v8817 = vadd.f32 %v8768, %v8816
  %v8818 = vpop.f32.mrf.mxu0
  %v8819 = vadd.f32 %v8770, %v8818
  %8820 = vmatmul.bf16.gmra.mxu0 %v8579
  %v8821 = vpop.f32.mrf.mxu0
  %v8822 = vadd.f32 %v8773, %v8821
  %v8823 = vpop.f32.mrf.mxu0
  %v8824 = vadd.f32 %v8775, %v8823
  %8825 = vdwg.mxu0
  %v8826 = vsel %vm1179, %v8787, 0.0
  %8827 = vadd.xlane.f32.xlu0 %v8826
  %v8828 = vpop.xlane.xlu0 %8827
  %v8829 = vsel %vm1179, %v8789, 0.0
  %8830 = vadd.xlane.f32.xlu0 %v8829
  %v8831 = vpop.xlane.xlu0 %8830
  %v8832 = vsel %vm1179, %v8792, 0.0
  %8833 = vadd.xlane.f32.xlu0 %v8832
  %v8834 = vpop.xlane.xlu0 %8833
  %v8835 = vsel %vm1179, %v8794, 0.0
  %8836 = vadd.xlane.f32.xlu0 %v8835
  %v8837 = vpop.xlane.xlu0 %8836
  %v8838 = vsel %vm1179, %v8797, 0.0
  %8839 = vadd.xlane.f32.xlu0 %v8838
  %v8840 = vpop.xlane.xlu0 %8839
  %v8841 = vsel %vm1179, %v8799, 0.0
  %8842 = vadd.xlane.f32.xlu0 %v8841
  %v8843 = vpop.xlane.xlu0 %8842
  %v8844 = vsel %vm1179, %v8802, 0.0
  %8845 = vadd.xlane.f32.xlu0 %v8844
  %v8846 = vpop.xlane.xlu0 %8845
  %v8847 = vsel %vm1179, %v8804, 0.0
  %8848 = vadd.xlane.f32.xlu0 %v8847
  %v8849 = vpop.xlane.xlu0 %8848
  %v8850 = vsel %vm1179, %v8807, 0.0
  %8851 = vadd.xlane.f32.xlu0 %v8850
  %v8852 = vpop.xlane.xlu0 %8851
  %v8853 = vsel %vm1179, %v8809, 0.0
  %8854 = vadd.xlane.f32.xlu0 %v8853
  %v8855 = vpop.xlane.xlu0 %8854
  %v8856 = vsel %vm1179, %v8812, 0.0
  %8857 = vadd.xlane.f32.xlu0 %v8856
  %v8858 = vpop.xlane.xlu0 %8857
  %v8859 = vsel %vm1179, %v8814, 0.0
  %8860 = vadd.xlane.f32.xlu0 %v8859
  %v8861 = vpop.xlane.xlu0 %8860
  %v8862 = vsel %vm1179, %v8817, 0.0
  %8863 = vadd.xlane.f32.xlu0 %v8862
  %v8864 = vpop.xlane.xlu0 %8863
  %v8865 = vsel %vm1179, %v8819, 0.0
  %8866 = vadd.xlane.f32.xlu0 %v8865
  %v8867 = vpop.xlane.xlu0 %8866
  %v8868 = vsel %vm1179, %v8822, 0.0
  %8869 = vadd.xlane.f32.xlu0 %v8868
  %v8870 = vpop.xlane.xlu0 %8869
  %v8871 = vsel %vm1179, %v8824, 0.0
  %8872 = vadd.xlane.f32.xlu0 %v8871
  %v8873 = vpop.xlane.xlu0 %8872
  %v8874 = vadd.f32 %v8828, %v8831
  %v8875 = vadd.f32 %v8874, %v8834
  %v8876 = vadd.f32 %v8875, %v8837
  %v8877 = vadd.f32 %v8876, %v8840
  %v8878 = vadd.f32 %v8877, %v8843
  %v8879 = vadd.f32 %v8878, %v8846
  %v8880 = vadd.f32 %v8879, %v8849
  %v8881 = vrot.slane %v8880, 4
  %v8882 = vadd.f32 %v8880, %v8881
  %v8883 = vrot.slane %v8882, 2
  %v8884 = vadd.f32 %v8882, %v8883
  %v8885 = vrot.slane %v8884, 1
  %v8886 = vadd.f32 %v8884, %v8885
  %v8887 = vadd.f32 %v8852, %v8855
  %v8888 = vadd.f32 %v8887, %v8858
  %v8889 = vadd.f32 %v8888, %v8861
  %v8890 = vadd.f32 %v8889, %v8864
  %v8891 = vadd.f32 %v8890, %v8867
  %v8892 = vadd.f32 %v8891, %v8870
  %v8893 = vadd.f32 %v8892, %v8873
  %v8894 = vrot.slane %v8893, 4
  %v8895 = vadd.f32 %v8893, %v8894
  %v8896 = vrot.slane %v8895, 2
  %v8897 = vadd.f32 %v8895, %v8896
  %v8898 = vrot.slane %v8897, 1
  %v8899 = vadd.f32 %v8897, %v8898
  %v8900 = vmul.f32 %v8886, %v6205
  %v8901 = vmul.f32 %v8899, %v6205
  %v8902 = vsub.f32 %v8787, %v8900
  %v8903 = vsub.f32 %v8789, %v8900
  %v8904 = vsub.f32 %v8792, %v8900
  %v8905 = vsub.f32 %v8794, %v8900
  %v8906 = vsub.f32 %v8797, %v8900
  %v8907 = vsub.f32 %v8799, %v8900
  %v8908 = vsub.f32 %v8802, %v8900
  %v8909 = vsub.f32 %v8804, %v8900
  %v8910 = vsub.f32 %v8807, %v8901
  %v8911 = vsub.f32 %v8809, %v8901
  %v8912 = vsub.f32 %v8812, %v8901
  %v8913 = vsub.f32 %v8814, %v8901
  %v8914 = vsub.f32 %v8817, %v8901
  %v8915 = vsub.f32 %v8819, %v8901
  %v8916 = vsub.f32 %v8822, %v8901
  %v8917 = vsub.f32 %v8824, %v8901
  %v8918 = vmul.f32 %v8902, %v8902
  %v8919 = vmul.f32 %v8903, %v8903
  %v8920 = vmul.f32 %v8904, %v8904
  %v8921 = vmul.f32 %v8905, %v8905
  %v8922 = vmul.f32 %v8906, %v8906
  %v8923 = vmul.f32 %v8907, %v8907
  %v8924 = vmul.f32 %v8908, %v8908
  %v8925 = vmul.f32 %v8909, %v8909
  %v8926 = vmul.f32 %v8910, %v8910
  %v8927 = vmul.f32 %v8911, %v8911
  %v8928 = vmul.f32 %v8912, %v8912
  %v8929 = vmul.f32 %v8913, %v8913
  %v8930 = vmul.f32 %v8914, %v8914
  %v8931 = vmul.f32 %v8915, %v8915
  %v8932 = vmul.f32 %v8916, %v8916
  %v8933 = vmul.f32 %v8917, %v8917
  %v8934 = vsel %vm1179, %v8918, 0.0
  %8935 = vadd.xlane.f32.xlu0 %v8934
  %v8936 = vpop.xlane.xlu0 %8935
  %v8937 = vsel %vm1179, %v8919, 0.0
  %8938 = vadd.xlane.f32.xlu0 %v8937
  %v8939 = vpop.xlane.xlu0 %8938
  %v8940 = vsel %vm1179, %v8920, 0.0
  %8941 = vadd.xlane.f32.xlu0 %v8940
  %v8942 = vpop.xlane.xlu0 %8941
  %v8943 = vsel %vm1179, %v8921, 0.0
  %8944 = vadd.xlane.f32.xlu0 %v8943
  %v8945 = vpop.xlane.xlu0 %8944
  %v8946 = vsel %vm1179, %v8922, 0.0
  %8947 = vadd.xlane.f32.xlu0 %v8946
  %v8948 = vpop.xlane.xlu0 %8947
  %v8949 = vsel %vm1179, %v8923, 0.0
  %8950 = vadd.xlane.f32.xlu0 %v8949
  %v8951 = vpop.xlane.xlu0 %8950
  %v8952 = vsel %vm1179, %v8924, 0.0
  %8953 = vadd.xlane.f32.xlu0 %v8952
  %v8954 = vpop.xlane.xlu0 %8953
  %v8955 = vsel %vm1179, %v8925, 0.0
  %8956 = vadd.xlane.f32.xlu0 %v8955
  %v8957 = vpop.xlane.xlu0 %8956
  %v8958 = vsel %vm1179, %v8926, 0.0
  %8959 = vadd.xlane.f32.xlu0 %v8958
  %v8960 = vpop.xlane.xlu0 %8959
  %v8961 = vsel %vm1179, %v8927, 0.0
  %8962 = vadd.xlane.f32.xlu0 %v8961
  %v8963 = vpop.xlane.xlu0 %8962
  %v8964 = vsel %vm1179, %v8928, 0.0
  %8965 = vadd.xlane.f32.xlu0 %v8964
  %v8966 = vpop.xlane.xlu0 %8965
  %v8967 = vsel %vm1179, %v8929, 0.0
  %8968 = vadd.xlane.f32.xlu0 %v8967
  %v8969 = vpop.xlane.xlu0 %8968
  %v8970 = vsel %vm1179, %v8930, 0.0
  %8971 = vadd.xlane.f32.xlu0 %v8970
  %v8972 = vpop.xlane.xlu0 %8971
  %v8973 = vsel %vm1179, %v8931, 0.0
  %8974 = vadd.xlane.f32.xlu0 %v8973
  %v8975 = vpop.xlane.xlu0 %8974
  %v8976 = vsel %vm1179, %v8932, 0.0
  %8977 = vadd.xlane.f32.xlu0 %v8976
  %v8978 = vpop.xlane.xlu0 %8977
  %v8979 = vsel %vm1179, %v8933, 0.0
  %8980 = vadd.xlane.f32.xlu0 %v8979
  %v8981 = vpop.xlane.xlu0 %8980
  %v8982 = vadd.f32 %v8936, %v8939
  %v8983 = vadd.f32 %v8982, %v8942
  %v8984 = vadd.f32 %v8983, %v8945
  %v8985 = vadd.f32 %v8984, %v8948
  %v8986 = vadd.f32 %v8985, %v8951
  %v8987 = vadd.f32 %v8986, %v8954
  %v8988 = vadd.f32 %v8987, %v8957
  %v8989 = vrot.slane %v8988, 4
  %v8990 = vadd.f32 %v8988, %v8989
  %v8991 = vrot.slane %v8990, 2
  %v8992 = vadd.f32 %v8990, %v8991
  %v8993 = vrot.slane %v8992, 1
  %v8994 = vadd.f32 %v8992, %v8993
  %v8995 = vadd.f32 %v8960, %v8963
  %v8996 = vadd.f32 %v8995, %v8966
  %v8997 = vadd.f32 %v8996, %v8969
  %v8998 = vadd.f32 %v8997, %v8972
  %v8999 = vadd.f32 %v8998, %v8975
  %v9000 = vadd.f32 %v8999, %v8978
  %v9001 = vadd.f32 %v9000, %v8981
  %v9002 = vrot.slane %v9001, 4
  %v9003 = vadd.f32 %v9001, %v9002
  %v9004 = vrot.slane %v9003, 2
  %v9005 = vadd.f32 %v9003, %v9004
  %v9006 = vrot.slane %v9005, 1
  %v9007 = vadd.f32 %v9005, %v9006
  %v9008 = vmul.f32 %v8994, %v6205
  %v9009 = vmul.f32 %v9007, %v6205
  %v9010 = vadd.f32 %v9008, 1e-05
  %v9011 = vadd.f32 %v9009, 1e-05
  %v9012 = vrsqrt.pop %v9010
  %v9013 = vmul.f32 %v9012, %v9010
  %v9014 = vmul.f32 %v9013, %v9012
  %v9015 = vmul.f32 0.5, %v9014
  %v9016 = vsub.f32 1.5, %v9015
  %v9017 = vmul.f32 %v9012, %v9016
  %vm9018 = vweird.f32 %v9010
  %vm9019 = vweird.f32 %v9012
  %vm9020 = vmor %vm9018, %vm9019
  %v9021 = vsel %vm9020, %v9012, %v9017
  %v9022 = vrsqrt.pop %v9011
  %v9023 = vmul.f32 %v9022, %v9011
  %v9024 = vmul.f32 %v9023, %v9022
  %v9025 = vmul.f32 0.5, %v9024
  %v9026 = vsub.f32 1.5, %v9025
  %v9027 = vmul.f32 %v9022, %v9026
  %vm9028 = vweird.f32 %v9011
  %vm9029 = vweird.f32 %v9022
  %vm9030 = vmor %vm9028, %vm9029
  %v9031 = vsel %vm9030, %v9022, %v9027
  %v9032 = vmul.f32 %v8902, %v9021
  %v9033 = vmul.f32 %v8903, %v9021
  %v9034 = vmul.f32 %v8904, %v9021
  %v9035 = vmul.f32 %v8905, %v9021
  %v9036 = vmul.f32 %v8906, %v9021
  %v9037 = vmul.f32 %v8907, %v9021
  %v9038 = vmul.f32 %v8908, %v9021
  %v9039 = vmul.f32 %v8909, %v9021
  %v9040 = vmul.f32 %v8910, %v9031
  %v9041 = vmul.f32 %v8911, %v9031
  %v9042 = vmul.f32 %v8912, %v9031
  %v9043 = vmul.f32 %v8913, %v9031
  %v9044 = vmul.f32 %v8914, %v9031
  %v9045 = vmul.f32 %v8915, %v9031
  %v9046 = vmul.f32 %v8916, %v9031
  %v9047 = vmul.f32 %v8917, %v9031
  %v9048 = vld [vmem:[%s14] sm:$0x1]
  %v9050 = vperm.slane %v9048, 0
  %v9052 = vmul.f32 %v9032, %v9050
  %v9053 = vmul.f32 %v9033, %v9050
  %v9054 = vmul.f32 %v9034, %v9050
  %v9055 = vmul.f32 %v9035, %v9050
  %v9056 = vmul.f32 %v9036, %v9050
  %v9057 = vmul.f32 %v9037, %v9050
  %v9058 = vmul.f32 %v9038, %v9050
  %v9059 = vmul.f32 %v9039, %v9050
  %v9060 = vmul.f32 %v9040, %v9050
  %v9061 = vmul.f32 %v9041, %v9050
  %v9062 = vmul.f32 %v9042, %v9050
  %v9063 = vmul.f32 %v9043, %v9050
  %v9064 = vmul.f32 %v9044, %v9050
  %v9065 = vmul.f32 %v9045, %v9050
  %v9066 = vmul.f32 %v9046, %v9050
  %v9067 = vmul.f32 %v9047, %v9050
  %v9068 = vld [vmem:[%s15] sm:$0x1]
  %v9070 = vperm.slane %v9068, 0
  %v9072 = vadd.f32 %v9052, %v9070
  %v9073 = vadd.f32 %v9053, %v9070
  %v9074 = vadd.f32 %v9054, %v9070
  %v9075 = vadd.f32 %v9055, %v9070
  %v9076 = vadd.f32 %v9056, %v9070
  %v9077 = vadd.f32 %v9057, %v9070
  %v9078 = vadd.f32 %v9058, %v9070
  %v9079 = vadd.f32 %v9059, %v9070
  %v9080 = vadd.f32 %v9060, %v9070
  %v9081 = vadd.f32 %v9061, %v9070
  %v9082 = vadd.f32 %v9062, %v9070
  %v9083 = vadd.f32 %v9063, %v9070
  %v9084 = vadd.f32 %v9064, %v9070
  %v9085 = vadd.f32 %v9065, %v9070
  %v9086 = vadd.f32 %v9066, %v9070
  %v9087 = vadd.f32 %v9067, %v9070
  %v9088 = vld [vmem:[%s1] sm:$0xf]
  %v9089 = vand.u32 2147483647, %v9088
  %v9090 = vsub.f32 0.0, %v9089
  %v9091 = vmul.f32 %v9090, 1.442695
  %v9092 = vpow.pop %v9091
  %vm9093 = vcmp.ge.f32.partialorder %v9088, 0.0
  %v9094 = vsel %vm9093, 1.0, %v9092
  %v9095 = vadd.f32 %v9092, 1.0
  %v9096 = vrcp.pop %v9095
  %v9097 = vmul.f32 %v9095, %v9096
  %v9098 = vsub.f32 1.0, %v9097
  %v9099 = vmul.f32 %v9096, %v9098
  %v9100 = vadd.f32 %v9096, %v9099
  %vm9101 = vweird.f32 %v9095
  %vm9102 = vweird.f32 %v9096
  %vm9103 = vmor %vm9101, %vm9102
  %v9104 = vsel %vm9103, %v9096, %v9100
  %v9105 = vand.u32 2147483647, %v9095
  %vm9106 = vcmp.eq.f32.partialorder %v9105, 8.507059e+37
  %v9107 = vand.u32 %v9095, 2147483648
  %v9108 = vor.u32 1.1754944e-38, %v9107
  %v9109 = vsel %vm9106, %v9108, %v9104
  %v9110 = vmul.f32 %v9094, %v9109
  %v9111 = vmul.f32 %v9088, %v9110
  %9113 = vst [vmem:[#allocation1] ss:$4 sm:$0xff] %v9111
  %v9114 = vld.sshfl [vmem:[#allocation1] sm:$0xff pattern:$0x73625140]
  %v9115 = vld.sshfl [vmem:[#allocation1 + $0x8] sm:$0xff pattern:$0x73625140]
  %v9118 = vpack.c.bf16 %v9114, %v9114
  %v9119 = vpack.c.bf16 %v9115, %v9115
  %v9120 = vld [vmem:[%s16] sm:$0xf]
  %v9121 = vld [vmem:[%s16 + $0x4] sm:$0xf]
  %v9122 = vld [vmem:[%s16 + $0x8] sm:$0xf]
  %v9123 = vld [vmem:[%s16 + $0xc] sm:$0xf]
  %v9124 = vld [vmem:[%s16 + $0x10] sm:$0xf]
  %v9125 = vld [vmem:[%s16 + $0x14] sm:$0xf]
  %v9126 = vld [vmem:[%s16 + $0x18] sm:$0xf]
  %v9127 = vld [vmem:[%s16 + $0x1c] sm:$0xf]
  %v9128 = vld [vmem:[%s16 + $0x20] sm:$0xf]
  %v9129 = vld [vmem:[%s16 + $0x24] sm:$0xf]
  %v9130 = vld [vmem:[%s16 + $0x28] sm:$0xf]
  %v9131 = vld [vmem:[%s16 + $0x2c] sm:$0xf]
  %v9132 = vld [vmem:[%s16 + $0x30] sm:$0xf]
  %v9133 = vld [vmem:[%s16 + $0x34] sm:$0xf]
  %v9134 = vld [vmem:[%s16 + $0x38] sm:$0xf]
  %v9135 = vld [vmem:[%s16 + $0x3c] sm:$0xf]
  %v9136 = vld [vmem:[%s16 + $0x40] sm:$0xf]
  %v9137 = vld [vmem:[%s16 + $0x44] sm:$0xf]
  %v9138 = vld [vmem:[%s16 + $0x48] sm:$0xf]
  %v9139 = vld [vmem:[%s16 + $0x4c] sm:$0xf]
  %v9140 = vld [vmem:[%s16 + $0x50] sm:$0xf]
  %v9141 = vld [vmem:[%s16 + $0x54] sm:$0xf]
  %v9142 = vld [vmem:[%s16 + $0x58] sm:$0xf]
  %v9143 = vld [vmem:[%s16 + $0x5c] sm:$0xf]
  %v9144 = vld [vmem:[%s16 + $0x60] sm:$0xf]
  %v9145 = vld [vmem:[%s16 + $0x64] sm:$0xf]
  %v9146 = vld [vmem:[%s16 + $0x68] sm:$0xf]
  %v9147 = vld [vmem:[%s16 + $0x6c] sm:$0xf]
  %v9148 = vld [vmem:[%s16 + $0x70] sm:$0xf]
  %v9149 = vld [vmem:[%s16 + $0x74] sm:$0xf]
  %v9150 = vld [vmem:[%s16 + $0x78] sm:$0xf]
  %v9151 = vld [vmem:[%s16 + $0x7c] sm:$0xf]
  %v9152 = vld [vmem:[%s17] sm:$0x1]
  %v9154 = vperm.slane %v9152, 0
  %v9188 = vunpack.c.l.b16 %v9120
  %v9189 = vunpack.c.l.b16 %v9121
  %v9190 = vunpack.c.l.b16 %v9122
  %v9191 = vunpack.c.l.b16 %v9123
  %v9192 = vunpack.c.l.b16 %v9124
  %v9193 = vunpack.c.l.b16 %v9125
  %v9194 = vunpack.c.l.b16 %v9126
  %v9195 = vunpack.c.l.b16 %v9127
  %v9196 = vunpack.c.l.b16 %v9128
  %v9197 = vunpack.c.l.b16 %v9129
  %v9198 = vunpack.c.l.b16 %v9130
  %v9199 = vunpack.c.l.b16 %v9131
  %v9200 = vunpack.c.l.b16 %v9132
  %v9201 = vunpack.c.l.b16 %v9133
  %v9202 = vunpack.c.l.b16 %v9134
  %v9203 = vunpack.c.l.b16 %v9135
  %v9204 = vunpack.c.l.b16 %v9136
  %v9205 = vunpack.c.l.b16 %v9137
  %v9206 = vunpack.c.l.b16 %v9138
  %v9207 = vunpack.c.l.b16 %v9139
  %v9208 = vunpack.c.l.b16 %v9140
  %v9209 = vunpack.c.l.b16 %v9141
  %v9210 = vunpack.c.l.b16 %v9142
  %v9211 = vunpack.c.l.b16 %v9143
  %v9212 = vunpack.c.l.b16 %v9144
  %v9213 = vunpack.c.l.b16 %v9145
  %v9214 = vunpack.c.l.b16 %v9146
  %v9215 = vunpack.c.l.b16 %v9147
  %v9216 = vunpack.c.l.b16 %v9148
  %v9217 = vunpack.c.l.b16 %v9149
  %v9218 = vunpack.c.l.b16 %v9150
  %v9219 = vunpack.c.l.b16 %v9151
  %v9220 = vpack.c.b16 %v9189, %v9188
  %v9221 = vpack.c.b16 %v9191, %v9190
  %v9222 = vpack.c.b16 %v9193, %v9192
  %v9223 = vpack.c.b16 %v9195, %v9194
  %v9224 = vpack.c.b16 %v9197, %v9196
  %v9225 = vpack.c.b16 %v9199, %v9198
  %v9226 = vpack.c.b16 %v9201, %v9200
  %v9227 = vpack.c.b16 %v9203, %v9202
  %v9228 = vpack.c.b16 %v9205, %v9204
  %v9229 = vpack.c.b16 %v9207, %v9206
  %v9230 = vpack.c.b16 %v9209, %v9208
  %v9231 = vpack.c.b16 %v9211, %v9210
  %v9232 = vpack.c.b16 %v9213, %v9212
  %v9233 = vpack.c.b16 %v9215, %v9214
  %v9234 = vpack.c.b16 %v9217, %v9216
  %v9235 = vpack.c.b16 %v9219, %v9218
  %9252 = vmatpush.bf16.msra.mxu0 %v9227
  %9253 = vmatpush.bf16.msra.mxu0 %v9226
  %9254 = vmatpush.bf16.msra.mxu0 %v9225
  %9255 = vmatpush.bf16.msra.mxu0 %v9224
  %9256 = vmatpush.bf16.msra.mxu0 %v9223
  %9257 = vmatpush.bf16.msra.mxu0 %v9222
  %9258 = vmatpush.bf16.msra.mxu0 %v9221
  %9259 = vmatpush.bf16.msra.mxu0 %v9220
  %9260 = vmatmul.bf16.gmra.mxu0 %v9118
  %v9261 = vpop.f32.mrf.mxu0
  %v9262 = vadd.f32 %v9154, %v9261
  %v9263 = vpop.f32.mrf.mxu0
  %9264 = vdwg.mxu0
  %9265 = vmatpush.bf16.msra.mxu0 %v9235
  %9266 = vmatpush.bf16.msra.mxu0 %v9234
  %9267 = vmatpush.bf16.msra.mxu0 %v9233
  %9268 = vmatpush.bf16.msra.mxu0 %v9232
  %9269 = vmatpush.bf16.msra.mxu0 %v9231
  %9270 = vmatpush.bf16.msra.mxu0 %v9230
  %9271 = vmatpush.bf16.msra.mxu0 %v9229
  %9272 = vmatpush.bf16.msra.mxu0 %v9228
  %9273 = vmatmul.bf16.gmra.mxu0 %v9119
  %v9274 = vpop.f32.mrf.mxu0
  %v9275 = vadd.f32 %v9262, %v9274
  %v9276 = vpop.f32.mrf.mxu0
  %9277 = vdwg.mxu0
  %v9279 = vrot.slane %v9275, 1
  %v9280 = vperm.slane %v9275, 0
  %v9281 = vperm.slane %v9279, 0
  %v9284 = vadd.f32 %v9072, %v9280
  %v9285 = vadd.f32 %v9073, %v9280
  %v9286 = vadd.f32 %v9074, %v9280
  %v9287 = vadd.f32 %v9075, %v9280
  %v9288 = vadd.f32 %v9076, %v9280
  %v9289 = vadd.f32 %v9077, %v9280
  %v9290 = vadd.f32 %v9078, %v9280
  %v9291 = vadd.f32 %v9079, %v9280
  %v9292 = vadd.f32 %v9080, %v9281
  %v9293 = vadd.f32 %v9081, %v9281
  %v9294 = vadd.f32 %v9082, %v9281
  %v9295 = vadd.f32 %v9083, %v9281
  %v9296 = vadd.f32 %v9084, %v9281
  %v9297 = vadd.f32 %v9085, %v9281
  %v9298 = vadd.f32 %v9086, %v9281
  %v9299 = vadd.f32 %v9087, %v9281
  %9300 = vst.msk [vmem:[%s18] sm:$0xff] %vm1179, %v9284
  %9301 = vst.msk [vmem:[%s18 + $0x8] sm:$0xff] %vm1179, %v9285
  %9302 = vst.msk [vmem:[%s18 + $0x10] sm:$0xff] %vm1179, %v9286
  %9303 = vst.msk [vmem:[%s18 + $0x18] sm:$0xff] %vm1179, %v9287
  %9304 = vst.msk [vmem:[%s18 + $0x20] sm:$0xff] %vm1179, %v9288
  %9305 = vst.msk [vmem:[%s18 + $0x28] sm:$0xff] %vm1179, %v9289
  %9306 = vst.msk [vmem:[%s18 + $0x30] sm:$0xff] %vm1179, %v9290
  %9307 = vst.msk [vmem:[%s18 + $0x38] sm:$0xff] %vm1179, %v9291
  %9308 = vst.msk [vmem:[%s18 + $0x40] sm:$0xff] %vm1179, %v9292
  %9309 = vst.msk [vmem:[%s18 + $0x48] sm:$0xff] %vm1179, %v9293
  %9310 = vst.msk [vmem:[%s18 + $0x50] sm:$0xff] %vm1179, %v9294
  %9311 = vst.msk [vmem:[%s18 + $0x58] sm:$0xff] %vm1179, %v9295
  %9312 = vst.msk [vmem:[%s18 + $0x60] sm:$0xff] %vm1179, %v9296
  %9313 = vst.msk [vmem:[%s18 + $0x68] sm:$0xff] %vm1179, %v9297
  %9314 = vst.msk [vmem:[%s18 + $0x70] sm:$0xff] %vm1179, %v9298
  %9315 = vst.msk [vmem:[%s18 + $0x78] sm:$0xff] %vm1179, %v9299
  // Predicated region
  $region74: #{tpu_custom_call.1} parent=0 // pred_check
    _
  $region75: #{tpu_custom_call.1} parent=0 // pred_check_branch
    %9317 = sbr.rel (0) target = $region77
  $region76: #{tpu_custom_call.1} parent=0 // pred_region
    _
  $region77: #{tpu_custom_call.1} parent=0 // pred_fallthru
    _
  // Predicated region
  $region78: #{tpu_custom_call.1} parent=0 // pred_check
    _
  $region79: #{tpu_custom_call.1} parent=0 // pred_check_branch
    %9319 = sbr.rel (0) target = $region81
  $region80: #{tpu_custom_call.1} parent=0 // pred_region
    _
  $region81: #{tpu_custom_call.1} parent=0 // pred_fallthru
    _

</llo_original>
